<compile_context>
chip_gen: v7x
topology: tpu7x:2x2x1
jax: 0.10.0
libtpu: 0.0.40
codegen_flags: <defaults>
</compile_context>

<pallas_src>
import math
import functools

import jax
import jax.numpy as jnp
from jax.experimental import pallas as pl
from jax.experimental.pallas import tpu as pltpu

# ---- model hyper-parameters (small, TPU-tile friendly) ----
D_IN = 16            # d_in
DIM_T = 128          # dim_t (512 in the original default; 128 keeps the demo small)
D_OUT_PAD = 128      # lane-dense padded output width (>= D_IN, multiple of 128)
MAX_POSITIONS = 10000.0
MAX_TILE_B = 1024    # cap keeps footprint < v5e's 16 MiB scoped-VMEM default


def _silu(v):
    # x * sigmoid(x) == x * (0.5 * tanh(0.5 * x) + 0.5): one EUP op instead of
    # exp + reciprocal; runs in v.dtype (bf16 on v6e/v7x, f32 on v5e).
    return v * (0.5 * jnp.tanh(0.5 * v) + 0.5)


def mlp_diffusion_kernel(
    x_ref, noise_ref, freqs_ref, phase_ref,
    w_te1_ref, b_te1_ref, w_te2_ref, b_te2_ref,
    w_proj_ref, b_proj_ref,
    w1_ref, b1_ref, w2_ref, b2_ref, w3_ref, b3_ref, w4_ref, b4_ref,
    out_ref,
    *, act_dtype,
):
    f32 = jnp.float32
    bf16 = jnp.bfloat16

    def layer(h, w_ref, b_ref, activate):
        # bf16 MXU inputs, f32 accumulation, f32 bias add.
        y = jnp.dot(h.astype(bf16), w_ref[...], preferred_element_type=f32) + b_ref[...]
        if activate:
            return _silu(y.astype(act_dtype))   # elementwise chain in act_dtype
        return y                                 # keep f32 for residual / output add

    # ---- PositionalEmbedding(dim_t) + flip, fused ----
    # freqs_ref = half-width frequency vector tiled twice; phase = [0]*half + [pi/2]*half
    # => emb = [sin(outer), cos(outer)] == cat([cos, sin]).reshape(B,2,half).flip(1).reshape(B,dim_t)
    emb = jnp.sin(noise_ref[...] * freqs_ref[...] + phase_ref[...])          # (TB, DIM_T) f32

    # ---- time_embed: Linear -> SiLU -> Linear ----
    h = layer(emb, w_te1_ref, b_te1_ref, activate=True)
    emb_t = layer(h, w_te2_ref, b_te2_ref, activate=False)                   # (TB, DIM_T) f32

    # ---- x = proj(x) + emb ----
    xh = jnp.dot(x_ref[...].astype(bf16), w_proj_ref[...], preferred_element_type=f32)
    xh = (xh + b_proj_ref[...] + emb_t).astype(act_dtype)                    # (TB, DIM_T)

    # ---- mlp: Lin(2t) SiLU Lin(2t) SiLU Lin(t) SiLU Lin(d_in, padded to 128 lanes) ----
    h = layer(xh, w1_ref, b1_ref, activate=True)
    h = layer(h, w2_ref, b2_ref, activate=True)
    h = layer(h, w3_ref, b3_ref, activate=True)
    out = layer(h, w4_ref, b4_ref, activate=False)                           # (TB, 128) f32

    out_ref[...] = out.astype(out_ref.dtype)      # lane-dense, bf16 store (half writeback)


def _const_spec(shape):
    # Whole array, same block every grid step -> stays resident in VMEM.
    return pl.BlockSpec(shape, lambda i: (0, 0))


def _pick_tile_b(batch, max_tile=MAX_TILE_B):
    # Biggest tile <= max_tile that still gives >= 2 grid steps (v7x has 2 TCs),
    # rounded up to a sublane multiple of 8.
    half = (batch + 1) // 2
    tile = ((half + 7) // 8) * 8
    return max(8, min(max_tile, tile))


def _default_act_dtype():
    # v5e (and older) have no bf16 VPU/EUP -> keep the elementwise chain in f32 there.
    try:
        kind = jax.devices()[0].device_kind.lower()
    except Exception:
        return jnp.bfloat16
    if any(tag in kind for tag in ("v2", "v3", "v4", "v5")):
        return jnp.float32
    return jnp.bfloat16


@functools.partial(jax.jit, static_argnames=("tile_b", "act_dtype"))
def _forward_impl(x, noise_labels, params, *, tile_b, act_dtype):
    b, d_in = x.shape
    assert d_in == D_IN

    pad = (-b) % tile_b
    xp = jnp.pad(x.astype(jnp.float32), ((0, pad), (0, 0)))
    noise2d = jnp.pad(noise_labels.astype(jnp.float32), ((0, pad),)).reshape(-1, 1)
    bp = b + pad

    # Host-side fused positional-embedding constants (1, DIM_T).
    half = DIM_T // 2
    base = (1.0 / MAX_POSITIONS) ** (jnp.arange(half, dtype=jnp.float32) / half)
    freqs_full = jnp.concatenate([base, base]).reshape(1, DIM_T)
    phase = jnp.concatenate(
        [jnp.zeros((half,), jnp.float32),
         jnp.full((half,), math.pi / 2.0, jnp.float32)]).reshape(1, DIM_T)

    args = (xp, noise2d, freqs_full, phase) + tuple(params)

    in_specs = [
        pl.BlockSpec((tile_b, D_IN), lambda i: (i, 0)),   # x: tiled over batch
        pl.BlockSpec((tile_b, 1), lambda i: (i, 0)),      # noise: tiled over batch
    ] + [_const_spec(a.shape) for a in args[2:]]          # freqs/phase/weights: resident

    out = pl.pallas_call(
        functools.partial(mlp_diffusion_kernel, act_dtype=act_dtype),
        grid=(bp // tile_b,),
        out_shape=jax.ShapeDtypeStruct((bp, D_OUT_PAD), jnp.bfloat16),
        in_specs=in_specs,
        out_specs=pl.BlockSpec((tile_b, D_OUT_PAD), lambda i: (i, 0)),
        compiler_params=pltpu.CompilerParams(
            dimension_semantics=("parallel",)),           # shard batch grid across TCs (v7x)
    )(*args)

    return out[:b, :D_IN].astype(jnp.float32)


def mlp_diffusion_forward(x, noise_labels, params):
    """x: (B, d_in) f32, noise_labels: (B,) f32. Returns (B, d_in) f32."""
    tile_b = _pick_tile_b(x.shape[0])
    act_dtype = _default_act_dtype()
    return _forward_impl(x, noise_labels, params, tile_b=tile_b, act_dtype=act_dtype)


def make_params(key):
    """Weights as (in, out) bf16; biases as (1, out) f32. mlp[6] padded to D_OUT_PAD lanes."""
    def linear(k, d_in, d_out, pad_out=None):
        k1, k2 = jax.random.split(k)
        bound = 1.0 / math.sqrt(d_in)
        w = jax.random.uniform(k1, (d_in, d_out), jnp.float32, -bound, bound)
        b = jax.random.uniform(k2, (1, d_out), jnp.float32, -bound, bound)
        if pad_out is not None and pad_out > d_out:
            w = jnp.pad(w, ((0, 0), (0, pad_out - d_out)))
            b = jnp.pad(b, ((0, 0), (0, pad_out - d_out)))
        return w.astype(jnp.bfloat16), b

    keys = jax.random.split(key, 7)
    w_te1, b_te1 = linear(keys[0], DIM_T, DIM_T)               # time_embed[0]
    w_te2, b_te2 = linear(keys[1], DIM_T, DIM_T)               # time_embed[2]
    w_proj, b_proj = linear(keys[2], D_IN, DIM_T)              # proj
    w1, b1 = linear(keys[3], DIM_T, 2 * DIM_T)                 # mlp[0]
    w2, b2 = linear(keys[4], 2 * DIM_T, 2 * DIM_T)             # mlp[2]
    w3, b3 = linear(keys[5], 2 * DIM_T, DIM_T)                 # mlp[4]
    w4, b4 = linear(keys[6], DIM_T, D_IN, pad_out=D_OUT_PAD)   # mlp[6] (lane-padded)
    return (w_te1, b_te1, w_te2, b_te2, w_proj, b_proj,
            w1, b1, w2, b2, w3, b3, w4, b4)


def reference_forward(x, noise_labels, params, *, act_dtype=jnp.bfloat16,
                      match_kernel_precision=True):
    """Faithful PyTorch-semantics reference (cos/sin + flip). Optionally mirrors the
    kernel's mixed-precision policy (bf16 dot inputs, f32 accum, act_dtype SiLU, bf16 out)."""
    (w_te1, b_te1, w_te2, b_te2, w_proj, b_proj,
     w1, b1, w2, b2, w3, b3, w4, b4) = params

    if match_kernel_precision:
        def dot(a, w):
            return jnp.dot(a.astype(jnp.bfloat16), w, preferred_element_type=jnp.float32)

        def silu(v):
            v = v.astype(act_dtype)
            return v * (0.5 * jnp.tanh(0.5 * v) + 0.5)
    else:
        def dot(a, w):
            return jnp.dot(a.astype(jnp.float32), w.astype(jnp.float32),
                           preferred_element_type=jnp.float32)

        silu = jax.nn.silu

    half = DIM_T // 2
    freqs = (1.0 / MAX_POSITIONS) ** (jnp.arange(half, dtype=jnp.float32) / half)
    outer = noise_labels.astype(jnp.float32)[:, None] * freqs[None, :]
    emb = jnp.concatenate([jnp.cos(outer), jnp.sin(outer)], axis=1)
    emb = jnp.flip(emb.reshape(emb.shape[0], 2, -1), axis=1).reshape(emb.shape[0], -1)
    emb = dot(silu(dot(emb, w_te1) + b_te1), w_te2) + b_te2
    h = dot(x, w_proj) + b_proj + emb
    h = silu(dot(h, w1) + b1)
    h = silu(dot(h, w2) + b2)
    h = silu(dot(h, w3) + b3)
    out = (dot(h, w4) + b4)[:, :D_IN]
    if match_kernel_precision:
        out = out.astype(jnp.bfloat16).astype(jnp.float32)   # mirror bf16 output store
    return out


if __name__ == "__main__":
    key = jax.random.PRNGKey(0)
    kx, kn, kp = jax.random.split(key, 3)

    BATCH = 512  # -> tile_b = 256, two grid steps (both v7x TensorCores active)
    x = jax.random.normal(kx, (BATCH, D_IN), jnp.float32)
    noise_labels = jax.random.uniform(kn, (BATCH,), jnp.float32, 0.0, 5.0)
    params = make_params(kp)

    out = jax.block_until_ready(mlp_diffusion_forward(x, noise_labels, params))
    assert out.shape == (BATCH, D_IN)

    # Tight check vs a reference that mirrors the kernel's mixed-precision policy.
    act_dtype = _default_act_dtype()
    ref = reference_forward(x, noise_labels, params, act_dtype=act_dtype,
                            match_kernel_precision=True)
    max_err = float(jnp.max(jnp.abs(out - ref)))
    assert jnp.allclose(out, ref, atol=1e-2, rtol=1e-2), \
        f"mismatch vs matched-precision reference (max abs err {max_err})"

    # Loose sanity check vs a full-f32 reference (bf16-rounded weights only).
    ref32 = reference_forward(x, noise_labels, params, match_kernel_precision=False)
    assert jnp.allclose(out, ref32, atol=2e-1, rtol=2e-1), "mismatch vs f32 reference"

    print("KERNEL_OK")
</pallas_src>

<mosaic_0001>
module attributes {stable_mosaic.version = 11 : i64} {
  func.func @mlp_diffusion_kernel(%arg0: i32, %arg1: memref<256x16xf32, #tpu.memory_space<vmem>>, %arg2: memref<256x1xf32, #tpu.memory_space<vmem>>, %arg3: memref<1x128xf32, #tpu.memory_space<vmem>>, %arg4: memref<1x128xf32, #tpu.memory_space<vmem>>, %arg5: memref<128x128xbf16, #tpu.memory_space<vmem>>, %arg6: memref<1x128xf32, #tpu.memory_space<vmem>>, %arg7: memref<128x128xbf16, #tpu.memory_space<vmem>>, %arg8: memref<1x128xf32, #tpu.memory_space<vmem>>, %arg9: memref<16x128xbf16, #tpu.memory_space<vmem>>, %arg10: memref<1x128xf32, #tpu.memory_space<vmem>>, %arg11: memref<128x256xbf16, #tpu.memory_space<vmem>>, %arg12: memref<1x256xf32, #tpu.memory_space<vmem>>, %arg13: memref<256x256xbf16, #tpu.memory_space<vmem>>, %arg14: memref<1x256xf32, #tpu.memory_space<vmem>>, %arg15: memref<256x128xbf16, #tpu.memory_space<vmem>>, %arg16: memref<1x128xf32, #tpu.memory_space<vmem>>, %arg17: memref<128x128xbf16, #tpu.memory_space<vmem>>, %arg18: memref<1x128xf32, #tpu.memory_space<vmem>>, %arg19: memref<256x128xbf16, #tpu.memory_space<vmem>>) attributes {dimension_semantics = [#tpu.dimension_semantics<parallel>], iteration_bounds = array<i64: 2>, scalar_prefetch = 0 : i64, scratch_operands = 0 : i64, tpu.core_type = #tpu.core_type<tc>, window_params = [{transform_indices = @transform_0, window_bounds = array<i64: 256, 16>}, {transform_indices = @transform_1, window_bounds = array<i64: 256, 1>}, {pipeline_mode = #tpu.pipeline_mode<synchronous>, transform_indices = @transform_2, window_bounds = array<i64: 1, 128>}, {pipeline_mode = #tpu.pipeline_mode<synchronous>, transform_indices = @transform_3, window_bounds = array<i64: 1, 128>}, {pipeline_mode = #tpu.pipeline_mode<synchronous>, transform_indices = @transform_4, window_bounds = array<i64: 128, 128>}, {pipeline_mode = #tpu.pipeline_mode<synchronous>, transform_indices = @transform_5, window_bounds = array<i64: 1, 128>}, {pipeline_mode = #tpu.pipeline_mode<synchronous>, transform_indices = @transform_6, window_bounds = array<i64: 128, 128>}, {pipeline_mode = #tpu.pipeline_mode<synchronous>, transform_indices = @transform_7, window_bounds = array<i64: 1, 128>}, {pipeline_mode = #tpu.pipeline_mode<synchronous>, transform_indices = @transform_8, window_bounds = array<i64: 16, 128>}, {pipeline_mode = #tpu.pipeline_mode<synchronous>, transform_indices = @transform_9, window_bounds = array<i64: 1, 128>}, {pipeline_mode = #tpu.pipeline_mode<synchronous>, transform_indices = @transform_10, window_bounds = array<i64: 128, 256>}, {pipeline_mode = #tpu.pipeline_mode<synchronous>, transform_indices = @transform_11, window_bounds = array<i64: 1, 256>}, {pipeline_mode = #tpu.pipeline_mode<synchronous>, transform_indices = @transform_12, window_bounds = array<i64: 256, 256>}, {pipeline_mode = #tpu.pipeline_mode<synchronous>, transform_indices = @transform_13, window_bounds = array<i64: 1, 256>}, {pipeline_mode = #tpu.pipeline_mode<synchronous>, transform_indices = @transform_14, window_bounds = array<i64: 256, 128>}, {pipeline_mode = #tpu.pipeline_mode<synchronous>, transform_indices = @transform_15, window_bounds = array<i64: 1, 128>}, {pipeline_mode = #tpu.pipeline_mode<synchronous>, transform_indices = @transform_16, window_bounds = array<i64: 128, 128>}, {pipeline_mode = #tpu.pipeline_mode<synchronous>, transform_indices = @transform_17, window_bounds = array<i64: 1, 128>}, {transform_indices = @transform_18, window_bounds = array<i64: 256, 128>}]} {
    %c0 = arith.constant 0 : index
    %c0_0 = arith.constant 0 : index
    %0 = vector.load %arg2[%c0, %c0_0] : memref<256x1xf32, #tpu.memory_space<vmem>>, vector<256x1xf32>
    %c0_1 = arith.constant 0 : index
    %c0_2 = arith.constant 0 : index
    %1 = vector.load %arg3[%c0_1, %c0_2] : memref<1x128xf32, #tpu.memory_space<vmem>>, vector<1x128xf32>
    %2 = vector.broadcast %0 : vector<256x1xf32> to vector<256x128xf32>
    %3 = vector.broadcast %1 : vector<1x128xf32> to vector<256x128xf32>
    %4 = arith.mulf %2, %3 : vector<256x128xf32>
    %c0_3 = arith.constant 0 : index
    %c0_4 = arith.constant 0 : index
    %5 = vector.load %arg4[%c0_3, %c0_4] : memref<1x128xf32, #tpu.memory_space<vmem>>, vector<1x128xf32>
    %6 = vector.broadcast %5 : vector<1x128xf32> to vector<256x128xf32>
    %7 = arith.addf %4, %6 : vector<256x128xf32>
    %8 = math.sin %7 : vector<256x128xf32>
    %9 = arith.truncf %8 : vector<256x128xf32> to vector<256x128xbf16>
    %c0_5 = arith.constant 0 : index
    %c0_6 = arith.constant 0 : index
    %10 = vector.load %arg5[%c0_5, %c0_6] : memref<128x128xbf16, #tpu.memory_space<vmem>>, vector<128x128xbf16>
    %cst = arith.constant dense<0.000000e+00> : vector<256x128xf32>
    %11 = tpu.matmul %9, %10, %cst {dimension_numbers = #tpu.dot_dimension_numbers<[1], [0], [0], [1], [0, 0, 1, 1], [], []>} : vector<256x128xbf16>, vector<128x128xbf16>, vector<256x128xf32> -> vector<256x128xf32>
    %c0_7 = arith.constant 0 : index
    %c0_8 = arith.constant 0 : index
    %12 = vector.load %arg6[%c0_7, %c0_8] : memref<1x128xf32, #tpu.memory_space<vmem>>, vector<1x128xf32>
    %13 = vector.broadcast %12 : vector<1x128xf32> to vector<256x128xf32>
    %14 = arith.addf %11, %13 : vector<256x128xf32>
    %15 = arith.truncf %14 : vector<256x128xf32> to vector<256x128xbf16>
    %cst_9 = arith.constant 5.000000e-01 : bf16
    %16 = vector.broadcast %cst_9 : bf16 to vector<256x128xbf16>
    %17 = arith.mulf %16, %15 : vector<256x128xbf16>
    %18 = math.tanh %17 : vector<256x128xbf16>
    %cst_10 = arith.constant 5.000000e-01 : bf16
    %19 = vector.broadcast %cst_10 : bf16 to vector<256x128xbf16>
    %20 = arith.mulf %19, %18 : vector<256x128xbf16>
    %cst_11 = arith.constant 5.000000e-01 : bf16
    %21 = vector.broadcast %cst_11 : bf16 to vector<256x128xbf16>
    %22 = arith.addf %20, %21 : vector<256x128xbf16>
    %23 = arith.mulf %15, %22 : vector<256x128xbf16>
    %c0_12 = arith.constant 0 : index
    %c0_13 = arith.constant 0 : index
    %24 = vector.load %arg7[%c0_12, %c0_13] : memref<128x128xbf16, #tpu.memory_space<vmem>>, vector<128x128xbf16>
    %cst_14 = arith.constant dense<0.000000e+00> : vector<256x128xf32>
    %25 = tpu.matmul %23, %24, %cst_14 {dimension_numbers = #tpu.dot_dimension_numbers<[1], [0], [0], [1], [0, 0, 1, 1], [], []>} : vector<256x128xbf16>, vector<128x128xbf16>, vector<256x128xf32> -> vector<256x128xf32>
    %c0_15 = arith.constant 0 : index
    %c0_16 = arith.constant 0 : index
    %26 = vector.load %arg8[%c0_15, %c0_16] : memref<1x128xf32, #tpu.memory_space<vmem>>, vector<1x128xf32>
    %27 = vector.broadcast %26 : vector<1x128xf32> to vector<256x128xf32>
    %28 = arith.addf %25, %27 : vector<256x128xf32>
    %c0_17 = arith.constant 0 : index
    %c0_18 = arith.constant 0 : index
    %29 = vector.load %arg1[%c0_17, %c0_18] : memref<256x16xf32, #tpu.memory_space<vmem>>, vector<256x16xf32>
    %30 = arith.truncf %29 : vector<256x16xf32> to vector<256x16xbf16>
    %c0_19 = arith.constant 0 : index
    %c0_20 = arith.constant 0 : index
    %31 = vector.load %arg9[%c0_19, %c0_20] : memref<16x128xbf16, #tpu.memory_space<vmem>>, vector<16x128xbf16>
    %cst_21 = arith.constant dense<0.000000e+00> : vector<256x128xf32>
    %32 = tpu.matmul %30, %31, %cst_21 {dimension_numbers = #tpu.dot_dimension_numbers<[1], [0], [0], [1], [0, 0, 1, 1], [], []>} : vector<256x16xbf16>, vector<16x128xbf16>, vector<256x128xf32> -> vector<256x128xf32>
    %c0_22 = arith.constant 0 : index
    %c0_23 = arith.constant 0 : index
    %33 = vector.load %arg10[%c0_22, %c0_23] : memref<1x128xf32, #tpu.memory_space<vmem>>, vector<1x128xf32>
    %34 = vector.broadcast %33 : vector<1x128xf32> to vector<256x128xf32>
    %35 = arith.addf %32, %34 : vector<256x128xf32>
    %36 = arith.addf %35, %28 : vector<256x128xf32>
    %37 = arith.truncf %36 : vector<256x128xf32> to vector<256x128xbf16>
    %c0_24 = arith.constant 0 : index
    %c0_25 = arith.constant 0 : index
    %38 = vector.load %arg11[%c0_24, %c0_25] : memref<128x256xbf16, #tpu.memory_space<vmem>>, vector<128x256xbf16>
    %cst_26 = arith.constant dense<0.000000e+00> : vector<256x256xf32>
    %39 = tpu.matmul %37, %38, %cst_26 {dimension_numbers = #tpu.dot_dimension_numbers<[1], [0], [0], [1], [0, 0, 1, 1], [], []>} : vector<256x128xbf16>, vector<128x256xbf16>, vector<256x256xf32> -> vector<256x256xf32>
    %c0_27 = arith.constant 0 : index
    %c0_28 = arith.constant 0 : index
    %40 = vector.load %arg12[%c0_27, %c0_28] : memref<1x256xf32, #tpu.memory_space<vmem>>, vector<1x256xf32>
    %41 = vector.broadcast %40 : vector<1x256xf32> to vector<256x256xf32>
    %42 = arith.addf %39, %41 : vector<256x256xf32>
    %43 = arith.truncf %42 : vector<256x256xf32> to vector<256x256xbf16>
    %cst_29 = arith.constant 5.000000e-01 : bf16
    %44 = vector.broadcast %cst_29 : bf16 to vector<256x256xbf16>
    %45 = arith.mulf %44, %43 : vector<256x256xbf16>
    %46 = math.tanh %45 : vector<256x256xbf16>
    %cst_30 = arith.constant 5.000000e-01 : bf16
    %47 = vector.broadcast %cst_30 : bf16 to vector<256x256xbf16>
    %48 = arith.mulf %47, %46 : vector<256x256xbf16>
    %cst_31 = arith.constant 5.000000e-01 : bf16
    %49 = vector.broadcast %cst_31 : bf16 to vector<256x256xbf16>
    %50 = arith.addf %48, %49 : vector<256x256xbf16>
    %51 = arith.mulf %43, %50 : vector<256x256xbf16>
    %c0_32 = arith.constant 0 : index
    %c0_33 = arith.constant 0 : index
    %52 = vector.load %arg13[%c0_32, %c0_33] : memref<256x256xbf16, #tpu.memory_space<vmem>>, vector<256x256xbf16>
    %cst_34 = arith.constant dense<0.000000e+00> : vector<256x256xf32>
    %53 = tpu.matmul %51, %52, %cst_34 {dimension_numbers = #tpu.dot_dimension_numbers<[1], [0], [0], [1], [0, 0, 1, 1], [], []>} : vector<256x256xbf16>, vector<256x256xbf16>, vector<256x256xf32> -> vector<256x256xf32>
    %c0_35 = arith.constant 0 : index
    %c0_36 = arith.constant 0 : index
    %54 = vector.load %arg14[%c0_35, %c0_36] : memref<1x256xf32, #tpu.memory_space<vmem>>, vector<1x256xf32>
    %55 = vector.broadcast %54 : vector<1x256xf32> to vector<256x256xf32>
    %56 = arith.addf %53, %55 : vector<256x256xf32>
    %57 = arith.truncf %56 : vector<256x256xf32> to vector<256x256xbf16>
    %cst_37 = arith.constant 5.000000e-01 : bf16
    %58 = vector.broadcast %cst_37 : bf16 to vector<256x256xbf16>
    %59 = arith.mulf %58, %57 : vector<256x256xbf16>
    %60 = math.tanh %59 : vector<256x256xbf16>
    %cst_38 = arith.constant 5.000000e-01 : bf16
    %61 = vector.broadcast %cst_38 : bf16 to vector<256x256xbf16>
    %62 = arith.mulf %61, %60 : vector<256x256xbf16>
    %cst_39 = arith.constant 5.000000e-01 : bf16
    %63 = vector.broadcast %cst_39 : bf16 to vector<256x256xbf16>
    %64 = arith.addf %62, %63 : vector<256x256xbf16>
    %65 = arith.mulf %57, %64 : vector<256x256xbf16>
    %c0_40 = arith.constant 0 : index
    %c0_41 = arith.constant 0 : index
    %66 = vector.load %arg15[%c0_40, %c0_41] : memref<256x128xbf16, #tpu.memory_space<vmem>>, vector<256x128xbf16>
    %cst_42 = arith.constant dense<0.000000e+00> : vector<256x128xf32>
    %67 = tpu.matmul %65, %66, %cst_42 {dimension_numbers = #tpu.dot_dimension_numbers<[1], [0], [0], [1], [0, 0, 1, 1], [], []>} : vector<256x256xbf16>, vector<256x128xbf16>, vector<256x128xf32> -> vector<256x128xf32>
    %c0_43 = arith.constant 0 : index
    %c0_44 = arith.constant 0 : index
    %68 = vector.load %arg16[%c0_43, %c0_44] : memref<1x128xf32, #tpu.memory_space<vmem>>, vector<1x128xf32>
    %69 = vector.broadcast %68 : vector<1x128xf32> to vector<256x128xf32>
    %70 = arith.addf %67, %69 : vector<256x128xf32>
    %71 = arith.truncf %70 : vector<256x128xf32> to vector<256x128xbf16>
    %cst_45 = arith.constant 5.000000e-01 : bf16
    %72 = vector.broadcast %cst_45 : bf16 to vector<256x128xbf16>
    %73 = arith.mulf %72, %71 : vector<256x128xbf16>
    %74 = math.tanh %73 : vector<256x128xbf16>
    %cst_46 = arith.constant 5.000000e-01 : bf16
    %75 = vector.broadcast %cst_46 : bf16 to vector<256x128xbf16>
    %76 = arith.mulf %75, %74 : vector<256x128xbf16>
    %cst_47 = arith.constant 5.000000e-01 : bf16
    %77 = vector.broadcast %cst_47 : bf16 to vector<256x128xbf16>
    %78 = arith.addf %76, %77 : vector<256x128xbf16>
    %79 = arith.mulf %71, %78 : vector<256x128xbf16>
    %c0_48 = arith.constant 0 : index
    %c0_49 = arith.constant 0 : index
    %80 = vector.load %arg17[%c0_48, %c0_49] : memref<128x128xbf16, #tpu.memory_space<vmem>>, vector<128x128xbf16>
    %cst_50 = arith.constant dense<0.000000e+00> : vector<256x128xf32>
    %81 = tpu.matmul %79, %80, %cst_50 {dimension_numbers = #tpu.dot_dimension_numbers<[1], [0], [0], [1], [0, 0, 1, 1], [], []>} : vector<256x128xbf16>, vector<128x128xbf16>, vector<256x128xf32> -> vector<256x128xf32>
    %c0_51 = arith.constant 0 : index
    %c0_52 = arith.constant 0 : index
    %82 = vector.load %arg18[%c0_51, %c0_52] : memref<1x128xf32, #tpu.memory_space<vmem>>, vector<1x128xf32>
    %83 = vector.broadcast %82 : vector<1x128xf32> to vector<256x128xf32>
    %84 = arith.addf %81, %83 : vector<256x128xf32>
    %85 = arith.truncf %84 : vector<256x128xf32> to vector<256x128xbf16>
    %c0_53 = arith.constant 0 : index
    %c0_54 = arith.constant 0 : index
    %86 = vector.load %arg19[%c0_53, %c0_54] : memref<256x128xbf16, #tpu.memory_space<vmem>>, vector<256x128xbf16>
    tpu.vector_store %arg19[%c0_53, %c0_54], %85 {strides = array<i32>} : memref<256x128xbf16, #tpu.memory_space<vmem>>, vector<256x128xbf16>,
    return
  }
  func.func @transform_0(%arg0: i32) -> (i32, i32) {
    %c0_i32 = arith.constant 0 : i32
    %c0_i32_0 = arith.constant 0 : i32
    return %arg0, %c0_i32 : i32, i32
  }
  func.func @transform_1(%arg0: i32) -> (i32, i32) {
    %c0_i32 = arith.constant 0 : i32
    %c0_i32_0 = arith.constant 0 : i32
    return %arg0, %c0_i32 : i32, i32
  }
  func.func @transform_2(%arg0: i32) -> (i32, i32) {
    %c0_i32 = arith.constant 0 : i32
    %c0_i32_0 = arith.constant 0 : i32
    %c0_i32_1 = arith.constant 0 : i32
    return %c0_i32, %c0_i32_0 : i32, i32
  }
  func.func @transform_3(%arg0: i32) -> (i32, i32) {
    %c0_i32 = arith.constant 0 : i32
    %c0_i32_0 = arith.constant 0 : i32
    %c0_i32_1 = arith.constant 0 : i32
    return %c0_i32, %c0_i32_0 : i32, i32
  }
  func.func @transform_4(%arg0: i32) -> (i32, i32) {
    %c0_i32 = arith.constant 0 : i32
    %c0_i32_0 = arith.constant 0 : i32
    %c0_i32_1 = arith.constant 0 : i32
    return %c0_i32, %c0_i32_0 : i32, i32
  }
  func.func @transform_5(%arg0: i32) -> (i32, i32) {
    %c0_i32 = arith.constant 0 : i32
    %c0_i32_0 = arith.constant 0 : i32
    %c0_i32_1 = arith.constant 0 : i32
    return %c0_i32, %c0_i32_0 : i32, i32
  }
  func.func @transform_6(%arg0: i32) -> (i32, i32) {
    %c0_i32 = arith.constant 0 : i32
    %c0_i32_0 = arith.constant 0 : i32
    %c0_i32_1 = arith.constant 0 : i32
    return %c0_i32, %c0_i32_0 : i32, i32
  }
  func.func @transform_7(%arg0: i32) -> (i32, i32) {
    %c0_i32 = arith.constant 0 : i32
    %c0_i32_0 = arith.constant 0 : i32
    %c0_i32_1 = arith.constant 0 : i32
    return %c0_i32, %c0_i32_0 : i32, i32
  }
  func.func @transform_8(%arg0: i32) -> (i32, i32) {
    %c0_i32 = arith.constant 0 : i32
    %c0_i32_0 = arith.constant 0 : i32
    %c0_i32_1 = arith.constant 0 : i32
    return %c0_i32, %c0_i32_0 : i32, i32
  }
  func.func @transform_9(%arg0: i32) -> (i32, i32) {
    %c0_i32 = arith.constant 0 : i32
    %c0_i32_0 = arith.constant 0 : i32
    %c0_i32_1 = arith.constant 0 : i32
    return %c0_i32, %c0_i32_0 : i32, i32
  }
  func.func @transform_10(%arg0: i32) -> (i32, i32) {
    %c0_i32 = arith.constant 0 : i32
    %c0_i32_0 = arith.constant 0 : i32
    %c0_i32_1 = arith.constant 0 : i32
    return %c0_i32, %c0_i32_0 : i32, i32
  }
  func.func @transform_11(%arg0: i32) -> (i32, i32) {
    %c0_i32 = arith.constant 0 : i32
    %c0_i32_0 = arith.constant 0 : i32
    %c0_i32_1 = arith.constant 0 : i32
    return %c0_i32, %c0_i32_0 : i32, i32
  }
  func.func @transform_12(%arg0: i32) -> (i32, i32) {
    %c0_i32 = arith.constant 0 : i32
    %c0_i32_0 = arith.constant 0 : i32
    %c0_i32_1 = arith.constant 0 : i32
    return %c0_i32, %c0_i32_0 : i32, i32
  }
  func.func @transform_13(%arg0: i32) -> (i32, i32) {
    %c0_i32 = arith.constant 0 : i32
    %c0_i32_0 = arith.constant 0 : i32
    %c0_i32_1 = arith.constant 0 : i32
    return %c0_i32, %c0_i32_0 : i32, i32
  }
  func.func @transform_14(%arg0: i32) -> (i32, i32) {
    %c0_i32 = arith.constant 0 : i32
    %c0_i32_0 = arith.constant 0 : i32
    %c0_i32_1 = arith.constant 0 : i32
    return %c0_i32, %c0_i32_0 : i32, i32
  }
  func.func @transform_15(%arg0: i32) -> (i32, i32) {
    %c0_i32 = arith.constant 0 : i32
    %c0_i32_0 = arith.constant 0 : i32
    %c0_i32_1 = arith.constant 0 : i32
    return %c0_i32, %c0_i32_0 : i32, i32
  }
  func.func @transform_16(%arg0: i32) -> (i32, i32) {
    %c0_i32 = arith.constant 0 : i32
    %c0_i32_0 = arith.constant 0 : i32
    %c0_i32_1 = arith.constant 0 : i32
    return %c0_i32, %c0_i32_0 : i32, i32
  }
  func.func @transform_17(%arg0: i32) -> (i32, i32) {
    %c0_i32 = arith.constant 0 : i32
    %c0_i32_0 = arith.constant 0 : i32
    %c0_i32_1 = arith.constant 0 : i32
    return %c0_i32, %c0_i32_0 : i32, i32
  }
  func.func @transform_18(%arg0: i32) -> (i32, i32) {
    %c0_i32 = arith.constant 0 : i32
    %c0_i32_0 = arith.constant 0 : i32
    return %arg0, %c0_i32 : i32, i32
  }
}

</mosaic_0001>

<llo_original>
// kernel: _forward_impl.1
$region0: #{_forward_impl.1}
  #allocation0 [shape = 'u32[]', space=smem, size = 0x4, offset = 0x4, fixed_abs, tag = 'smem constant byte address 0x4 - core index']
  #allocation1 [shape = 'u32[144,128]{1,0:T(1,128)}', space=vmem, size = 0x12000, scoped, tag = 'internal scratch']
  %s0 = inlined_call_operand.vmem [shape: f32[512,16], index: 0, kind: input, shape index: {}]
  %s1 = inlined_call_operand.vmem [shape: f32[512,1], index: 1, kind: input, shape index: {}]
  %s2 = inlined_call_operand.vmem [shape: f32[1,128], index: 2, kind: input, shape index: {}]
  %s3 = inlined_call_operand.vmem [shape: f32[1,128], index: 3, kind: input, shape index: {}]
  %s4 = inlined_call_operand.vmem [shape: bf16[128,128], index: 4, kind: input, shape index: {}]
  %s5 = inlined_call_operand.vmem [shape: f32[1,128], index: 5, kind: input, shape index: {}]
  %s6 = inlined_call_operand.vmem [shape: bf16[128,128], index: 6, kind: input, shape index: {}]
  %s7 = inlined_call_operand.vmem [shape: f32[1,128], index: 7, kind: input, shape index: {}]
  %s8 = inlined_call_operand.vmem [shape: bf16[16,128], index: 8, kind: input, shape index: {}]
  %s9 = inlined_call_operand.vmem [shape: f32[1,128], index: 9, kind: input, shape index: {}]
  %s10 = inlined_call_operand.vmem [shape: bf16[128,256], index: 10, kind: input, shape index: {}]
  %s11 = inlined_call_operand.vmem [shape: f32[1,256], index: 11, kind: input, shape index: {}]
  %s12 = inlined_call_operand.vmem [shape: bf16[256,256], index: 12, kind: input, shape index: {}]
  %s13 = inlined_call_operand.vmem [shape: f32[1,256], index: 13, kind: input, shape index: {}]
  %s14 = inlined_call_operand.vmem [shape: bf16[256,128], index: 14, kind: input, shape index: {}]
  %s15 = inlined_call_operand.vmem [shape: f32[1,128], index: 15, kind: input, shape index: {}]
  %s16 = inlined_call_operand.vmem [shape: bf16[128,128], index: 16, kind: input, shape index: {}]
  %s17 = inlined_call_operand.vmem [shape: f32[1,128], index: 17, kind: input, shape index: {}]
  %s18 = inlined_call_operand.vmem [shape: bf16[512,128], index: 18, kind: output, shape index: {}]
  %s19 = sld [smem:[#allocation0]]
  $region105: #{_forward_impl.1} parent=0
    _
  %s21 = ssub.s32 1, %s19
  %s22 = scalar_select 0, %s21, %s19
  loop: start=0, step=1, limit=4
  $region2: #{_forward_impl.1} parent=0 // loop_pre_header
    _
  $region3: #{_forward_impl.1} parent=0 // loop_header
    %s24 = sphi 0, %s28
    %p25 = scmp.ge.s32.totalorder %s24, 4
    %s34 = sphi 0, %s36
    %s37 = sphi 0, %s34
    %s38 = sphi 0, %s37
    %s54 = sphi 0, %s38
    %s60 = sphi 0, %s62
    %s63 = sphi 0, %s60
    %s64 = sphi 0, %s63
    %s80 = sphi 0, %s64
    %s84 = sphi 0, %s84
    %s86 = sphi 0, %s84
    %s87 = sphi 0, %s86
    %s101 = sphi 0, %s87
    %s105 = sphi 0, %s105
    %s107 = sphi 0, %s105
    %s108 = sphi 0, %s107
    %s122 = sphi 0, %s108
    %s126 = sphi 0, %s126
    %s128 = sphi 0, %s126
    %s129 = sphi 0, %s128
    %s143 = sphi 0, %s129
    %s147 = sphi 0, %s147
    %s149 = sphi 0, %s147
    %s150 = sphi 0, %s149
    %s164 = sphi 0, %s150
    %s168 = sphi 0, %s168
    %s170 = sphi 0, %s168
    %s171 = sphi 0, %s170
    %s185 = sphi 0, %s171
    %s189 = sphi 0, %s189
    %s191 = sphi 0, %s189
    %s192 = sphi 0, %s191
    %s206 = sphi 0, %s192
    %s210 = sphi 0, %s210
    %s212 = sphi 0, %s210
    %s213 = sphi 0, %s212
    %s227 = sphi 0, %s213
    %s231 = sphi 0, %s231
    %s233 = sphi 0, %s231
    %s234 = sphi 0, %s233
    %s248 = sphi 0, %s234
    %s252 = sphi 0, %s252
    %s254 = sphi 0, %s252
    %s255 = sphi 0, %s254
    %s269 = sphi 0, %s255
    %s273 = sphi 0, %s273
    %s275 = sphi 0, %s273
    %s276 = sphi 0, %s275
    %s290 = sphi 0, %s276
    %s294 = sphi 0, %s294
    %s296 = sphi 0, %s294
    %s297 = sphi 0, %s296
    %s311 = sphi 0, %s297
    %s315 = sphi 0, %s315
    %s317 = sphi 0, %s315
    %s318 = sphi 0, %s317
    %s332 = sphi 0, %s318
    %s336 = sphi 0, %s336
    %s338 = sphi 0, %s336
    %s339 = sphi 0, %s338
    %s353 = sphi 0, %s339
    %s357 = sphi 0, %s357
    %s359 = sphi 0, %s357
    %s360 = sphi 0, %s359
    %s374 = sphi 0, %s360
    %s378 = sphi 0, %s378
    %s380 = sphi 0, %s378
    %s381 = sphi 0, %s380
    %s395 = sphi 0, %s381
    %s399 = sphi 0, %s399
    %s401 = sphi 0, %s399
    %s402 = sphi 0, %s401
    %s416 = sphi 0, %s402
    %s422 = sphi 0, %s424
    %s425 = sphi 0, %s422
    %s426 = sphi 0, %s425
    %s442 = sphi 0, %s426
  $region4: #{_forward_impl.1} parent=0 // loop_header_branch
    %27 = sbr.rel (%p25) target = $region8
  $region5: #{_forward_impl.1} parent=0 // loop_body
    %s29 = ssub.s32 %s24, 1
    %s30 = ssub.s32 %s24, 2
    %s31 = sadd.s32 %s24, 1
    %s32 = ssub.s32 %s24, %s31
    %p33 = scmp.eq.s32.totalorder %s32, 0
    %s35 = sadd.s32 %s34, 1
    %s36 = scalar_select %p33, %s34, %s35
    %p39 = pneg %p33
    %p40 = scmp.eq.s32.totalorder %s24, 1
    %p41 = por %p39, %p40
    %p42 = scmp.ne.s32.totalorder %s34, %s37
    %p43 = scmp.eq.s32.totalorder %s24, 0
    %p44 = por %p42, %p43
    %p45 = scmp.ne.s32.totalorder %s34, %s37
    %p46 = scmp.eq.s32.totalorder %s29, 1
    %p47 = por %p45, %p46
    %p48 = scmp.ne.s32.totalorder %s37, %s38
    %p49 = scmp.eq.s32.totalorder %s29, 0
    %p50 = por %p48, %p49
    %p51 = scmp.ne.s32.totalorder %s37, %s38
    %p52 = scmp.eq.s32.totalorder %s30, 1
    %p53 = por %p51, %p52
    %p55 = scmp.ne.s32.totalorder %s38, %s54
    %p56 = scmp.eq.s32.totalorder %s30, 0
    %p57 = por %p55, %p56
    %s58 = ssub.s32 %s24, %s31
    %p59 = scmp.eq.s32.totalorder %s58, 0
    %s61 = sadd.s32 %s60, 1
    %s62 = scalar_select %p59, %s60, %s61
    %p65 = pneg %p59
    %p66 = scmp.eq.s32.totalorder %s24, 1
    %p67 = por %p65, %p66
    %p68 = scmp.ne.s32.totalorder %s60, %s63
    %p69 = scmp.eq.s32.totalorder %s24, 0
    %p70 = por %p68, %p69
    %p71 = scmp.ne.s32.totalorder %s60, %s63
    %p72 = scmp.eq.s32.totalorder %s29, 1
    %p73 = por %p71, %p72
    %p74 = scmp.ne.s32.totalorder %s63, %s64
    %p75 = scmp.eq.s32.totalorder %s29, 0
    %p76 = por %p74, %p75
    %p77 = scmp.ne.s32.totalorder %s63, %s64
    %p78 = scmp.eq.s32.totalorder %s30, 1
    %p79 = por %p77, %p78
    %p81 = scmp.ne.s32.totalorder %s64, %s80
    %p82 = scmp.eq.s32.totalorder %s30, 0
    %p83 = por %p81, %p82
    %s85 = sadd.s32 %s84, 1
    %p88 = scmp.eq.s32.totalorder %s24, 1
    %p89 = scmp.ne.s32.totalorder %s84, %s86
    %p90 = scmp.eq.s32.totalorder %s24, 0
    %p91 = por %p89, %p90
    %p92 = scmp.ne.s32.totalorder %s84, %s86
    %p93 = scmp.eq.s32.totalorder %s29, 1
    %p94 = por %p92, %p93
    %p95 = scmp.ne.s32.totalorder %s86, %s87
    %p96 = scmp.eq.s32.totalorder %s29, 0
    %p97 = por %p95, %p96
    %p98 = scmp.ne.s32.totalorder %s86, %s87
    %p99 = scmp.eq.s32.totalorder %s30, 1
    %p100 = por %p98, %p99
    %p102 = scmp.ne.s32.totalorder %s87, %s101
    %p103 = scmp.eq.s32.totalorder %s30, 0
    %p104 = por %p102, %p103
    %s106 = sadd.s32 %s105, 1
    %p109 = scmp.eq.s32.totalorder %s24, 1
    %p110 = scmp.ne.s32.totalorder %s105, %s107
    %p111 = scmp.eq.s32.totalorder %s24, 0
    %p112 = por %p110, %p111
    %p113 = scmp.ne.s32.totalorder %s105, %s107
    %p114 = scmp.eq.s32.totalorder %s29, 1
    %p115 = por %p113, %p114
    %p116 = scmp.ne.s32.totalorder %s107, %s108
    %p117 = scmp.eq.s32.totalorder %s29, 0
    %p118 = por %p116, %p117
    %p119 = scmp.ne.s32.totalorder %s107, %s108
    %p120 = scmp.eq.s32.totalorder %s30, 1
    %p121 = por %p119, %p120
    %p123 = scmp.ne.s32.totalorder %s108, %s122
    %p124 = scmp.eq.s32.totalorder %s30, 0
    %p125 = por %p123, %p124
    %s127 = sadd.s32 %s126, 1
    %p130 = scmp.eq.s32.totalorder %s24, 1
    %p131 = scmp.ne.s32.totalorder %s126, %s128
    %p132 = scmp.eq.s32.totalorder %s24, 0
    %p133 = por %p131, %p132
    %p134 = scmp.ne.s32.totalorder %s126, %s128
    %p135 = scmp.eq.s32.totalorder %s29, 1
    %p136 = por %p134, %p135
    %p137 = scmp.ne.s32.totalorder %s128, %s129
    %p138 = scmp.eq.s32.totalorder %s29, 0
    %p139 = por %p137, %p138
    %p140 = scmp.ne.s32.totalorder %s128, %s129
    %p141 = scmp.eq.s32.totalorder %s30, 1
    %p142 = por %p140, %p141
    %p144 = scmp.ne.s32.totalorder %s129, %s143
    %p145 = scmp.eq.s32.totalorder %s30, 0
    %p146 = por %p144, %p145
    %s148 = sadd.s32 %s147, 1
    %p151 = scmp.eq.s32.totalorder %s24, 1
    %p152 = scmp.ne.s32.totalorder %s147, %s149
    %p153 = scmp.eq.s32.totalorder %s24, 0
    %p154 = por %p152, %p153
    %p155 = scmp.ne.s32.totalorder %s147, %s149
    %p156 = scmp.eq.s32.totalorder %s29, 1
    %p157 = por %p155, %p156
    %p158 = scmp.ne.s32.totalorder %s149, %s150
    %p159 = scmp.eq.s32.totalorder %s29, 0
    %p160 = por %p158, %p159
    %p161 = scmp.ne.s32.totalorder %s149, %s150
    %p162 = scmp.eq.s32.totalorder %s30, 1
    %p163 = por %p161, %p162
    %p165 = scmp.ne.s32.totalorder %s150, %s164
    %p166 = scmp.eq.s32.totalorder %s30, 0
    %p167 = por %p165, %p166
    %s169 = sadd.s32 %s168, 1
    %p172 = scmp.eq.s32.totalorder %s24, 1
    %p173 = scmp.ne.s32.totalorder %s168, %s170
    %p174 = scmp.eq.s32.totalorder %s24, 0
    %p175 = por %p173, %p174
    %p176 = scmp.ne.s32.totalorder %s168, %s170
    %p177 = scmp.eq.s32.totalorder %s29, 1
    %p178 = por %p176, %p177
    %p179 = scmp.ne.s32.totalorder %s170, %s171
    %p180 = scmp.eq.s32.totalorder %s29, 0
    %p181 = por %p179, %p180
    %p182 = scmp.ne.s32.totalorder %s170, %s171
    %p183 = scmp.eq.s32.totalorder %s30, 1
    %p184 = por %p182, %p183
    %p186 = scmp.ne.s32.totalorder %s171, %s185
    %p187 = scmp.eq.s32.totalorder %s30, 0
    %p188 = por %p186, %p187
    %s190 = sadd.s32 %s189, 1
    %p193 = scmp.eq.s32.totalorder %s24, 1
    %p194 = scmp.ne.s32.totalorder %s189, %s191
    %p195 = scmp.eq.s32.totalorder %s24, 0
    %p196 = por %p194, %p195
    %p197 = scmp.ne.s32.totalorder %s189, %s191
    %p198 = scmp.eq.s32.totalorder %s29, 1
    %p199 = por %p197, %p198
    %p200 = scmp.ne.s32.totalorder %s191, %s192
    %p201 = scmp.eq.s32.totalorder %s29, 0
    %p202 = por %p200, %p201
    %p203 = scmp.ne.s32.totalorder %s191, %s192
    %p204 = scmp.eq.s32.totalorder %s30, 1
    %p205 = por %p203, %p204
    %p207 = scmp.ne.s32.totalorder %s192, %s206
    %p208 = scmp.eq.s32.totalorder %s30, 0
    %p209 = por %p207, %p208
    %s211 = sadd.s32 %s210, 1
    %p214 = scmp.eq.s32.totalorder %s24, 1
    %p215 = scmp.ne.s32.totalorder %s210, %s212
    %p216 = scmp.eq.s32.totalorder %s24, 0
    %p217 = por %p215, %p216
    %p218 = scmp.ne.s32.totalorder %s210, %s212
    %p219 = scmp.eq.s32.totalorder %s29, 1
    %p220 = por %p218, %p219
    %p221 = scmp.ne.s32.totalorder %s212, %s213
    %p222 = scmp.eq.s32.totalorder %s29, 0
    %p223 = por %p221, %p222
    %p224 = scmp.ne.s32.totalorder %s212, %s213
    %p225 = scmp.eq.s32.totalorder %s30, 1
    %p226 = por %p224, %p225
    %p228 = scmp.ne.s32.totalorder %s213, %s227
    %p229 = scmp.eq.s32.totalorder %s30, 0
    %p230 = por %p228, %p229
    %s232 = sadd.s32 %s231, 1
    %p235 = scmp.eq.s32.totalorder %s24, 1
    %p236 = scmp.ne.s32.totalorder %s231, %s233
    %p237 = scmp.eq.s32.totalorder %s24, 0
    %p238 = por %p236, %p237
    %p239 = scmp.ne.s32.totalorder %s231, %s233
    %p240 = scmp.eq.s32.totalorder %s29, 1
    %p241 = por %p239, %p240
    %p242 = scmp.ne.s32.totalorder %s233, %s234
    %p243 = scmp.eq.s32.totalorder %s29, 0
    %p244 = por %p242, %p243
    %p245 = scmp.ne.s32.totalorder %s233, %s234
    %p246 = scmp.eq.s32.totalorder %s30, 1
    %p247 = por %p245, %p246
    %p249 = scmp.ne.s32.totalorder %s234, %s248
    %p250 = scmp.eq.s32.totalorder %s30, 0
    %p251 = por %p249, %p250
    %s253 = sadd.s32 %s252, 1
    %p256 = scmp.eq.s32.totalorder %s24, 1
    %p257 = scmp.ne.s32.totalorder %s252, %s254
    %p258 = scmp.eq.s32.totalorder %s24, 0
    %p259 = por %p257, %p258
    %p260 = scmp.ne.s32.totalorder %s252, %s254
    %p261 = scmp.eq.s32.totalorder %s29, 1
    %p262 = por %p260, %p261
    %p263 = scmp.ne.s32.totalorder %s254, %s255
    %p264 = scmp.eq.s32.totalorder %s29, 0
    %p265 = por %p263, %p264
    %p266 = scmp.ne.s32.totalorder %s254, %s255
    %p267 = scmp.eq.s32.totalorder %s30, 1
    %p268 = por %p266, %p267
    %p270 = scmp.ne.s32.totalorder %s255, %s269
    %p271 = scmp.eq.s32.totalorder %s30, 0
    %p272 = por %p270, %p271
    %s274 = sadd.s32 %s273, 1
    %p277 = scmp.eq.s32.totalorder %s24, 1
    %p278 = scmp.ne.s32.totalorder %s273, %s275
    %p279 = scmp.eq.s32.totalorder %s24, 0
    %p280 = por %p278, %p279
    %p281 = scmp.ne.s32.totalorder %s273, %s275
    %p282 = scmp.eq.s32.totalorder %s29, 1
    %p283 = por %p281, %p282
    %p284 = scmp.ne.s32.totalorder %s275, %s276
    %p285 = scmp.eq.s32.totalorder %s29, 0
    %p286 = por %p284, %p285
    %p287 = scmp.ne.s32.totalorder %s275, %s276
    %p288 = scmp.eq.s32.totalorder %s30, 1
    %p289 = por %p287, %p288
    %p291 = scmp.ne.s32.totalorder %s276, %s290
    %p292 = scmp.eq.s32.totalorder %s30, 0
    %p293 = por %p291, %p292
    %s295 = sadd.s32 %s294, 1
    %p298 = scmp.eq.s32.totalorder %s24, 1
    %p299 = scmp.ne.s32.totalorder %s294, %s296
    %p300 = scmp.eq.s32.totalorder %s24, 0
    %p301 = por %p299, %p300
    %p302 = scmp.ne.s32.totalorder %s294, %s296
    %p303 = scmp.eq.s32.totalorder %s29, 1
    %p304 = por %p302, %p303
    %p305 = scmp.ne.s32.totalorder %s296, %s297
    %p306 = scmp.eq.s32.totalorder %s29, 0
    %p307 = por %p305, %p306
    %p308 = scmp.ne.s32.totalorder %s296, %s297
    %p309 = scmp.eq.s32.totalorder %s30, 1
    %p310 = por %p308, %p309
    %p312 = scmp.ne.s32.totalorder %s297, %s311
    %p313 = scmp.eq.s32.totalorder %s30, 0
    %p314 = por %p312, %p313
    %s316 = sadd.s32 %s315, 1
    %p319 = scmp.eq.s32.totalorder %s24, 1
    %p320 = scmp.ne.s32.totalorder %s315, %s317
    %p321 = scmp.eq.s32.totalorder %s24, 0
    %p322 = por %p320, %p321
    %p323 = scmp.ne.s32.totalorder %s315, %s317
    %p324 = scmp.eq.s32.totalorder %s29, 1
    %p325 = por %p323, %p324
    %p326 = scmp.ne.s32.totalorder %s317, %s318
    %p327 = scmp.eq.s32.totalorder %s29, 0
    %p328 = por %p326, %p327
    %p329 = scmp.ne.s32.totalorder %s317, %s318
    %p330 = scmp.eq.s32.totalorder %s30, 1
    %p331 = por %p329, %p330
    %p333 = scmp.ne.s32.totalorder %s318, %s332
    %p334 = scmp.eq.s32.totalorder %s30, 0
    %p335 = por %p333, %p334
    %s337 = sadd.s32 %s336, 1
    %p340 = scmp.eq.s32.totalorder %s24, 1
    %p341 = scmp.ne.s32.totalorder %s336, %s338
    %p342 = scmp.eq.s32.totalorder %s24, 0
    %p343 = por %p341, %p342
    %p344 = scmp.ne.s32.totalorder %s336, %s338
    %p345 = scmp.eq.s32.totalorder %s29, 1
    %p346 = por %p344, %p345
    %p347 = scmp.ne.s32.totalorder %s338, %s339
    %p348 = scmp.eq.s32.totalorder %s29, 0
    %p349 = por %p347, %p348
    %p350 = scmp.ne.s32.totalorder %s338, %s339
    %p351 = scmp.eq.s32.totalorder %s30, 1
    %p352 = por %p350, %p351
    %p354 = scmp.ne.s32.totalorder %s339, %s353
    %p355 = scmp.eq.s32.totalorder %s30, 0
    %p356 = por %p354, %p355
    %s358 = sadd.s32 %s357, 1
    %p361 = scmp.eq.s32.totalorder %s24, 1
    %p362 = scmp.ne.s32.totalorder %s357, %s359
    %p363 = scmp.eq.s32.totalorder %s24, 0
    %p364 = por %p362, %p363
    %p365 = scmp.ne.s32.totalorder %s357, %s359
    %p366 = scmp.eq.s32.totalorder %s29, 1
    %p367 = por %p365, %p366
    %p368 = scmp.ne.s32.totalorder %s359, %s360
    %p369 = scmp.eq.s32.totalorder %s29, 0
    %p370 = por %p368, %p369
    %p371 = scmp.ne.s32.totalorder %s359, %s360
    %p372 = scmp.eq.s32.totalorder %s30, 1
    %p373 = por %p371, %p372
    %p375 = scmp.ne.s32.totalorder %s360, %s374
    %p376 = scmp.eq.s32.totalorder %s30, 0
    %p377 = por %p375, %p376
    %s379 = sadd.s32 %s378, 1
    %p382 = scmp.eq.s32.totalorder %s24, 1
    %p383 = scmp.ne.s32.totalorder %s378, %s380
    %p384 = scmp.eq.s32.totalorder %s24, 0
    %p385 = por %p383, %p384
    %p386 = scmp.ne.s32.totalorder %s378, %s380
    %p387 = scmp.eq.s32.totalorder %s29, 1
    %p388 = por %p386, %p387
    %p389 = scmp.ne.s32.totalorder %s380, %s381
    %p390 = scmp.eq.s32.totalorder %s29, 0
    %p391 = por %p389, %p390
    %p392 = scmp.ne.s32.totalorder %s380, %s381
    %p393 = scmp.eq.s32.totalorder %s30, 1
    %p394 = por %p392, %p393
    %p396 = scmp.ne.s32.totalorder %s381, %s395
    %p397 = scmp.eq.s32.totalorder %s30, 0
    %p398 = por %p396, %p397
    %s400 = sadd.s32 %s399, 1
    %p403 = scmp.eq.s32.totalorder %s24, 1
    %p404 = scmp.ne.s32.totalorder %s399, %s401
    %p405 = scmp.eq.s32.totalorder %s24, 0
    %p406 = por %p404, %p405
    %p407 = scmp.ne.s32.totalorder %s399, %s401
    %p408 = scmp.eq.s32.totalorder %s29, 1
    %p409 = por %p407, %p408
    %p410 = scmp.ne.s32.totalorder %s401, %s402
    %p411 = scmp.eq.s32.totalorder %s29, 0
    %p412 = por %p410, %p411
    %p413 = scmp.ne.s32.totalorder %s401, %s402
    %p414 = scmp.eq.s32.totalorder %s30, 1
    %p415 = por %p413, %p414
    %p417 = scmp.ne.s32.totalorder %s402, %s416
    %p418 = scmp.eq.s32.totalorder %s30, 0
    %p419 = por %p417, %p418
    %s420 = ssub.s32 %s24, %s31
    %p421 = scmp.eq.s32.totalorder %s420, 0
    %s423 = sadd.s32 %s422, 1
    %s424 = scalar_select %p421, %s422, %s423
    %p427 = pneg %p421
    %p428 = scmp.eq.s32.totalorder %s24, 1
    %p429 = por %p427, %p428
    %p430 = scmp.ne.s32.totalorder %s422, %s425
    %p431 = scmp.eq.s32.totalorder %s24, 0
    %p432 = por %p430, %p431
    %p433 = scmp.ne.s32.totalorder %s422, %s425
    %p434 = scmp.eq.s32.totalorder %s29, 1
    %p435 = por %p433, %p434
    %p436 = scmp.ne.s32.totalorder %s425, %s426
    %p437 = scmp.eq.s32.totalorder %s29, 0
    %p438 = por %p436, %p437
    %p439 = scmp.ne.s32.totalorder %s425, %s426
    %p440 = scmp.eq.s32.totalorder %s30, 1
    %p441 = por %p439, %p440
    %p443 = scmp.ne.s32.totalorder %s426, %s442
    %p444 = scmp.eq.s32.totalorder %s30, 0
    %p445 = por %p443, %p444
    %p446 = scmp.le.s32.totalorder 1, %s24
    %p447 = scmp.lt.s32.totalorder %s24, 3
    %p448 = pnand %p446, %p447
    %p449 = pneg %p448
    // Predicated region
    $region9: #{_forward_impl.1} parent=5 // pred_check
      _
    $region10: #{_forward_impl.1} parent=5 // pred_check_branch
      %451 = sbr.rel (%p448) target = $region12
    $region11: #{_forward_impl.1} parent=5 // pred_region
      %s452 = ssub.s32 %s24, 1
      // Predicated region
      $region13: #{_forward_impl.1} parent=11 // pred_check
        %p453 = pneg %p97
      $region14: #{_forward_impl.1} parent=11 // pred_check_branch
        %455 = sbr.rel (%p453) target = $region16
      $region15: #{_forward_impl.1} parent=11 // pred_region
        _
      $region16: #{_forward_impl.1} parent=11 // pred_fallthru
        _
      // Predicated region
      $region17: #{_forward_impl.1} parent=11 // pred_check
        %p456 = pneg %p118
      $region18: #{_forward_impl.1} parent=11 // pred_check_branch
        %458 = sbr.rel (%p456) target = $region20
      $region19: #{_forward_impl.1} parent=11 // pred_region
        _
      $region20: #{_forward_impl.1} parent=11 // pred_fallthru
        _
      // Predicated region
      $region21: #{_forward_impl.1} parent=11 // pred_check
        %p459 = pneg %p139
      $region22: #{_forward_impl.1} parent=11 // pred_check_branch
        %461 = sbr.rel (%p459) target = $region24
      $region23: #{_forward_impl.1} parent=11 // pred_region
        _
      $region24: #{_forward_impl.1} parent=11 // pred_fallthru
        _
      // Predicated region
      $region25: #{_forward_impl.1} parent=11 // pred_check
        %p462 = pneg %p160
      $region26: #{_forward_impl.1} parent=11 // pred_check_branch
        %464 = sbr.rel (%p462) target = $region28
      $region27: #{_forward_impl.1} parent=11 // pred_region
        _
      $region28: #{_forward_impl.1} parent=11 // pred_fallthru
        _
      // Predicated region
      $region29: #{_forward_impl.1} parent=11 // pred_check
        %p465 = pneg %p181
      $region30: #{_forward_impl.1} parent=11 // pred_check_branch
        %467 = sbr.rel (%p465) target = $region32
      $region31: #{_forward_impl.1} parent=11 // pred_region
        _
      $region32: #{_forward_impl.1} parent=11 // pred_fallthru
        _
      // Predicated region
      $region33: #{_forward_impl.1} parent=11 // pred_check
        %p468 = pneg %p202
      $region34: #{_forward_impl.1} parent=11 // pred_check_branch
        %470 = sbr.rel (%p468) target = $region36
      $region35: #{_forward_impl.1} parent=11 // pred_region
        _
      $region36: #{_forward_impl.1} parent=11 // pred_fallthru
        _
      // Predicated region
      $region37: #{_forward_impl.1} parent=11 // pred_check
        %p471 = pneg %p223
      $region38: #{_forward_impl.1} parent=11 // pred_check_branch
        %473 = sbr.rel (%p471) target = $region40
      $region39: #{_forward_impl.1} parent=11 // pred_region
        _
      $region40: #{_forward_impl.1} parent=11 // pred_fallthru
        _
      // Predicated region
      $region41: #{_forward_impl.1} parent=11 // pred_check
        %p474 = pneg %p244
      $region42: #{_forward_impl.1} parent=11 // pred_check_branch
        %476 = sbr.rel (%p474) target = $region44
      $region43: #{_forward_impl.1} parent=11 // pred_region
        _
      $region44: #{_forward_impl.1} parent=11 // pred_fallthru
        _
      // Predicated region
      $region45: #{_forward_impl.1} parent=11 // pred_check
        %p477 = pneg %p265
      $region46: #{_forward_impl.1} parent=11 // pred_check_branch
        %479 = sbr.rel (%p477) target = $region48
      $region47: #{_forward_impl.1} parent=11 // pred_region
        _
      $region48: #{_forward_impl.1} parent=11 // pred_fallthru
        _
      // Predicated region
      $region49: #{_forward_impl.1} parent=11 // pred_check
        %p480 = pneg %p286
      $region50: #{_forward_impl.1} parent=11 // pred_check_branch
        %482 = sbr.rel (%p480) target = $region52
      $region51: #{_forward_impl.1} parent=11 // pred_region
        _
      $region52: #{_forward_impl.1} parent=11 // pred_fallthru
        _
      // Predicated region
      $region53: #{_forward_impl.1} parent=11 // pred_check
        %p483 = pneg %p307
      $region54: #{_forward_impl.1} parent=11 // pred_check_branch
        %485 = sbr.rel (%p483) target = $region56
      $region55: #{_forward_impl.1} parent=11 // pred_region
        _
      $region56: #{_forward_impl.1} parent=11 // pred_fallthru
        _
      // Predicated region
      $region57: #{_forward_impl.1} parent=11 // pred_check
        %p486 = pneg %p328
      $region58: #{_forward_impl.1} parent=11 // pred_check_branch
        %488 = sbr.rel (%p486) target = $region60
      $region59: #{_forward_impl.1} parent=11 // pred_region
        _
      $region60: #{_forward_impl.1} parent=11 // pred_fallthru
        _
      // Predicated region
      $region61: #{_forward_impl.1} parent=11 // pred_check
        %p489 = pneg %p349
      $region62: #{_forward_impl.1} parent=11 // pred_check_branch
        %491 = sbr.rel (%p489) target = $region64
      $region63: #{_forward_impl.1} parent=11 // pred_region
        _
      $region64: #{_forward_impl.1} parent=11 // pred_fallthru
        _
      // Predicated region
      $region65: #{_forward_impl.1} parent=11 // pred_check
        %p492 = pneg %p370
      $region66: #{_forward_impl.1} parent=11 // pred_check_branch
        %494 = sbr.rel (%p492) target = $region68
      $region67: #{_forward_impl.1} parent=11 // pred_region
        _
      $region68: #{_forward_impl.1} parent=11 // pred_fallthru
        _
      // Predicated region
      $region69: #{_forward_impl.1} parent=11 // pred_check
        %p495 = pneg %p391
      $region70: #{_forward_impl.1} parent=11 // pred_check_branch
        %497 = sbr.rel (%p495) target = $region72
      $region71: #{_forward_impl.1} parent=11 // pred_region
        _
      $region72: #{_forward_impl.1} parent=11 // pred_fallthru
        _
      // Predicated region
      $region73: #{_forward_impl.1} parent=11 // pred_check
        %p498 = pneg %p412
      $region74: #{_forward_impl.1} parent=11 // pred_check_branch
        %500 = sbr.rel (%p498) target = $region76
      $region75: #{_forward_impl.1} parent=11 // pred_region
        _
      $region76: #{_forward_impl.1} parent=11 // pred_fallthru
        _
    $region12: #{_forward_impl.1} parent=5 // pred_fallthru
      _
    %p501 = scmp.lt.s32.totalorder %s24, 2
    // Predicated region
    $region77: #{_forward_impl.1} parent=5 // pred_check
      %p502 = pneg %p501
    $region78: #{_forward_impl.1} parent=5 // pred_check_branch
      %504 = sbr.rel (%p502) target = $region80
    $region79: #{_forward_impl.1} parent=5 // pred_region
      // Predicated region
      $region81: #{_forward_impl.1} parent=79 // pred_check
        %p505 = pneg %p44
      $region82: #{_forward_impl.1} parent=79 // pred_check_branch
        %507 = sbr.rel (%p505) target = $region84
      $region83: #{_forward_impl.1} parent=79 // pred_region
        %s508 = smul.u32 32, %s24
        %p509 = scmp.lt.s32.totalorder %s508, 63
        %s510 = scalar_select %p509, %s508, 63
        %s511 = smul.addr %s510, 8
        %s512 = scalar_lea.vmem %s0, %s511
        %s513 = smul.u32 32, %s24
      $region84: #{_forward_impl.1} parent=79 // pred_fallthru
        _
      // Predicated region
      $region85: #{_forward_impl.1} parent=79 // pred_check
        %p514 = pneg %p70
      $region86: #{_forward_impl.1} parent=79 // pred_check_branch
        %516 = sbr.rel (%p514) target = $region88
      $region87: #{_forward_impl.1} parent=79 // pred_region
        %s517 = smul.u32 32, %s24
        %p518 = scmp.lt.s32.totalorder %s517, 63
        %s519 = scalar_select %p518, %s517, 63
        %s520 = smul.addr %s519, 8
        %s521 = scalar_lea.vmem %s1, %s520
        %s522 = smul.u32 32, %s24
      $region88: #{_forward_impl.1} parent=79 // pred_fallthru
        _
    $region80: #{_forward_impl.1} parent=5 // pred_fallthru
      _
    %p523 = scmp.le.s32.totalorder 1, %s24
    %p524 = scmp.lt.s32.totalorder %s24, 3
    %p525 = pnand %p523, %p524
    %p526 = pneg %p525
    // Predicated region
    $region89: #{_forward_impl.1} parent=5 // pred_check
      _
    $region90: #{_forward_impl.1} parent=5 // pred_check_branch
      %528 = sbr.rel (%p525) target = $region92
    $region91: #{_forward_impl.1} parent=5 // pred_region
      %s529 = ssub.s32 %s24, 1
      %s530 = smul.u32 32, %s29
      %p531 = scmp.lt.s32.totalorder %s530, 63
      %s532 = scalar_select %p531, %s530, 63
      %s533 = smul.addr %s532, 8
      %s534 = scalar_lea.vmem %s0, %s533
      %p535 = pneg %p50
      %p536 = pneg %p47
      %s537 = smul.u32 32, %s29
      %p538 = scmp.lt.s32.totalorder %s537, 63
      %s539 = scalar_select %p538, %s537, 63
      %s540 = smul.addr %s539, 8
      %s541 = scalar_lea.vmem %s1, %s540
      %p542 = pneg %p76
      %p543 = pneg %p73
      %p544 = pneg %p97
      %p545 = pneg %p94
      %p546 = pneg %p118
      %p547 = pneg %p115
      %p548 = pneg %p139
      %p549 = pneg %p136
      %p550 = pneg %p160
      %p551 = pneg %p157
      %p552 = pneg %p181
      %p553 = pneg %p178
      %p554 = pneg %p202
      %p555 = pneg %p199
      %p556 = pneg %p223
      %p557 = pneg %p220
      %p558 = pneg %p244
      %p559 = pneg %p241
      %p560 = pneg %p265
      %p561 = pneg %p262
      %p562 = pneg %p286
      %p563 = pneg %p283
      %p564 = pneg %p307
      %p565 = pneg %p304
      %p566 = pneg %p328
      %p567 = pneg %p325
      %p568 = pneg %p349
      %p569 = pneg %p346
      %p570 = pneg %p370
      %p571 = pneg %p367
      %p572 = pneg %p391
      %p573 = pneg %p388
      %p574 = pneg %p412
      %p575 = pneg %p409
      %p576 = pneg %p438
      %p577 = pneg %p435
      %s578 = smul.u32 32, %s29
      %p579 = scmp.lt.s32.totalorder %s578, 63
      %s580 = scalar_select %p579, %s578, 63
      %s581 = smul.addr %s580, 4
      %s582 = scalar_lea.vmem %s18, %s581
      %s583 = smul.u32 32, %s29
      %p584 = scmp.lt.s32.totalorder %s583, 63
      %s585 = scalar_select %p584, %s583, 63
      %s586 = smul.addr %s585, 8
      %s587 = scalar_lea.vmem %s0, %s586
      %s588 = smul.u32 32, %s29
      %s589 = smul.u32 32, %s29
      %p590 = scmp.lt.s32.totalorder %s589, 63
      %s591 = scalar_select %p590, %s589, 63
      %s592 = smul.addr %s591, 8
      %s593 = scalar_lea.vmem %s1, %s592
      %s594 = smul.u32 32, %s29
      %s595 = smul.u32 32, %s29
      %p596 = scmp.lt.s32.totalorder %s595, 63
      %s597 = scalar_select %p596, %s595, 63
      %s598 = smul.addr %s597, 4
      %s599 = scalar_lea.vmem %s18, %s598
      %s600 = smul.u32 32, %s29
      %v603 = vld [vmem:[%s593] sm:$0xff]
      %v604 = vld [vmem:[%s593 + $0x8] sm:$0xff]
      %v605 = vld [vmem:[%s593 + $0x10] sm:$0xff]
      %v606 = vld [vmem:[%s593 + $0x18] sm:$0xff]
      %v607 = vld [vmem:[%s593 + $0x20] sm:$0xff]
      %v608 = vld [vmem:[%s593 + $0x28] sm:$0xff]
      %v609 = vld [vmem:[%s593 + $0x30] sm:$0xff]
      %v610 = vld [vmem:[%s593 + $0x38] sm:$0xff]
      %v611 = vld [vmem:[%s593 + $0x40] sm:$0xff]
      %v612 = vld [vmem:[%s593 + $0x48] sm:$0xff]
      %v613 = vld [vmem:[%s593 + $0x50] sm:$0xff]
      %v614 = vld [vmem:[%s593 + $0x58] sm:$0xff]
      %v615 = vld [vmem:[%s593 + $0x60] sm:$0xff]
      %v616 = vld [vmem:[%s593 + $0x68] sm:$0xff]
      %v617 = vld [vmem:[%s593 + $0x70] sm:$0xff]
      %v618 = vld [vmem:[%s593 + $0x78] sm:$0xff]
      %v619 = vld [vmem:[%s593 + $0x80] sm:$0xff]
      %v620 = vld [vmem:[%s593 + $0x88] sm:$0xff]
      %v621 = vld [vmem:[%s593 + $0x90] sm:$0xff]
      %v622 = vld [vmem:[%s593 + $0x98] sm:$0xff]
      %v623 = vld [vmem:[%s593 + $0xa0] sm:$0xff]
      %v624 = vld [vmem:[%s593 + $0xa8] sm:$0xff]
      %v625 = vld [vmem:[%s593 + $0xb0] sm:$0xff]
      %v626 = vld [vmem:[%s593 + $0xb8] sm:$0xff]
      %v627 = vld [vmem:[%s593 + $0xc0] sm:$0xff]
      %v628 = vld [vmem:[%s593 + $0xc8] sm:$0xff]
      %v629 = vld [vmem:[%s593 + $0xd0] sm:$0xff]
      %v630 = vld [vmem:[%s593 + $0xd8] sm:$0xff]
      %v631 = vld [vmem:[%s593 + $0xe0] sm:$0xff]
      %v632 = vld [vmem:[%s593 + $0xe8] sm:$0xff]
      %v633 = vld [vmem:[%s593 + $0xf0] sm:$0xff]
      %v634 = vld [vmem:[%s593 + $0xf8] sm:$0xff]
      %v635 = vld [vmem:[%s2] sm:$0x1]
      %637 = vset.pattern.permute.xlu0 0
      %638 = vperm.xlu0 %637, %v603
      %v639 = vpop.permute.xlu0 %638
      %642 = vset.pattern.permute.xlu0 0
      %643 = vperm.xlu0 %642, %v604
      %v644 = vpop.permute.xlu0 %643
      %647 = vset.pattern.permute.xlu0 0
      %648 = vperm.xlu0 %647, %v605
      %v649 = vpop.permute.xlu0 %648
      %652 = vset.pattern.permute.xlu0 0
      %653 = vperm.xlu0 %652, %v606
      %v654 = vpop.permute.xlu0 %653
      %657 = vset.pattern.permute.xlu0 0
      %658 = vperm.xlu0 %657, %v607
      %v659 = vpop.permute.xlu0 %658
      %662 = vset.pattern.permute.xlu0 0
      %663 = vperm.xlu0 %662, %v608
      %v664 = vpop.permute.xlu0 %663
      %667 = vset.pattern.permute.xlu0 0
      %668 = vperm.xlu0 %667, %v609
      %v669 = vpop.permute.xlu0 %668
      %672 = vset.pattern.permute.xlu0 0
      %673 = vperm.xlu0 %672, %v610
      %v674 = vpop.permute.xlu0 %673
      %677 = vset.pattern.permute.xlu0 0
      %678 = vperm.xlu0 %677, %v611
      %v679 = vpop.permute.xlu0 %678
      %682 = vset.pattern.permute.xlu0 0
      %683 = vperm.xlu0 %682, %v612
      %v684 = vpop.permute.xlu0 %683
      %687 = vset.pattern.permute.xlu0 0
      %688 = vperm.xlu0 %687, %v613
      %v689 = vpop.permute.xlu0 %688
      %692 = vset.pattern.permute.xlu0 0
      %693 = vperm.xlu0 %692, %v614
      %v694 = vpop.permute.xlu0 %693
      %697 = vset.pattern.permute.xlu0 0
      %698 = vperm.xlu0 %697, %v615
      %v699 = vpop.permute.xlu0 %698
      %702 = vset.pattern.permute.xlu0 0
      %703 = vperm.xlu0 %702, %v616
      %v704 = vpop.permute.xlu0 %703
      %707 = vset.pattern.permute.xlu0 0
      %708 = vperm.xlu0 %707, %v617
      %v709 = vpop.permute.xlu0 %708
      %712 = vset.pattern.permute.xlu0 0
      %713 = vperm.xlu0 %712, %v618
      %v714 = vpop.permute.xlu0 %713
      %717 = vset.pattern.permute.xlu0 0
      %718 = vperm.xlu0 %717, %v619
      %v719 = vpop.permute.xlu0 %718
      %722 = vset.pattern.permute.xlu0 0
      %723 = vperm.xlu0 %722, %v620
      %v724 = vpop.permute.xlu0 %723
      %727 = vset.pattern.permute.xlu0 0
      %728 = vperm.xlu0 %727, %v621
      %v729 = vpop.permute.xlu0 %728
      %732 = vset.pattern.permute.xlu0 0
      %733 = vperm.xlu0 %732, %v622
      %v734 = vpop.permute.xlu0 %733
      %737 = vset.pattern.permute.xlu0 0
      %738 = vperm.xlu0 %737, %v623
      %v739 = vpop.permute.xlu0 %738
      %742 = vset.pattern.permute.xlu0 0
      %743 = vperm.xlu0 %742, %v624
      %v744 = vpop.permute.xlu0 %743
      %747 = vset.pattern.permute.xlu0 0
      %748 = vperm.xlu0 %747, %v625
      %v749 = vpop.permute.xlu0 %748
      %752 = vset.pattern.permute.xlu0 0
      %753 = vperm.xlu0 %752, %v626
      %v754 = vpop.permute.xlu0 %753
      %757 = vset.pattern.permute.xlu0 0
      %758 = vperm.xlu0 %757, %v627
      %v759 = vpop.permute.xlu0 %758
      %762 = vset.pattern.permute.xlu0 0
      %763 = vperm.xlu0 %762, %v628
      %v764 = vpop.permute.xlu0 %763
      %767 = vset.pattern.permute.xlu0 0
      %768 = vperm.xlu0 %767, %v629
      %v769 = vpop.permute.xlu0 %768
      %772 = vset.pattern.permute.xlu0 0
      %773 = vperm.xlu0 %772, %v630
      %v774 = vpop.permute.xlu0 %773
      %777 = vset.pattern.permute.xlu0 0
      %778 = vperm.xlu0 %777, %v631
      %v779 = vpop.permute.xlu0 %778
      %782 = vset.pattern.permute.xlu0 0
      %783 = vperm.xlu0 %782, %v632
      %v784 = vpop.permute.xlu0 %783
      %787 = vset.pattern.permute.xlu0 0
      %788 = vperm.xlu0 %787, %v633
      %v789 = vpop.permute.xlu0 %788
      %792 = vset.pattern.permute.xlu0 0
      %793 = vperm.xlu0 %792, %v634
      %v794 = vpop.permute.xlu0 %793
      %v797 = vlaneseq
      %v798 = vshrl.u32 %v797, 7
      %v799 = vsub.s32 0, %v798
      %v800 = vrot.slane %v635, %v799
      %v802 = vmul.f32 %v639, %v800
      %v803 = vmul.f32 %v644, %v800
      %v804 = vmul.f32 %v649, %v800
      %v805 = vmul.f32 %v654, %v800
      %v806 = vmul.f32 %v659, %v800
      %v807 = vmul.f32 %v664, %v800
      %v808 = vmul.f32 %v669, %v800
      %v809 = vmul.f32 %v674, %v800
      %v810 = vmul.f32 %v679, %v800
      %v811 = vmul.f32 %v684, %v800
      %v812 = vmul.f32 %v689, %v800
      %v813 = vmul.f32 %v694, %v800
      %v814 = vmul.f32 %v699, %v800
      %v815 = vmul.f32 %v704, %v800
      %v816 = vmul.f32 %v709, %v800
      %v817 = vmul.f32 %v714, %v800
      %v818 = vmul.f32 %v719, %v800
      %v819 = vmul.f32 %v724, %v800
      %v820 = vmul.f32 %v729, %v800
      %v821 = vmul.f32 %v734, %v800
      %v822 = vmul.f32 %v739, %v800
      %v823 = vmul.f32 %v744, %v800
      %v824 = vmul.f32 %v749, %v800
      %v825 = vmul.f32 %v754, %v800
      %v826 = vmul.f32 %v759, %v800
      %v827 = vmul.f32 %v764, %v800
      %v828 = vmul.f32 %v769, %v800
      %v829 = vmul.f32 %v774, %v800
      %v830 = vmul.f32 %v779, %v800
      %v831 = vmul.f32 %v784, %v800
      %v832 = vmul.f32 %v789, %v800
      %v833 = vmul.f32 %v794, %v800
      %v834 = vld [vmem:[%s3] sm:$0x1]
      %v836 = vlaneseq
      %v837 = vshrl.u32 %v836, 7
      %v838 = vsub.s32 0, %v837
      %v839 = vrot.slane %v834, %v838
      %v841 = vadd.f32 %v802, %v839
      %v842 = vadd.f32 %v803, %v839
      %v843 = vadd.f32 %v804, %v839
      %v844 = vadd.f32 %v805, %v839
      %v845 = vadd.f32 %v806, %v839
      %v846 = vadd.f32 %v807, %v839
      %v847 = vadd.f32 %v808, %v839
      %v848 = vadd.f32 %v809, %v839
      %v849 = vadd.f32 %v810, %v839
      %v850 = vadd.f32 %v811, %v839
      %v851 = vadd.f32 %v812, %v839
      %v852 = vadd.f32 %v813, %v839
      %v853 = vadd.f32 %v814, %v839
      %v854 = vadd.f32 %v815, %v839
      %v855 = vadd.f32 %v816, %v839
      %v856 = vadd.f32 %v817, %v839
      %v857 = vadd.f32 %v818, %v839
      %v858 = vadd.f32 %v819, %v839
      %v859 = vadd.f32 %v820, %v839
      %v860 = vadd.f32 %v821, %v839
      %v861 = vadd.f32 %v822, %v839
      %v862 = vadd.f32 %v823, %v839
      %v863 = vadd.f32 %v824, %v839
      %v864 = vadd.f32 %v825, %v839
      %v865 = vadd.f32 %v826, %v839
      %v866 = vadd.f32 %v827, %v839
      %v867 = vadd.f32 %v828, %v839
      %v868 = vadd.f32 %v829, %v839
      %v869 = vadd.f32 %v830, %v839
      %v870 = vadd.f32 %v831, %v839
      %v871 = vadd.f32 %v832, %v839
      %v872 = vadd.f32 %v833, %v839
      %v873 = vand.u32 2147483647, %v841
      %vm874 = vcmp.le.f32.partialorder %v873, 0.7853982
      %vm875 = vcmp.lt.s32.totalorder %v841, 0
      %v876 = vand.u32 %v841, 2139095040
      %v877 = vshrl.u32 %v876, 23
      %v878 = vsub.s32 %v877, 127
      %v879 = vand.u32 2147483647, %v841
      %v880 = vand.u32 %v879, 8388607
      %v881 = vor.u32 %v880, 8388608
      %v882 = vsub.s32 0, %v881
      %v883 = vadd.s32 %v878, 1
      %vm884 = vcmp.gt.s32.totalorder %v883, 0
      %v885 = vsel %vm884, %v883, 0
      %v886 = vshrl.u32 %v885, 5
      %v887 = vand.u32 %v885, 31
      %v888 = vsub.s32 32, %v887
      %v889 = vshrl.u32 683565275, %v888
      %v890 = vshll.u32 683565275, %v887
      %v891 = vshrl.u32 2475754826, %v888
      %v892 = vor.u32 %v890, %v891
      %v893 = vshll.u32 2475754826, %v887
      %v894 = vshrl.u32 2131351028, %v888
      %v895 = vor.u32 %v893, %v894
      %v896 = vshll.u32 2131351028, %v887
      %v897 = vshrl.u32 2102212464, %v888
      %v898 = vor.u32 %v896, %v897
      %v899 = vshll.u32 2102212464, %v887
      %v900 = vshrl.u32 920167782, %v888
      %v901 = vor.u32 %v899, %v900
      %v902 = vshll.u32 920167782, %v887
      %v903 = vshrl.u32 1326507024, %v888
      %v904 = vor.u32 %v902, %v903
      %vm905 = vcmp.lt.s32.totalorder %v886, 1
      %vm906 = vcmp.lt.s32.totalorder %v886, 2
      %vm907 = vcmp.lt.s32.totalorder %v886, 3
      %vm908 = vcmp.lt.s32.totalorder %v886, 4
      %v909 = vsel %vm905, %v889, %v892
      %v910 = vsel %vm908, %v898, 2102212464
      %v911 = vsel %vm907, %v895, %v910
      %v912 = vsel %vm906, %v909, %v911
      %v913 = vsel %vm905, %v892, %v895
      %v914 = vsel %vm908, %v901, 920167782
      %v915 = vsel %vm907, %v898, %v914
      %v916 = vsel %vm906, %v913, %v915
      %v917 = vsel %vm905, %v895, %v898
      %v918 = vsel %vm908, %v904, 1326507024
      %v919 = vsel %vm907, %v901, %v918
      %v920 = vsel %vm906, %v917, %v919
      %v921 = vshll.u32 %v881, 8
      %v922 = vmul.u32.u64.compose %v921, %v920
      %v923 = vextract.low.u32 %v922
      %v924 = vextract.high.u32 %v922
      %v925 = vmul.u32.u64.compose %v921, %v916
      %v926 = vextract.low.u32 %v925
      %v927 = vextract.high.u32 %v925
      %v928 = vmul.u32 %v921, %v912
      %v929 = vadd.s32 %v924, %v926
      %vm930 = vc.u32 %v924, %v926
      %v931 = vadd.s32 %v927, 1
      %v932 = vsel %vm930, %v931, %v927
      %v933 = vadd.s32 %v928, %v932
      %v934 = vadd.s32 %v933, 536870912
      %v935 = vshrl.u32 %v934, 30
      %v936 = vshll.u32 %v935, 30
      %v937 = vsub.s32 %v933, %v936
      %vm938 = vcmp.lt.s32.totalorder %v937, 0
      %v939 = vsub.s32 0, %v937
      %v940 = vsel %vm938, %v939, %v937
      %v941 = vclz %v940
      %v942 = vsub.s32 %v941, 2
      %vm943 = vcmp.gt.s32.totalorder 0, %v942
      %v944 = vsel %vm943, 0, %v942
      %v945 = vsub.s32 32, %v944
      %v946 = vshll.u32 %v937, %v944
      %v947 = vshrl.u32 %v929, %v945
      %v948 = vor.u32 %v946, %v947
      %v949 = vsub.s32 4294967266, %v944
      %v950 = vadd.s32 %v949, 127
      %v951 = vshll.u32 %v950, 23
      %v952 = vor.u32 4788187, %v951
      %v953 = vand.u32 2147483647, %v952
      %v955 = vcvt.s32.f32 %v948
      %v956 = vmul.f32 %v955, %v953
      %v957 = vxor.u32 %v956, 2147483648
      %v958 = vsel %vm875, %v957, %v956
      %v959 = vsub.s32 4, %v935
      %v960 = vsel %vm875, %v959, %v935
      %v961 = vsel %vm874, %v841, %v958
      %v962 = vsel %vm874, 0, %v960
      %v963 = vcosq.f32.pop %v961
      %v964 = vsinq.f32.pop %v961
      %vm965 = vweird.f32 %v841
      %v966 = vadd.s32 %v962, 3
      %v967 = vand.u32 %v966, 3
      %vm968 = vcmp.lt.s32.totalorder %v967, 2
      %vm969 = vcmp.eq.s32.totalorder %v967, 0
      %v970 = vxor.u32 %v964, 2147483648
      %v971 = vsel %vm969, %v963, %v970
      %vm972 = vcmp.eq.s32.totalorder %v967, 2
      %v973 = vxor.u32 %v963, 2147483648
      %v974 = vsel %vm972, %v973, %v964
      %v975 = vsel %vm968, %v971, %v974
      %v976 = vsel %vm965, nan, %v975
      %v977 = vand.u32 2147483647, %v842
      %vm978 = vcmp.le.f32.partialorder %v977, 0.7853982
      %vm979 = vcmp.lt.s32.totalorder %v842, 0
      %v980 = vand.u32 %v842, 2139095040
      %v981 = vshrl.u32 %v980, 23
      %v982 = vsub.s32 %v981, 127
      %v983 = vand.u32 2147483647, %v842
      %v984 = vand.u32 %v983, 8388607
      %v985 = vor.u32 %v984, 8388608
      %v986 = vsub.s32 0, %v985
      %v987 = vadd.s32 %v982, 1
      %vm988 = vcmp.gt.s32.totalorder %v987, 0
      %v989 = vsel %vm988, %v987, 0
      %v990 = vshrl.u32 %v989, 5
      %v991 = vand.u32 %v989, 31
      %v992 = vsub.s32 32, %v991
      %v993 = vshrl.u32 683565275, %v992
      %v994 = vshll.u32 683565275, %v991
      %v995 = vshrl.u32 2475754826, %v992
      %v996 = vor.u32 %v994, %v995
      %v997 = vshll.u32 2475754826, %v991
      %v998 = vshrl.u32 2131351028, %v992
      %v999 = vor.u32 %v997, %v998
      %v1000 = vshll.u32 2131351028, %v991
      %v1001 = vshrl.u32 2102212464, %v992
      %v1002 = vor.u32 %v1000, %v1001
      %v1003 = vshll.u32 2102212464, %v991
      %v1004 = vshrl.u32 920167782, %v992
      %v1005 = vor.u32 %v1003, %v1004
      %v1006 = vshll.u32 920167782, %v991
      %v1007 = vshrl.u32 1326507024, %v992
      %v1008 = vor.u32 %v1006, %v1007
      %vm1009 = vcmp.lt.s32.totalorder %v990, 1
      %vm1010 = vcmp.lt.s32.totalorder %v990, 2
      %vm1011 = vcmp.lt.s32.totalorder %v990, 3
      %vm1012 = vcmp.lt.s32.totalorder %v990, 4
      %v1013 = vsel %vm1009, %v993, %v996
      %v1014 = vsel %vm1012, %v1002, 2102212464
      %v1015 = vsel %vm1011, %v999, %v1014
      %v1016 = vsel %vm1010, %v1013, %v1015
      %v1017 = vsel %vm1009, %v996, %v999
      %v1018 = vsel %vm1012, %v1005, 920167782
      %v1019 = vsel %vm1011, %v1002, %v1018
      %v1020 = vsel %vm1010, %v1017, %v1019
      %v1021 = vsel %vm1009, %v999, %v1002
      %v1022 = vsel %vm1012, %v1008, 1326507024
      %v1023 = vsel %vm1011, %v1005, %v1022
      %v1024 = vsel %vm1010, %v1021, %v1023
      %v1025 = vshll.u32 %v985, 8
      %v1026 = vmul.u32.u64.compose %v1025, %v1024
      %v1027 = vextract.low.u32 %v1026
      %v1028 = vextract.high.u32 %v1026
      %v1029 = vmul.u32.u64.compose %v1025, %v1020
      %v1030 = vextract.low.u32 %v1029
      %v1031 = vextract.high.u32 %v1029
      %v1032 = vmul.u32 %v1025, %v1016
      %v1033 = vadd.s32 %v1028, %v1030
      %vm1034 = vc.u32 %v1028, %v1030
      %v1035 = vadd.s32 %v1031, 1
      %v1036 = vsel %vm1034, %v1035, %v1031
      %v1037 = vadd.s32 %v1032, %v1036
      %v1038 = vadd.s32 %v1037, 536870912
      %v1039 = vshrl.u32 %v1038, 30
      %v1040 = vshll.u32 %v1039, 30
      %v1041 = vsub.s32 %v1037, %v1040
      %vm1042 = vcmp.lt.s32.totalorder %v1041, 0
      %v1043 = vsub.s32 0, %v1041
      %v1044 = vsel %vm1042, %v1043, %v1041
      %v1045 = vclz %v1044
      %v1046 = vsub.s32 %v1045, 2
      %vm1047 = vcmp.gt.s32.totalorder 0, %v1046
      %v1048 = vsel %vm1047, 0, %v1046
      %v1049 = vsub.s32 32, %v1048
      %v1050 = vshll.u32 %v1041, %v1048
      %v1051 = vshrl.u32 %v1033, %v1049
      %v1052 = vor.u32 %v1050, %v1051
      %v1053 = vsub.s32 4294967266, %v1048
      %v1054 = vadd.s32 %v1053, 127
      %v1055 = vshll.u32 %v1054, 23
      %v1056 = vor.u32 4788187, %v1055
      %v1057 = vand.u32 2147483647, %v1056
      %v1059 = vcvt.s32.f32 %v1052
      %v1060 = vmul.f32 %v1059, %v1057
      %v1061 = vxor.u32 %v1060, 2147483648
      %v1062 = vsel %vm979, %v1061, %v1060
      %v1063 = vsub.s32 4, %v1039
      %v1064 = vsel %vm979, %v1063, %v1039
      %v1065 = vsel %vm978, %v842, %v1062
      %v1066 = vsel %vm978, 0, %v1064
      %v1067 = vcosq.f32.pop %v1065
      %v1068 = vsinq.f32.pop %v1065
      %vm1069 = vweird.f32 %v842
      %v1070 = vadd.s32 %v1066, 3
      %v1071 = vand.u32 %v1070, 3
      %vm1072 = vcmp.lt.s32.totalorder %v1071, 2
      %vm1073 = vcmp.eq.s32.totalorder %v1071, 0
      %v1074 = vxor.u32 %v1068, 2147483648
      %v1075 = vsel %vm1073, %v1067, %v1074
      %vm1076 = vcmp.eq.s32.totalorder %v1071, 2
      %v1077 = vxor.u32 %v1067, 2147483648
      %v1078 = vsel %vm1076, %v1077, %v1068
      %v1079 = vsel %vm1072, %v1075, %v1078
      %v1080 = vsel %vm1069, nan, %v1079
      %v1081 = vand.u32 2147483647, %v843
      %vm1082 = vcmp.le.f32.partialorder %v1081, 0.7853982
      %vm1083 = vcmp.lt.s32.totalorder %v843, 0
      %v1084 = vand.u32 %v843, 2139095040
      %v1085 = vshrl.u32 %v1084, 23
      %v1086 = vsub.s32 %v1085, 127
      %v1087 = vand.u32 2147483647, %v843
      %v1088 = vand.u32 %v1087, 8388607
      %v1089 = vor.u32 %v1088, 8388608
      %v1090 = vsub.s32 0, %v1089
      %v1091 = vadd.s32 %v1086, 1
      %vm1092 = vcmp.gt.s32.totalorder %v1091, 0
      %v1093 = vsel %vm1092, %v1091, 0
      %v1094 = vshrl.u32 %v1093, 5
      %v1095 = vand.u32 %v1093, 31
      %v1096 = vsub.s32 32, %v1095
      %v1097 = vshrl.u32 683565275, %v1096
      %v1098 = vshll.u32 683565275, %v1095
      %v1099 = vshrl.u32 2475754826, %v1096
      %v1100 = vor.u32 %v1098, %v1099
      %v1101 = vshll.u32 2475754826, %v1095
      %v1102 = vshrl.u32 2131351028, %v1096
      %v1103 = vor.u32 %v1101, %v1102
      %v1104 = vshll.u32 2131351028, %v1095
      %v1105 = vshrl.u32 2102212464, %v1096
      %v1106 = vor.u32 %v1104, %v1105
      %v1107 = vshll.u32 2102212464, %v1095
      %v1108 = vshrl.u32 920167782, %v1096
      %v1109 = vor.u32 %v1107, %v1108
      %v1110 = vshll.u32 920167782, %v1095
      %v1111 = vshrl.u32 1326507024, %v1096
      %v1112 = vor.u32 %v1110, %v1111
      %vm1113 = vcmp.lt.s32.totalorder %v1094, 1
      %vm1114 = vcmp.lt.s32.totalorder %v1094, 2
      %vm1115 = vcmp.lt.s32.totalorder %v1094, 3
      %vm1116 = vcmp.lt.s32.totalorder %v1094, 4
      %v1117 = vsel %vm1113, %v1097, %v1100
      %v1118 = vsel %vm1116, %v1106, 2102212464
      %v1119 = vsel %vm1115, %v1103, %v1118
      %v1120 = vsel %vm1114, %v1117, %v1119
      %v1121 = vsel %vm1113, %v1100, %v1103
      %v1122 = vsel %vm1116, %v1109, 920167782
      %v1123 = vsel %vm1115, %v1106, %v1122
      %v1124 = vsel %vm1114, %v1121, %v1123
      %v1125 = vsel %vm1113, %v1103, %v1106
      %v1126 = vsel %vm1116, %v1112, 1326507024
      %v1127 = vsel %vm1115, %v1109, %v1126
      %v1128 = vsel %vm1114, %v1125, %v1127
      %v1129 = vshll.u32 %v1089, 8
      %v1130 = vmul.u32.u64.compose %v1129, %v1128
      %v1131 = vextract.low.u32 %v1130
      %v1132 = vextract.high.u32 %v1130
      %v1133 = vmul.u32.u64.compose %v1129, %v1124
      %v1134 = vextract.low.u32 %v1133
      %v1135 = vextract.high.u32 %v1133
      %v1136 = vmul.u32 %v1129, %v1120
      %v1137 = vadd.s32 %v1132, %v1134
      %vm1138 = vc.u32 %v1132, %v1134
      %v1139 = vadd.s32 %v1135, 1
      %v1140 = vsel %vm1138, %v1139, %v1135
      %v1141 = vadd.s32 %v1136, %v1140
      %v1142 = vadd.s32 %v1141, 536870912
      %v1143 = vshrl.u32 %v1142, 30
      %v1144 = vshll.u32 %v1143, 30
      %v1145 = vsub.s32 %v1141, %v1144
      %vm1146 = vcmp.lt.s32.totalorder %v1145, 0
      %v1147 = vsub.s32 0, %v1145
      %v1148 = vsel %vm1146, %v1147, %v1145
      %v1149 = vclz %v1148
      %v1150 = vsub.s32 %v1149, 2
      %vm1151 = vcmp.gt.s32.totalorder 0, %v1150
      %v1152 = vsel %vm1151, 0, %v1150
      %v1153 = vsub.s32 32, %v1152
      %v1154 = vshll.u32 %v1145, %v1152
      %v1155 = vshrl.u32 %v1137, %v1153
      %v1156 = vor.u32 %v1154, %v1155
      %v1157 = vsub.s32 4294967266, %v1152
      %v1158 = vadd.s32 %v1157, 127
      %v1159 = vshll.u32 %v1158, 23
      %v1160 = vor.u32 4788187, %v1159
      %v1161 = vand.u32 2147483647, %v1160
      %v1163 = vcvt.s32.f32 %v1156
      %v1164 = vmul.f32 %v1163, %v1161
      %v1165 = vxor.u32 %v1164, 2147483648
      %v1166 = vsel %vm1083, %v1165, %v1164
      %v1167 = vsub.s32 4, %v1143
      %v1168 = vsel %vm1083, %v1167, %v1143
      %v1169 = vsel %vm1082, %v843, %v1166
      %v1170 = vsel %vm1082, 0, %v1168
      %v1171 = vcosq.f32.pop %v1169
      %v1172 = vsinq.f32.pop %v1169
      %vm1173 = vweird.f32 %v843
      %v1174 = vadd.s32 %v1170, 3
      %v1175 = vand.u32 %v1174, 3
      %vm1176 = vcmp.lt.s32.totalorder %v1175, 2
      %vm1177 = vcmp.eq.s32.totalorder %v1175, 0
      %v1178 = vxor.u32 %v1172, 2147483648
      %v1179 = vsel %vm1177, %v1171, %v1178
      %vm1180 = vcmp.eq.s32.totalorder %v1175, 2
      %v1181 = vxor.u32 %v1171, 2147483648
      %v1182 = vsel %vm1180, %v1181, %v1172
      %v1183 = vsel %vm1176, %v1179, %v1182
      %v1184 = vsel %vm1173, nan, %v1183
      %v1185 = vand.u32 2147483647, %v844
      %vm1186 = vcmp.le.f32.partialorder %v1185, 0.7853982
      %vm1187 = vcmp.lt.s32.totalorder %v844, 0
      %v1188 = vand.u32 %v844, 2139095040
      %v1189 = vshrl.u32 %v1188, 23
      %v1190 = vsub.s32 %v1189, 127
      %v1191 = vand.u32 2147483647, %v844
      %v1192 = vand.u32 %v1191, 8388607
      %v1193 = vor.u32 %v1192, 8388608
      %v1194 = vsub.s32 0, %v1193
      %v1195 = vadd.s32 %v1190, 1
      %vm1196 = vcmp.gt.s32.totalorder %v1195, 0
      %v1197 = vsel %vm1196, %v1195, 0
      %v1198 = vshrl.u32 %v1197, 5
      %v1199 = vand.u32 %v1197, 31
      %v1200 = vsub.s32 32, %v1199
      %v1201 = vshrl.u32 683565275, %v1200
      %v1202 = vshll.u32 683565275, %v1199
      %v1203 = vshrl.u32 2475754826, %v1200
      %v1204 = vor.u32 %v1202, %v1203
      %v1205 = vshll.u32 2475754826, %v1199
      %v1206 = vshrl.u32 2131351028, %v1200
      %v1207 = vor.u32 %v1205, %v1206
      %v1208 = vshll.u32 2131351028, %v1199
      %v1209 = vshrl.u32 2102212464, %v1200
      %v1210 = vor.u32 %v1208, %v1209
      %v1211 = vshll.u32 2102212464, %v1199
      %v1212 = vshrl.u32 920167782, %v1200
      %v1213 = vor.u32 %v1211, %v1212
      %v1214 = vshll.u32 920167782, %v1199
      %v1215 = vshrl.u32 1326507024, %v1200
      %v1216 = vor.u32 %v1214, %v1215
      %vm1217 = vcmp.lt.s32.totalorder %v1198, 1
      %vm1218 = vcmp.lt.s32.totalorder %v1198, 2
      %vm1219 = vcmp.lt.s32.totalorder %v1198, 3
      %vm1220 = vcmp.lt.s32.totalorder %v1198, 4
      %v1221 = vsel %vm1217, %v1201, %v1204
      %v1222 = vsel %vm1220, %v1210, 2102212464
      %v1223 = vsel %vm1219, %v1207, %v1222
      %v1224 = vsel %vm1218, %v1221, %v1223
      %v1225 = vsel %vm1217, %v1204, %v1207
      %v1226 = vsel %vm1220, %v1213, 920167782
      %v1227 = vsel %vm1219, %v1210, %v1226
      %v1228 = vsel %vm1218, %v1225, %v1227
      %v1229 = vsel %vm1217, %v1207, %v1210
      %v1230 = vsel %vm1220, %v1216, 1326507024
      %v1231 = vsel %vm1219, %v1213, %v1230
      %v1232 = vsel %vm1218, %v1229, %v1231
      %v1233 = vshll.u32 %v1193, 8
      %v1234 = vmul.u32.u64.compose %v1233, %v1232
      %v1235 = vextract.low.u32 %v1234
      %v1236 = vextract.high.u32 %v1234
      %v1237 = vmul.u32.u64.compose %v1233, %v1228
      %v1238 = vextract.low.u32 %v1237
      %v1239 = vextract.high.u32 %v1237
      %v1240 = vmul.u32 %v1233, %v1224
      %v1241 = vadd.s32 %v1236, %v1238
      %vm1242 = vc.u32 %v1236, %v1238
      %v1243 = vadd.s32 %v1239, 1
      %v1244 = vsel %vm1242, %v1243, %v1239
      %v1245 = vadd.s32 %v1240, %v1244
      %v1246 = vadd.s32 %v1245, 536870912
      %v1247 = vshrl.u32 %v1246, 30
      %v1248 = vshll.u32 %v1247, 30
      %v1249 = vsub.s32 %v1245, %v1248
      %vm1250 = vcmp.lt.s32.totalorder %v1249, 0
      %v1251 = vsub.s32 0, %v1249
      %v1252 = vsel %vm1250, %v1251, %v1249
      %v1253 = vclz %v1252
      %v1254 = vsub.s32 %v1253, 2
      %vm1255 = vcmp.gt.s32.totalorder 0, %v1254
      %v1256 = vsel %vm1255, 0, %v1254
      %v1257 = vsub.s32 32, %v1256
      %v1258 = vshll.u32 %v1249, %v1256
      %v1259 = vshrl.u32 %v1241, %v1257
      %v1260 = vor.u32 %v1258, %v1259
      %v1261 = vsub.s32 4294967266, %v1256
      %v1262 = vadd.s32 %v1261, 127
      %v1263 = vshll.u32 %v1262, 23
      %v1264 = vor.u32 4788187, %v1263
      %v1265 = vand.u32 2147483647, %v1264
      %v1267 = vcvt.s32.f32 %v1260
      %v1268 = vmul.f32 %v1267, %v1265
      %v1269 = vxor.u32 %v1268, 2147483648
      %v1270 = vsel %vm1187, %v1269, %v1268
      %v1271 = vsub.s32 4, %v1247
      %v1272 = vsel %vm1187, %v1271, %v1247
      %v1273 = vsel %vm1186, %v844, %v1270
      %v1274 = vsel %vm1186, 0, %v1272
      %v1275 = vcosq.f32.pop %v1273
      %v1276 = vsinq.f32.pop %v1273
      %vm1277 = vweird.f32 %v844
      %v1278 = vadd.s32 %v1274, 3
      %v1279 = vand.u32 %v1278, 3
      %vm1280 = vcmp.lt.s32.totalorder %v1279, 2
      %vm1281 = vcmp.eq.s32.totalorder %v1279, 0
      %v1282 = vxor.u32 %v1276, 2147483648
      %v1283 = vsel %vm1281, %v1275, %v1282
      %vm1284 = vcmp.eq.s32.totalorder %v1279, 2
      %v1285 = vxor.u32 %v1275, 2147483648
      %v1286 = vsel %vm1284, %v1285, %v1276
      %v1287 = vsel %vm1280, %v1283, %v1286
      %v1288 = vsel %vm1277, nan, %v1287
      %v1289 = vand.u32 2147483647, %v845
      %vm1290 = vcmp.le.f32.partialorder %v1289, 0.7853982
      %vm1291 = vcmp.lt.s32.totalorder %v845, 0
      %v1292 = vand.u32 %v845, 2139095040
      %v1293 = vshrl.u32 %v1292, 23
      %v1294 = vsub.s32 %v1293, 127
      %v1295 = vand.u32 2147483647, %v845
      %v1296 = vand.u32 %v1295, 8388607
      %v1297 = vor.u32 %v1296, 8388608
      %v1298 = vsub.s32 0, %v1297
      %v1299 = vadd.s32 %v1294, 1
      %vm1300 = vcmp.gt.s32.totalorder %v1299, 0
      %v1301 = vsel %vm1300, %v1299, 0
      %v1302 = vshrl.u32 %v1301, 5
      %v1303 = vand.u32 %v1301, 31
      %v1304 = vsub.s32 32, %v1303
      %v1305 = vshrl.u32 683565275, %v1304
      %v1306 = vshll.u32 683565275, %v1303
      %v1307 = vshrl.u32 2475754826, %v1304
      %v1308 = vor.u32 %v1306, %v1307
      %v1309 = vshll.u32 2475754826, %v1303
      %v1310 = vshrl.u32 2131351028, %v1304
      %v1311 = vor.u32 %v1309, %v1310
      %v1312 = vshll.u32 2131351028, %v1303
      %v1313 = vshrl.u32 2102212464, %v1304
      %v1314 = vor.u32 %v1312, %v1313
      %v1315 = vshll.u32 2102212464, %v1303
      %v1316 = vshrl.u32 920167782, %v1304
      %v1317 = vor.u32 %v1315, %v1316
      %v1318 = vshll.u32 920167782, %v1303
      %v1319 = vshrl.u32 1326507024, %v1304
      %v1320 = vor.u32 %v1318, %v1319
      %vm1321 = vcmp.lt.s32.totalorder %v1302, 1
      %vm1322 = vcmp.lt.s32.totalorder %v1302, 2
      %vm1323 = vcmp.lt.s32.totalorder %v1302, 3
      %vm1324 = vcmp.lt.s32.totalorder %v1302, 4
      %v1325 = vsel %vm1321, %v1305, %v1308
      %v1326 = vsel %vm1324, %v1314, 2102212464
      %v1327 = vsel %vm1323, %v1311, %v1326
      %v1328 = vsel %vm1322, %v1325, %v1327
      %v1329 = vsel %vm1321, %v1308, %v1311
      %v1330 = vsel %vm1324, %v1317, 920167782
      %v1331 = vsel %vm1323, %v1314, %v1330
      %v1332 = vsel %vm1322, %v1329, %v1331
      %v1333 = vsel %vm1321, %v1311, %v1314
      %v1334 = vsel %vm1324, %v1320, 1326507024
      %v1335 = vsel %vm1323, %v1317, %v1334
      %v1336 = vsel %vm1322, %v1333, %v1335
      %v1337 = vshll.u32 %v1297, 8
      %v1338 = vmul.u32.u64.compose %v1337, %v1336
      %v1339 = vextract.low.u32 %v1338
      %v1340 = vextract.high.u32 %v1338
      %v1341 = vmul.u32.u64.compose %v1337, %v1332
      %v1342 = vextract.low.u32 %v1341
      %v1343 = vextract.high.u32 %v1341
      %v1344 = vmul.u32 %v1337, %v1328
      %v1345 = vadd.s32 %v1340, %v1342
      %vm1346 = vc.u32 %v1340, %v1342
      %v1347 = vadd.s32 %v1343, 1
      %v1348 = vsel %vm1346, %v1347, %v1343
      %v1349 = vadd.s32 %v1344, %v1348
      %v1350 = vadd.s32 %v1349, 536870912
      %v1351 = vshrl.u32 %v1350, 30
      %v1352 = vshll.u32 %v1351, 30
      %v1353 = vsub.s32 %v1349, %v1352
      %vm1354 = vcmp.lt.s32.totalorder %v1353, 0
      %v1355 = vsub.s32 0, %v1353
      %v1356 = vsel %vm1354, %v1355, %v1353
      %v1357 = vclz %v1356
      %v1358 = vsub.s32 %v1357, 2
      %vm1359 = vcmp.gt.s32.totalorder 0, %v1358
      %v1360 = vsel %vm1359, 0, %v1358
      %v1361 = vsub.s32 32, %v1360
      %v1362 = vshll.u32 %v1353, %v1360
      %v1363 = vshrl.u32 %v1345, %v1361
      %v1364 = vor.u32 %v1362, %v1363
      %v1365 = vsub.s32 4294967266, %v1360
      %v1366 = vadd.s32 %v1365, 127
      %v1367 = vshll.u32 %v1366, 23
      %v1368 = vor.u32 4788187, %v1367
      %v1369 = vand.u32 2147483647, %v1368
      %v1371 = vcvt.s32.f32 %v1364
      %v1372 = vmul.f32 %v1371, %v1369
      %v1373 = vxor.u32 %v1372, 2147483648
      %v1374 = vsel %vm1291, %v1373, %v1372
      %v1375 = vsub.s32 4, %v1351
      %v1376 = vsel %vm1291, %v1375, %v1351
      %v1377 = vsel %vm1290, %v845, %v1374
      %v1378 = vsel %vm1290, 0, %v1376
      %v1379 = vcosq.f32.pop %v1377
      %v1380 = vsinq.f32.pop %v1377
      %vm1381 = vweird.f32 %v845
      %v1382 = vadd.s32 %v1378, 3
      %v1383 = vand.u32 %v1382, 3
      %vm1384 = vcmp.lt.s32.totalorder %v1383, 2
      %vm1385 = vcmp.eq.s32.totalorder %v1383, 0
      %v1386 = vxor.u32 %v1380, 2147483648
      %v1387 = vsel %vm1385, %v1379, %v1386
      %vm1388 = vcmp.eq.s32.totalorder %v1383, 2
      %v1389 = vxor.u32 %v1379, 2147483648
      %v1390 = vsel %vm1388, %v1389, %v1380
      %v1391 = vsel %vm1384, %v1387, %v1390
      %v1392 = vsel %vm1381, nan, %v1391
      %v1393 = vand.u32 2147483647, %v846
      %vm1394 = vcmp.le.f32.partialorder %v1393, 0.7853982
      %vm1395 = vcmp.lt.s32.totalorder %v846, 0
      %v1396 = vand.u32 %v846, 2139095040
      %v1397 = vshrl.u32 %v1396, 23
      %v1398 = vsub.s32 %v1397, 127
      %v1399 = vand.u32 2147483647, %v846
      %v1400 = vand.u32 %v1399, 8388607
      %v1401 = vor.u32 %v1400, 8388608
      %v1402 = vsub.s32 0, %v1401
      %v1403 = vadd.s32 %v1398, 1
      %vm1404 = vcmp.gt.s32.totalorder %v1403, 0
      %v1405 = vsel %vm1404, %v1403, 0
      %v1406 = vshrl.u32 %v1405, 5
      %v1407 = vand.u32 %v1405, 31
      %v1408 = vsub.s32 32, %v1407
      %v1409 = vshrl.u32 683565275, %v1408
      %v1410 = vshll.u32 683565275, %v1407
      %v1411 = vshrl.u32 2475754826, %v1408
      %v1412 = vor.u32 %v1410, %v1411
      %v1413 = vshll.u32 2475754826, %v1407
      %v1414 = vshrl.u32 2131351028, %v1408
      %v1415 = vor.u32 %v1413, %v1414
      %v1416 = vshll.u32 2131351028, %v1407
      %v1417 = vshrl.u32 2102212464, %v1408
      %v1418 = vor.u32 %v1416, %v1417
      %v1419 = vshll.u32 2102212464, %v1407
      %v1420 = vshrl.u32 920167782, %v1408
      %v1421 = vor.u32 %v1419, %v1420
      %v1422 = vshll.u32 920167782, %v1407
      %v1423 = vshrl.u32 1326507024, %v1408
      %v1424 = vor.u32 %v1422, %v1423
      %vm1425 = vcmp.lt.s32.totalorder %v1406, 1
      %vm1426 = vcmp.lt.s32.totalorder %v1406, 2
      %vm1427 = vcmp.lt.s32.totalorder %v1406, 3
      %vm1428 = vcmp.lt.s32.totalorder %v1406, 4
      %v1429 = vsel %vm1425, %v1409, %v1412
      %v1430 = vsel %vm1428, %v1418, 2102212464
      %v1431 = vsel %vm1427, %v1415, %v1430
      %v1432 = vsel %vm1426, %v1429, %v1431
      %v1433 = vsel %vm1425, %v1412, %v1415
      %v1434 = vsel %vm1428, %v1421, 920167782
      %v1435 = vsel %vm1427, %v1418, %v1434
      %v1436 = vsel %vm1426, %v1433, %v1435
      %v1437 = vsel %vm1425, %v1415, %v1418
      %v1438 = vsel %vm1428, %v1424, 1326507024
      %v1439 = vsel %vm1427, %v1421, %v1438
      %v1440 = vsel %vm1426, %v1437, %v1439
      %v1441 = vshll.u32 %v1401, 8
      %v1442 = vmul.u32.u64.compose %v1441, %v1440
      %v1443 = vextract.low.u32 %v1442
      %v1444 = vextract.high.u32 %v1442
      %v1445 = vmul.u32.u64.compose %v1441, %v1436
      %v1446 = vextract.low.u32 %v1445
      %v1447 = vextract.high.u32 %v1445
      %v1448 = vmul.u32 %v1441, %v1432
      %v1449 = vadd.s32 %v1444, %v1446
      %vm1450 = vc.u32 %v1444, %v1446
      %v1451 = vadd.s32 %v1447, 1
      %v1452 = vsel %vm1450, %v1451, %v1447
      %v1453 = vadd.s32 %v1448, %v1452
      %v1454 = vadd.s32 %v1453, 536870912
      %v1455 = vshrl.u32 %v1454, 30
      %v1456 = vshll.u32 %v1455, 30
      %v1457 = vsub.s32 %v1453, %v1456
      %vm1458 = vcmp.lt.s32.totalorder %v1457, 0
      %v1459 = vsub.s32 0, %v1457
      %v1460 = vsel %vm1458, %v1459, %v1457
      %v1461 = vclz %v1460
      %v1462 = vsub.s32 %v1461, 2
      %vm1463 = vcmp.gt.s32.totalorder 0, %v1462
      %v1464 = vsel %vm1463, 0, %v1462
      %v1465 = vsub.s32 32, %v1464
      %v1466 = vshll.u32 %v1457, %v1464
      %v1467 = vshrl.u32 %v1449, %v1465
      %v1468 = vor.u32 %v1466, %v1467
      %v1469 = vsub.s32 4294967266, %v1464
      %v1470 = vadd.s32 %v1469, 127
      %v1471 = vshll.u32 %v1470, 23
      %v1472 = vor.u32 4788187, %v1471
      %v1473 = vand.u32 2147483647, %v1472
      %v1475 = vcvt.s32.f32 %v1468
      %v1476 = vmul.f32 %v1475, %v1473
      %v1477 = vxor.u32 %v1476, 2147483648
      %v1478 = vsel %vm1395, %v1477, %v1476
      %v1479 = vsub.s32 4, %v1455
      %v1480 = vsel %vm1395, %v1479, %v1455
      %v1481 = vsel %vm1394, %v846, %v1478
      %v1482 = vsel %vm1394, 0, %v1480
      %v1483 = vcosq.f32.pop %v1481
      %v1484 = vsinq.f32.pop %v1481
      %vm1485 = vweird.f32 %v846
      %v1486 = vadd.s32 %v1482, 3
      %v1487 = vand.u32 %v1486, 3
      %vm1488 = vcmp.lt.s32.totalorder %v1487, 2
      %vm1489 = vcmp.eq.s32.totalorder %v1487, 0
      %v1490 = vxor.u32 %v1484, 2147483648
      %v1491 = vsel %vm1489, %v1483, %v1490
      %vm1492 = vcmp.eq.s32.totalorder %v1487, 2
      %v1493 = vxor.u32 %v1483, 2147483648
      %v1494 = vsel %vm1492, %v1493, %v1484
      %v1495 = vsel %vm1488, %v1491, %v1494
      %v1496 = vsel %vm1485, nan, %v1495
      %v1497 = vand.u32 2147483647, %v847
      %vm1498 = vcmp.le.f32.partialorder %v1497, 0.7853982
      %vm1499 = vcmp.lt.s32.totalorder %v847, 0
      %v1500 = vand.u32 %v847, 2139095040
      %v1501 = vshrl.u32 %v1500, 23
      %v1502 = vsub.s32 %v1501, 127
      %v1503 = vand.u32 2147483647, %v847
      %v1504 = vand.u32 %v1503, 8388607
      %v1505 = vor.u32 %v1504, 8388608
      %v1506 = vsub.s32 0, %v1505
      %v1507 = vadd.s32 %v1502, 1
      %vm1508 = vcmp.gt.s32.totalorder %v1507, 0
      %v1509 = vsel %vm1508, %v1507, 0
      %v1510 = vshrl.u32 %v1509, 5
      %v1511 = vand.u32 %v1509, 31
      %v1512 = vsub.s32 32, %v1511
      %v1513 = vshrl.u32 683565275, %v1512
      %v1514 = vshll.u32 683565275, %v1511
      %v1515 = vshrl.u32 2475754826, %v1512
      %v1516 = vor.u32 %v1514, %v1515
      %v1517 = vshll.u32 2475754826, %v1511
      %v1518 = vshrl.u32 2131351028, %v1512
      %v1519 = vor.u32 %v1517, %v1518
      %v1520 = vshll.u32 2131351028, %v1511
      %v1521 = vshrl.u32 2102212464, %v1512
      %v1522 = vor.u32 %v1520, %v1521
      %v1523 = vshll.u32 2102212464, %v1511
      %v1524 = vshrl.u32 920167782, %v1512
      %v1525 = vor.u32 %v1523, %v1524
      %v1526 = vshll.u32 920167782, %v1511
      %v1527 = vshrl.u32 1326507024, %v1512
      %v1528 = vor.u32 %v1526, %v1527
      %vm1529 = vcmp.lt.s32.totalorder %v1510, 1
      %vm1530 = vcmp.lt.s32.totalorder %v1510, 2
      %vm1531 = vcmp.lt.s32.totalorder %v1510, 3
      %vm1532 = vcmp.lt.s32.totalorder %v1510, 4
      %v1533 = vsel %vm1529, %v1513, %v1516
      %v1534 = vsel %vm1532, %v1522, 2102212464
      %v1535 = vsel %vm1531, %v1519, %v1534
      %v1536 = vsel %vm1530, %v1533, %v1535
      %v1537 = vsel %vm1529, %v1516, %v1519
      %v1538 = vsel %vm1532, %v1525, 920167782
      %v1539 = vsel %vm1531, %v1522, %v1538
      %v1540 = vsel %vm1530, %v1537, %v1539
      %v1541 = vsel %vm1529, %v1519, %v1522
      %v1542 = vsel %vm1532, %v1528, 1326507024
      %v1543 = vsel %vm1531, %v1525, %v1542
      %v1544 = vsel %vm1530, %v1541, %v1543
      %v1545 = vshll.u32 %v1505, 8
      %v1546 = vmul.u32.u64.compose %v1545, %v1544
      %v1547 = vextract.low.u32 %v1546
      %v1548 = vextract.high.u32 %v1546
      %v1549 = vmul.u32.u64.compose %v1545, %v1540
      %v1550 = vextract.low.u32 %v1549
      %v1551 = vextract.high.u32 %v1549
      %v1552 = vmul.u32 %v1545, %v1536
      %v1553 = vadd.s32 %v1548, %v1550
      %vm1554 = vc.u32 %v1548, %v1550
      %v1555 = vadd.s32 %v1551, 1
      %v1556 = vsel %vm1554, %v1555, %v1551
      %v1557 = vadd.s32 %v1552, %v1556
      %v1558 = vadd.s32 %v1557, 536870912
      %v1559 = vshrl.u32 %v1558, 30
      %v1560 = vshll.u32 %v1559, 30
      %v1561 = vsub.s32 %v1557, %v1560
      %vm1562 = vcmp.lt.s32.totalorder %v1561, 0
      %v1563 = vsub.s32 0, %v1561
      %v1564 = vsel %vm1562, %v1563, %v1561
      %v1565 = vclz %v1564
      %v1566 = vsub.s32 %v1565, 2
      %vm1567 = vcmp.gt.s32.totalorder 0, %v1566
      %v1568 = vsel %vm1567, 0, %v1566
      %v1569 = vsub.s32 32, %v1568
      %v1570 = vshll.u32 %v1561, %v1568
      %v1571 = vshrl.u32 %v1553, %v1569
      %v1572 = vor.u32 %v1570, %v1571
      %v1573 = vsub.s32 4294967266, %v1568
      %v1574 = vadd.s32 %v1573, 127
      %v1575 = vshll.u32 %v1574, 23
      %v1576 = vor.u32 4788187, %v1575
      %v1577 = vand.u32 2147483647, %v1576
      %v1579 = vcvt.s32.f32 %v1572
      %v1580 = vmul.f32 %v1579, %v1577
      %v1581 = vxor.u32 %v1580, 2147483648
      %v1582 = vsel %vm1499, %v1581, %v1580
      %v1583 = vsub.s32 4, %v1559
      %v1584 = vsel %vm1499, %v1583, %v1559
      %v1585 = vsel %vm1498, %v847, %v1582
      %v1586 = vsel %vm1498, 0, %v1584
      %v1587 = vcosq.f32.pop %v1585
      %v1588 = vsinq.f32.pop %v1585
      %vm1589 = vweird.f32 %v847
      %v1590 = vadd.s32 %v1586, 3
      %v1591 = vand.u32 %v1590, 3
      %vm1592 = vcmp.lt.s32.totalorder %v1591, 2
      %vm1593 = vcmp.eq.s32.totalorder %v1591, 0
      %v1594 = vxor.u32 %v1588, 2147483648
      %v1595 = vsel %vm1593, %v1587, %v1594
      %vm1596 = vcmp.eq.s32.totalorder %v1591, 2
      %v1597 = vxor.u32 %v1587, 2147483648
      %v1598 = vsel %vm1596, %v1597, %v1588
      %v1599 = vsel %vm1592, %v1595, %v1598
      %v1600 = vsel %vm1589, nan, %v1599
      %v1601 = vand.u32 2147483647, %v848
      %vm1602 = vcmp.le.f32.partialorder %v1601, 0.7853982
      %vm1603 = vcmp.lt.s32.totalorder %v848, 0
      %v1604 = vand.u32 %v848, 2139095040
      %v1605 = vshrl.u32 %v1604, 23
      %v1606 = vsub.s32 %v1605, 127
      %v1607 = vand.u32 2147483647, %v848
      %v1608 = vand.u32 %v1607, 8388607
      %v1609 = vor.u32 %v1608, 8388608
      %v1610 = vsub.s32 0, %v1609
      %v1611 = vadd.s32 %v1606, 1
      %vm1612 = vcmp.gt.s32.totalorder %v1611, 0
      %v1613 = vsel %vm1612, %v1611, 0
      %v1614 = vshrl.u32 %v1613, 5
      %v1615 = vand.u32 %v1613, 31
      %v1616 = vsub.s32 32, %v1615
      %v1617 = vshrl.u32 683565275, %v1616
      %v1618 = vshll.u32 683565275, %v1615
      %v1619 = vshrl.u32 2475754826, %v1616
      %v1620 = vor.u32 %v1618, %v1619
      %v1621 = vshll.u32 2475754826, %v1615
      %v1622 = vshrl.u32 2131351028, %v1616
      %v1623 = vor.u32 %v1621, %v1622
      %v1624 = vshll.u32 2131351028, %v1615
      %v1625 = vshrl.u32 2102212464, %v1616
      %v1626 = vor.u32 %v1624, %v1625
      %v1627 = vshll.u32 2102212464, %v1615
      %v1628 = vshrl.u32 920167782, %v1616
      %v1629 = vor.u32 %v1627, %v1628
      %v1630 = vshll.u32 920167782, %v1615
      %v1631 = vshrl.u32 1326507024, %v1616
      %v1632 = vor.u32 %v1630, %v1631
      %vm1633 = vcmp.lt.s32.totalorder %v1614, 1
      %vm1634 = vcmp.lt.s32.totalorder %v1614, 2
      %vm1635 = vcmp.lt.s32.totalorder %v1614, 3
      %vm1636 = vcmp.lt.s32.totalorder %v1614, 4
      %v1637 = vsel %vm1633, %v1617, %v1620
      %v1638 = vsel %vm1636, %v1626, 2102212464
      %v1639 = vsel %vm1635, %v1623, %v1638
      %v1640 = vsel %vm1634, %v1637, %v1639
      %v1641 = vsel %vm1633, %v1620, %v1623
      %v1642 = vsel %vm1636, %v1629, 920167782
      %v1643 = vsel %vm1635, %v1626, %v1642
      %v1644 = vsel %vm1634, %v1641, %v1643
      %v1645 = vsel %vm1633, %v1623, %v1626
      %v1646 = vsel %vm1636, %v1632, 1326507024
      %v1647 = vsel %vm1635, %v1629, %v1646
      %v1648 = vsel %vm1634, %v1645, %v1647
      %v1649 = vshll.u32 %v1609, 8
      %v1650 = vmul.u32.u64.compose %v1649, %v1648
      %v1651 = vextract.low.u32 %v1650
      %v1652 = vextract.high.u32 %v1650
      %v1653 = vmul.u32.u64.compose %v1649, %v1644
      %v1654 = vextract.low.u32 %v1653
      %v1655 = vextract.high.u32 %v1653
      %v1656 = vmul.u32 %v1649, %v1640
      %v1657 = vadd.s32 %v1652, %v1654
      %vm1658 = vc.u32 %v1652, %v1654
      %v1659 = vadd.s32 %v1655, 1
      %v1660 = vsel %vm1658, %v1659, %v1655
      %v1661 = vadd.s32 %v1656, %v1660
      %v1662 = vadd.s32 %v1661, 536870912
      %v1663 = vshrl.u32 %v1662, 30
      %v1664 = vshll.u32 %v1663, 30
      %v1665 = vsub.s32 %v1661, %v1664
      %vm1666 = vcmp.lt.s32.totalorder %v1665, 0
      %v1667 = vsub.s32 0, %v1665
      %v1668 = vsel %vm1666, %v1667, %v1665
      %v1669 = vclz %v1668
      %v1670 = vsub.s32 %v1669, 2
      %vm1671 = vcmp.gt.s32.totalorder 0, %v1670
      %v1672 = vsel %vm1671, 0, %v1670
      %v1673 = vsub.s32 32, %v1672
      %v1674 = vshll.u32 %v1665, %v1672
      %v1675 = vshrl.u32 %v1657, %v1673
      %v1676 = vor.u32 %v1674, %v1675
      %v1677 = vsub.s32 4294967266, %v1672
      %v1678 = vadd.s32 %v1677, 127
      %v1679 = vshll.u32 %v1678, 23
      %v1680 = vor.u32 4788187, %v1679
      %v1681 = vand.u32 2147483647, %v1680
      %v1683 = vcvt.s32.f32 %v1676
      %v1684 = vmul.f32 %v1683, %v1681
      %v1685 = vxor.u32 %v1684, 2147483648
      %v1686 = vsel %vm1603, %v1685, %v1684
      %v1687 = vsub.s32 4, %v1663
      %v1688 = vsel %vm1603, %v1687, %v1663
      %v1689 = vsel %vm1602, %v848, %v1686
      %v1690 = vsel %vm1602, 0, %v1688
      %v1691 = vcosq.f32.pop %v1689
      %v1692 = vsinq.f32.pop %v1689
      %vm1693 = vweird.f32 %v848
      %v1694 = vadd.s32 %v1690, 3
      %v1695 = vand.u32 %v1694, 3
      %vm1696 = vcmp.lt.s32.totalorder %v1695, 2
      %vm1697 = vcmp.eq.s32.totalorder %v1695, 0
      %v1698 = vxor.u32 %v1692, 2147483648
      %v1699 = vsel %vm1697, %v1691, %v1698
      %vm1700 = vcmp.eq.s32.totalorder %v1695, 2
      %v1701 = vxor.u32 %v1691, 2147483648
      %v1702 = vsel %vm1700, %v1701, %v1692
      %v1703 = vsel %vm1696, %v1699, %v1702
      %v1704 = vsel %vm1693, nan, %v1703
      %v1705 = vand.u32 2147483647, %v849
      %vm1706 = vcmp.le.f32.partialorder %v1705, 0.7853982
      %vm1707 = vcmp.lt.s32.totalorder %v849, 0
      %v1708 = vand.u32 %v849, 2139095040
      %v1709 = vshrl.u32 %v1708, 23
      %v1710 = vsub.s32 %v1709, 127
      %v1711 = vand.u32 2147483647, %v849
      %v1712 = vand.u32 %v1711, 8388607
      %v1713 = vor.u32 %v1712, 8388608
      %v1714 = vsub.s32 0, %v1713
      %v1715 = vadd.s32 %v1710, 1
      %vm1716 = vcmp.gt.s32.totalorder %v1715, 0
      %v1717 = vsel %vm1716, %v1715, 0
      %v1718 = vshrl.u32 %v1717, 5
      %v1719 = vand.u32 %v1717, 31
      %v1720 = vsub.s32 32, %v1719
      %v1721 = vshrl.u32 683565275, %v1720
      %v1722 = vshll.u32 683565275, %v1719
      %v1723 = vshrl.u32 2475754826, %v1720
      %v1724 = vor.u32 %v1722, %v1723
      %v1725 = vshll.u32 2475754826, %v1719
      %v1726 = vshrl.u32 2131351028, %v1720
      %v1727 = vor.u32 %v1725, %v1726
      %v1728 = vshll.u32 2131351028, %v1719
      %v1729 = vshrl.u32 2102212464, %v1720
      %v1730 = vor.u32 %v1728, %v1729
      %v1731 = vshll.u32 2102212464, %v1719
      %v1732 = vshrl.u32 920167782, %v1720
      %v1733 = vor.u32 %v1731, %v1732
      %v1734 = vshll.u32 920167782, %v1719
      %v1735 = vshrl.u32 1326507024, %v1720
      %v1736 = vor.u32 %v1734, %v1735
      %vm1737 = vcmp.lt.s32.totalorder %v1718, 1
      %vm1738 = vcmp.lt.s32.totalorder %v1718, 2
      %vm1739 = vcmp.lt.s32.totalorder %v1718, 3
      %vm1740 = vcmp.lt.s32.totalorder %v1718, 4
      %v1741 = vsel %vm1737, %v1721, %v1724
      %v1742 = vsel %vm1740, %v1730, 2102212464
      %v1743 = vsel %vm1739, %v1727, %v1742
      %v1744 = vsel %vm1738, %v1741, %v1743
      %v1745 = vsel %vm1737, %v1724, %v1727
      %v1746 = vsel %vm1740, %v1733, 920167782
      %v1747 = vsel %vm1739, %v1730, %v1746
      %v1748 = vsel %vm1738, %v1745, %v1747
      %v1749 = vsel %vm1737, %v1727, %v1730
      %v1750 = vsel %vm1740, %v1736, 1326507024
      %v1751 = vsel %vm1739, %v1733, %v1750
      %v1752 = vsel %vm1738, %v1749, %v1751
      %v1753 = vshll.u32 %v1713, 8
      %v1754 = vmul.u32.u64.compose %v1753, %v1752
      %v1755 = vextract.low.u32 %v1754
      %v1756 = vextract.high.u32 %v1754
      %v1757 = vmul.u32.u64.compose %v1753, %v1748
      %v1758 = vextract.low.u32 %v1757
      %v1759 = vextract.high.u32 %v1757
      %v1760 = vmul.u32 %v1753, %v1744
      %v1761 = vadd.s32 %v1756, %v1758
      %vm1762 = vc.u32 %v1756, %v1758
      %v1763 = vadd.s32 %v1759, 1
      %v1764 = vsel %vm1762, %v1763, %v1759
      %v1765 = vadd.s32 %v1760, %v1764
      %v1766 = vadd.s32 %v1765, 536870912
      %v1767 = vshrl.u32 %v1766, 30
      %v1768 = vshll.u32 %v1767, 30
      %v1769 = vsub.s32 %v1765, %v1768
      %vm1770 = vcmp.lt.s32.totalorder %v1769, 0
      %v1771 = vsub.s32 0, %v1769
      %v1772 = vsel %vm1770, %v1771, %v1769
      %v1773 = vclz %v1772
      %v1774 = vsub.s32 %v1773, 2
      %vm1775 = vcmp.gt.s32.totalorder 0, %v1774
      %v1776 = vsel %vm1775, 0, %v1774
      %v1777 = vsub.s32 32, %v1776
      %v1778 = vshll.u32 %v1769, %v1776
      %v1779 = vshrl.u32 %v1761, %v1777
      %v1780 = vor.u32 %v1778, %v1779
      %v1781 = vsub.s32 4294967266, %v1776
      %v1782 = vadd.s32 %v1781, 127
      %v1783 = vshll.u32 %v1782, 23
      %v1784 = vor.u32 4788187, %v1783
      %v1785 = vand.u32 2147483647, %v1784
      %v1787 = vcvt.s32.f32 %v1780
      %v1788 = vmul.f32 %v1787, %v1785
      %v1789 = vxor.u32 %v1788, 2147483648
      %v1790 = vsel %vm1707, %v1789, %v1788
      %v1791 = vsub.s32 4, %v1767
      %v1792 = vsel %vm1707, %v1791, %v1767
      %v1793 = vsel %vm1706, %v849, %v1790
      %v1794 = vsel %vm1706, 0, %v1792
      %v1795 = vcosq.f32.pop %v1793
      %v1796 = vsinq.f32.pop %v1793
      %vm1797 = vweird.f32 %v849
      %v1798 = vadd.s32 %v1794, 3
      %v1799 = vand.u32 %v1798, 3
      %vm1800 = vcmp.lt.s32.totalorder %v1799, 2
      %vm1801 = vcmp.eq.s32.totalorder %v1799, 0
      %v1802 = vxor.u32 %v1796, 2147483648
      %v1803 = vsel %vm1801, %v1795, %v1802
      %vm1804 = vcmp.eq.s32.totalorder %v1799, 2
      %v1805 = vxor.u32 %v1795, 2147483648
      %v1806 = vsel %vm1804, %v1805, %v1796
      %v1807 = vsel %vm1800, %v1803, %v1806
      %v1808 = vsel %vm1797, nan, %v1807
      %v1809 = vand.u32 2147483647, %v850
      %vm1810 = vcmp.le.f32.partialorder %v1809, 0.7853982
      %vm1811 = vcmp.lt.s32.totalorder %v850, 0
      %v1812 = vand.u32 %v850, 2139095040
      %v1813 = vshrl.u32 %v1812, 23
      %v1814 = vsub.s32 %v1813, 127
      %v1815 = vand.u32 2147483647, %v850
      %v1816 = vand.u32 %v1815, 8388607
      %v1817 = vor.u32 %v1816, 8388608
      %v1818 = vsub.s32 0, %v1817
      %v1819 = vadd.s32 %v1814, 1
      %vm1820 = vcmp.gt.s32.totalorder %v1819, 0
      %v1821 = vsel %vm1820, %v1819, 0
      %v1822 = vshrl.u32 %v1821, 5
      %v1823 = vand.u32 %v1821, 31
      %v1824 = vsub.s32 32, %v1823
      %v1825 = vshrl.u32 683565275, %v1824
      %v1826 = vshll.u32 683565275, %v1823
      %v1827 = vshrl.u32 2475754826, %v1824
      %v1828 = vor.u32 %v1826, %v1827
      %v1829 = vshll.u32 2475754826, %v1823
      %v1830 = vshrl.u32 2131351028, %v1824
      %v1831 = vor.u32 %v1829, %v1830
      %v1832 = vshll.u32 2131351028, %v1823
      %v1833 = vshrl.u32 2102212464, %v1824
      %v1834 = vor.u32 %v1832, %v1833
      %v1835 = vshll.u32 2102212464, %v1823
      %v1836 = vshrl.u32 920167782, %v1824
      %v1837 = vor.u32 %v1835, %v1836
      %v1838 = vshll.u32 920167782, %v1823
      %v1839 = vshrl.u32 1326507024, %v1824
      %v1840 = vor.u32 %v1838, %v1839
      %vm1841 = vcmp.lt.s32.totalorder %v1822, 1
      %vm1842 = vcmp.lt.s32.totalorder %v1822, 2
      %vm1843 = vcmp.lt.s32.totalorder %v1822, 3
      %vm1844 = vcmp.lt.s32.totalorder %v1822, 4
      %v1845 = vsel %vm1841, %v1825, %v1828
      %v1846 = vsel %vm1844, %v1834, 2102212464
      %v1847 = vsel %vm1843, %v1831, %v1846
      %v1848 = vsel %vm1842, %v1845, %v1847
      %v1849 = vsel %vm1841, %v1828, %v1831
      %v1850 = vsel %vm1844, %v1837, 920167782
      %v1851 = vsel %vm1843, %v1834, %v1850
      %v1852 = vsel %vm1842, %v1849, %v1851
      %v1853 = vsel %vm1841, %v1831, %v1834
      %v1854 = vsel %vm1844, %v1840, 1326507024
      %v1855 = vsel %vm1843, %v1837, %v1854
      %v1856 = vsel %vm1842, %v1853, %v1855
      %v1857 = vshll.u32 %v1817, 8
      %v1858 = vmul.u32.u64.compose %v1857, %v1856
      %v1859 = vextract.low.u32 %v1858
      %v1860 = vextract.high.u32 %v1858
      %v1861 = vmul.u32.u64.compose %v1857, %v1852
      %v1862 = vextract.low.u32 %v1861
      %v1863 = vextract.high.u32 %v1861
      %v1864 = vmul.u32 %v1857, %v1848
      %v1865 = vadd.s32 %v1860, %v1862
      %vm1866 = vc.u32 %v1860, %v1862
      %v1867 = vadd.s32 %v1863, 1
      %v1868 = vsel %vm1866, %v1867, %v1863
      %v1869 = vadd.s32 %v1864, %v1868
      %v1870 = vadd.s32 %v1869, 536870912
      %v1871 = vshrl.u32 %v1870, 30
      %v1872 = vshll.u32 %v1871, 30
      %v1873 = vsub.s32 %v1869, %v1872
      %vm1874 = vcmp.lt.s32.totalorder %v1873, 0
      %v1875 = vsub.s32 0, %v1873
      %v1876 = vsel %vm1874, %v1875, %v1873
      %v1877 = vclz %v1876
      %v1878 = vsub.s32 %v1877, 2
      %vm1879 = vcmp.gt.s32.totalorder 0, %v1878
      %v1880 = vsel %vm1879, 0, %v1878
      %v1881 = vsub.s32 32, %v1880
      %v1882 = vshll.u32 %v1873, %v1880
      %v1883 = vshrl.u32 %v1865, %v1881
      %v1884 = vor.u32 %v1882, %v1883
      %v1885 = vsub.s32 4294967266, %v1880
      %v1886 = vadd.s32 %v1885, 127
      %v1887 = vshll.u32 %v1886, 23
      %v1888 = vor.u32 4788187, %v1887
      %v1889 = vand.u32 2147483647, %v1888
      %v1891 = vcvt.s32.f32 %v1884
      %v1892 = vmul.f32 %v1891, %v1889
      %v1893 = vxor.u32 %v1892, 2147483648
      %v1894 = vsel %vm1811, %v1893, %v1892
      %v1895 = vsub.s32 4, %v1871
      %v1896 = vsel %vm1811, %v1895, %v1871
      %v1897 = vsel %vm1810, %v850, %v1894
      %v1898 = vsel %vm1810, 0, %v1896
      %v1899 = vcosq.f32.pop %v1897
      %v1900 = vsinq.f32.pop %v1897
      %vm1901 = vweird.f32 %v850
      %v1902 = vadd.s32 %v1898, 3
      %v1903 = vand.u32 %v1902, 3
      %vm1904 = vcmp.lt.s32.totalorder %v1903, 2
      %vm1905 = vcmp.eq.s32.totalorder %v1903, 0
      %v1906 = vxor.u32 %v1900, 2147483648
      %v1907 = vsel %vm1905, %v1899, %v1906
      %vm1908 = vcmp.eq.s32.totalorder %v1903, 2
      %v1909 = vxor.u32 %v1899, 2147483648
      %v1910 = vsel %vm1908, %v1909, %v1900
      %v1911 = vsel %vm1904, %v1907, %v1910
      %v1912 = vsel %vm1901, nan, %v1911
      %v1913 = vand.u32 2147483647, %v851
      %vm1914 = vcmp.le.f32.partialorder %v1913, 0.7853982
      %vm1915 = vcmp.lt.s32.totalorder %v851, 0
      %v1916 = vand.u32 %v851, 2139095040
      %v1917 = vshrl.u32 %v1916, 23
      %v1918 = vsub.s32 %v1917, 127
      %v1919 = vand.u32 2147483647, %v851
      %v1920 = vand.u32 %v1919, 8388607
      %v1921 = vor.u32 %v1920, 8388608
      %v1922 = vsub.s32 0, %v1921
      %v1923 = vadd.s32 %v1918, 1
      %vm1924 = vcmp.gt.s32.totalorder %v1923, 0
      %v1925 = vsel %vm1924, %v1923, 0
      %v1926 = vshrl.u32 %v1925, 5
      %v1927 = vand.u32 %v1925, 31
      %v1928 = vsub.s32 32, %v1927
      %v1929 = vshrl.u32 683565275, %v1928
      %v1930 = vshll.u32 683565275, %v1927
      %v1931 = vshrl.u32 2475754826, %v1928
      %v1932 = vor.u32 %v1930, %v1931
      %v1933 = vshll.u32 2475754826, %v1927
      %v1934 = vshrl.u32 2131351028, %v1928
      %v1935 = vor.u32 %v1933, %v1934
      %v1936 = vshll.u32 2131351028, %v1927
      %v1937 = vshrl.u32 2102212464, %v1928
      %v1938 = vor.u32 %v1936, %v1937
      %v1939 = vshll.u32 2102212464, %v1927
      %v1940 = vshrl.u32 920167782, %v1928
      %v1941 = vor.u32 %v1939, %v1940
      %v1942 = vshll.u32 920167782, %v1927
      %v1943 = vshrl.u32 1326507024, %v1928
      %v1944 = vor.u32 %v1942, %v1943
      %vm1945 = vcmp.lt.s32.totalorder %v1926, 1
      %vm1946 = vcmp.lt.s32.totalorder %v1926, 2
      %vm1947 = vcmp.lt.s32.totalorder %v1926, 3
      %vm1948 = vcmp.lt.s32.totalorder %v1926, 4
      %v1949 = vsel %vm1945, %v1929, %v1932
      %v1950 = vsel %vm1948, %v1938, 2102212464
      %v1951 = vsel %vm1947, %v1935, %v1950
      %v1952 = vsel %vm1946, %v1949, %v1951
      %v1953 = vsel %vm1945, %v1932, %v1935
      %v1954 = vsel %vm1948, %v1941, 920167782
      %v1955 = vsel %vm1947, %v1938, %v1954
      %v1956 = vsel %vm1946, %v1953, %v1955
      %v1957 = vsel %vm1945, %v1935, %v1938
      %v1958 = vsel %vm1948, %v1944, 1326507024
      %v1959 = vsel %vm1947, %v1941, %v1958
      %v1960 = vsel %vm1946, %v1957, %v1959
      %v1961 = vshll.u32 %v1921, 8
      %v1962 = vmul.u32.u64.compose %v1961, %v1960
      %v1963 = vextract.low.u32 %v1962
      %v1964 = vextract.high.u32 %v1962
      %v1965 = vmul.u32.u64.compose %v1961, %v1956
      %v1966 = vextract.low.u32 %v1965
      %v1967 = vextract.high.u32 %v1965
      %v1968 = vmul.u32 %v1961, %v1952
      %v1969 = vadd.s32 %v1964, %v1966
      %vm1970 = vc.u32 %v1964, %v1966
      %v1971 = vadd.s32 %v1967, 1
      %v1972 = vsel %vm1970, %v1971, %v1967
      %v1973 = vadd.s32 %v1968, %v1972
      %v1974 = vadd.s32 %v1973, 536870912
      %v1975 = vshrl.u32 %v1974, 30
      %v1976 = vshll.u32 %v1975, 30
      %v1977 = vsub.s32 %v1973, %v1976
      %vm1978 = vcmp.lt.s32.totalorder %v1977, 0
      %v1979 = vsub.s32 0, %v1977
      %v1980 = vsel %vm1978, %v1979, %v1977
      %v1981 = vclz %v1980
      %v1982 = vsub.s32 %v1981, 2
      %vm1983 = vcmp.gt.s32.totalorder 0, %v1982
      %v1984 = vsel %vm1983, 0, %v1982
      %v1985 = vsub.s32 32, %v1984
      %v1986 = vshll.u32 %v1977, %v1984
      %v1987 = vshrl.u32 %v1969, %v1985
      %v1988 = vor.u32 %v1986, %v1987
      %v1989 = vsub.s32 4294967266, %v1984
      %v1990 = vadd.s32 %v1989, 127
      %v1991 = vshll.u32 %v1990, 23
      %v1992 = vor.u32 4788187, %v1991
      %v1993 = vand.u32 2147483647, %v1992
      %v1995 = vcvt.s32.f32 %v1988
      %v1996 = vmul.f32 %v1995, %v1993
      %v1997 = vxor.u32 %v1996, 2147483648
      %v1998 = vsel %vm1915, %v1997, %v1996
      %v1999 = vsub.s32 4, %v1975
      %v2000 = vsel %vm1915, %v1999, %v1975
      %v2001 = vsel %vm1914, %v851, %v1998
      %v2002 = vsel %vm1914, 0, %v2000
      %v2003 = vcosq.f32.pop %v2001
      %v2004 = vsinq.f32.pop %v2001
      %vm2005 = vweird.f32 %v851
      %v2006 = vadd.s32 %v2002, 3
      %v2007 = vand.u32 %v2006, 3
      %vm2008 = vcmp.lt.s32.totalorder %v2007, 2
      %vm2009 = vcmp.eq.s32.totalorder %v2007, 0
      %v2010 = vxor.u32 %v2004, 2147483648
      %v2011 = vsel %vm2009, %v2003, %v2010
      %vm2012 = vcmp.eq.s32.totalorder %v2007, 2
      %v2013 = vxor.u32 %v2003, 2147483648
      %v2014 = vsel %vm2012, %v2013, %v2004
      %v2015 = vsel %vm2008, %v2011, %v2014
      %v2016 = vsel %vm2005, nan, %v2015
      %v2017 = vand.u32 2147483647, %v852
      %vm2018 = vcmp.le.f32.partialorder %v2017, 0.7853982
      %vm2019 = vcmp.lt.s32.totalorder %v852, 0
      %v2020 = vand.u32 %v852, 2139095040
      %v2021 = vshrl.u32 %v2020, 23
      %v2022 = vsub.s32 %v2021, 127
      %v2023 = vand.u32 2147483647, %v852
      %v2024 = vand.u32 %v2023, 8388607
      %v2025 = vor.u32 %v2024, 8388608
      %v2026 = vsub.s32 0, %v2025
      %v2027 = vadd.s32 %v2022, 1
      %vm2028 = vcmp.gt.s32.totalorder %v2027, 0
      %v2029 = vsel %vm2028, %v2027, 0
      %v2030 = vshrl.u32 %v2029, 5
      %v2031 = vand.u32 %v2029, 31
      %v2032 = vsub.s32 32, %v2031
      %v2033 = vshrl.u32 683565275, %v2032
      %v2034 = vshll.u32 683565275, %v2031
      %v2035 = vshrl.u32 2475754826, %v2032
      %v2036 = vor.u32 %v2034, %v2035
      %v2037 = vshll.u32 2475754826, %v2031
      %v2038 = vshrl.u32 2131351028, %v2032
      %v2039 = vor.u32 %v2037, %v2038
      %v2040 = vshll.u32 2131351028, %v2031
      %v2041 = vshrl.u32 2102212464, %v2032
      %v2042 = vor.u32 %v2040, %v2041
      %v2043 = vshll.u32 2102212464, %v2031
      %v2044 = vshrl.u32 920167782, %v2032
      %v2045 = vor.u32 %v2043, %v2044
      %v2046 = vshll.u32 920167782, %v2031
      %v2047 = vshrl.u32 1326507024, %v2032
      %v2048 = vor.u32 %v2046, %v2047
      %vm2049 = vcmp.lt.s32.totalorder %v2030, 1
      %vm2050 = vcmp.lt.s32.totalorder %v2030, 2
      %vm2051 = vcmp.lt.s32.totalorder %v2030, 3
      %vm2052 = vcmp.lt.s32.totalorder %v2030, 4
      %v2053 = vsel %vm2049, %v2033, %v2036
      %v2054 = vsel %vm2052, %v2042, 2102212464
      %v2055 = vsel %vm2051, %v2039, %v2054
      %v2056 = vsel %vm2050, %v2053, %v2055
      %v2057 = vsel %vm2049, %v2036, %v2039
      %v2058 = vsel %vm2052, %v2045, 920167782
      %v2059 = vsel %vm2051, %v2042, %v2058
      %v2060 = vsel %vm2050, %v2057, %v2059
      %v2061 = vsel %vm2049, %v2039, %v2042
      %v2062 = vsel %vm2052, %v2048, 1326507024
      %v2063 = vsel %vm2051, %v2045, %v2062
      %v2064 = vsel %vm2050, %v2061, %v2063
      %v2065 = vshll.u32 %v2025, 8
      %v2066 = vmul.u32.u64.compose %v2065, %v2064
      %v2067 = vextract.low.u32 %v2066
      %v2068 = vextract.high.u32 %v2066
      %v2069 = vmul.u32.u64.compose %v2065, %v2060
      %v2070 = vextract.low.u32 %v2069
      %v2071 = vextract.high.u32 %v2069
      %v2072 = vmul.u32 %v2065, %v2056
      %v2073 = vadd.s32 %v2068, %v2070
      %vm2074 = vc.u32 %v2068, %v2070
      %v2075 = vadd.s32 %v2071, 1
      %v2076 = vsel %vm2074, %v2075, %v2071
      %v2077 = vadd.s32 %v2072, %v2076
      %v2078 = vadd.s32 %v2077, 536870912
      %v2079 = vshrl.u32 %v2078, 30
      %v2080 = vshll.u32 %v2079, 30
      %v2081 = vsub.s32 %v2077, %v2080
      %vm2082 = vcmp.lt.s32.totalorder %v2081, 0
      %v2083 = vsub.s32 0, %v2081
      %v2084 = vsel %vm2082, %v2083, %v2081
      %v2085 = vclz %v2084
      %v2086 = vsub.s32 %v2085, 2
      %vm2087 = vcmp.gt.s32.totalorder 0, %v2086
      %v2088 = vsel %vm2087, 0, %v2086
      %v2089 = vsub.s32 32, %v2088
      %v2090 = vshll.u32 %v2081, %v2088
      %v2091 = vshrl.u32 %v2073, %v2089
      %v2092 = vor.u32 %v2090, %v2091
      %v2093 = vsub.s32 4294967266, %v2088
      %v2094 = vadd.s32 %v2093, 127
      %v2095 = vshll.u32 %v2094, 23
      %v2096 = vor.u32 4788187, %v2095
      %v2097 = vand.u32 2147483647, %v2096
      %v2099 = vcvt.s32.f32 %v2092
      %v2100 = vmul.f32 %v2099, %v2097
      %v2101 = vxor.u32 %v2100, 2147483648
      %v2102 = vsel %vm2019, %v2101, %v2100
      %v2103 = vsub.s32 4, %v2079
      %v2104 = vsel %vm2019, %v2103, %v2079
      %v2105 = vsel %vm2018, %v852, %v2102
      %v2106 = vsel %vm2018, 0, %v2104
      %v2107 = vcosq.f32.pop %v2105
      %v2108 = vsinq.f32.pop %v2105
      %vm2109 = vweird.f32 %v852
      %v2110 = vadd.s32 %v2106, 3
      %v2111 = vand.u32 %v2110, 3
      %vm2112 = vcmp.lt.s32.totalorder %v2111, 2
      %vm2113 = vcmp.eq.s32.totalorder %v2111, 0
      %v2114 = vxor.u32 %v2108, 2147483648
      %v2115 = vsel %vm2113, %v2107, %v2114
      %vm2116 = vcmp.eq.s32.totalorder %v2111, 2
      %v2117 = vxor.u32 %v2107, 2147483648
      %v2118 = vsel %vm2116, %v2117, %v2108
      %v2119 = vsel %vm2112, %v2115, %v2118
      %v2120 = vsel %vm2109, nan, %v2119
      %v2121 = vand.u32 2147483647, %v853
      %vm2122 = vcmp.le.f32.partialorder %v2121, 0.7853982
      %vm2123 = vcmp.lt.s32.totalorder %v853, 0
      %v2124 = vand.u32 %v853, 2139095040
      %v2125 = vshrl.u32 %v2124, 23
      %v2126 = vsub.s32 %v2125, 127
      %v2127 = vand.u32 2147483647, %v853
      %v2128 = vand.u32 %v2127, 8388607
      %v2129 = vor.u32 %v2128, 8388608
      %v2130 = vsub.s32 0, %v2129
      %v2131 = vadd.s32 %v2126, 1
      %vm2132 = vcmp.gt.s32.totalorder %v2131, 0
      %v2133 = vsel %vm2132, %v2131, 0
      %v2134 = vshrl.u32 %v2133, 5
      %v2135 = vand.u32 %v2133, 31
      %v2136 = vsub.s32 32, %v2135
      %v2137 = vshrl.u32 683565275, %v2136
      %v2138 = vshll.u32 683565275, %v2135
      %v2139 = vshrl.u32 2475754826, %v2136
      %v2140 = vor.u32 %v2138, %v2139
      %v2141 = vshll.u32 2475754826, %v2135
      %v2142 = vshrl.u32 2131351028, %v2136
      %v2143 = vor.u32 %v2141, %v2142
      %v2144 = vshll.u32 2131351028, %v2135
      %v2145 = vshrl.u32 2102212464, %v2136
      %v2146 = vor.u32 %v2144, %v2145
      %v2147 = vshll.u32 2102212464, %v2135
      %v2148 = vshrl.u32 920167782, %v2136
      %v2149 = vor.u32 %v2147, %v2148
      %v2150 = vshll.u32 920167782, %v2135
      %v2151 = vshrl.u32 1326507024, %v2136
      %v2152 = vor.u32 %v2150, %v2151
      %vm2153 = vcmp.lt.s32.totalorder %v2134, 1
      %vm2154 = vcmp.lt.s32.totalorder %v2134, 2
      %vm2155 = vcmp.lt.s32.totalorder %v2134, 3
      %vm2156 = vcmp.lt.s32.totalorder %v2134, 4
      %v2157 = vsel %vm2153, %v2137, %v2140
      %v2158 = vsel %vm2156, %v2146, 2102212464
      %v2159 = vsel %vm2155, %v2143, %v2158
      %v2160 = vsel %vm2154, %v2157, %v2159
      %v2161 = vsel %vm2153, %v2140, %v2143
      %v2162 = vsel %vm2156, %v2149, 920167782
      %v2163 = vsel %vm2155, %v2146, %v2162
      %v2164 = vsel %vm2154, %v2161, %v2163
      %v2165 = vsel %vm2153, %v2143, %v2146
      %v2166 = vsel %vm2156, %v2152, 1326507024
      %v2167 = vsel %vm2155, %v2149, %v2166
      %v2168 = vsel %vm2154, %v2165, %v2167
      %v2169 = vshll.u32 %v2129, 8
      %v2170 = vmul.u32.u64.compose %v2169, %v2168
      %v2171 = vextract.low.u32 %v2170
      %v2172 = vextract.high.u32 %v2170
      %v2173 = vmul.u32.u64.compose %v2169, %v2164
      %v2174 = vextract.low.u32 %v2173
      %v2175 = vextract.high.u32 %v2173
      %v2176 = vmul.u32 %v2169, %v2160
      %v2177 = vadd.s32 %v2172, %v2174
      %vm2178 = vc.u32 %v2172, %v2174
      %v2179 = vadd.s32 %v2175, 1
      %v2180 = vsel %vm2178, %v2179, %v2175
      %v2181 = vadd.s32 %v2176, %v2180
      %v2182 = vadd.s32 %v2181, 536870912
      %v2183 = vshrl.u32 %v2182, 30
      %v2184 = vshll.u32 %v2183, 30
      %v2185 = vsub.s32 %v2181, %v2184
      %vm2186 = vcmp.lt.s32.totalorder %v2185, 0
      %v2187 = vsub.s32 0, %v2185
      %v2188 = vsel %vm2186, %v2187, %v2185
      %v2189 = vclz %v2188
      %v2190 = vsub.s32 %v2189, 2
      %vm2191 = vcmp.gt.s32.totalorder 0, %v2190
      %v2192 = vsel %vm2191, 0, %v2190
      %v2193 = vsub.s32 32, %v2192
      %v2194 = vshll.u32 %v2185, %v2192
      %v2195 = vshrl.u32 %v2177, %v2193
      %v2196 = vor.u32 %v2194, %v2195
      %v2197 = vsub.s32 4294967266, %v2192
      %v2198 = vadd.s32 %v2197, 127
      %v2199 = vshll.u32 %v2198, 23
      %v2200 = vor.u32 4788187, %v2199
      %v2201 = vand.u32 2147483647, %v2200
      %v2203 = vcvt.s32.f32 %v2196
      %v2204 = vmul.f32 %v2203, %v2201
      %v2205 = vxor.u32 %v2204, 2147483648
      %v2206 = vsel %vm2123, %v2205, %v2204
      %v2207 = vsub.s32 4, %v2183
      %v2208 = vsel %vm2123, %v2207, %v2183
      %v2209 = vsel %vm2122, %v853, %v2206
      %v2210 = vsel %vm2122, 0, %v2208
      %v2211 = vcosq.f32.pop %v2209
      %v2212 = vsinq.f32.pop %v2209
      %vm2213 = vweird.f32 %v853
      %v2214 = vadd.s32 %v2210, 3
      %v2215 = vand.u32 %v2214, 3
      %vm2216 = vcmp.lt.s32.totalorder %v2215, 2
      %vm2217 = vcmp.eq.s32.totalorder %v2215, 0
      %v2218 = vxor.u32 %v2212, 2147483648
      %v2219 = vsel %vm2217, %v2211, %v2218
      %vm2220 = vcmp.eq.s32.totalorder %v2215, 2
      %v2221 = vxor.u32 %v2211, 2147483648
      %v2222 = vsel %vm2220, %v2221, %v2212
      %v2223 = vsel %vm2216, %v2219, %v2222
      %v2224 = vsel %vm2213, nan, %v2223
      %v2225 = vand.u32 2147483647, %v854
      %vm2226 = vcmp.le.f32.partialorder %v2225, 0.7853982
      %vm2227 = vcmp.lt.s32.totalorder %v854, 0
      %v2228 = vand.u32 %v854, 2139095040
      %v2229 = vshrl.u32 %v2228, 23
      %v2230 = vsub.s32 %v2229, 127
      %v2231 = vand.u32 2147483647, %v854
      %v2232 = vand.u32 %v2231, 8388607
      %v2233 = vor.u32 %v2232, 8388608
      %v2234 = vsub.s32 0, %v2233
      %v2235 = vadd.s32 %v2230, 1
      %vm2236 = vcmp.gt.s32.totalorder %v2235, 0
      %v2237 = vsel %vm2236, %v2235, 0
      %v2238 = vshrl.u32 %v2237, 5
      %v2239 = vand.u32 %v2237, 31
      %v2240 = vsub.s32 32, %v2239
      %v2241 = vshrl.u32 683565275, %v2240
      %v2242 = vshll.u32 683565275, %v2239
      %v2243 = vshrl.u32 2475754826, %v2240
      %v2244 = vor.u32 %v2242, %v2243
      %v2245 = vshll.u32 2475754826, %v2239
      %v2246 = vshrl.u32 2131351028, %v2240
      %v2247 = vor.u32 %v2245, %v2246
      %v2248 = vshll.u32 2131351028, %v2239
      %v2249 = vshrl.u32 2102212464, %v2240
      %v2250 = vor.u32 %v2248, %v2249
      %v2251 = vshll.u32 2102212464, %v2239
      %v2252 = vshrl.u32 920167782, %v2240
      %v2253 = vor.u32 %v2251, %v2252
      %v2254 = vshll.u32 920167782, %v2239
      %v2255 = vshrl.u32 1326507024, %v2240
      %v2256 = vor.u32 %v2254, %v2255
      %vm2257 = vcmp.lt.s32.totalorder %v2238, 1
      %vm2258 = vcmp.lt.s32.totalorder %v2238, 2
      %vm2259 = vcmp.lt.s32.totalorder %v2238, 3
      %vm2260 = vcmp.lt.s32.totalorder %v2238, 4
      %v2261 = vsel %vm2257, %v2241, %v2244
      %v2262 = vsel %vm2260, %v2250, 2102212464
      %v2263 = vsel %vm2259, %v2247, %v2262
      %v2264 = vsel %vm2258, %v2261, %v2263
      %v2265 = vsel %vm2257, %v2244, %v2247
      %v2266 = vsel %vm2260, %v2253, 920167782
      %v2267 = vsel %vm2259, %v2250, %v2266
      %v2268 = vsel %vm2258, %v2265, %v2267
      %v2269 = vsel %vm2257, %v2247, %v2250
      %v2270 = vsel %vm2260, %v2256, 1326507024
      %v2271 = vsel %vm2259, %v2253, %v2270
      %v2272 = vsel %vm2258, %v2269, %v2271
      %v2273 = vshll.u32 %v2233, 8
      %v2274 = vmul.u32.u64.compose %v2273, %v2272
      %v2275 = vextract.low.u32 %v2274
      %v2276 = vextract.high.u32 %v2274
      %v2277 = vmul.u32.u64.compose %v2273, %v2268
      %v2278 = vextract.low.u32 %v2277
      %v2279 = vextract.high.u32 %v2277
      %v2280 = vmul.u32 %v2273, %v2264
      %v2281 = vadd.s32 %v2276, %v2278
      %vm2282 = vc.u32 %v2276, %v2278
      %v2283 = vadd.s32 %v2279, 1
      %v2284 = vsel %vm2282, %v2283, %v2279
      %v2285 = vadd.s32 %v2280, %v2284
      %v2286 = vadd.s32 %v2285, 536870912
      %v2287 = vshrl.u32 %v2286, 30
      %v2288 = vshll.u32 %v2287, 30
      %v2289 = vsub.s32 %v2285, %v2288
      %vm2290 = vcmp.lt.s32.totalorder %v2289, 0
      %v2291 = vsub.s32 0, %v2289
      %v2292 = vsel %vm2290, %v2291, %v2289
      %v2293 = vclz %v2292
      %v2294 = vsub.s32 %v2293, 2
      %vm2295 = vcmp.gt.s32.totalorder 0, %v2294
      %v2296 = vsel %vm2295, 0, %v2294
      %v2297 = vsub.s32 32, %v2296
      %v2298 = vshll.u32 %v2289, %v2296
      %v2299 = vshrl.u32 %v2281, %v2297
      %v2300 = vor.u32 %v2298, %v2299
      %v2301 = vsub.s32 4294967266, %v2296
      %v2302 = vadd.s32 %v2301, 127
      %v2303 = vshll.u32 %v2302, 23
      %v2304 = vor.u32 4788187, %v2303
      %v2305 = vand.u32 2147483647, %v2304
      %v2307 = vcvt.s32.f32 %v2300
      %v2308 = vmul.f32 %v2307, %v2305
      %v2309 = vxor.u32 %v2308, 2147483648
      %v2310 = vsel %vm2227, %v2309, %v2308
      %v2311 = vsub.s32 4, %v2287
      %v2312 = vsel %vm2227, %v2311, %v2287
      %v2313 = vsel %vm2226, %v854, %v2310
      %v2314 = vsel %vm2226, 0, %v2312
      %v2315 = vcosq.f32.pop %v2313
      %v2316 = vsinq.f32.pop %v2313
      %vm2317 = vweird.f32 %v854
      %v2318 = vadd.s32 %v2314, 3
      %v2319 = vand.u32 %v2318, 3
      %vm2320 = vcmp.lt.s32.totalorder %v2319, 2
      %vm2321 = vcmp.eq.s32.totalorder %v2319, 0
      %v2322 = vxor.u32 %v2316, 2147483648
      %v2323 = vsel %vm2321, %v2315, %v2322
      %vm2324 = vcmp.eq.s32.totalorder %v2319, 2
      %v2325 = vxor.u32 %v2315, 2147483648
      %v2326 = vsel %vm2324, %v2325, %v2316
      %v2327 = vsel %vm2320, %v2323, %v2326
      %v2328 = vsel %vm2317, nan, %v2327
      %v2329 = vand.u32 2147483647, %v855
      %vm2330 = vcmp.le.f32.partialorder %v2329, 0.7853982
      %vm2331 = vcmp.lt.s32.totalorder %v855, 0
      %v2332 = vand.u32 %v855, 2139095040
      %v2333 = vshrl.u32 %v2332, 23
      %v2334 = vsub.s32 %v2333, 127
      %v2335 = vand.u32 2147483647, %v855
      %v2336 = vand.u32 %v2335, 8388607
      %v2337 = vor.u32 %v2336, 8388608
      %v2338 = vsub.s32 0, %v2337
      %v2339 = vadd.s32 %v2334, 1
      %vm2340 = vcmp.gt.s32.totalorder %v2339, 0
      %v2341 = vsel %vm2340, %v2339, 0
      %v2342 = vshrl.u32 %v2341, 5
      %v2343 = vand.u32 %v2341, 31
      %v2344 = vsub.s32 32, %v2343
      %v2345 = vshrl.u32 683565275, %v2344
      %v2346 = vshll.u32 683565275, %v2343
      %v2347 = vshrl.u32 2475754826, %v2344
      %v2348 = vor.u32 %v2346, %v2347
      %v2349 = vshll.u32 2475754826, %v2343
      %v2350 = vshrl.u32 2131351028, %v2344
      %v2351 = vor.u32 %v2349, %v2350
      %v2352 = vshll.u32 2131351028, %v2343
      %v2353 = vshrl.u32 2102212464, %v2344
      %v2354 = vor.u32 %v2352, %v2353
      %v2355 = vshll.u32 2102212464, %v2343
      %v2356 = vshrl.u32 920167782, %v2344
      %v2357 = vor.u32 %v2355, %v2356
      %v2358 = vshll.u32 920167782, %v2343
      %v2359 = vshrl.u32 1326507024, %v2344
      %v2360 = vor.u32 %v2358, %v2359
      %vm2361 = vcmp.lt.s32.totalorder %v2342, 1
      %vm2362 = vcmp.lt.s32.totalorder %v2342, 2
      %vm2363 = vcmp.lt.s32.totalorder %v2342, 3
      %vm2364 = vcmp.lt.s32.totalorder %v2342, 4
      %v2365 = vsel %vm2361, %v2345, %v2348
      %v2366 = vsel %vm2364, %v2354, 2102212464
      %v2367 = vsel %vm2363, %v2351, %v2366
      %v2368 = vsel %vm2362, %v2365, %v2367
      %v2369 = vsel %vm2361, %v2348, %v2351
      %v2370 = vsel %vm2364, %v2357, 920167782
      %v2371 = vsel %vm2363, %v2354, %v2370
      %v2372 = vsel %vm2362, %v2369, %v2371
      %v2373 = vsel %vm2361, %v2351, %v2354
      %v2374 = vsel %vm2364, %v2360, 1326507024
      %v2375 = vsel %vm2363, %v2357, %v2374
      %v2376 = vsel %vm2362, %v2373, %v2375
      %v2377 = vshll.u32 %v2337, 8
      %v2378 = vmul.u32.u64.compose %v2377, %v2376
      %v2379 = vextract.low.u32 %v2378
      %v2380 = vextract.high.u32 %v2378
      %v2381 = vmul.u32.u64.compose %v2377, %v2372
      %v2382 = vextract.low.u32 %v2381
      %v2383 = vextract.high.u32 %v2381
      %v2384 = vmul.u32 %v2377, %v2368
      %v2385 = vadd.s32 %v2380, %v2382
      %vm2386 = vc.u32 %v2380, %v2382
      %v2387 = vadd.s32 %v2383, 1
      %v2388 = vsel %vm2386, %v2387, %v2383
      %v2389 = vadd.s32 %v2384, %v2388
      %v2390 = vadd.s32 %v2389, 536870912
      %v2391 = vshrl.u32 %v2390, 30
      %v2392 = vshll.u32 %v2391, 30
      %v2393 = vsub.s32 %v2389, %v2392
      %vm2394 = vcmp.lt.s32.totalorder %v2393, 0
      %v2395 = vsub.s32 0, %v2393
      %v2396 = vsel %vm2394, %v2395, %v2393
      %v2397 = vclz %v2396
      %v2398 = vsub.s32 %v2397, 2
      %vm2399 = vcmp.gt.s32.totalorder 0, %v2398
      %v2400 = vsel %vm2399, 0, %v2398
      %v2401 = vsub.s32 32, %v2400
      %v2402 = vshll.u32 %v2393, %v2400
      %v2403 = vshrl.u32 %v2385, %v2401
      %v2404 = vor.u32 %v2402, %v2403
      %v2405 = vsub.s32 4294967266, %v2400
      %v2406 = vadd.s32 %v2405, 127
      %v2407 = vshll.u32 %v2406, 23
      %v2408 = vor.u32 4788187, %v2407
      %v2409 = vand.u32 2147483647, %v2408
      %v2411 = vcvt.s32.f32 %v2404
      %v2412 = vmul.f32 %v2411, %v2409
      %v2413 = vxor.u32 %v2412, 2147483648
      %v2414 = vsel %vm2331, %v2413, %v2412
      %v2415 = vsub.s32 4, %v2391
      %v2416 = vsel %vm2331, %v2415, %v2391
      %v2417 = vsel %vm2330, %v855, %v2414
      %v2418 = vsel %vm2330, 0, %v2416
      %v2419 = vcosq.f32.pop %v2417
      %v2420 = vsinq.f32.pop %v2417
      %vm2421 = vweird.f32 %v855
      %v2422 = vadd.s32 %v2418, 3
      %v2423 = vand.u32 %v2422, 3
      %vm2424 = vcmp.lt.s32.totalorder %v2423, 2
      %vm2425 = vcmp.eq.s32.totalorder %v2423, 0
      %v2426 = vxor.u32 %v2420, 2147483648
      %v2427 = vsel %vm2425, %v2419, %v2426
      %vm2428 = vcmp.eq.s32.totalorder %v2423, 2
      %v2429 = vxor.u32 %v2419, 2147483648
      %v2430 = vsel %vm2428, %v2429, %v2420
      %v2431 = vsel %vm2424, %v2427, %v2430
      %v2432 = vsel %vm2421, nan, %v2431
      %v2433 = vand.u32 2147483647, %v856
      %vm2434 = vcmp.le.f32.partialorder %v2433, 0.7853982
      %vm2435 = vcmp.lt.s32.totalorder %v856, 0
      %v2436 = vand.u32 %v856, 2139095040
      %v2437 = vshrl.u32 %v2436, 23
      %v2438 = vsub.s32 %v2437, 127
      %v2439 = vand.u32 2147483647, %v856
      %v2440 = vand.u32 %v2439, 8388607
      %v2441 = vor.u32 %v2440, 8388608
      %v2442 = vsub.s32 0, %v2441
      %v2443 = vadd.s32 %v2438, 1
      %vm2444 = vcmp.gt.s32.totalorder %v2443, 0
      %v2445 = vsel %vm2444, %v2443, 0
      %v2446 = vshrl.u32 %v2445, 5
      %v2447 = vand.u32 %v2445, 31
      %v2448 = vsub.s32 32, %v2447
      %v2449 = vshrl.u32 683565275, %v2448
      %v2450 = vshll.u32 683565275, %v2447
      %v2451 = vshrl.u32 2475754826, %v2448
      %v2452 = vor.u32 %v2450, %v2451
      %v2453 = vshll.u32 2475754826, %v2447
      %v2454 = vshrl.u32 2131351028, %v2448
      %v2455 = vor.u32 %v2453, %v2454
      %v2456 = vshll.u32 2131351028, %v2447
      %v2457 = vshrl.u32 2102212464, %v2448
      %v2458 = vor.u32 %v2456, %v2457
      %v2459 = vshll.u32 2102212464, %v2447
      %v2460 = vshrl.u32 920167782, %v2448
      %v2461 = vor.u32 %v2459, %v2460
      %v2462 = vshll.u32 920167782, %v2447
      %v2463 = vshrl.u32 1326507024, %v2448
      %v2464 = vor.u32 %v2462, %v2463
      %vm2465 = vcmp.lt.s32.totalorder %v2446, 1
      %vm2466 = vcmp.lt.s32.totalorder %v2446, 2
      %vm2467 = vcmp.lt.s32.totalorder %v2446, 3
      %vm2468 = vcmp.lt.s32.totalorder %v2446, 4
      %v2469 = vsel %vm2465, %v2449, %v2452
      %v2470 = vsel %vm2468, %v2458, 2102212464
      %v2471 = vsel %vm2467, %v2455, %v2470
      %v2472 = vsel %vm2466, %v2469, %v2471
      %v2473 = vsel %vm2465, %v2452, %v2455
      %v2474 = vsel %vm2468, %v2461, 920167782
      %v2475 = vsel %vm2467, %v2458, %v2474
      %v2476 = vsel %vm2466, %v2473, %v2475
      %v2477 = vsel %vm2465, %v2455, %v2458
      %v2478 = vsel %vm2468, %v2464, 1326507024
      %v2479 = vsel %vm2467, %v2461, %v2478
      %v2480 = vsel %vm2466, %v2477, %v2479
      %v2481 = vshll.u32 %v2441, 8
      %v2482 = vmul.u32.u64.compose %v2481, %v2480
      %v2483 = vextract.low.u32 %v2482
      %v2484 = vextract.high.u32 %v2482
      %v2485 = vmul.u32.u64.compose %v2481, %v2476
      %v2486 = vextract.low.u32 %v2485
      %v2487 = vextract.high.u32 %v2485
      %v2488 = vmul.u32 %v2481, %v2472
      %v2489 = vadd.s32 %v2484, %v2486
      %vm2490 = vc.u32 %v2484, %v2486
      %v2491 = vadd.s32 %v2487, 1
      %v2492 = vsel %vm2490, %v2491, %v2487
      %v2493 = vadd.s32 %v2488, %v2492
      %v2494 = vadd.s32 %v2493, 536870912
      %v2495 = vshrl.u32 %v2494, 30
      %v2496 = vshll.u32 %v2495, 30
      %v2497 = vsub.s32 %v2493, %v2496
      %vm2498 = vcmp.lt.s32.totalorder %v2497, 0
      %v2499 = vsub.s32 0, %v2497
      %v2500 = vsel %vm2498, %v2499, %v2497
      %v2501 = vclz %v2500
      %v2502 = vsub.s32 %v2501, 2
      %vm2503 = vcmp.gt.s32.totalorder 0, %v2502
      %v2504 = vsel %vm2503, 0, %v2502
      %v2505 = vsub.s32 32, %v2504
      %v2506 = vshll.u32 %v2497, %v2504
      %v2507 = vshrl.u32 %v2489, %v2505
      %v2508 = vor.u32 %v2506, %v2507
      %v2509 = vsub.s32 4294967266, %v2504
      %v2510 = vadd.s32 %v2509, 127
      %v2511 = vshll.u32 %v2510, 23
      %v2512 = vor.u32 4788187, %v2511
      %v2513 = vand.u32 2147483647, %v2512
      %v2515 = vcvt.s32.f32 %v2508
      %v2516 = vmul.f32 %v2515, %v2513
      %v2517 = vxor.u32 %v2516, 2147483648
      %v2518 = vsel %vm2435, %v2517, %v2516
      %v2519 = vsub.s32 4, %v2495
      %v2520 = vsel %vm2435, %v2519, %v2495
      %v2521 = vsel %vm2434, %v856, %v2518
      %v2522 = vsel %vm2434, 0, %v2520
      %v2523 = vcosq.f32.pop %v2521
      %v2524 = vsinq.f32.pop %v2521
      %vm2525 = vweird.f32 %v856
      %v2526 = vadd.s32 %v2522, 3
      %v2527 = vand.u32 %v2526, 3
      %vm2528 = vcmp.lt.s32.totalorder %v2527, 2
      %vm2529 = vcmp.eq.s32.totalorder %v2527, 0
      %v2530 = vxor.u32 %v2524, 2147483648
      %v2531 = vsel %vm2529, %v2523, %v2530
      %vm2532 = vcmp.eq.s32.totalorder %v2527, 2
      %v2533 = vxor.u32 %v2523, 2147483648
      %v2534 = vsel %vm2532, %v2533, %v2524
      %v2535 = vsel %vm2528, %v2531, %v2534
      %v2536 = vsel %vm2525, nan, %v2535
      %v2537 = vand.u32 2147483647, %v857
      %vm2538 = vcmp.le.f32.partialorder %v2537, 0.7853982
      %vm2539 = vcmp.lt.s32.totalorder %v857, 0
      %v2540 = vand.u32 %v857, 2139095040
      %v2541 = vshrl.u32 %v2540, 23
      %v2542 = vsub.s32 %v2541, 127
      %v2543 = vand.u32 2147483647, %v857
      %v2544 = vand.u32 %v2543, 8388607
      %v2545 = vor.u32 %v2544, 8388608
      %v2546 = vsub.s32 0, %v2545
      %v2547 = vadd.s32 %v2542, 1
      %vm2548 = vcmp.gt.s32.totalorder %v2547, 0
      %v2549 = vsel %vm2548, %v2547, 0
      %v2550 = vshrl.u32 %v2549, 5
      %v2551 = vand.u32 %v2549, 31
      %v2552 = vsub.s32 32, %v2551
      %v2553 = vshrl.u32 683565275, %v2552
      %v2554 = vshll.u32 683565275, %v2551
      %v2555 = vshrl.u32 2475754826, %v2552
      %v2556 = vor.u32 %v2554, %v2555
      %v2557 = vshll.u32 2475754826, %v2551
      %v2558 = vshrl.u32 2131351028, %v2552
      %v2559 = vor.u32 %v2557, %v2558
      %v2560 = vshll.u32 2131351028, %v2551
      %v2561 = vshrl.u32 2102212464, %v2552
      %v2562 = vor.u32 %v2560, %v2561
      %v2563 = vshll.u32 2102212464, %v2551
      %v2564 = vshrl.u32 920167782, %v2552
      %v2565 = vor.u32 %v2563, %v2564
      %v2566 = vshll.u32 920167782, %v2551
      %v2567 = vshrl.u32 1326507024, %v2552
      %v2568 = vor.u32 %v2566, %v2567
      %vm2569 = vcmp.lt.s32.totalorder %v2550, 1
      %vm2570 = vcmp.lt.s32.totalorder %v2550, 2
      %vm2571 = vcmp.lt.s32.totalorder %v2550, 3
      %vm2572 = vcmp.lt.s32.totalorder %v2550, 4
      %v2573 = vsel %vm2569, %v2553, %v2556
      %v2574 = vsel %vm2572, %v2562, 2102212464
      %v2575 = vsel %vm2571, %v2559, %v2574
      %v2576 = vsel %vm2570, %v2573, %v2575
      %v2577 = vsel %vm2569, %v2556, %v2559
      %v2578 = vsel %vm2572, %v2565, 920167782
      %v2579 = vsel %vm2571, %v2562, %v2578
      %v2580 = vsel %vm2570, %v2577, %v2579
      %v2581 = vsel %vm2569, %v2559, %v2562
      %v2582 = vsel %vm2572, %v2568, 1326507024
      %v2583 = vsel %vm2571, %v2565, %v2582
      %v2584 = vsel %vm2570, %v2581, %v2583
      %v2585 = vshll.u32 %v2545, 8
      %v2586 = vmul.u32.u64.compose %v2585, %v2584
      %v2587 = vextract.low.u32 %v2586
      %v2588 = vextract.high.u32 %v2586
      %v2589 = vmul.u32.u64.compose %v2585, %v2580
      %v2590 = vextract.low.u32 %v2589
      %v2591 = vextract.high.u32 %v2589
      %v2592 = vmul.u32 %v2585, %v2576
      %v2593 = vadd.s32 %v2588, %v2590
      %vm2594 = vc.u32 %v2588, %v2590
      %v2595 = vadd.s32 %v2591, 1
      %v2596 = vsel %vm2594, %v2595, %v2591
      %v2597 = vadd.s32 %v2592, %v2596
      %v2598 = vadd.s32 %v2597, 536870912
      %v2599 = vshrl.u32 %v2598, 30
      %v2600 = vshll.u32 %v2599, 30
      %v2601 = vsub.s32 %v2597, %v2600
      %vm2602 = vcmp.lt.s32.totalorder %v2601, 0
      %v2603 = vsub.s32 0, %v2601
      %v2604 = vsel %vm2602, %v2603, %v2601
      %v2605 = vclz %v2604
      %v2606 = vsub.s32 %v2605, 2
      %vm2607 = vcmp.gt.s32.totalorder 0, %v2606
      %v2608 = vsel %vm2607, 0, %v2606
      %v2609 = vsub.s32 32, %v2608
      %v2610 = vshll.u32 %v2601, %v2608
      %v2611 = vshrl.u32 %v2593, %v2609
      %v2612 = vor.u32 %v2610, %v2611
      %v2613 = vsub.s32 4294967266, %v2608
      %v2614 = vadd.s32 %v2613, 127
      %v2615 = vshll.u32 %v2614, 23
      %v2616 = vor.u32 4788187, %v2615
      %v2617 = vand.u32 2147483647, %v2616
      %v2619 = vcvt.s32.f32 %v2612
      %v2620 = vmul.f32 %v2619, %v2617
      %v2621 = vxor.u32 %v2620, 2147483648
      %v2622 = vsel %vm2539, %v2621, %v2620
      %v2623 = vsub.s32 4, %v2599
      %v2624 = vsel %vm2539, %v2623, %v2599
      %v2625 = vsel %vm2538, %v857, %v2622
      %v2626 = vsel %vm2538, 0, %v2624
      %v2627 = vcosq.f32.pop %v2625
      %v2628 = vsinq.f32.pop %v2625
      %vm2629 = vweird.f32 %v857
      %v2630 = vadd.s32 %v2626, 3
      %v2631 = vand.u32 %v2630, 3
      %vm2632 = vcmp.lt.s32.totalorder %v2631, 2
      %vm2633 = vcmp.eq.s32.totalorder %v2631, 0
      %v2634 = vxor.u32 %v2628, 2147483648
      %v2635 = vsel %vm2633, %v2627, %v2634
      %vm2636 = vcmp.eq.s32.totalorder %v2631, 2
      %v2637 = vxor.u32 %v2627, 2147483648
      %v2638 = vsel %vm2636, %v2637, %v2628
      %v2639 = vsel %vm2632, %v2635, %v2638
      %v2640 = vsel %vm2629, nan, %v2639
      %v2641 = vand.u32 2147483647, %v858
      %vm2642 = vcmp.le.f32.partialorder %v2641, 0.7853982
      %vm2643 = vcmp.lt.s32.totalorder %v858, 0
      %v2644 = vand.u32 %v858, 2139095040
      %v2645 = vshrl.u32 %v2644, 23
      %v2646 = vsub.s32 %v2645, 127
      %v2647 = vand.u32 2147483647, %v858
      %v2648 = vand.u32 %v2647, 8388607
      %v2649 = vor.u32 %v2648, 8388608
      %v2650 = vsub.s32 0, %v2649
      %v2651 = vadd.s32 %v2646, 1
      %vm2652 = vcmp.gt.s32.totalorder %v2651, 0
      %v2653 = vsel %vm2652, %v2651, 0
      %v2654 = vshrl.u32 %v2653, 5
      %v2655 = vand.u32 %v2653, 31
      %v2656 = vsub.s32 32, %v2655
      %v2657 = vshrl.u32 683565275, %v2656
      %v2658 = vshll.u32 683565275, %v2655
      %v2659 = vshrl.u32 2475754826, %v2656
      %v2660 = vor.u32 %v2658, %v2659
      %v2661 = vshll.u32 2475754826, %v2655
      %v2662 = vshrl.u32 2131351028, %v2656
      %v2663 = vor.u32 %v2661, %v2662
      %v2664 = vshll.u32 2131351028, %v2655
      %v2665 = vshrl.u32 2102212464, %v2656
      %v2666 = vor.u32 %v2664, %v2665
      %v2667 = vshll.u32 2102212464, %v2655
      %v2668 = vshrl.u32 920167782, %v2656
      %v2669 = vor.u32 %v2667, %v2668
      %v2670 = vshll.u32 920167782, %v2655
      %v2671 = vshrl.u32 1326507024, %v2656
      %v2672 = vor.u32 %v2670, %v2671
      %vm2673 = vcmp.lt.s32.totalorder %v2654, 1
      %vm2674 = vcmp.lt.s32.totalorder %v2654, 2
      %vm2675 = vcmp.lt.s32.totalorder %v2654, 3
      %vm2676 = vcmp.lt.s32.totalorder %v2654, 4
      %v2677 = vsel %vm2673, %v2657, %v2660
      %v2678 = vsel %vm2676, %v2666, 2102212464
      %v2679 = vsel %vm2675, %v2663, %v2678
      %v2680 = vsel %vm2674, %v2677, %v2679
      %v2681 = vsel %vm2673, %v2660, %v2663
      %v2682 = vsel %vm2676, %v2669, 920167782
      %v2683 = vsel %vm2675, %v2666, %v2682
      %v2684 = vsel %vm2674, %v2681, %v2683
      %v2685 = vsel %vm2673, %v2663, %v2666
      %v2686 = vsel %vm2676, %v2672, 1326507024
      %v2687 = vsel %vm2675, %v2669, %v2686
      %v2688 = vsel %vm2674, %v2685, %v2687
      %v2689 = vshll.u32 %v2649, 8
      %v2690 = vmul.u32.u64.compose %v2689, %v2688
      %v2691 = vextract.low.u32 %v2690
      %v2692 = vextract.high.u32 %v2690
      %v2693 = vmul.u32.u64.compose %v2689, %v2684
      %v2694 = vextract.low.u32 %v2693
      %v2695 = vextract.high.u32 %v2693
      %v2696 = vmul.u32 %v2689, %v2680
      %v2697 = vadd.s32 %v2692, %v2694
      %vm2698 = vc.u32 %v2692, %v2694
      %v2699 = vadd.s32 %v2695, 1
      %v2700 = vsel %vm2698, %v2699, %v2695
      %v2701 = vadd.s32 %v2696, %v2700
      %v2702 = vadd.s32 %v2701, 536870912
      %v2703 = vshrl.u32 %v2702, 30
      %v2704 = vshll.u32 %v2703, 30
      %v2705 = vsub.s32 %v2701, %v2704
      %vm2706 = vcmp.lt.s32.totalorder %v2705, 0
      %v2707 = vsub.s32 0, %v2705
      %v2708 = vsel %vm2706, %v2707, %v2705
      %v2709 = vclz %v2708
      %v2710 = vsub.s32 %v2709, 2
      %vm2711 = vcmp.gt.s32.totalorder 0, %v2710
      %v2712 = vsel %vm2711, 0, %v2710
      %v2713 = vsub.s32 32, %v2712
      %v2714 = vshll.u32 %v2705, %v2712
      %v2715 = vshrl.u32 %v2697, %v2713
      %v2716 = vor.u32 %v2714, %v2715
      %v2717 = vsub.s32 4294967266, %v2712
      %v2718 = vadd.s32 %v2717, 127
      %v2719 = vshll.u32 %v2718, 23
      %v2720 = vor.u32 4788187, %v2719
      %v2721 = vand.u32 2147483647, %v2720
      %v2723 = vcvt.s32.f32 %v2716
      %v2724 = vmul.f32 %v2723, %v2721
      %v2725 = vxor.u32 %v2724, 2147483648
      %v2726 = vsel %vm2643, %v2725, %v2724
      %v2727 = vsub.s32 4, %v2703
      %v2728 = vsel %vm2643, %v2727, %v2703
      %v2729 = vsel %vm2642, %v858, %v2726
      %v2730 = vsel %vm2642, 0, %v2728
      %v2731 = vcosq.f32.pop %v2729
      %v2732 = vsinq.f32.pop %v2729
      %vm2733 = vweird.f32 %v858
      %v2734 = vadd.s32 %v2730, 3
      %v2735 = vand.u32 %v2734, 3
      %vm2736 = vcmp.lt.s32.totalorder %v2735, 2
      %vm2737 = vcmp.eq.s32.totalorder %v2735, 0
      %v2738 = vxor.u32 %v2732, 2147483648
      %v2739 = vsel %vm2737, %v2731, %v2738
      %vm2740 = vcmp.eq.s32.totalorder %v2735, 2
      %v2741 = vxor.u32 %v2731, 2147483648
      %v2742 = vsel %vm2740, %v2741, %v2732
      %v2743 = vsel %vm2736, %v2739, %v2742
      %v2744 = vsel %vm2733, nan, %v2743
      %v2745 = vand.u32 2147483647, %v859
      %vm2746 = vcmp.le.f32.partialorder %v2745, 0.7853982
      %vm2747 = vcmp.lt.s32.totalorder %v859, 0
      %v2748 = vand.u32 %v859, 2139095040
      %v2749 = vshrl.u32 %v2748, 23
      %v2750 = vsub.s32 %v2749, 127
      %v2751 = vand.u32 2147483647, %v859
      %v2752 = vand.u32 %v2751, 8388607
      %v2753 = vor.u32 %v2752, 8388608
      %v2754 = vsub.s32 0, %v2753
      %v2755 = vadd.s32 %v2750, 1
      %vm2756 = vcmp.gt.s32.totalorder %v2755, 0
      %v2757 = vsel %vm2756, %v2755, 0
      %v2758 = vshrl.u32 %v2757, 5
      %v2759 = vand.u32 %v2757, 31
      %v2760 = vsub.s32 32, %v2759
      %v2761 = vshrl.u32 683565275, %v2760
      %v2762 = vshll.u32 683565275, %v2759
      %v2763 = vshrl.u32 2475754826, %v2760
      %v2764 = vor.u32 %v2762, %v2763
      %v2765 = vshll.u32 2475754826, %v2759
      %v2766 = vshrl.u32 2131351028, %v2760
      %v2767 = vor.u32 %v2765, %v2766
      %v2768 = vshll.u32 2131351028, %v2759
      %v2769 = vshrl.u32 2102212464, %v2760
      %v2770 = vor.u32 %v2768, %v2769
      %v2771 = vshll.u32 2102212464, %v2759
      %v2772 = vshrl.u32 920167782, %v2760
      %v2773 = vor.u32 %v2771, %v2772
      %v2774 = vshll.u32 920167782, %v2759
      %v2775 = vshrl.u32 1326507024, %v2760
      %v2776 = vor.u32 %v2774, %v2775
      %vm2777 = vcmp.lt.s32.totalorder %v2758, 1
      %vm2778 = vcmp.lt.s32.totalorder %v2758, 2
      %vm2779 = vcmp.lt.s32.totalorder %v2758, 3
      %vm2780 = vcmp.lt.s32.totalorder %v2758, 4
      %v2781 = vsel %vm2777, %v2761, %v2764
      %v2782 = vsel %vm2780, %v2770, 2102212464
      %v2783 = vsel %vm2779, %v2767, %v2782
      %v2784 = vsel %vm2778, %v2781, %v2783
      %v2785 = vsel %vm2777, %v2764, %v2767
      %v2786 = vsel %vm2780, %v2773, 920167782
      %v2787 = vsel %vm2779, %v2770, %v2786
      %v2788 = vsel %vm2778, %v2785, %v2787
      %v2789 = vsel %vm2777, %v2767, %v2770
      %v2790 = vsel %vm2780, %v2776, 1326507024
      %v2791 = vsel %vm2779, %v2773, %v2790
      %v2792 = vsel %vm2778, %v2789, %v2791
      %v2793 = vshll.u32 %v2753, 8
      %v2794 = vmul.u32.u64.compose %v2793, %v2792
      %v2795 = vextract.low.u32 %v2794
      %v2796 = vextract.high.u32 %v2794
      %v2797 = vmul.u32.u64.compose %v2793, %v2788
      %v2798 = vextract.low.u32 %v2797
      %v2799 = vextract.high.u32 %v2797
      %v2800 = vmul.u32 %v2793, %v2784
      %v2801 = vadd.s32 %v2796, %v2798
      %vm2802 = vc.u32 %v2796, %v2798
      %v2803 = vadd.s32 %v2799, 1
      %v2804 = vsel %vm2802, %v2803, %v2799
      %v2805 = vadd.s32 %v2800, %v2804
      %v2806 = vadd.s32 %v2805, 536870912
      %v2807 = vshrl.u32 %v2806, 30
      %v2808 = vshll.u32 %v2807, 30
      %v2809 = vsub.s32 %v2805, %v2808
      %vm2810 = vcmp.lt.s32.totalorder %v2809, 0
      %v2811 = vsub.s32 0, %v2809
      %v2812 = vsel %vm2810, %v2811, %v2809
      %v2813 = vclz %v2812
      %v2814 = vsub.s32 %v2813, 2
      %vm2815 = vcmp.gt.s32.totalorder 0, %v2814
      %v2816 = vsel %vm2815, 0, %v2814
      %v2817 = vsub.s32 32, %v2816
      %v2818 = vshll.u32 %v2809, %v2816
      %v2819 = vshrl.u32 %v2801, %v2817
      %v2820 = vor.u32 %v2818, %v2819
      %v2821 = vsub.s32 4294967266, %v2816
      %v2822 = vadd.s32 %v2821, 127
      %v2823 = vshll.u32 %v2822, 23
      %v2824 = vor.u32 4788187, %v2823
      %v2825 = vand.u32 2147483647, %v2824
      %v2827 = vcvt.s32.f32 %v2820
      %v2828 = vmul.f32 %v2827, %v2825
      %v2829 = vxor.u32 %v2828, 2147483648
      %v2830 = vsel %vm2747, %v2829, %v2828
      %v2831 = vsub.s32 4, %v2807
      %v2832 = vsel %vm2747, %v2831, %v2807
      %v2833 = vsel %vm2746, %v859, %v2830
      %v2834 = vsel %vm2746, 0, %v2832
      %v2835 = vcosq.f32.pop %v2833
      %v2836 = vsinq.f32.pop %v2833
      %vm2837 = vweird.f32 %v859
      %v2838 = vadd.s32 %v2834, 3
      %v2839 = vand.u32 %v2838, 3
      %vm2840 = vcmp.lt.s32.totalorder %v2839, 2
      %vm2841 = vcmp.eq.s32.totalorder %v2839, 0
      %v2842 = vxor.u32 %v2836, 2147483648
      %v2843 = vsel %vm2841, %v2835, %v2842
      %vm2844 = vcmp.eq.s32.totalorder %v2839, 2
      %v2845 = vxor.u32 %v2835, 2147483648
      %v2846 = vsel %vm2844, %v2845, %v2836
      %v2847 = vsel %vm2840, %v2843, %v2846
      %v2848 = vsel %vm2837, nan, %v2847
      %v2849 = vand.u32 2147483647, %v860
      %vm2850 = vcmp.le.f32.partialorder %v2849, 0.7853982
      %vm2851 = vcmp.lt.s32.totalorder %v860, 0
      %v2852 = vand.u32 %v860, 2139095040
      %v2853 = vshrl.u32 %v2852, 23
      %v2854 = vsub.s32 %v2853, 127
      %v2855 = vand.u32 2147483647, %v860
      %v2856 = vand.u32 %v2855, 8388607
      %v2857 = vor.u32 %v2856, 8388608
      %v2858 = vsub.s32 0, %v2857
      %v2859 = vadd.s32 %v2854, 1
      %vm2860 = vcmp.gt.s32.totalorder %v2859, 0
      %v2861 = vsel %vm2860, %v2859, 0
      %v2862 = vshrl.u32 %v2861, 5
      %v2863 = vand.u32 %v2861, 31
      %v2864 = vsub.s32 32, %v2863
      %v2865 = vshrl.u32 683565275, %v2864
      %v2866 = vshll.u32 683565275, %v2863
      %v2867 = vshrl.u32 2475754826, %v2864
      %v2868 = vor.u32 %v2866, %v2867
      %v2869 = vshll.u32 2475754826, %v2863
      %v2870 = vshrl.u32 2131351028, %v2864
      %v2871 = vor.u32 %v2869, %v2870
      %v2872 = vshll.u32 2131351028, %v2863
      %v2873 = vshrl.u32 2102212464, %v2864
      %v2874 = vor.u32 %v2872, %v2873
      %v2875 = vshll.u32 2102212464, %v2863
      %v2876 = vshrl.u32 920167782, %v2864
      %v2877 = vor.u32 %v2875, %v2876
      %v2878 = vshll.u32 920167782, %v2863
      %v2879 = vshrl.u32 1326507024, %v2864
      %v2880 = vor.u32 %v2878, %v2879
      %vm2881 = vcmp.lt.s32.totalorder %v2862, 1
      %vm2882 = vcmp.lt.s32.totalorder %v2862, 2
      %vm2883 = vcmp.lt.s32.totalorder %v2862, 3
      %vm2884 = vcmp.lt.s32.totalorder %v2862, 4
      %v2885 = vsel %vm2881, %v2865, %v2868
      %v2886 = vsel %vm2884, %v2874, 2102212464
      %v2887 = vsel %vm2883, %v2871, %v2886
      %v2888 = vsel %vm2882, %v2885, %v2887
      %v2889 = vsel %vm2881, %v2868, %v2871
      %v2890 = vsel %vm2884, %v2877, 920167782
      %v2891 = vsel %vm2883, %v2874, %v2890
      %v2892 = vsel %vm2882, %v2889, %v2891
      %v2893 = vsel %vm2881, %v2871, %v2874
      %v2894 = vsel %vm2884, %v2880, 1326507024
      %v2895 = vsel %vm2883, %v2877, %v2894
      %v2896 = vsel %vm2882, %v2893, %v2895
      %v2897 = vshll.u32 %v2857, 8
      %v2898 = vmul.u32.u64.compose %v2897, %v2896
      %v2899 = vextract.low.u32 %v2898
      %v2900 = vextract.high.u32 %v2898
      %v2901 = vmul.u32.u64.compose %v2897, %v2892
      %v2902 = vextract.low.u32 %v2901
      %v2903 = vextract.high.u32 %v2901
      %v2904 = vmul.u32 %v2897, %v2888
      %v2905 = vadd.s32 %v2900, %v2902
      %vm2906 = vc.u32 %v2900, %v2902
      %v2907 = vadd.s32 %v2903, 1
      %v2908 = vsel %vm2906, %v2907, %v2903
      %v2909 = vadd.s32 %v2904, %v2908
      %v2910 = vadd.s32 %v2909, 536870912
      %v2911 = vshrl.u32 %v2910, 30
      %v2912 = vshll.u32 %v2911, 30
      %v2913 = vsub.s32 %v2909, %v2912
      %vm2914 = vcmp.lt.s32.totalorder %v2913, 0
      %v2915 = vsub.s32 0, %v2913
      %v2916 = vsel %vm2914, %v2915, %v2913
      %v2917 = vclz %v2916
      %v2918 = vsub.s32 %v2917, 2
      %vm2919 = vcmp.gt.s32.totalorder 0, %v2918
      %v2920 = vsel %vm2919, 0, %v2918
      %v2921 = vsub.s32 32, %v2920
      %v2922 = vshll.u32 %v2913, %v2920
      %v2923 = vshrl.u32 %v2905, %v2921
      %v2924 = vor.u32 %v2922, %v2923
      %v2925 = vsub.s32 4294967266, %v2920
      %v2926 = vadd.s32 %v2925, 127
      %v2927 = vshll.u32 %v2926, 23
      %v2928 = vor.u32 4788187, %v2927
      %v2929 = vand.u32 2147483647, %v2928
      %v2931 = vcvt.s32.f32 %v2924
      %v2932 = vmul.f32 %v2931, %v2929
      %v2933 = vxor.u32 %v2932, 2147483648
      %v2934 = vsel %vm2851, %v2933, %v2932
      %v2935 = vsub.s32 4, %v2911
      %v2936 = vsel %vm2851, %v2935, %v2911
      %v2937 = vsel %vm2850, %v860, %v2934
      %v2938 = vsel %vm2850, 0, %v2936
      %v2939 = vcosq.f32.pop %v2937
      %v2940 = vsinq.f32.pop %v2937
      %vm2941 = vweird.f32 %v860
      %v2942 = vadd.s32 %v2938, 3
      %v2943 = vand.u32 %v2942, 3
      %vm2944 = vcmp.lt.s32.totalorder %v2943, 2
      %vm2945 = vcmp.eq.s32.totalorder %v2943, 0
      %v2946 = vxor.u32 %v2940, 2147483648
      %v2947 = vsel %vm2945, %v2939, %v2946
      %vm2948 = vcmp.eq.s32.totalorder %v2943, 2
      %v2949 = vxor.u32 %v2939, 2147483648
      %v2950 = vsel %vm2948, %v2949, %v2940
      %v2951 = vsel %vm2944, %v2947, %v2950
      %v2952 = vsel %vm2941, nan, %v2951
      %v2953 = vand.u32 2147483647, %v861
      %vm2954 = vcmp.le.f32.partialorder %v2953, 0.7853982
      %vm2955 = vcmp.lt.s32.totalorder %v861, 0
      %v2956 = vand.u32 %v861, 2139095040
      %v2957 = vshrl.u32 %v2956, 23
      %v2958 = vsub.s32 %v2957, 127
      %v2959 = vand.u32 2147483647, %v861
      %v2960 = vand.u32 %v2959, 8388607
      %v2961 = vor.u32 %v2960, 8388608
      %v2962 = vsub.s32 0, %v2961
      %v2963 = vadd.s32 %v2958, 1
      %vm2964 = vcmp.gt.s32.totalorder %v2963, 0
      %v2965 = vsel %vm2964, %v2963, 0
      %v2966 = vshrl.u32 %v2965, 5
      %v2967 = vand.u32 %v2965, 31
      %v2968 = vsub.s32 32, %v2967
      %v2969 = vshrl.u32 683565275, %v2968
      %v2970 = vshll.u32 683565275, %v2967
      %v2971 = vshrl.u32 2475754826, %v2968
      %v2972 = vor.u32 %v2970, %v2971
      %v2973 = vshll.u32 2475754826, %v2967
      %v2974 = vshrl.u32 2131351028, %v2968
      %v2975 = vor.u32 %v2973, %v2974
      %v2976 = vshll.u32 2131351028, %v2967
      %v2977 = vshrl.u32 2102212464, %v2968
      %v2978 = vor.u32 %v2976, %v2977
      %v2979 = vshll.u32 2102212464, %v2967
      %v2980 = vshrl.u32 920167782, %v2968
      %v2981 = vor.u32 %v2979, %v2980
      %v2982 = vshll.u32 920167782, %v2967
      %v2983 = vshrl.u32 1326507024, %v2968
      %v2984 = vor.u32 %v2982, %v2983
      %vm2985 = vcmp.lt.s32.totalorder %v2966, 1
      %vm2986 = vcmp.lt.s32.totalorder %v2966, 2
      %vm2987 = vcmp.lt.s32.totalorder %v2966, 3
      %vm2988 = vcmp.lt.s32.totalorder %v2966, 4
      %v2989 = vsel %vm2985, %v2969, %v2972
      %v2990 = vsel %vm2988, %v2978, 2102212464
      %v2991 = vsel %vm2987, %v2975, %v2990
      %v2992 = vsel %vm2986, %v2989, %v2991
      %v2993 = vsel %vm2985, %v2972, %v2975
      %v2994 = vsel %vm2988, %v2981, 920167782
      %v2995 = vsel %vm2987, %v2978, %v2994
      %v2996 = vsel %vm2986, %v2993, %v2995
      %v2997 = vsel %vm2985, %v2975, %v2978
      %v2998 = vsel %vm2988, %v2984, 1326507024
      %v2999 = vsel %vm2987, %v2981, %v2998
      %v3000 = vsel %vm2986, %v2997, %v2999
      %v3001 = vshll.u32 %v2961, 8
      %v3002 = vmul.u32.u64.compose %v3001, %v3000
      %v3003 = vextract.low.u32 %v3002
      %v3004 = vextract.high.u32 %v3002
      %v3005 = vmul.u32.u64.compose %v3001, %v2996
      %v3006 = vextract.low.u32 %v3005
      %v3007 = vextract.high.u32 %v3005
      %v3008 = vmul.u32 %v3001, %v2992
      %v3009 = vadd.s32 %v3004, %v3006
      %vm3010 = vc.u32 %v3004, %v3006
      %v3011 = vadd.s32 %v3007, 1
      %v3012 = vsel %vm3010, %v3011, %v3007
      %v3013 = vadd.s32 %v3008, %v3012
      %v3014 = vadd.s32 %v3013, 536870912
      %v3015 = vshrl.u32 %v3014, 30
      %v3016 = vshll.u32 %v3015, 30
      %v3017 = vsub.s32 %v3013, %v3016
      %vm3018 = vcmp.lt.s32.totalorder %v3017, 0
      %v3019 = vsub.s32 0, %v3017
      %v3020 = vsel %vm3018, %v3019, %v3017
      %v3021 = vclz %v3020
      %v3022 = vsub.s32 %v3021, 2
      %vm3023 = vcmp.gt.s32.totalorder 0, %v3022
      %v3024 = vsel %vm3023, 0, %v3022
      %v3025 = vsub.s32 32, %v3024
      %v3026 = vshll.u32 %v3017, %v3024
      %v3027 = vshrl.u32 %v3009, %v3025
      %v3028 = vor.u32 %v3026, %v3027
      %v3029 = vsub.s32 4294967266, %v3024
      %v3030 = vadd.s32 %v3029, 127
      %v3031 = vshll.u32 %v3030, 23
      %v3032 = vor.u32 4788187, %v3031
      %v3033 = vand.u32 2147483647, %v3032
      %v3035 = vcvt.s32.f32 %v3028
      %v3036 = vmul.f32 %v3035, %v3033
      %v3037 = vxor.u32 %v3036, 2147483648
      %v3038 = vsel %vm2955, %v3037, %v3036
      %v3039 = vsub.s32 4, %v3015
      %v3040 = vsel %vm2955, %v3039, %v3015
      %v3041 = vsel %vm2954, %v861, %v3038
      %v3042 = vsel %vm2954, 0, %v3040
      %v3043 = vcosq.f32.pop %v3041
      %v3044 = vsinq.f32.pop %v3041
      %vm3045 = vweird.f32 %v861
      %v3046 = vadd.s32 %v3042, 3
      %v3047 = vand.u32 %v3046, 3
      %vm3048 = vcmp.lt.s32.totalorder %v3047, 2
      %vm3049 = vcmp.eq.s32.totalorder %v3047, 0
      %v3050 = vxor.u32 %v3044, 2147483648
      %v3051 = vsel %vm3049, %v3043, %v3050
      %vm3052 = vcmp.eq.s32.totalorder %v3047, 2
      %v3053 = vxor.u32 %v3043, 2147483648
      %v3054 = vsel %vm3052, %v3053, %v3044
      %v3055 = vsel %vm3048, %v3051, %v3054
      %v3056 = vsel %vm3045, nan, %v3055
      %v3057 = vand.u32 2147483647, %v862
      %vm3058 = vcmp.le.f32.partialorder %v3057, 0.7853982
      %vm3059 = vcmp.lt.s32.totalorder %v862, 0
      %v3060 = vand.u32 %v862, 2139095040
      %v3061 = vshrl.u32 %v3060, 23
      %v3062 = vsub.s32 %v3061, 127
      %v3063 = vand.u32 2147483647, %v862
      %v3064 = vand.u32 %v3063, 8388607
      %v3065 = vor.u32 %v3064, 8388608
      %v3066 = vsub.s32 0, %v3065
      %v3067 = vadd.s32 %v3062, 1
      %vm3068 = vcmp.gt.s32.totalorder %v3067, 0
      %v3069 = vsel %vm3068, %v3067, 0
      %v3070 = vshrl.u32 %v3069, 5
      %v3071 = vand.u32 %v3069, 31
      %v3072 = vsub.s32 32, %v3071
      %v3073 = vshrl.u32 683565275, %v3072
      %v3074 = vshll.u32 683565275, %v3071
      %v3075 = vshrl.u32 2475754826, %v3072
      %v3076 = vor.u32 %v3074, %v3075
      %v3077 = vshll.u32 2475754826, %v3071
      %v3078 = vshrl.u32 2131351028, %v3072
      %v3079 = vor.u32 %v3077, %v3078
      %v3080 = vshll.u32 2131351028, %v3071
      %v3081 = vshrl.u32 2102212464, %v3072
      %v3082 = vor.u32 %v3080, %v3081
      %v3083 = vshll.u32 2102212464, %v3071
      %v3084 = vshrl.u32 920167782, %v3072
      %v3085 = vor.u32 %v3083, %v3084
      %v3086 = vshll.u32 920167782, %v3071
      %v3087 = vshrl.u32 1326507024, %v3072
      %v3088 = vor.u32 %v3086, %v3087
      %vm3089 = vcmp.lt.s32.totalorder %v3070, 1
      %vm3090 = vcmp.lt.s32.totalorder %v3070, 2
      %vm3091 = vcmp.lt.s32.totalorder %v3070, 3
      %vm3092 = vcmp.lt.s32.totalorder %v3070, 4
      %v3093 = vsel %vm3089, %v3073, %v3076
      %v3094 = vsel %vm3092, %v3082, 2102212464
      %v3095 = vsel %vm3091, %v3079, %v3094
      %v3096 = vsel %vm3090, %v3093, %v3095
      %v3097 = vsel %vm3089, %v3076, %v3079
      %v3098 = vsel %vm3092, %v3085, 920167782
      %v3099 = vsel %vm3091, %v3082, %v3098
      %v3100 = vsel %vm3090, %v3097, %v3099
      %v3101 = vsel %vm3089, %v3079, %v3082
      %v3102 = vsel %vm3092, %v3088, 1326507024
      %v3103 = vsel %vm3091, %v3085, %v3102
      %v3104 = vsel %vm3090, %v3101, %v3103
      %v3105 = vshll.u32 %v3065, 8
      %v3106 = vmul.u32.u64.compose %v3105, %v3104
      %v3107 = vextract.low.u32 %v3106
      %v3108 = vextract.high.u32 %v3106
      %v3109 = vmul.u32.u64.compose %v3105, %v3100
      %v3110 = vextract.low.u32 %v3109
      %v3111 = vextract.high.u32 %v3109
      %v3112 = vmul.u32 %v3105, %v3096
      %v3113 = vadd.s32 %v3108, %v3110
      %vm3114 = vc.u32 %v3108, %v3110
      %v3115 = vadd.s32 %v3111, 1
      %v3116 = vsel %vm3114, %v3115, %v3111
      %v3117 = vadd.s32 %v3112, %v3116
      %v3118 = vadd.s32 %v3117, 536870912
      %v3119 = vshrl.u32 %v3118, 30
      %v3120 = vshll.u32 %v3119, 30
      %v3121 = vsub.s32 %v3117, %v3120
      %vm3122 = vcmp.lt.s32.totalorder %v3121, 0
      %v3123 = vsub.s32 0, %v3121
      %v3124 = vsel %vm3122, %v3123, %v3121
      %v3125 = vclz %v3124
      %v3126 = vsub.s32 %v3125, 2
      %vm3127 = vcmp.gt.s32.totalorder 0, %v3126
      %v3128 = vsel %vm3127, 0, %v3126
      %v3129 = vsub.s32 32, %v3128
      %v3130 = vshll.u32 %v3121, %v3128
      %v3131 = vshrl.u32 %v3113, %v3129
      %v3132 = vor.u32 %v3130, %v3131
      %v3133 = vsub.s32 4294967266, %v3128
      %v3134 = vadd.s32 %v3133, 127
      %v3135 = vshll.u32 %v3134, 23
      %v3136 = vor.u32 4788187, %v3135
      %v3137 = vand.u32 2147483647, %v3136
      %v3139 = vcvt.s32.f32 %v3132
      %v3140 = vmul.f32 %v3139, %v3137
      %v3141 = vxor.u32 %v3140, 2147483648
      %v3142 = vsel %vm3059, %v3141, %v3140
      %v3143 = vsub.s32 4, %v3119
      %v3144 = vsel %vm3059, %v3143, %v3119
      %v3145 = vsel %vm3058, %v862, %v3142
      %v3146 = vsel %vm3058, 0, %v3144
      %v3147 = vcosq.f32.pop %v3145
      %v3148 = vsinq.f32.pop %v3145
      %vm3149 = vweird.f32 %v862
      %v3150 = vadd.s32 %v3146, 3
      %v3151 = vand.u32 %v3150, 3
      %vm3152 = vcmp.lt.s32.totalorder %v3151, 2
      %vm3153 = vcmp.eq.s32.totalorder %v3151, 0
      %v3154 = vxor.u32 %v3148, 2147483648
      %v3155 = vsel %vm3153, %v3147, %v3154
      %vm3156 = vcmp.eq.s32.totalorder %v3151, 2
      %v3157 = vxor.u32 %v3147, 2147483648
      %v3158 = vsel %vm3156, %v3157, %v3148
      %v3159 = vsel %vm3152, %v3155, %v3158
      %v3160 = vsel %vm3149, nan, %v3159
      %v3161 = vand.u32 2147483647, %v863
      %vm3162 = vcmp.le.f32.partialorder %v3161, 0.7853982
      %vm3163 = vcmp.lt.s32.totalorder %v863, 0
      %v3164 = vand.u32 %v863, 2139095040
      %v3165 = vshrl.u32 %v3164, 23
      %v3166 = vsub.s32 %v3165, 127
      %v3167 = vand.u32 2147483647, %v863
      %v3168 = vand.u32 %v3167, 8388607
      %v3169 = vor.u32 %v3168, 8388608
      %v3170 = vsub.s32 0, %v3169
      %v3171 = vadd.s32 %v3166, 1
      %vm3172 = vcmp.gt.s32.totalorder %v3171, 0
      %v3173 = vsel %vm3172, %v3171, 0
      %v3174 = vshrl.u32 %v3173, 5
      %v3175 = vand.u32 %v3173, 31
      %v3176 = vsub.s32 32, %v3175
      %v3177 = vshrl.u32 683565275, %v3176
      %v3178 = vshll.u32 683565275, %v3175
      %v3179 = vshrl.u32 2475754826, %v3176
      %v3180 = vor.u32 %v3178, %v3179
      %v3181 = vshll.u32 2475754826, %v3175
      %v3182 = vshrl.u32 2131351028, %v3176
      %v3183 = vor.u32 %v3181, %v3182
      %v3184 = vshll.u32 2131351028, %v3175
      %v3185 = vshrl.u32 2102212464, %v3176
      %v3186 = vor.u32 %v3184, %v3185
      %v3187 = vshll.u32 2102212464, %v3175
      %v3188 = vshrl.u32 920167782, %v3176
      %v3189 = vor.u32 %v3187, %v3188
      %v3190 = vshll.u32 920167782, %v3175
      %v3191 = vshrl.u32 1326507024, %v3176
      %v3192 = vor.u32 %v3190, %v3191
      %vm3193 = vcmp.lt.s32.totalorder %v3174, 1
      %vm3194 = vcmp.lt.s32.totalorder %v3174, 2
      %vm3195 = vcmp.lt.s32.totalorder %v3174, 3
      %vm3196 = vcmp.lt.s32.totalorder %v3174, 4
      %v3197 = vsel %vm3193, %v3177, %v3180
      %v3198 = vsel %vm3196, %v3186, 2102212464
      %v3199 = vsel %vm3195, %v3183, %v3198
      %v3200 = vsel %vm3194, %v3197, %v3199
      %v3201 = vsel %vm3193, %v3180, %v3183
      %v3202 = vsel %vm3196, %v3189, 920167782
      %v3203 = vsel %vm3195, %v3186, %v3202
      %v3204 = vsel %vm3194, %v3201, %v3203
      %v3205 = vsel %vm3193, %v3183, %v3186
      %v3206 = vsel %vm3196, %v3192, 1326507024
      %v3207 = vsel %vm3195, %v3189, %v3206
      %v3208 = vsel %vm3194, %v3205, %v3207
      %v3209 = vshll.u32 %v3169, 8
      %v3210 = vmul.u32.u64.compose %v3209, %v3208
      %v3211 = vextract.low.u32 %v3210
      %v3212 = vextract.high.u32 %v3210
      %v3213 = vmul.u32.u64.compose %v3209, %v3204
      %v3214 = vextract.low.u32 %v3213
      %v3215 = vextract.high.u32 %v3213
      %v3216 = vmul.u32 %v3209, %v3200
      %v3217 = vadd.s32 %v3212, %v3214
      %vm3218 = vc.u32 %v3212, %v3214
      %v3219 = vadd.s32 %v3215, 1
      %v3220 = vsel %vm3218, %v3219, %v3215
      %v3221 = vadd.s32 %v3216, %v3220
      %v3222 = vadd.s32 %v3221, 536870912
      %v3223 = vshrl.u32 %v3222, 30
      %v3224 = vshll.u32 %v3223, 30
      %v3225 = vsub.s32 %v3221, %v3224
      %vm3226 = vcmp.lt.s32.totalorder %v3225, 0
      %v3227 = vsub.s32 0, %v3225
      %v3228 = vsel %vm3226, %v3227, %v3225
      %v3229 = vclz %v3228
      %v3230 = vsub.s32 %v3229, 2
      %vm3231 = vcmp.gt.s32.totalorder 0, %v3230
      %v3232 = vsel %vm3231, 0, %v3230
      %v3233 = vsub.s32 32, %v3232
      %v3234 = vshll.u32 %v3225, %v3232
      %v3235 = vshrl.u32 %v3217, %v3233
      %v3236 = vor.u32 %v3234, %v3235
      %v3237 = vsub.s32 4294967266, %v3232
      %v3238 = vadd.s32 %v3237, 127
      %v3239 = vshll.u32 %v3238, 23
      %v3240 = vor.u32 4788187, %v3239
      %v3241 = vand.u32 2147483647, %v3240
      %v3243 = vcvt.s32.f32 %v3236
      %v3244 = vmul.f32 %v3243, %v3241
      %v3245 = vxor.u32 %v3244, 2147483648
      %v3246 = vsel %vm3163, %v3245, %v3244
      %v3247 = vsub.s32 4, %v3223
      %v3248 = vsel %vm3163, %v3247, %v3223
      %v3249 = vsel %vm3162, %v863, %v3246
      %v3250 = vsel %vm3162, 0, %v3248
      %v3251 = vcosq.f32.pop %v3249
      %v3252 = vsinq.f32.pop %v3249
      %vm3253 = vweird.f32 %v863
      %v3254 = vadd.s32 %v3250, 3
      %v3255 = vand.u32 %v3254, 3
      %vm3256 = vcmp.lt.s32.totalorder %v3255, 2
      %vm3257 = vcmp.eq.s32.totalorder %v3255, 0
      %v3258 = vxor.u32 %v3252, 2147483648
      %v3259 = vsel %vm3257, %v3251, %v3258
      %vm3260 = vcmp.eq.s32.totalorder %v3255, 2
      %v3261 = vxor.u32 %v3251, 2147483648
      %v3262 = vsel %vm3260, %v3261, %v3252
      %v3263 = vsel %vm3256, %v3259, %v3262
      %v3264 = vsel %vm3253, nan, %v3263
      %v3265 = vand.u32 2147483647, %v864
      %vm3266 = vcmp.le.f32.partialorder %v3265, 0.7853982
      %vm3267 = vcmp.lt.s32.totalorder %v864, 0
      %v3268 = vand.u32 %v864, 2139095040
      %v3269 = vshrl.u32 %v3268, 23
      %v3270 = vsub.s32 %v3269, 127
      %v3271 = vand.u32 2147483647, %v864
      %v3272 = vand.u32 %v3271, 8388607
      %v3273 = vor.u32 %v3272, 8388608
      %v3274 = vsub.s32 0, %v3273
      %v3275 = vadd.s32 %v3270, 1
      %vm3276 = vcmp.gt.s32.totalorder %v3275, 0
      %v3277 = vsel %vm3276, %v3275, 0
      %v3278 = vshrl.u32 %v3277, 5
      %v3279 = vand.u32 %v3277, 31
      %v3280 = vsub.s32 32, %v3279
      %v3281 = vshrl.u32 683565275, %v3280
      %v3282 = vshll.u32 683565275, %v3279
      %v3283 = vshrl.u32 2475754826, %v3280
      %v3284 = vor.u32 %v3282, %v3283
      %v3285 = vshll.u32 2475754826, %v3279
      %v3286 = vshrl.u32 2131351028, %v3280
      %v3287 = vor.u32 %v3285, %v3286
      %v3288 = vshll.u32 2131351028, %v3279
      %v3289 = vshrl.u32 2102212464, %v3280
      %v3290 = vor.u32 %v3288, %v3289
      %v3291 = vshll.u32 2102212464, %v3279
      %v3292 = vshrl.u32 920167782, %v3280
      %v3293 = vor.u32 %v3291, %v3292
      %v3294 = vshll.u32 920167782, %v3279
      %v3295 = vshrl.u32 1326507024, %v3280
      %v3296 = vor.u32 %v3294, %v3295
      %vm3297 = vcmp.lt.s32.totalorder %v3278, 1
      %vm3298 = vcmp.lt.s32.totalorder %v3278, 2
      %vm3299 = vcmp.lt.s32.totalorder %v3278, 3
      %vm3300 = vcmp.lt.s32.totalorder %v3278, 4
      %v3301 = vsel %vm3297, %v3281, %v3284
      %v3302 = vsel %vm3300, %v3290, 2102212464
      %v3303 = vsel %vm3299, %v3287, %v3302
      %v3304 = vsel %vm3298, %v3301, %v3303
      %v3305 = vsel %vm3297, %v3284, %v3287
      %v3306 = vsel %vm3300, %v3293, 920167782
      %v3307 = vsel %vm3299, %v3290, %v3306
      %v3308 = vsel %vm3298, %v3305, %v3307
      %v3309 = vsel %vm3297, %v3287, %v3290
      %v3310 = vsel %vm3300, %v3296, 1326507024
      %v3311 = vsel %vm3299, %v3293, %v3310
      %v3312 = vsel %vm3298, %v3309, %v3311
      %v3313 = vshll.u32 %v3273, 8
      %v3314 = vmul.u32.u64.compose %v3313, %v3312
      %v3315 = vextract.low.u32 %v3314
      %v3316 = vextract.high.u32 %v3314
      %v3317 = vmul.u32.u64.compose %v3313, %v3308
      %v3318 = vextract.low.u32 %v3317
      %v3319 = vextract.high.u32 %v3317
      %v3320 = vmul.u32 %v3313, %v3304
      %v3321 = vadd.s32 %v3316, %v3318
      %vm3322 = vc.u32 %v3316, %v3318
      %v3323 = vadd.s32 %v3319, 1
      %v3324 = vsel %vm3322, %v3323, %v3319
      %v3325 = vadd.s32 %v3320, %v3324
      %v3326 = vadd.s32 %v3325, 536870912
      %v3327 = vshrl.u32 %v3326, 30
      %v3328 = vshll.u32 %v3327, 30
      %v3329 = vsub.s32 %v3325, %v3328
      %vm3330 = vcmp.lt.s32.totalorder %v3329, 0
      %v3331 = vsub.s32 0, %v3329
      %v3332 = vsel %vm3330, %v3331, %v3329
      %v3333 = vclz %v3332
      %v3334 = vsub.s32 %v3333, 2
      %vm3335 = vcmp.gt.s32.totalorder 0, %v3334
      %v3336 = vsel %vm3335, 0, %v3334
      %v3337 = vsub.s32 32, %v3336
      %v3338 = vshll.u32 %v3329, %v3336
      %v3339 = vshrl.u32 %v3321, %v3337
      %v3340 = vor.u32 %v3338, %v3339
      %v3341 = vsub.s32 4294967266, %v3336
      %v3342 = vadd.s32 %v3341, 127
      %v3343 = vshll.u32 %v3342, 23
      %v3344 = vor.u32 4788187, %v3343
      %v3345 = vand.u32 2147483647, %v3344
      %v3347 = vcvt.s32.f32 %v3340
      %v3348 = vmul.f32 %v3347, %v3345
      %v3349 = vxor.u32 %v3348, 2147483648
      %v3350 = vsel %vm3267, %v3349, %v3348
      %v3351 = vsub.s32 4, %v3327
      %v3352 = vsel %vm3267, %v3351, %v3327
      %v3353 = vsel %vm3266, %v864, %v3350
      %v3354 = vsel %vm3266, 0, %v3352
      %v3355 = vcosq.f32.pop %v3353
      %v3356 = vsinq.f32.pop %v3353
      %vm3357 = vweird.f32 %v864
      %v3358 = vadd.s32 %v3354, 3
      %v3359 = vand.u32 %v3358, 3
      %vm3360 = vcmp.lt.s32.totalorder %v3359, 2
      %vm3361 = vcmp.eq.s32.totalorder %v3359, 0
      %v3362 = vxor.u32 %v3356, 2147483648
      %v3363 = vsel %vm3361, %v3355, %v3362
      %vm3364 = vcmp.eq.s32.totalorder %v3359, 2
      %v3365 = vxor.u32 %v3355, 2147483648
      %v3366 = vsel %vm3364, %v3365, %v3356
      %v3367 = vsel %vm3360, %v3363, %v3366
      %v3368 = vsel %vm3357, nan, %v3367
      %v3369 = vand.u32 2147483647, %v865
      %vm3370 = vcmp.le.f32.partialorder %v3369, 0.7853982
      %vm3371 = vcmp.lt.s32.totalorder %v865, 0
      %v3372 = vand.u32 %v865, 2139095040
      %v3373 = vshrl.u32 %v3372, 23
      %v3374 = vsub.s32 %v3373, 127
      %v3375 = vand.u32 2147483647, %v865
      %v3376 = vand.u32 %v3375, 8388607
      %v3377 = vor.u32 %v3376, 8388608
      %v3378 = vsub.s32 0, %v3377
      %v3379 = vadd.s32 %v3374, 1
      %vm3380 = vcmp.gt.s32.totalorder %v3379, 0
      %v3381 = vsel %vm3380, %v3379, 0
      %v3382 = vshrl.u32 %v3381, 5
      %v3383 = vand.u32 %v3381, 31
      %v3384 = vsub.s32 32, %v3383
      %v3385 = vshrl.u32 683565275, %v3384
      %v3386 = vshll.u32 683565275, %v3383
      %v3387 = vshrl.u32 2475754826, %v3384
      %v3388 = vor.u32 %v3386, %v3387
      %v3389 = vshll.u32 2475754826, %v3383
      %v3390 = vshrl.u32 2131351028, %v3384
      %v3391 = vor.u32 %v3389, %v3390
      %v3392 = vshll.u32 2131351028, %v3383
      %v3393 = vshrl.u32 2102212464, %v3384
      %v3394 = vor.u32 %v3392, %v3393
      %v3395 = vshll.u32 2102212464, %v3383
      %v3396 = vshrl.u32 920167782, %v3384
      %v3397 = vor.u32 %v3395, %v3396
      %v3398 = vshll.u32 920167782, %v3383
      %v3399 = vshrl.u32 1326507024, %v3384
      %v3400 = vor.u32 %v3398, %v3399
      %vm3401 = vcmp.lt.s32.totalorder %v3382, 1
      %vm3402 = vcmp.lt.s32.totalorder %v3382, 2
      %vm3403 = vcmp.lt.s32.totalorder %v3382, 3
      %vm3404 = vcmp.lt.s32.totalorder %v3382, 4
      %v3405 = vsel %vm3401, %v3385, %v3388
      %v3406 = vsel %vm3404, %v3394, 2102212464
      %v3407 = vsel %vm3403, %v3391, %v3406
      %v3408 = vsel %vm3402, %v3405, %v3407
      %v3409 = vsel %vm3401, %v3388, %v3391
      %v3410 = vsel %vm3404, %v3397, 920167782
      %v3411 = vsel %vm3403, %v3394, %v3410
      %v3412 = vsel %vm3402, %v3409, %v3411
      %v3413 = vsel %vm3401, %v3391, %v3394
      %v3414 = vsel %vm3404, %v3400, 1326507024
      %v3415 = vsel %vm3403, %v3397, %v3414
      %v3416 = vsel %vm3402, %v3413, %v3415
      %v3417 = vshll.u32 %v3377, 8
      %v3418 = vmul.u32.u64.compose %v3417, %v3416
      %v3419 = vextract.low.u32 %v3418
      %v3420 = vextract.high.u32 %v3418
      %v3421 = vmul.u32.u64.compose %v3417, %v3412
      %v3422 = vextract.low.u32 %v3421
      %v3423 = vextract.high.u32 %v3421
      %v3424 = vmul.u32 %v3417, %v3408
      %v3425 = vadd.s32 %v3420, %v3422
      %vm3426 = vc.u32 %v3420, %v3422
      %v3427 = vadd.s32 %v3423, 1
      %v3428 = vsel %vm3426, %v3427, %v3423
      %v3429 = vadd.s32 %v3424, %v3428
      %v3430 = vadd.s32 %v3429, 536870912
      %v3431 = vshrl.u32 %v3430, 30
      %v3432 = vshll.u32 %v3431, 30
      %v3433 = vsub.s32 %v3429, %v3432
      %vm3434 = vcmp.lt.s32.totalorder %v3433, 0
      %v3435 = vsub.s32 0, %v3433
      %v3436 = vsel %vm3434, %v3435, %v3433
      %v3437 = vclz %v3436
      %v3438 = vsub.s32 %v3437, 2
      %vm3439 = vcmp.gt.s32.totalorder 0, %v3438
      %v3440 = vsel %vm3439, 0, %v3438
      %v3441 = vsub.s32 32, %v3440
      %v3442 = vshll.u32 %v3433, %v3440
      %v3443 = vshrl.u32 %v3425, %v3441
      %v3444 = vor.u32 %v3442, %v3443
      %v3445 = vsub.s32 4294967266, %v3440
      %v3446 = vadd.s32 %v3445, 127
      %v3447 = vshll.u32 %v3446, 23
      %v3448 = vor.u32 4788187, %v3447
      %v3449 = vand.u32 2147483647, %v3448
      %v3451 = vcvt.s32.f32 %v3444
      %v3452 = vmul.f32 %v3451, %v3449
      %v3453 = vxor.u32 %v3452, 2147483648
      %v3454 = vsel %vm3371, %v3453, %v3452
      %v3455 = vsub.s32 4, %v3431
      %v3456 = vsel %vm3371, %v3455, %v3431
      %v3457 = vsel %vm3370, %v865, %v3454
      %v3458 = vsel %vm3370, 0, %v3456
      %v3459 = vcosq.f32.pop %v3457
      %v3460 = vsinq.f32.pop %v3457
      %vm3461 = vweird.f32 %v865
      %v3462 = vadd.s32 %v3458, 3
      %v3463 = vand.u32 %v3462, 3
      %vm3464 = vcmp.lt.s32.totalorder %v3463, 2
      %vm3465 = vcmp.eq.s32.totalorder %v3463, 0
      %v3466 = vxor.u32 %v3460, 2147483648
      %v3467 = vsel %vm3465, %v3459, %v3466
      %vm3468 = vcmp.eq.s32.totalorder %v3463, 2
      %v3469 = vxor.u32 %v3459, 2147483648
      %v3470 = vsel %vm3468, %v3469, %v3460
      %v3471 = vsel %vm3464, %v3467, %v3470
      %v3472 = vsel %vm3461, nan, %v3471
      %v3473 = vand.u32 2147483647, %v866
      %vm3474 = vcmp.le.f32.partialorder %v3473, 0.7853982
      %vm3475 = vcmp.lt.s32.totalorder %v866, 0
      %v3476 = vand.u32 %v866, 2139095040
      %v3477 = vshrl.u32 %v3476, 23
      %v3478 = vsub.s32 %v3477, 127
      %v3479 = vand.u32 2147483647, %v866
      %v3480 = vand.u32 %v3479, 8388607
      %v3481 = vor.u32 %v3480, 8388608
      %v3482 = vsub.s32 0, %v3481
      %v3483 = vadd.s32 %v3478, 1
      %vm3484 = vcmp.gt.s32.totalorder %v3483, 0
      %v3485 = vsel %vm3484, %v3483, 0
      %v3486 = vshrl.u32 %v3485, 5
      %v3487 = vand.u32 %v3485, 31
      %v3488 = vsub.s32 32, %v3487
      %v3489 = vshrl.u32 683565275, %v3488
      %v3490 = vshll.u32 683565275, %v3487
      %v3491 = vshrl.u32 2475754826, %v3488
      %v3492 = vor.u32 %v3490, %v3491
      %v3493 = vshll.u32 2475754826, %v3487
      %v3494 = vshrl.u32 2131351028, %v3488
      %v3495 = vor.u32 %v3493, %v3494
      %v3496 = vshll.u32 2131351028, %v3487
      %v3497 = vshrl.u32 2102212464, %v3488
      %v3498 = vor.u32 %v3496, %v3497
      %v3499 = vshll.u32 2102212464, %v3487
      %v3500 = vshrl.u32 920167782, %v3488
      %v3501 = vor.u32 %v3499, %v3500
      %v3502 = vshll.u32 920167782, %v3487
      %v3503 = vshrl.u32 1326507024, %v3488
      %v3504 = vor.u32 %v3502, %v3503
      %vm3505 = vcmp.lt.s32.totalorder %v3486, 1
      %vm3506 = vcmp.lt.s32.totalorder %v3486, 2
      %vm3507 = vcmp.lt.s32.totalorder %v3486, 3
      %vm3508 = vcmp.lt.s32.totalorder %v3486, 4
      %v3509 = vsel %vm3505, %v3489, %v3492
      %v3510 = vsel %vm3508, %v3498, 2102212464
      %v3511 = vsel %vm3507, %v3495, %v3510
      %v3512 = vsel %vm3506, %v3509, %v3511
      %v3513 = vsel %vm3505, %v3492, %v3495
      %v3514 = vsel %vm3508, %v3501, 920167782
      %v3515 = vsel %vm3507, %v3498, %v3514
      %v3516 = vsel %vm3506, %v3513, %v3515
      %v3517 = vsel %vm3505, %v3495, %v3498
      %v3518 = vsel %vm3508, %v3504, 1326507024
      %v3519 = vsel %vm3507, %v3501, %v3518
      %v3520 = vsel %vm3506, %v3517, %v3519
      %v3521 = vshll.u32 %v3481, 8
      %v3522 = vmul.u32.u64.compose %v3521, %v3520
      %v3523 = vextract.low.u32 %v3522
      %v3524 = vextract.high.u32 %v3522
      %v3525 = vmul.u32.u64.compose %v3521, %v3516
      %v3526 = vextract.low.u32 %v3525
      %v3527 = vextract.high.u32 %v3525
      %v3528 = vmul.u32 %v3521, %v3512
      %v3529 = vadd.s32 %v3524, %v3526
      %vm3530 = vc.u32 %v3524, %v3526
      %v3531 = vadd.s32 %v3527, 1
      %v3532 = vsel %vm3530, %v3531, %v3527
      %v3533 = vadd.s32 %v3528, %v3532
      %v3534 = vadd.s32 %v3533, 536870912
      %v3535 = vshrl.u32 %v3534, 30
      %v3536 = vshll.u32 %v3535, 30
      %v3537 = vsub.s32 %v3533, %v3536
      %vm3538 = vcmp.lt.s32.totalorder %v3537, 0
      %v3539 = vsub.s32 0, %v3537
      %v3540 = vsel %vm3538, %v3539, %v3537
      %v3541 = vclz %v3540
      %v3542 = vsub.s32 %v3541, 2
      %vm3543 = vcmp.gt.s32.totalorder 0, %v3542
      %v3544 = vsel %vm3543, 0, %v3542
      %v3545 = vsub.s32 32, %v3544
      %v3546 = vshll.u32 %v3537, %v3544
      %v3547 = vshrl.u32 %v3529, %v3545
      %v3548 = vor.u32 %v3546, %v3547
      %v3549 = vsub.s32 4294967266, %v3544
      %v3550 = vadd.s32 %v3549, 127
      %v3551 = vshll.u32 %v3550, 23
      %v3552 = vor.u32 4788187, %v3551
      %v3553 = vand.u32 2147483647, %v3552
      %v3555 = vcvt.s32.f32 %v3548
      %v3556 = vmul.f32 %v3555, %v3553
      %v3557 = vxor.u32 %v3556, 2147483648
      %v3558 = vsel %vm3475, %v3557, %v3556
      %v3559 = vsub.s32 4, %v3535
      %v3560 = vsel %vm3475, %v3559, %v3535
      %v3561 = vsel %vm3474, %v866, %v3558
      %v3562 = vsel %vm3474, 0, %v3560
      %v3563 = vcosq.f32.pop %v3561
      %v3564 = vsinq.f32.pop %v3561
      %vm3565 = vweird.f32 %v866
      %v3566 = vadd.s32 %v3562, 3
      %v3567 = vand.u32 %v3566, 3
      %vm3568 = vcmp.lt.s32.totalorder %v3567, 2
      %vm3569 = vcmp.eq.s32.totalorder %v3567, 0
      %v3570 = vxor.u32 %v3564, 2147483648
      %v3571 = vsel %vm3569, %v3563, %v3570
      %vm3572 = vcmp.eq.s32.totalorder %v3567, 2
      %v3573 = vxor.u32 %v3563, 2147483648
      %v3574 = vsel %vm3572, %v3573, %v3564
      %v3575 = vsel %vm3568, %v3571, %v3574
      %v3576 = vsel %vm3565, nan, %v3575
      %v3577 = vand.u32 2147483647, %v867
      %vm3578 = vcmp.le.f32.partialorder %v3577, 0.7853982
      %vm3579 = vcmp.lt.s32.totalorder %v867, 0
      %v3580 = vand.u32 %v867, 2139095040
      %v3581 = vshrl.u32 %v3580, 23
      %v3582 = vsub.s32 %v3581, 127
      %v3583 = vand.u32 2147483647, %v867
      %v3584 = vand.u32 %v3583, 8388607
      %v3585 = vor.u32 %v3584, 8388608
      %v3586 = vsub.s32 0, %v3585
      %v3587 = vadd.s32 %v3582, 1
      %vm3588 = vcmp.gt.s32.totalorder %v3587, 0
      %v3589 = vsel %vm3588, %v3587, 0
      %v3590 = vshrl.u32 %v3589, 5
      %v3591 = vand.u32 %v3589, 31
      %v3592 = vsub.s32 32, %v3591
      %v3593 = vshrl.u32 683565275, %v3592
      %v3594 = vshll.u32 683565275, %v3591
      %v3595 = vshrl.u32 2475754826, %v3592
      %v3596 = vor.u32 %v3594, %v3595
      %v3597 = vshll.u32 2475754826, %v3591
      %v3598 = vshrl.u32 2131351028, %v3592
      %v3599 = vor.u32 %v3597, %v3598
      %v3600 = vshll.u32 2131351028, %v3591
      %v3601 = vshrl.u32 2102212464, %v3592
      %v3602 = vor.u32 %v3600, %v3601
      %v3603 = vshll.u32 2102212464, %v3591
      %v3604 = vshrl.u32 920167782, %v3592
      %v3605 = vor.u32 %v3603, %v3604
      %v3606 = vshll.u32 920167782, %v3591
      %v3607 = vshrl.u32 1326507024, %v3592
      %v3608 = vor.u32 %v3606, %v3607
      %vm3609 = vcmp.lt.s32.totalorder %v3590, 1
      %vm3610 = vcmp.lt.s32.totalorder %v3590, 2
      %vm3611 = vcmp.lt.s32.totalorder %v3590, 3
      %vm3612 = vcmp.lt.s32.totalorder %v3590, 4
      %v3613 = vsel %vm3609, %v3593, %v3596
      %v3614 = vsel %vm3612, %v3602, 2102212464
      %v3615 = vsel %vm3611, %v3599, %v3614
      %v3616 = vsel %vm3610, %v3613, %v3615
      %v3617 = vsel %vm3609, %v3596, %v3599
      %v3618 = vsel %vm3612, %v3605, 920167782
      %v3619 = vsel %vm3611, %v3602, %v3618
      %v3620 = vsel %vm3610, %v3617, %v3619
      %v3621 = vsel %vm3609, %v3599, %v3602
      %v3622 = vsel %vm3612, %v3608, 1326507024
      %v3623 = vsel %vm3611, %v3605, %v3622
      %v3624 = vsel %vm3610, %v3621, %v3623
      %v3625 = vshll.u32 %v3585, 8
      %v3626 = vmul.u32.u64.compose %v3625, %v3624
      %v3627 = vextract.low.u32 %v3626
      %v3628 = vextract.high.u32 %v3626
      %v3629 = vmul.u32.u64.compose %v3625, %v3620
      %v3630 = vextract.low.u32 %v3629
      %v3631 = vextract.high.u32 %v3629
      %v3632 = vmul.u32 %v3625, %v3616
      %v3633 = vadd.s32 %v3628, %v3630
      %vm3634 = vc.u32 %v3628, %v3630
      %v3635 = vadd.s32 %v3631, 1
      %v3636 = vsel %vm3634, %v3635, %v3631
      %v3637 = vadd.s32 %v3632, %v3636
      %v3638 = vadd.s32 %v3637, 536870912
      %v3639 = vshrl.u32 %v3638, 30
      %v3640 = vshll.u32 %v3639, 30
      %v3641 = vsub.s32 %v3637, %v3640
      %vm3642 = vcmp.lt.s32.totalorder %v3641, 0
      %v3643 = vsub.s32 0, %v3641
      %v3644 = vsel %vm3642, %v3643, %v3641
      %v3645 = vclz %v3644
      %v3646 = vsub.s32 %v3645, 2
      %vm3647 = vcmp.gt.s32.totalorder 0, %v3646
      %v3648 = vsel %vm3647, 0, %v3646
      %v3649 = vsub.s32 32, %v3648
      %v3650 = vshll.u32 %v3641, %v3648
      %v3651 = vshrl.u32 %v3633, %v3649
      %v3652 = vor.u32 %v3650, %v3651
      %v3653 = vsub.s32 4294967266, %v3648
      %v3654 = vadd.s32 %v3653, 127
      %v3655 = vshll.u32 %v3654, 23
      %v3656 = vor.u32 4788187, %v3655
      %v3657 = vand.u32 2147483647, %v3656
      %v3659 = vcvt.s32.f32 %v3652
      %v3660 = vmul.f32 %v3659, %v3657
      %v3661 = vxor.u32 %v3660, 2147483648
      %v3662 = vsel %vm3579, %v3661, %v3660
      %v3663 = vsub.s32 4, %v3639
      %v3664 = vsel %vm3579, %v3663, %v3639
      %v3665 = vsel %vm3578, %v867, %v3662
      %v3666 = vsel %vm3578, 0, %v3664
      %v3667 = vcosq.f32.pop %v3665
      %v3668 = vsinq.f32.pop %v3665
      %vm3669 = vweird.f32 %v867
      %v3670 = vadd.s32 %v3666, 3
      %v3671 = vand.u32 %v3670, 3
      %vm3672 = vcmp.lt.s32.totalorder %v3671, 2
      %vm3673 = vcmp.eq.s32.totalorder %v3671, 0
      %v3674 = vxor.u32 %v3668, 2147483648
      %v3675 = vsel %vm3673, %v3667, %v3674
      %vm3676 = vcmp.eq.s32.totalorder %v3671, 2
      %v3677 = vxor.u32 %v3667, 2147483648
      %v3678 = vsel %vm3676, %v3677, %v3668
      %v3679 = vsel %vm3672, %v3675, %v3678
      %v3680 = vsel %vm3669, nan, %v3679
      %v3681 = vand.u32 2147483647, %v868
      %vm3682 = vcmp.le.f32.partialorder %v3681, 0.7853982
      %vm3683 = vcmp.lt.s32.totalorder %v868, 0
      %v3684 = vand.u32 %v868, 2139095040
      %v3685 = vshrl.u32 %v3684, 23
      %v3686 = vsub.s32 %v3685, 127
      %v3687 = vand.u32 2147483647, %v868
      %v3688 = vand.u32 %v3687, 8388607
      %v3689 = vor.u32 %v3688, 8388608
      %v3690 = vsub.s32 0, %v3689
      %v3691 = vadd.s32 %v3686, 1
      %vm3692 = vcmp.gt.s32.totalorder %v3691, 0
      %v3693 = vsel %vm3692, %v3691, 0
      %v3694 = vshrl.u32 %v3693, 5
      %v3695 = vand.u32 %v3693, 31
      %v3696 = vsub.s32 32, %v3695
      %v3697 = vshrl.u32 683565275, %v3696
      %v3698 = vshll.u32 683565275, %v3695
      %v3699 = vshrl.u32 2475754826, %v3696
      %v3700 = vor.u32 %v3698, %v3699
      %v3701 = vshll.u32 2475754826, %v3695
      %v3702 = vshrl.u32 2131351028, %v3696
      %v3703 = vor.u32 %v3701, %v3702
      %v3704 = vshll.u32 2131351028, %v3695
      %v3705 = vshrl.u32 2102212464, %v3696
      %v3706 = vor.u32 %v3704, %v3705
      %v3707 = vshll.u32 2102212464, %v3695
      %v3708 = vshrl.u32 920167782, %v3696
      %v3709 = vor.u32 %v3707, %v3708
      %v3710 = vshll.u32 920167782, %v3695
      %v3711 = vshrl.u32 1326507024, %v3696
      %v3712 = vor.u32 %v3710, %v3711
      %vm3713 = vcmp.lt.s32.totalorder %v3694, 1
      %vm3714 = vcmp.lt.s32.totalorder %v3694, 2
      %vm3715 = vcmp.lt.s32.totalorder %v3694, 3
      %vm3716 = vcmp.lt.s32.totalorder %v3694, 4
      %v3717 = vsel %vm3713, %v3697, %v3700
      %v3718 = vsel %vm3716, %v3706, 2102212464
      %v3719 = vsel %vm3715, %v3703, %v3718
      %v3720 = vsel %vm3714, %v3717, %v3719
      %v3721 = vsel %vm3713, %v3700, %v3703
      %v3722 = vsel %vm3716, %v3709, 920167782
      %v3723 = vsel %vm3715, %v3706, %v3722
      %v3724 = vsel %vm3714, %v3721, %v3723
      %v3725 = vsel %vm3713, %v3703, %v3706
      %v3726 = vsel %vm3716, %v3712, 1326507024
      %v3727 = vsel %vm3715, %v3709, %v3726
      %v3728 = vsel %vm3714, %v3725, %v3727
      %v3729 = vshll.u32 %v3689, 8
      %v3730 = vmul.u32.u64.compose %v3729, %v3728
      %v3731 = vextract.low.u32 %v3730
      %v3732 = vextract.high.u32 %v3730
      %v3733 = vmul.u32.u64.compose %v3729, %v3724
      %v3734 = vextract.low.u32 %v3733
      %v3735 = vextract.high.u32 %v3733
      %v3736 = vmul.u32 %v3729, %v3720
      %v3737 = vadd.s32 %v3732, %v3734
      %vm3738 = vc.u32 %v3732, %v3734
      %v3739 = vadd.s32 %v3735, 1
      %v3740 = vsel %vm3738, %v3739, %v3735
      %v3741 = vadd.s32 %v3736, %v3740
      %v3742 = vadd.s32 %v3741, 536870912
      %v3743 = vshrl.u32 %v3742, 30
      %v3744 = vshll.u32 %v3743, 30
      %v3745 = vsub.s32 %v3741, %v3744
      %vm3746 = vcmp.lt.s32.totalorder %v3745, 0
      %v3747 = vsub.s32 0, %v3745
      %v3748 = vsel %vm3746, %v3747, %v3745
      %v3749 = vclz %v3748
      %v3750 = vsub.s32 %v3749, 2
      %vm3751 = vcmp.gt.s32.totalorder 0, %v3750
      %v3752 = vsel %vm3751, 0, %v3750
      %v3753 = vsub.s32 32, %v3752
      %v3754 = vshll.u32 %v3745, %v3752
      %v3755 = vshrl.u32 %v3737, %v3753
      %v3756 = vor.u32 %v3754, %v3755
      %v3757 = vsub.s32 4294967266, %v3752
      %v3758 = vadd.s32 %v3757, 127
      %v3759 = vshll.u32 %v3758, 23
      %v3760 = vor.u32 4788187, %v3759
      %v3761 = vand.u32 2147483647, %v3760
      %v3763 = vcvt.s32.f32 %v3756
      %v3764 = vmul.f32 %v3763, %v3761
      %v3765 = vxor.u32 %v3764, 2147483648
      %v3766 = vsel %vm3683, %v3765, %v3764
      %v3767 = vsub.s32 4, %v3743
      %v3768 = vsel %vm3683, %v3767, %v3743
      %v3769 = vsel %vm3682, %v868, %v3766
      %v3770 = vsel %vm3682, 0, %v3768
      %v3771 = vcosq.f32.pop %v3769
      %v3772 = vsinq.f32.pop %v3769
      %vm3773 = vweird.f32 %v868
      %v3774 = vadd.s32 %v3770, 3
      %v3775 = vand.u32 %v3774, 3
      %vm3776 = vcmp.lt.s32.totalorder %v3775, 2
      %vm3777 = vcmp.eq.s32.totalorder %v3775, 0
      %v3778 = vxor.u32 %v3772, 2147483648
      %v3779 = vsel %vm3777, %v3771, %v3778
      %vm3780 = vcmp.eq.s32.totalorder %v3775, 2
      %v3781 = vxor.u32 %v3771, 2147483648
      %v3782 = vsel %vm3780, %v3781, %v3772
      %v3783 = vsel %vm3776, %v3779, %v3782
      %v3784 = vsel %vm3773, nan, %v3783
      %v3785 = vand.u32 2147483647, %v869
      %vm3786 = vcmp.le.f32.partialorder %v3785, 0.7853982
      %vm3787 = vcmp.lt.s32.totalorder %v869, 0
      %v3788 = vand.u32 %v869, 2139095040
      %v3789 = vshrl.u32 %v3788, 23
      %v3790 = vsub.s32 %v3789, 127
      %v3791 = vand.u32 2147483647, %v869
      %v3792 = vand.u32 %v3791, 8388607
      %v3793 = vor.u32 %v3792, 8388608
      %v3794 = vsub.s32 0, %v3793
      %v3795 = vadd.s32 %v3790, 1
      %vm3796 = vcmp.gt.s32.totalorder %v3795, 0
      %v3797 = vsel %vm3796, %v3795, 0
      %v3798 = vshrl.u32 %v3797, 5
      %v3799 = vand.u32 %v3797, 31
      %v3800 = vsub.s32 32, %v3799
      %v3801 = vshrl.u32 683565275, %v3800
      %v3802 = vshll.u32 683565275, %v3799
      %v3803 = vshrl.u32 2475754826, %v3800
      %v3804 = vor.u32 %v3802, %v3803
      %v3805 = vshll.u32 2475754826, %v3799
      %v3806 = vshrl.u32 2131351028, %v3800
      %v3807 = vor.u32 %v3805, %v3806
      %v3808 = vshll.u32 2131351028, %v3799
      %v3809 = vshrl.u32 2102212464, %v3800
      %v3810 = vor.u32 %v3808, %v3809
      %v3811 = vshll.u32 2102212464, %v3799
      %v3812 = vshrl.u32 920167782, %v3800
      %v3813 = vor.u32 %v3811, %v3812
      %v3814 = vshll.u32 920167782, %v3799
      %v3815 = vshrl.u32 1326507024, %v3800
      %v3816 = vor.u32 %v3814, %v3815
      %vm3817 = vcmp.lt.s32.totalorder %v3798, 1
      %vm3818 = vcmp.lt.s32.totalorder %v3798, 2
      %vm3819 = vcmp.lt.s32.totalorder %v3798, 3
      %vm3820 = vcmp.lt.s32.totalorder %v3798, 4
      %v3821 = vsel %vm3817, %v3801, %v3804
      %v3822 = vsel %vm3820, %v3810, 2102212464
      %v3823 = vsel %vm3819, %v3807, %v3822
      %v3824 = vsel %vm3818, %v3821, %v3823
      %v3825 = vsel %vm3817, %v3804, %v3807
      %v3826 = vsel %vm3820, %v3813, 920167782
      %v3827 = vsel %vm3819, %v3810, %v3826
      %v3828 = vsel %vm3818, %v3825, %v3827
      %v3829 = vsel %vm3817, %v3807, %v3810
      %v3830 = vsel %vm3820, %v3816, 1326507024
      %v3831 = vsel %vm3819, %v3813, %v3830
      %v3832 = vsel %vm3818, %v3829, %v3831
      %v3833 = vshll.u32 %v3793, 8
      %v3834 = vmul.u32.u64.compose %v3833, %v3832
      %v3835 = vextract.low.u32 %v3834
      %v3836 = vextract.high.u32 %v3834
      %v3837 = vmul.u32.u64.compose %v3833, %v3828
      %v3838 = vextract.low.u32 %v3837
      %v3839 = vextract.high.u32 %v3837
      %v3840 = vmul.u32 %v3833, %v3824
      %v3841 = vadd.s32 %v3836, %v3838
      %vm3842 = vc.u32 %v3836, %v3838
      %v3843 = vadd.s32 %v3839, 1
      %v3844 = vsel %vm3842, %v3843, %v3839
      %v3845 = vadd.s32 %v3840, %v3844
      %v3846 = vadd.s32 %v3845, 536870912
      %v3847 = vshrl.u32 %v3846, 30
      %v3848 = vshll.u32 %v3847, 30
      %v3849 = vsub.s32 %v3845, %v3848
      %vm3850 = vcmp.lt.s32.totalorder %v3849, 0
      %v3851 = vsub.s32 0, %v3849
      %v3852 = vsel %vm3850, %v3851, %v3849
      %v3853 = vclz %v3852
      %v3854 = vsub.s32 %v3853, 2
      %vm3855 = vcmp.gt.s32.totalorder 0, %v3854
      %v3856 = vsel %vm3855, 0, %v3854
      %v3857 = vsub.s32 32, %v3856
      %v3858 = vshll.u32 %v3849, %v3856
      %v3859 = vshrl.u32 %v3841, %v3857
      %v3860 = vor.u32 %v3858, %v3859
      %v3861 = vsub.s32 4294967266, %v3856
      %v3862 = vadd.s32 %v3861, 127
      %v3863 = vshll.u32 %v3862, 23
      %v3864 = vor.u32 4788187, %v3863
      %v3865 = vand.u32 2147483647, %v3864
      %v3867 = vcvt.s32.f32 %v3860
      %v3868 = vmul.f32 %v3867, %v3865
      %v3869 = vxor.u32 %v3868, 2147483648
      %v3870 = vsel %vm3787, %v3869, %v3868
      %v3871 = vsub.s32 4, %v3847
      %v3872 = vsel %vm3787, %v3871, %v3847
      %v3873 = vsel %vm3786, %v869, %v3870
      %v3874 = vsel %vm3786, 0, %v3872
      %v3875 = vcosq.f32.pop %v3873
      %v3876 = vsinq.f32.pop %v3873
      %vm3877 = vweird.f32 %v869
      %v3878 = vadd.s32 %v3874, 3
      %v3879 = vand.u32 %v3878, 3
      %vm3880 = vcmp.lt.s32.totalorder %v3879, 2
      %vm3881 = vcmp.eq.s32.totalorder %v3879, 0
      %v3882 = vxor.u32 %v3876, 2147483648
      %v3883 = vsel %vm3881, %v3875, %v3882
      %vm3884 = vcmp.eq.s32.totalorder %v3879, 2
      %v3885 = vxor.u32 %v3875, 2147483648
      %v3886 = vsel %vm3884, %v3885, %v3876
      %v3887 = vsel %vm3880, %v3883, %v3886
      %v3888 = vsel %vm3877, nan, %v3887
      %v3889 = vand.u32 2147483647, %v870
      %vm3890 = vcmp.le.f32.partialorder %v3889, 0.7853982
      %vm3891 = vcmp.lt.s32.totalorder %v870, 0
      %v3892 = vand.u32 %v870, 2139095040
      %v3893 = vshrl.u32 %v3892, 23
      %v3894 = vsub.s32 %v3893, 127
      %v3895 = vand.u32 2147483647, %v870
      %v3896 = vand.u32 %v3895, 8388607
      %v3897 = vor.u32 %v3896, 8388608
      %v3898 = vsub.s32 0, %v3897
      %v3899 = vadd.s32 %v3894, 1
      %vm3900 = vcmp.gt.s32.totalorder %v3899, 0
      %v3901 = vsel %vm3900, %v3899, 0
      %v3902 = vshrl.u32 %v3901, 5
      %v3903 = vand.u32 %v3901, 31
      %v3904 = vsub.s32 32, %v3903
      %v3905 = vshrl.u32 683565275, %v3904
      %v3906 = vshll.u32 683565275, %v3903
      %v3907 = vshrl.u32 2475754826, %v3904
      %v3908 = vor.u32 %v3906, %v3907
      %v3909 = vshll.u32 2475754826, %v3903
      %v3910 = vshrl.u32 2131351028, %v3904
      %v3911 = vor.u32 %v3909, %v3910
      %v3912 = vshll.u32 2131351028, %v3903
      %v3913 = vshrl.u32 2102212464, %v3904
      %v3914 = vor.u32 %v3912, %v3913
      %v3915 = vshll.u32 2102212464, %v3903
      %v3916 = vshrl.u32 920167782, %v3904
      %v3917 = vor.u32 %v3915, %v3916
      %v3918 = vshll.u32 920167782, %v3903
      %v3919 = vshrl.u32 1326507024, %v3904
      %v3920 = vor.u32 %v3918, %v3919
      %vm3921 = vcmp.lt.s32.totalorder %v3902, 1
      %vm3922 = vcmp.lt.s32.totalorder %v3902, 2
      %vm3923 = vcmp.lt.s32.totalorder %v3902, 3
      %vm3924 = vcmp.lt.s32.totalorder %v3902, 4
      %v3925 = vsel %vm3921, %v3905, %v3908
      %v3926 = vsel %vm3924, %v3914, 2102212464
      %v3927 = vsel %vm3923, %v3911, %v3926
      %v3928 = vsel %vm3922, %v3925, %v3927
      %v3929 = vsel %vm3921, %v3908, %v3911
      %v3930 = vsel %vm3924, %v3917, 920167782
      %v3931 = vsel %vm3923, %v3914, %v3930
      %v3932 = vsel %vm3922, %v3929, %v3931
      %v3933 = vsel %vm3921, %v3911, %v3914
      %v3934 = vsel %vm3924, %v3920, 1326507024
      %v3935 = vsel %vm3923, %v3917, %v3934
      %v3936 = vsel %vm3922, %v3933, %v3935
      %v3937 = vshll.u32 %v3897, 8
      %v3938 = vmul.u32.u64.compose %v3937, %v3936
      %v3939 = vextract.low.u32 %v3938
      %v3940 = vextract.high.u32 %v3938
      %v3941 = vmul.u32.u64.compose %v3937, %v3932
      %v3942 = vextract.low.u32 %v3941
      %v3943 = vextract.high.u32 %v3941
      %v3944 = vmul.u32 %v3937, %v3928
      %v3945 = vadd.s32 %v3940, %v3942
      %vm3946 = vc.u32 %v3940, %v3942
      %v3947 = vadd.s32 %v3943, 1
      %v3948 = vsel %vm3946, %v3947, %v3943
      %v3949 = vadd.s32 %v3944, %v3948
      %v3950 = vadd.s32 %v3949, 536870912
      %v3951 = vshrl.u32 %v3950, 30
      %v3952 = vshll.u32 %v3951, 30
      %v3953 = vsub.s32 %v3949, %v3952
      %vm3954 = vcmp.lt.s32.totalorder %v3953, 0
      %v3955 = vsub.s32 0, %v3953
      %v3956 = vsel %vm3954, %v3955, %v3953
      %v3957 = vclz %v3956
      %v3958 = vsub.s32 %v3957, 2
      %vm3959 = vcmp.gt.s32.totalorder 0, %v3958
      %v3960 = vsel %vm3959, 0, %v3958
      %v3961 = vsub.s32 32, %v3960
      %v3962 = vshll.u32 %v3953, %v3960
      %v3963 = vshrl.u32 %v3945, %v3961
      %v3964 = vor.u32 %v3962, %v3963
      %v3965 = vsub.s32 4294967266, %v3960
      %v3966 = vadd.s32 %v3965, 127
      %v3967 = vshll.u32 %v3966, 23
      %v3968 = vor.u32 4788187, %v3967
      %v3969 = vand.u32 2147483647, %v3968
      %v3971 = vcvt.s32.f32 %v3964
      %v3972 = vmul.f32 %v3971, %v3969
      %v3973 = vxor.u32 %v3972, 2147483648
      %v3974 = vsel %vm3891, %v3973, %v3972
      %v3975 = vsub.s32 4, %v3951
      %v3976 = vsel %vm3891, %v3975, %v3951
      %v3977 = vsel %vm3890, %v870, %v3974
      %v3978 = vsel %vm3890, 0, %v3976
      %v3979 = vcosq.f32.pop %v3977
      %v3980 = vsinq.f32.pop %v3977
      %vm3981 = vweird.f32 %v870
      %v3982 = vadd.s32 %v3978, 3
      %v3983 = vand.u32 %v3982, 3
      %vm3984 = vcmp.lt.s32.totalorder %v3983, 2
      %vm3985 = vcmp.eq.s32.totalorder %v3983, 0
      %v3986 = vxor.u32 %v3980, 2147483648
      %v3987 = vsel %vm3985, %v3979, %v3986
      %vm3988 = vcmp.eq.s32.totalorder %v3983, 2
      %v3989 = vxor.u32 %v3979, 2147483648
      %v3990 = vsel %vm3988, %v3989, %v3980
      %v3991 = vsel %vm3984, %v3987, %v3990
      %v3992 = vsel %vm3981, nan, %v3991
      %v3993 = vand.u32 2147483647, %v871
      %vm3994 = vcmp.le.f32.partialorder %v3993, 0.7853982
      %vm3995 = vcmp.lt.s32.totalorder %v871, 0
      %v3996 = vand.u32 %v871, 2139095040
      %v3997 = vshrl.u32 %v3996, 23
      %v3998 = vsub.s32 %v3997, 127
      %v3999 = vand.u32 2147483647, %v871
      %v4000 = vand.u32 %v3999, 8388607
      %v4001 = vor.u32 %v4000, 8388608
      %v4002 = vsub.s32 0, %v4001
      %v4003 = vadd.s32 %v3998, 1
      %vm4004 = vcmp.gt.s32.totalorder %v4003, 0
      %v4005 = vsel %vm4004, %v4003, 0
      %v4006 = vshrl.u32 %v4005, 5
      %v4007 = vand.u32 %v4005, 31
      %v4008 = vsub.s32 32, %v4007
      %v4009 = vshrl.u32 683565275, %v4008
      %v4010 = vshll.u32 683565275, %v4007
      %v4011 = vshrl.u32 2475754826, %v4008
      %v4012 = vor.u32 %v4010, %v4011
      %v4013 = vshll.u32 2475754826, %v4007
      %v4014 = vshrl.u32 2131351028, %v4008
      %v4015 = vor.u32 %v4013, %v4014
      %v4016 = vshll.u32 2131351028, %v4007
      %v4017 = vshrl.u32 2102212464, %v4008
      %v4018 = vor.u32 %v4016, %v4017
      %v4019 = vshll.u32 2102212464, %v4007
      %v4020 = vshrl.u32 920167782, %v4008
      %v4021 = vor.u32 %v4019, %v4020
      %v4022 = vshll.u32 920167782, %v4007
      %v4023 = vshrl.u32 1326507024, %v4008
      %v4024 = vor.u32 %v4022, %v4023
      %vm4025 = vcmp.lt.s32.totalorder %v4006, 1
      %vm4026 = vcmp.lt.s32.totalorder %v4006, 2
      %vm4027 = vcmp.lt.s32.totalorder %v4006, 3
      %vm4028 = vcmp.lt.s32.totalorder %v4006, 4
      %v4029 = vsel %vm4025, %v4009, %v4012
      %v4030 = vsel %vm4028, %v4018, 2102212464
      %v4031 = vsel %vm4027, %v4015, %v4030
      %v4032 = vsel %vm4026, %v4029, %v4031
      %v4033 = vsel %vm4025, %v4012, %v4015
      %v4034 = vsel %vm4028, %v4021, 920167782
      %v4035 = vsel %vm4027, %v4018, %v4034
      %v4036 = vsel %vm4026, %v4033, %v4035
      %v4037 = vsel %vm4025, %v4015, %v4018
      %v4038 = vsel %vm4028, %v4024, 1326507024
      %v4039 = vsel %vm4027, %v4021, %v4038
      %v4040 = vsel %vm4026, %v4037, %v4039
      %v4041 = vshll.u32 %v4001, 8
      %v4042 = vmul.u32.u64.compose %v4041, %v4040
      %v4043 = vextract.low.u32 %v4042
      %v4044 = vextract.high.u32 %v4042
      %v4045 = vmul.u32.u64.compose %v4041, %v4036
      %v4046 = vextract.low.u32 %v4045
      %v4047 = vextract.high.u32 %v4045
      %v4048 = vmul.u32 %v4041, %v4032
      %v4049 = vadd.s32 %v4044, %v4046
      %vm4050 = vc.u32 %v4044, %v4046
      %v4051 = vadd.s32 %v4047, 1
      %v4052 = vsel %vm4050, %v4051, %v4047
      %v4053 = vadd.s32 %v4048, %v4052
      %v4054 = vadd.s32 %v4053, 536870912
      %v4055 = vshrl.u32 %v4054, 30
      %v4056 = vshll.u32 %v4055, 30
      %v4057 = vsub.s32 %v4053, %v4056
      %vm4058 = vcmp.lt.s32.totalorder %v4057, 0
      %v4059 = vsub.s32 0, %v4057
      %v4060 = vsel %vm4058, %v4059, %v4057
      %v4061 = vclz %v4060
      %v4062 = vsub.s32 %v4061, 2
      %vm4063 = vcmp.gt.s32.totalorder 0, %v4062
      %v4064 = vsel %vm4063, 0, %v4062
      %v4065 = vsub.s32 32, %v4064
      %v4066 = vshll.u32 %v4057, %v4064
      %v4067 = vshrl.u32 %v4049, %v4065
      %v4068 = vor.u32 %v4066, %v4067
      %v4069 = vsub.s32 4294967266, %v4064
      %v4070 = vadd.s32 %v4069, 127
      %v4071 = vshll.u32 %v4070, 23
      %v4072 = vor.u32 4788187, %v4071
      %v4073 = vand.u32 2147483647, %v4072
      %v4075 = vcvt.s32.f32 %v4068
      %v4076 = vmul.f32 %v4075, %v4073
      %v4077 = vxor.u32 %v4076, 2147483648
      %v4078 = vsel %vm3995, %v4077, %v4076
      %v4079 = vsub.s32 4, %v4055
      %v4080 = vsel %vm3995, %v4079, %v4055
      %v4081 = vsel %vm3994, %v871, %v4078
      %v4082 = vsel %vm3994, 0, %v4080
      %v4083 = vcosq.f32.pop %v4081
      %v4084 = vsinq.f32.pop %v4081
      %vm4085 = vweird.f32 %v871
      %v4086 = vadd.s32 %v4082, 3
      %v4087 = vand.u32 %v4086, 3
      %vm4088 = vcmp.lt.s32.totalorder %v4087, 2
      %vm4089 = vcmp.eq.s32.totalorder %v4087, 0
      %v4090 = vxor.u32 %v4084, 2147483648
      %v4091 = vsel %vm4089, %v4083, %v4090
      %vm4092 = vcmp.eq.s32.totalorder %v4087, 2
      %v4093 = vxor.u32 %v4083, 2147483648
      %v4094 = vsel %vm4092, %v4093, %v4084
      %v4095 = vsel %vm4088, %v4091, %v4094
      %v4096 = vsel %vm4085, nan, %v4095
      %v4097 = vand.u32 2147483647, %v872
      %vm4098 = vcmp.le.f32.partialorder %v4097, 0.7853982
      %vm4099 = vcmp.lt.s32.totalorder %v872, 0
      %v4100 = vand.u32 %v872, 2139095040
      %v4101 = vshrl.u32 %v4100, 23
      %v4102 = vsub.s32 %v4101, 127
      %v4103 = vand.u32 2147483647, %v872
      %v4104 = vand.u32 %v4103, 8388607
      %v4105 = vor.u32 %v4104, 8388608
      %v4106 = vsub.s32 0, %v4105
      %v4107 = vadd.s32 %v4102, 1
      %vm4108 = vcmp.gt.s32.totalorder %v4107, 0
      %v4109 = vsel %vm4108, %v4107, 0
      %v4110 = vshrl.u32 %v4109, 5
      %v4111 = vand.u32 %v4109, 31
      %v4112 = vsub.s32 32, %v4111
      %v4113 = vshrl.u32 683565275, %v4112
      %v4114 = vshll.u32 683565275, %v4111
      %v4115 = vshrl.u32 2475754826, %v4112
      %v4116 = vor.u32 %v4114, %v4115
      %v4117 = vshll.u32 2475754826, %v4111
      %v4118 = vshrl.u32 2131351028, %v4112
      %v4119 = vor.u32 %v4117, %v4118
      %v4120 = vshll.u32 2131351028, %v4111
      %v4121 = vshrl.u32 2102212464, %v4112
      %v4122 = vor.u32 %v4120, %v4121
      %v4123 = vshll.u32 2102212464, %v4111
      %v4124 = vshrl.u32 920167782, %v4112
      %v4125 = vor.u32 %v4123, %v4124
      %v4126 = vshll.u32 920167782, %v4111
      %v4127 = vshrl.u32 1326507024, %v4112
      %v4128 = vor.u32 %v4126, %v4127
      %vm4129 = vcmp.lt.s32.totalorder %v4110, 1
      %vm4130 = vcmp.lt.s32.totalorder %v4110, 2
      %vm4131 = vcmp.lt.s32.totalorder %v4110, 3
      %vm4132 = vcmp.lt.s32.totalorder %v4110, 4
      %v4133 = vsel %vm4129, %v4113, %v4116
      %v4134 = vsel %vm4132, %v4122, 2102212464
      %v4135 = vsel %vm4131, %v4119, %v4134
      %v4136 = vsel %vm4130, %v4133, %v4135
      %v4137 = vsel %vm4129, %v4116, %v4119
      %v4138 = vsel %vm4132, %v4125, 920167782
      %v4139 = vsel %vm4131, %v4122, %v4138
      %v4140 = vsel %vm4130, %v4137, %v4139
      %v4141 = vsel %vm4129, %v4119, %v4122
      %v4142 = vsel %vm4132, %v4128, 1326507024
      %v4143 = vsel %vm4131, %v4125, %v4142
      %v4144 = vsel %vm4130, %v4141, %v4143
      %v4145 = vshll.u32 %v4105, 8
      %v4146 = vmul.u32.u64.compose %v4145, %v4144
      %v4147 = vextract.low.u32 %v4146
      %v4148 = vextract.high.u32 %v4146
      %v4149 = vmul.u32.u64.compose %v4145, %v4140
      %v4150 = vextract.low.u32 %v4149
      %v4151 = vextract.high.u32 %v4149
      %v4152 = vmul.u32 %v4145, %v4136
      %v4153 = vadd.s32 %v4148, %v4150
      %vm4154 = vc.u32 %v4148, %v4150
      %v4155 = vadd.s32 %v4151, 1
      %v4156 = vsel %vm4154, %v4155, %v4151
      %v4157 = vadd.s32 %v4152, %v4156
      %v4158 = vadd.s32 %v4157, 536870912
      %v4159 = vshrl.u32 %v4158, 30
      %v4160 = vshll.u32 %v4159, 30
      %v4161 = vsub.s32 %v4157, %v4160
      %vm4162 = vcmp.lt.s32.totalorder %v4161, 0
      %v4163 = vsub.s32 0, %v4161
      %v4164 = vsel %vm4162, %v4163, %v4161
      %v4165 = vclz %v4164
      %v4166 = vsub.s32 %v4165, 2
      %vm4167 = vcmp.gt.s32.totalorder 0, %v4166
      %v4168 = vsel %vm4167, 0, %v4166
      %v4169 = vsub.s32 32, %v4168
      %v4170 = vshll.u32 %v4161, %v4168
      %v4171 = vshrl.u32 %v4153, %v4169
      %v4172 = vor.u32 %v4170, %v4171
      %v4173 = vsub.s32 4294967266, %v4168
      %v4174 = vadd.s32 %v4173, 127
      %v4175 = vshll.u32 %v4174, 23
      %v4176 = vor.u32 4788187, %v4175
      %v4177 = vand.u32 2147483647, %v4176
      %v4179 = vcvt.s32.f32 %v4172
      %v4180 = vmul.f32 %v4179, %v4177
      %v4181 = vxor.u32 %v4180, 2147483648
      %v4182 = vsel %vm4099, %v4181, %v4180
      %v4183 = vsub.s32 4, %v4159
      %v4184 = vsel %vm4099, %v4183, %v4159
      %v4185 = vsel %vm4098, %v872, %v4182
      %v4186 = vsel %vm4098, 0, %v4184
      %v4187 = vcosq.f32.pop %v4185
      %v4188 = vsinq.f32.pop %v4185
      %vm4189 = vweird.f32 %v872
      %v4190 = vadd.s32 %v4186, 3
      %v4191 = vand.u32 %v4190, 3
      %vm4192 = vcmp.lt.s32.totalorder %v4191, 2
      %vm4193 = vcmp.eq.s32.totalorder %v4191, 0
      %v4194 = vxor.u32 %v4188, 2147483648
      %v4195 = vsel %vm4193, %v4187, %v4194
      %vm4196 = vcmp.eq.s32.totalorder %v4191, 2
      %v4197 = vxor.u32 %v4187, 2147483648
      %v4198 = vsel %vm4196, %v4197, %v4188
      %v4199 = vsel %vm4192, %v4195, %v4198
      %v4200 = vsel %vm4189, nan, %v4199
      %v4201 = vpack.c.bf16 %v1080, %v976
      %v4202 = vpack.c.bf16 %v1288, %v1184
      %v4203 = vpack.c.bf16 %v1496, %v1392
      %v4204 = vpack.c.bf16 %v1704, %v1600
      %v4205 = vpack.c.bf16 %v1912, %v1808
      %v4206 = vpack.c.bf16 %v2120, %v2016
      %v4207 = vpack.c.bf16 %v2328, %v2224
      %v4208 = vpack.c.bf16 %v2536, %v2432
      %v4209 = vpack.c.bf16 %v2744, %v2640
      %v4210 = vpack.c.bf16 %v2952, %v2848
      %v4211 = vpack.c.bf16 %v3160, %v3056
      %v4212 = vpack.c.bf16 %v3368, %v3264
      %v4213 = vpack.c.bf16 %v3576, %v3472
      %v4214 = vpack.c.bf16 %v3784, %v3680
      %v4215 = vpack.c.bf16 %v3992, %v3888
      %v4216 = vpack.c.bf16 %v4200, %v4096
      %v4217 = vld [vmem:[%s4] sm:$0xf]
      %v4218 = vld [vmem:[%s4 + $0x4] sm:$0xf]
      %v4219 = vld [vmem:[%s4 + $0x8] sm:$0xf]
      %v4220 = vld [vmem:[%s4 + $0xc] sm:$0xf]
      %v4221 = vld [vmem:[%s4 + $0x10] sm:$0xf]
      %v4222 = vld [vmem:[%s4 + $0x14] sm:$0xf]
      %v4223 = vld [vmem:[%s4 + $0x18] sm:$0xf]
      %v4224 = vld [vmem:[%s4 + $0x1c] sm:$0xf]
      %v4225 = vld [vmem:[%s4 + $0x20] sm:$0xf]
      %v4226 = vld [vmem:[%s4 + $0x24] sm:$0xf]
      %v4227 = vld [vmem:[%s4 + $0x28] sm:$0xf]
      %v4228 = vld [vmem:[%s4 + $0x2c] sm:$0xf]
      %v4229 = vld [vmem:[%s4 + $0x30] sm:$0xf]
      %v4230 = vld [vmem:[%s4 + $0x34] sm:$0xf]
      %v4231 = vld [vmem:[%s4 + $0x38] sm:$0xf]
      %v4232 = vld [vmem:[%s4 + $0x3c] sm:$0xf]
      %v4233 = vld [vmem:[%s5] sm:$0x1]
      %v4235 = vlaneseq
      %v4236 = vshrl.u32 %v4235, 7
      %v4237 = vsub.s32 0, %v4236
      %v4238 = vrot.slane %v4233, %v4237
      %v4256 = vunpack.c.l.b16 %v4217
      %v4257 = vunpack.c.l.b16 %v4218
      %v4258 = vunpack.c.l.b16 %v4219
      %v4259 = vunpack.c.l.b16 %v4220
      %v4260 = vunpack.c.l.b16 %v4221
      %v4261 = vunpack.c.l.b16 %v4222
      %v4262 = vunpack.c.l.b16 %v4223
      %v4263 = vunpack.c.l.b16 %v4224
      %v4264 = vunpack.c.l.b16 %v4225
      %v4265 = vunpack.c.l.b16 %v4226
      %v4266 = vunpack.c.l.b16 %v4227
      %v4267 = vunpack.c.l.b16 %v4228
      %v4268 = vunpack.c.l.b16 %v4229
      %v4269 = vunpack.c.l.b16 %v4230
      %v4270 = vunpack.c.l.b16 %v4231
      %v4271 = vunpack.c.l.b16 %v4232
      %v4272 = vpack.c.b16 %v4257, %v4256
      %v4273 = vpack.c.b16 %v4259, %v4258
      %v4274 = vpack.c.b16 %v4261, %v4260
      %v4275 = vpack.c.b16 %v4263, %v4262
      %v4276 = vpack.c.b16 %v4265, %v4264
      %v4277 = vpack.c.b16 %v4267, %v4266
      %v4278 = vpack.c.b16 %v4269, %v4268
      %v4279 = vpack.c.b16 %v4271, %v4270
      %4288 = vmatprep.subr.bf16.mxu0 0
      %4289 = vmatpush1.bf16.msra.mxu0 %v4272
      %4290 = vmatprep.subr.bf16.mxu0 0
      %4291 = vmatpush1.bf16.msra.mxu0 %v4273
      %4292 = vmatprep.subr.bf16.mxu0 0
      %4293 = vmatpush1.bf16.msra.mxu0 %v4274
      %4294 = vmatprep.subr.bf16.mxu0 0
      %4295 = vmatpush1.bf16.msra.mxu0 %v4275
      %4296 = vmatprep.subr.bf16.mxu0 0
      %4297 = vmatpush1.bf16.msra.mxu0 %v4276
      %4298 = vmatprep.subr.bf16.mxu0 0
      %4299 = vmatpush1.bf16.msra.mxu0 %v4277
      %4300 = vmatprep.subr.bf16.mxu0 0
      %4301 = vmatpush1.bf16.msra.mxu0 %v4278
      %4302 = vmatprep.subr.bf16.mxu0 0
      %4303 = vmatpush1.bf16.msra.mxu0 %v4279
      %4304 = vmatprep.subr.bf16.mxu0 0
      %4305 = vmatpush1.bf16.msra.mxu0 0
      %4306 = vmatprep.subr.bf16.mxu0 0
      %4307 = vmatpush1.bf16.msra.mxu0 0
      %4308 = vmatprep.subr.bf16.mxu0 0
      %4309 = vmatpush1.bf16.msra.mxu0 0
      %4310 = vmatprep.subr.bf16.mxu0 0
      %4311 = vmatpush1.bf16.msra.mxu0 0
      %4312 = vmatprep.subr.bf16.mxu0 0
      %4313 = vmatpush1.bf16.msra.mxu0 0
      %4314 = vmatprep.subr.bf16.mxu0 0
      %4315 = vmatpush1.bf16.msra.mxu0 0
      %4316 = vmatprep.subr.bf16.mxu0 0
      %4317 = vmatpush1.bf16.msra.mxu0 0
      %4318 = vmatprep.subr.bf16.mxu0 0
      %4319 = vmatpush1.bf16.msra.mxu0 0
      %4320 = vmatprep.mubr.bf16.mxu0 0
      %4321 = vmatmul.mubr.bf16.gmra.mrb[0].mxu0 %v4201
      %v4322 = vpop.f32.mrb[0].mxu0
      %v4323 = vadd.f32 %v4238, %v4322
      %v4324 = vpop.f32.mrb[0].mxu0
      %v4325 = vpop.f32.mrb[0].mxu0
      %v4326 = vadd.f32 %v4238, %v4325
      %v4327 = vpop.f32.mrb[0].mxu0
      %4328 = vmatprep.mubr.bf16.mxu0 0
      %4329 = vmatmul.mubr.bf16.gmra.mrb[0].mxu0 %v4202
      %v4330 = vpop.f32.mrb[0].mxu0
      %v4331 = vadd.f32 %v4238, %v4330
      %v4332 = vpop.f32.mrb[0].mxu0
      %v4333 = vpop.f32.mrb[0].mxu0
      %v4334 = vadd.f32 %v4238, %v4333
      %v4335 = vpop.f32.mrb[0].mxu0
      %4336 = vmatprep.mubr.bf16.mxu0 0
      %4337 = vmatmul.mubr.bf16.gmra.mrb[0].mxu0 %v4203
      %v4338 = vpop.f32.mrb[0].mxu0
      %v4339 = vadd.f32 %v4238, %v4338
      %v4340 = vpop.f32.mrb[0].mxu0
      %v4341 = vpop.f32.mrb[0].mxu0
      %v4342 = vadd.f32 %v4238, %v4341
      %v4343 = vpop.f32.mrb[0].mxu0
      %4344 = vmatprep.mubr.bf16.mxu0 0
      %4345 = vmatmul.mubr.bf16.gmra.mrb[0].mxu0 %v4204
      %v4346 = vpop.f32.mrb[0].mxu0
      %v4347 = vadd.f32 %v4238, %v4346
      %v4348 = vpop.f32.mrb[0].mxu0
      %v4349 = vpop.f32.mrb[0].mxu0
      %v4350 = vadd.f32 %v4238, %v4349
      %v4351 = vpop.f32.mrb[0].mxu0
      %4352 = vmatprep.mubr.bf16.mxu0 0
      %4353 = vmatmul.mubr.bf16.gmra.mrb[0].mxu0 %v4205
      %v4354 = vpop.f32.mrb[0].mxu0
      %v4355 = vadd.f32 %v4238, %v4354
      %v4356 = vpop.f32.mrb[0].mxu0
      %v4357 = vpop.f32.mrb[0].mxu0
      %v4358 = vadd.f32 %v4238, %v4357
      %v4359 = vpop.f32.mrb[0].mxu0
      %4360 = vmatprep.mubr.bf16.mxu0 0
      %4361 = vmatmul.mubr.bf16.gmra.mrb[0].mxu0 %v4206
      %v4362 = vpop.f32.mrb[0].mxu0
      %v4363 = vadd.f32 %v4238, %v4362
      %v4364 = vpop.f32.mrb[0].mxu0
      %v4365 = vpop.f32.mrb[0].mxu0
      %v4366 = vadd.f32 %v4238, %v4365
      %v4367 = vpop.f32.mrb[0].mxu0
      %4368 = vmatprep.mubr.bf16.mxu0 0
      %4369 = vmatmul.mubr.bf16.gmra.mrb[0].mxu0 %v4207
      %v4370 = vpop.f32.mrb[0].mxu0
      %v4371 = vadd.f32 %v4238, %v4370
      %v4372 = vpop.f32.mrb[0].mxu0
      %v4373 = vpop.f32.mrb[0].mxu0
      %v4374 = vadd.f32 %v4238, %v4373
      %v4375 = vpop.f32.mrb[0].mxu0
      %4376 = vmatprep.mubr.bf16.mxu0 0
      %4377 = vmatmul.mubr.bf16.gmra.mrb[0].mxu0 %v4208
      %v4378 = vpop.f32.mrb[0].mxu0
      %v4379 = vadd.f32 %v4238, %v4378
      %v4380 = vpop.f32.mrb[0].mxu0
      %v4381 = vpop.f32.mrb[0].mxu0
      %v4382 = vadd.f32 %v4238, %v4381
      %v4383 = vpop.f32.mrb[0].mxu0
      %4384 = vmatprep.mubr.bf16.mxu0 0
      %4385 = vmatmul.mubr.bf16.gmra.mrb[0].mxu0 %v4209
      %v4386 = vpop.f32.mrb[0].mxu0
      %v4387 = vadd.f32 %v4238, %v4386
      %v4388 = vpop.f32.mrb[0].mxu0
      %v4389 = vpop.f32.mrb[0].mxu0
      %v4390 = vadd.f32 %v4238, %v4389
      %v4391 = vpop.f32.mrb[0].mxu0
      %4392 = vmatprep.mubr.bf16.mxu0 0
      %4393 = vmatmul.mubr.bf16.gmra.mrb[0].mxu0 %v4210
      %v4394 = vpop.f32.mrb[0].mxu0
      %v4395 = vadd.f32 %v4238, %v4394
      %v4396 = vpop.f32.mrb[0].mxu0
      %v4397 = vpop.f32.mrb[0].mxu0
      %v4398 = vadd.f32 %v4238, %v4397
      %v4399 = vpop.f32.mrb[0].mxu0
      %4400 = vmatprep.mubr.bf16.mxu0 0
      %4401 = vmatmul.mubr.bf16.gmra.mrb[0].mxu0 %v4211
      %v4402 = vpop.f32.mrb[0].mxu0
      %v4403 = vadd.f32 %v4238, %v4402
      %v4404 = vpop.f32.mrb[0].mxu0
      %v4405 = vpop.f32.mrb[0].mxu0
      %v4406 = vadd.f32 %v4238, %v4405
      %v4407 = vpop.f32.mrb[0].mxu0
      %4408 = vmatprep.mubr.bf16.mxu0 0
      %4409 = vmatmul.mubr.bf16.gmra.mrb[0].mxu0 %v4212
      %v4410 = vpop.f32.mrb[0].mxu0
      %v4411 = vadd.f32 %v4238, %v4410
      %v4412 = vpop.f32.mrb[0].mxu0
      %v4413 = vpop.f32.mrb[0].mxu0
      %v4414 = vadd.f32 %v4238, %v4413
      %v4415 = vpop.f32.mrb[0].mxu0
      %4416 = vmatprep.mubr.bf16.mxu0 0
      %4417 = vmatmul.mubr.bf16.gmra.mrb[0].mxu0 %v4213
      %v4418 = vpop.f32.mrb[0].mxu0
      %v4419 = vadd.f32 %v4238, %v4418
      %v4420 = vpop.f32.mrb[0].mxu0
      %v4421 = vpop.f32.mrb[0].mxu0
      %v4422 = vadd.f32 %v4238, %v4421
      %v4423 = vpop.f32.mrb[0].mxu0
      %4424 = vmatprep.mubr.bf16.mxu0 0
      %4425 = vmatmul.mubr.bf16.gmra.mrb[0].mxu0 %v4214
      %v4426 = vpop.f32.mrb[0].mxu0
      %v4427 = vadd.f32 %v4238, %v4426
      %v4428 = vpop.f32.mrb[0].mxu0
      %v4429 = vpop.f32.mrb[0].mxu0
      %v4430 = vadd.f32 %v4238, %v4429
      %v4431 = vpop.f32.mrb[0].mxu0
      %4432 = vmatprep.mubr.bf16.mxu0 0
      %4433 = vmatmul.mubr.bf16.gmra.mrb[0].mxu0 %v4215
      %v4434 = vpop.f32.mrb[0].mxu0
      %v4435 = vadd.f32 %v4238, %v4434
      %v4436 = vpop.f32.mrb[0].mxu0
      %v4437 = vpop.f32.mrb[0].mxu0
      %v4438 = vadd.f32 %v4238, %v4437
      %v4439 = vpop.f32.mrb[0].mxu0
      %4440 = vmatprep.mubr.bf16.mxu0 0
      %4441 = vmatmul.mubr.bf16.gmra.mrb[0].mxu0 %v4216
      %v4442 = vpop.f32.mrb[0].mxu0
      %v4443 = vadd.f32 %v4238, %v4442
      %v4444 = vpop.f32.mrb[0].mxu0
      %v4445 = vpop.f32.mrb[0].mxu0
      %v4446 = vadd.f32 %v4238, %v4445
      %v4447 = vpop.f32.mrb[0].mxu0
      %4448 = vdwg.mxu0
      %v4449 = vpack.c.bf16 %v4326, %v4323
      %v4450 = vpack.c.bf16 %v4334, %v4331
      %v4451 = vpack.c.bf16 %v4342, %v4339
      %v4452 = vpack.c.bf16 %v4350, %v4347
      %v4453 = vpack.c.bf16 %v4358, %v4355
      %v4454 = vpack.c.bf16 %v4366, %v4363
      %v4455 = vpack.c.bf16 %v4374, %v4371
      %v4456 = vpack.c.bf16 %v4382, %v4379
      %v4457 = vpack.c.bf16 %v4390, %v4387
      %v4458 = vpack.c.bf16 %v4398, %v4395
      %v4459 = vpack.c.bf16 %v4406, %v4403
      %v4460 = vpack.c.bf16 %v4414, %v4411
      %v4461 = vpack.c.bf16 %v4422, %v4419
      %v4462 = vpack.c.bf16 %v4430, %v4427
      %v4463 = vpack.c.bf16 %v4438, %v4435
      %v4464 = vpack.c.bf16 %v4446, %v4443
      %v4465 = vmul.bf16 %v4449, 1056980736
      %v4466 = vmul.bf16 %v4450, 1056980736
      %v4467 = vmul.bf16 %v4451, 1056980736
      %v4468 = vmul.bf16 %v4452, 1056980736
      %v4469 = vmul.bf16 %v4453, 1056980736
      %v4470 = vmul.bf16 %v4454, 1056980736
      %v4471 = vmul.bf16 %v4455, 1056980736
      %v4472 = vmul.bf16 %v4456, 1056980736
      %v4473 = vmul.bf16 %v4457, 1056980736
      %v4474 = vmul.bf16 %v4458, 1056980736
      %v4475 = vmul.bf16 %v4459, 1056980736
      %v4476 = vmul.bf16 %v4460, 1056980736
      %v4477 = vmul.bf16 %v4461, 1056980736
      %v4478 = vmul.bf16 %v4462, 1056980736
      %v4479 = vmul.bf16 %v4463, 1056980736
      %v4480 = vmul.bf16 %v4464, 1056980736
      %v4481 = vtanh.bf16.pop %v4465
      %v4482 = vtanh.bf16.pop %v4466
      %v4483 = vtanh.bf16.pop %v4467
      %v4484 = vtanh.bf16.pop %v4468
      %v4485 = vtanh.bf16.pop %v4469
      %v4486 = vtanh.bf16.pop %v4470
      %v4487 = vtanh.bf16.pop %v4471
      %v4488 = vtanh.bf16.pop %v4472
      %v4489 = vtanh.bf16.pop %v4473
      %v4490 = vtanh.bf16.pop %v4474
      %v4491 = vtanh.bf16.pop %v4475
      %v4492 = vtanh.bf16.pop %v4476
      %v4493 = vtanh.bf16.pop %v4477
      %v4494 = vtanh.bf16.pop %v4478
      %v4495 = vtanh.bf16.pop %v4479
      %v4496 = vtanh.bf16.pop %v4480
      %v4497 = vmul.bf16 %v4481, 1056980736
      %v4498 = vmul.bf16 %v4482, 1056980736
      %v4499 = vmul.bf16 %v4483, 1056980736
      %v4500 = vmul.bf16 %v4484, 1056980736
      %v4501 = vmul.bf16 %v4485, 1056980736
      %v4502 = vmul.bf16 %v4486, 1056980736
      %v4503 = vmul.bf16 %v4487, 1056980736
      %v4504 = vmul.bf16 %v4488, 1056980736
      %v4505 = vmul.bf16 %v4489, 1056980736
      %v4506 = vmul.bf16 %v4490, 1056980736
      %v4507 = vmul.bf16 %v4491, 1056980736
      %v4508 = vmul.bf16 %v4492, 1056980736
      %v4509 = vmul.bf16 %v4493, 1056980736
      %v4510 = vmul.bf16 %v4494, 1056980736
      %v4511 = vmul.bf16 %v4495, 1056980736
      %v4512 = vmul.bf16 %v4496, 1056980736
      %v4513 = vadd.bf16 %v4497, 1056980736
      %v4514 = vadd.bf16 %v4498, 1056980736
      %v4515 = vadd.bf16 %v4499, 1056980736
      %v4516 = vadd.bf16 %v4500, 1056980736
      %v4517 = vadd.bf16 %v4501, 1056980736
      %v4518 = vadd.bf16 %v4502, 1056980736
      %v4519 = vadd.bf16 %v4503, 1056980736
      %v4520 = vadd.bf16 %v4504, 1056980736
      %v4521 = vadd.bf16 %v4505, 1056980736
      %v4522 = vadd.bf16 %v4506, 1056980736
      %v4523 = vadd.bf16 %v4507, 1056980736
      %v4524 = vadd.bf16 %v4508, 1056980736
      %v4525 = vadd.bf16 %v4509, 1056980736
      %v4526 = vadd.bf16 %v4510, 1056980736
      %v4527 = vadd.bf16 %v4511, 1056980736
      %v4528 = vadd.bf16 %v4512, 1056980736
      %v4529 = vmul.bf16 %v4449, %v4513
      %v4530 = vmul.bf16 %v4450, %v4514
      %v4531 = vmul.bf16 %v4451, %v4515
      %v4532 = vmul.bf16 %v4452, %v4516
      %v4533 = vmul.bf16 %v4453, %v4517
      %v4534 = vmul.bf16 %v4454, %v4518
      %v4535 = vmul.bf16 %v4455, %v4519
      %v4536 = vmul.bf16 %v4456, %v4520
      %v4537 = vmul.bf16 %v4457, %v4521
      %v4538 = vmul.bf16 %v4458, %v4522
      %v4539 = vmul.bf16 %v4459, %v4523
      %v4540 = vmul.bf16 %v4460, %v4524
      %v4541 = vmul.bf16 %v4461, %v4525
      %v4542 = vmul.bf16 %v4462, %v4526
      %v4543 = vmul.bf16 %v4463, %v4527
      %v4544 = vmul.bf16 %v4464, %v4528
      %v4545 = vld [vmem:[%s6] sm:$0xf]
      %v4546 = vld [vmem:[%s6 + $0x4] sm:$0xf]
      %v4547 = vld [vmem:[%s6 + $0x8] sm:$0xf]
      %v4548 = vld [vmem:[%s6 + $0xc] sm:$0xf]
      %v4549 = vld [vmem:[%s6 + $0x10] sm:$0xf]
      %v4550 = vld [vmem:[%s6 + $0x14] sm:$0xf]
      %v4551 = vld [vmem:[%s6 + $0x18] sm:$0xf]
      %v4552 = vld [vmem:[%s6 + $0x1c] sm:$0xf]
      %v4553 = vld [vmem:[%s6 + $0x20] sm:$0xf]
      %v4554 = vld [vmem:[%s6 + $0x24] sm:$0xf]
      %v4555 = vld [vmem:[%s6 + $0x28] sm:$0xf]
      %v4556 = vld [vmem:[%s6 + $0x2c] sm:$0xf]
      %v4557 = vld [vmem:[%s6 + $0x30] sm:$0xf]
      %v4558 = vld [vmem:[%s6 + $0x34] sm:$0xf]
      %v4559 = vld [vmem:[%s6 + $0x38] sm:$0xf]
      %v4560 = vld [vmem:[%s6 + $0x3c] sm:$0xf]
      %v4561 = vld [vmem:[%s7] sm:$0x1]
      %v4563 = vlaneseq
      %v4564 = vshrl.u32 %v4563, 7
      %v4565 = vsub.s32 0, %v4564
      %v4566 = vrot.slane %v4561, %v4565
      %v4584 = vunpack.c.l.b16 %v4545
      %v4585 = vunpack.c.l.b16 %v4546
      %v4586 = vunpack.c.l.b16 %v4547
      %v4587 = vunpack.c.l.b16 %v4548
      %v4588 = vunpack.c.l.b16 %v4549
      %v4589 = vunpack.c.l.b16 %v4550
      %v4590 = vunpack.c.l.b16 %v4551
      %v4591 = vunpack.c.l.b16 %v4552
      %v4592 = vunpack.c.l.b16 %v4553
      %v4593 = vunpack.c.l.b16 %v4554
      %v4594 = vunpack.c.l.b16 %v4555
      %v4595 = vunpack.c.l.b16 %v4556
      %v4596 = vunpack.c.l.b16 %v4557
      %v4597 = vunpack.c.l.b16 %v4558
      %v4598 = vunpack.c.l.b16 %v4559
      %v4599 = vunpack.c.l.b16 %v4560
      %v4600 = vpack.c.b16 %v4585, %v4584
      %v4601 = vpack.c.b16 %v4587, %v4586
      %v4602 = vpack.c.b16 %v4589, %v4588
      %v4603 = vpack.c.b16 %v4591, %v4590
      %v4604 = vpack.c.b16 %v4593, %v4592
      %v4605 = vpack.c.b16 %v4595, %v4594
      %v4606 = vpack.c.b16 %v4597, %v4596
      %v4607 = vpack.c.b16 %v4599, %v4598
      %4616 = vmatprep.subr.bf16.mxu0 0
      %4617 = vmatpush1.bf16.msra.mxu0 %v4600
      %4618 = vmatprep.subr.bf16.mxu0 0
      %4619 = vmatpush1.bf16.msra.mxu0 %v4601
      %4620 = vmatprep.subr.bf16.mxu0 0
      %4621 = vmatpush1.bf16.msra.mxu0 %v4602
      %4622 = vmatprep.subr.bf16.mxu0 0
      %4623 = vmatpush1.bf16.msra.mxu0 %v4603
      %4624 = vmatprep.subr.bf16.mxu0 0
      %4625 = vmatpush1.bf16.msra.mxu0 %v4604
      %4626 = vmatprep.subr.bf16.mxu0 0
      %4627 = vmatpush1.bf16.msra.mxu0 %v4605
      %4628 = vmatprep.subr.bf16.mxu0 0
      %4629 = vmatpush1.bf16.msra.mxu0 %v4606
      %4630 = vmatprep.subr.bf16.mxu0 0
      %4631 = vmatpush1.bf16.msra.mxu0 %v4607
      %4632 = vmatprep.subr.bf16.mxu0 0
      %4633 = vmatpush1.bf16.msra.mxu0 0
      %4634 = vmatprep.subr.bf16.mxu0 0
      %4635 = vmatpush1.bf16.msra.mxu0 0
      %4636 = vmatprep.subr.bf16.mxu0 0
      %4637 = vmatpush1.bf16.msra.mxu0 0
      %4638 = vmatprep.subr.bf16.mxu0 0
      %4639 = vmatpush1.bf16.msra.mxu0 0
      %4640 = vmatprep.subr.bf16.mxu0 0
      %4641 = vmatpush1.bf16.msra.mxu0 0
      %4642 = vmatprep.subr.bf16.mxu0 0
      %4643 = vmatpush1.bf16.msra.mxu0 0
      %4644 = vmatprep.subr.bf16.mxu0 0
      %4645 = vmatpush1.bf16.msra.mxu0 0
      %4646 = vmatprep.subr.bf16.mxu0 0
      %4647 = vmatpush1.bf16.msra.mxu0 0
      %4648 = vmatprep.mubr.bf16.mxu0 0
      %4649 = vmatmul.mubr.bf16.gmra.mrb[0].mxu0 %v4529
      %v4650 = vpop.f32.mrb[0].mxu0
      %v4651 = vadd.f32 %v4566, %v4650
      %v4652 = vpop.f32.mrb[0].mxu0
      %v4653 = vpop.f32.mrb[0].mxu0
      %v4654 = vadd.f32 %v4566, %v4653
      %v4655 = vpop.f32.mrb[0].mxu0
      %4656 = vmatprep.mubr.bf16.mxu0 0
      %4657 = vmatmul.mubr.bf16.gmra.mrb[0].mxu0 %v4530
      %v4658 = vpop.f32.mrb[0].mxu0
      %v4659 = vadd.f32 %v4566, %v4658
      %v4660 = vpop.f32.mrb[0].mxu0
      %v4661 = vpop.f32.mrb[0].mxu0
      %v4662 = vadd.f32 %v4566, %v4661
      %v4663 = vpop.f32.mrb[0].mxu0
      %4664 = vmatprep.mubr.bf16.mxu0 0
      %4665 = vmatmul.mubr.bf16.gmra.mrb[0].mxu0 %v4531
      %v4666 = vpop.f32.mrb[0].mxu0
      %v4667 = vadd.f32 %v4566, %v4666
      %v4668 = vpop.f32.mrb[0].mxu0
      %v4669 = vpop.f32.mrb[0].mxu0
      %v4670 = vadd.f32 %v4566, %v4669
      %v4671 = vpop.f32.mrb[0].mxu0
      %4672 = vmatprep.mubr.bf16.mxu0 0
      %4673 = vmatmul.mubr.bf16.gmra.mrb[0].mxu0 %v4532
      %v4674 = vpop.f32.mrb[0].mxu0
      %v4675 = vadd.f32 %v4566, %v4674
      %v4676 = vpop.f32.mrb[0].mxu0
      %v4677 = vpop.f32.mrb[0].mxu0
      %v4678 = vadd.f32 %v4566, %v4677
      %v4679 = vpop.f32.mrb[0].mxu0
      %4680 = vmatprep.mubr.bf16.mxu0 0
      %4681 = vmatmul.mubr.bf16.gmra.mrb[0].mxu0 %v4533
      %v4682 = vpop.f32.mrb[0].mxu0
      %v4683 = vadd.f32 %v4566, %v4682
      %v4684 = vpop.f32.mrb[0].mxu0
      %v4685 = vpop.f32.mrb[0].mxu0
      %v4686 = vadd.f32 %v4566, %v4685
      %v4687 = vpop.f32.mrb[0].mxu0
      %4688 = vmatprep.mubr.bf16.mxu0 0
      %4689 = vmatmul.mubr.bf16.gmra.mrb[0].mxu0 %v4534
      %v4690 = vpop.f32.mrb[0].mxu0
      %v4691 = vadd.f32 %v4566, %v4690
      %v4692 = vpop.f32.mrb[0].mxu0
      %v4693 = vpop.f32.mrb[0].mxu0
      %v4694 = vadd.f32 %v4566, %v4693
      %v4695 = vpop.f32.mrb[0].mxu0
      %4696 = vmatprep.mubr.bf16.mxu0 0
      %4697 = vmatmul.mubr.bf16.gmra.mrb[0].mxu0 %v4535
      %v4698 = vpop.f32.mrb[0].mxu0
      %v4699 = vadd.f32 %v4566, %v4698
      %v4700 = vpop.f32.mrb[0].mxu0
      %v4701 = vpop.f32.mrb[0].mxu0
      %v4702 = vadd.f32 %v4566, %v4701
      %v4703 = vpop.f32.mrb[0].mxu0
      %4704 = vmatprep.mubr.bf16.mxu0 0
      %4705 = vmatmul.mubr.bf16.gmra.mrb[0].mxu0 %v4536
      %v4706 = vpop.f32.mrb[0].mxu0
      %v4707 = vadd.f32 %v4566, %v4706
      %v4708 = vpop.f32.mrb[0].mxu0
      %v4709 = vpop.f32.mrb[0].mxu0
      %v4710 = vadd.f32 %v4566, %v4709
      %v4711 = vpop.f32.mrb[0].mxu0
      %4712 = vmatprep.mubr.bf16.mxu0 0
      %4713 = vmatmul.mubr.bf16.gmra.mrb[0].mxu0 %v4537
      %v4714 = vpop.f32.mrb[0].mxu0
      %v4715 = vadd.f32 %v4566, %v4714
      %v4716 = vpop.f32.mrb[0].mxu0
      %v4717 = vpop.f32.mrb[0].mxu0
      %v4718 = vadd.f32 %v4566, %v4717
      %v4719 = vpop.f32.mrb[0].mxu0
      %4720 = vmatprep.mubr.bf16.mxu0 0
      %4721 = vmatmul.mubr.bf16.gmra.mrb[0].mxu0 %v4538
      %v4722 = vpop.f32.mrb[0].mxu0
      %v4723 = vadd.f32 %v4566, %v4722
      %v4724 = vpop.f32.mrb[0].mxu0
      %v4725 = vpop.f32.mrb[0].mxu0
      %v4726 = vadd.f32 %v4566, %v4725
      %v4727 = vpop.f32.mrb[0].mxu0
      %4728 = vmatprep.mubr.bf16.mxu0 0
      %4729 = vmatmul.mubr.bf16.gmra.mrb[0].mxu0 %v4539
      %v4730 = vpop.f32.mrb[0].mxu0
      %v4731 = vadd.f32 %v4566, %v4730
      %v4732 = vpop.f32.mrb[0].mxu0
      %v4733 = vpop.f32.mrb[0].mxu0
      %v4734 = vadd.f32 %v4566, %v4733
      %v4735 = vpop.f32.mrb[0].mxu0
      %4736 = vmatprep.mubr.bf16.mxu0 0
      %4737 = vmatmul.mubr.bf16.gmra.mrb[0].mxu0 %v4540
      %v4738 = vpop.f32.mrb[0].mxu0
      %v4739 = vadd.f32 %v4566, %v4738
      %v4740 = vpop.f32.mrb[0].mxu0
      %v4741 = vpop.f32.mrb[0].mxu0
      %v4742 = vadd.f32 %v4566, %v4741
      %v4743 = vpop.f32.mrb[0].mxu0
      %4744 = vmatprep.mubr.bf16.mxu0 0
      %4745 = vmatmul.mubr.bf16.gmra.mrb[0].mxu0 %v4541
      %v4746 = vpop.f32.mrb[0].mxu0
      %v4747 = vadd.f32 %v4566, %v4746
      %v4748 = vpop.f32.mrb[0].mxu0
      %v4749 = vpop.f32.mrb[0].mxu0
      %v4750 = vadd.f32 %v4566, %v4749
      %v4751 = vpop.f32.mrb[0].mxu0
      %4752 = vmatprep.mubr.bf16.mxu0 0
      %4753 = vmatmul.mubr.bf16.gmra.mrb[0].mxu0 %v4542
      %v4754 = vpop.f32.mrb[0].mxu0
      %v4755 = vadd.f32 %v4566, %v4754
      %v4756 = vpop.f32.mrb[0].mxu0
      %v4757 = vpop.f32.mrb[0].mxu0
      %v4758 = vadd.f32 %v4566, %v4757
      %v4759 = vpop.f32.mrb[0].mxu0
      %4760 = vmatprep.mubr.bf16.mxu0 0
      %4761 = vmatmul.mubr.bf16.gmra.mrb[0].mxu0 %v4543
      %v4762 = vpop.f32.mrb[0].mxu0
      %v4763 = vadd.f32 %v4566, %v4762
      %v4764 = vpop.f32.mrb[0].mxu0
      %v4765 = vpop.f32.mrb[0].mxu0
      %v4766 = vadd.f32 %v4566, %v4765
      %v4767 = vpop.f32.mrb[0].mxu0
      %4768 = vmatprep.mubr.bf16.mxu0 0
      %4769 = vmatmul.mubr.bf16.gmra.mrb[0].mxu0 %v4544
      %v4770 = vpop.f32.mrb[0].mxu0
      %v4771 = vadd.f32 %v4566, %v4770
      %v4772 = vpop.f32.mrb[0].mxu0
      %v4773 = vpop.f32.mrb[0].mxu0
      %v4774 = vadd.f32 %v4566, %v4773
      %v4775 = vpop.f32.mrb[0].mxu0
      %4776 = vdwg.mxu0
      %v4777 = vld [vmem:[%s587] sm:$0xff]
      %v4778 = vld [vmem:[%s587 + $0x8] sm:$0xff]
      %v4779 = vld [vmem:[%s587 + $0x10] sm:$0xff]
      %v4780 = vld [vmem:[%s587 + $0x18] sm:$0xff]
      %v4781 = vld [vmem:[%s587 + $0x20] sm:$0xff]
      %v4782 = vld [vmem:[%s587 + $0x28] sm:$0xff]
      %v4783 = vld [vmem:[%s587 + $0x30] sm:$0xff]
      %v4784 = vld [vmem:[%s587 + $0x38] sm:$0xff]
      %v4785 = vld [vmem:[%s587 + $0x40] sm:$0xff]
      %v4786 = vld [vmem:[%s587 + $0x48] sm:$0xff]
      %v4787 = vld [vmem:[%s587 + $0x50] sm:$0xff]
      %v4788 = vld [vmem:[%s587 + $0x58] sm:$0xff]
      %v4789 = vld [vmem:[%s587 + $0x60] sm:$0xff]
      %v4790 = vld [vmem:[%s587 + $0x68] sm:$0xff]
      %v4791 = vld [vmem:[%s587 + $0x70] sm:$0xff]
      %v4792 = vld [vmem:[%s587 + $0x78] sm:$0xff]
      %v4793 = vld [vmem:[%s587 + $0x80] sm:$0xff]
      %v4794 = vld [vmem:[%s587 + $0x88] sm:$0xff]
      %v4795 = vld [vmem:[%s587 + $0x90] sm:$0xff]
      %v4796 = vld [vmem:[%s587 + $0x98] sm:$0xff]
      %v4797 = vld [vmem:[%s587 + $0xa0] sm:$0xff]
      %v4798 = vld [vmem:[%s587 + $0xa8] sm:$0xff]
      %v4799 = vld [vmem:[%s587 + $0xb0] sm:$0xff]
      %v4800 = vld [vmem:[%s587 + $0xb8] sm:$0xff]
      %v4801 = vld [vmem:[%s587 + $0xc0] sm:$0xff]
      %v4802 = vld [vmem:[%s587 + $0xc8] sm:$0xff]
      %v4803 = vld [vmem:[%s587 + $0xd0] sm:$0xff]
      %v4804 = vld [vmem:[%s587 + $0xd8] sm:$0xff]
      %v4805 = vld [vmem:[%s587 + $0xe0] sm:$0xff]
      %v4806 = vld [vmem:[%s587 + $0xe8] sm:$0xff]
      %v4807 = vld [vmem:[%s587 + $0xf0] sm:$0xff]
      %v4808 = vld [vmem:[%s587 + $0xf8] sm:$0xff]
      %v4809 = vpack.c.bf16 %v4778, %v4777
      %v4810 = vpack.c.bf16 %v4780, %v4779
      %v4811 = vpack.c.bf16 %v4782, %v4781
      %v4812 = vpack.c.bf16 %v4784, %v4783
      %v4813 = vpack.c.bf16 %v4786, %v4785
      %v4814 = vpack.c.bf16 %v4788, %v4787
      %v4815 = vpack.c.bf16 %v4790, %v4789
      %v4816 = vpack.c.bf16 %v4792, %v4791
      %v4817 = vpack.c.bf16 %v4794, %v4793
      %v4818 = vpack.c.bf16 %v4796, %v4795
      %v4819 = vpack.c.bf16 %v4798, %v4797
      %v4820 = vpack.c.bf16 %v4800, %v4799
      %v4821 = vpack.c.bf16 %v4802, %v4801
      %v4822 = vpack.c.bf16 %v4804, %v4803
      %v4823 = vpack.c.bf16 %v4806, %v4805
      %v4824 = vpack.c.bf16 %v4808, %v4807
      %v4825 = vld [vmem:[%s8] sm:$0xf]
      %v4826 = vld [vmem:[%s8 + $0x4] sm:$0xf]
      %v4827 = vld [vmem:[%s9] sm:$0x1]
      %v4829 = vlaneseq
      %v4830 = vshrl.u32 %v4829, 7
      %v4831 = vsub.s32 0, %v4830
      %v4832 = vrot.slane %v4827, %v4831
      %v4836 = vunpack.c.l.b16 %v4825
      %v4837 = vunpack.c.l.b16 %v4826
      %v4838 = vpack.c.b16 %v4837, %v4836
      %vm4840 = vcmask 130048
      %v4842 = vsel %vm4840, %v4809, 0
      %v4845 = vsel %vm4840, %v4810, 0
      %v4848 = vsel %vm4840, %v4811, 0
      %v4851 = vsel %vm4840, %v4812, 0
      %v4854 = vsel %vm4840, %v4813, 0
      %v4857 = vsel %vm4840, %v4814, 0
      %v4860 = vsel %vm4840, %v4815, 0
      %v4863 = vsel %vm4840, %v4816, 0
      %v4866 = vsel %vm4840, %v4817, 0
      %v4869 = vsel %vm4840, %v4818, 0
      %v4872 = vsel %vm4840, %v4819, 0
      %v4875 = vsel %vm4840, %v4820, 0
      %v4878 = vsel %vm4840, %v4821, 0
      %v4881 = vsel %vm4840, %v4822, 0
      %v4884 = vsel %vm4840, %v4823, 0
      %v4887 = vsel %vm4840, %v4824, 0
      %4889 = vmatprep.subr.bf16.mxu0 0
      %4890 = vmatpush1.bf16.msra.mxu0 %v4838
      %4891 = vmatprep.subr.bf16.mxu0 0
      %4892 = vmatpush1.bf16.msra.mxu0 0
      %4893 = vmatprep.subr.bf16.mxu0 0
      %4894 = vmatpush1.bf16.msra.mxu0 0
      %4895 = vmatprep.subr.bf16.mxu0 0
      %4896 = vmatpush1.bf16.msra.mxu0 0
      %4897 = vmatprep.subr.bf16.mxu0 0
      %4898 = vmatpush1.bf16.msra.mxu0 0
      %4899 = vmatprep.subr.bf16.mxu0 0
      %4900 = vmatpush1.bf16.msra.mxu0 0
      %4901 = vmatprep.subr.bf16.mxu0 0
      %4902 = vmatpush1.bf16.msra.mxu0 0
      %4903 = vmatprep.subr.bf16.mxu0 0
      %4904 = vmatpush1.bf16.msra.mxu0 0
      %4905 = vmatprep.subr.bf16.mxu0 0
      %4906 = vmatpush1.bf16.msra.mxu0 0
      %4907 = vmatprep.subr.bf16.mxu0 0
      %4908 = vmatpush1.bf16.msra.mxu0 0
      %4909 = vmatprep.subr.bf16.mxu0 0
      %4910 = vmatpush1.bf16.msra.mxu0 0
      %4911 = vmatprep.subr.bf16.mxu0 0
      %4912 = vmatpush1.bf16.msra.mxu0 0
      %4913 = vmatprep.subr.bf16.mxu0 0
      %4914 = vmatpush1.bf16.msra.mxu0 0
      %4915 = vmatprep.subr.bf16.mxu0 0
      %4916 = vmatpush1.bf16.msra.mxu0 0
      %4917 = vmatprep.subr.bf16.mxu0 0
      %4918 = vmatpush1.bf16.msra.mxu0 0
      %4919 = vmatprep.subr.bf16.mxu0 0
      %4920 = vmatpush1.bf16.msra.mxu0 0
      %4921 = vmatprep.mubr.bf16.mxu0 0
      %4922 = vmatmul.mubr.bf16.gmra.mrb[0].mxu0 %v4842
      %v4923 = vpop.f32.mrb[0].mxu0
      %v4924 = vadd.f32 %v4832, %v4923
      %v4925 = vpop.f32.mrb[0].mxu0
      %v4926 = vpop.f32.mrb[0].mxu0
      %v4927 = vadd.f32 %v4832, %v4926
      %v4928 = vpop.f32.mrb[0].mxu0
      %4929 = vmatprep.mubr.bf16.mxu0 0
      %4930 = vmatmul.mubr.bf16.gmra.mrb[0].mxu0 %v4845
      %v4931 = vpop.f32.mrb[0].mxu0
      %v4932 = vadd.f32 %v4832, %v4931
      %v4933 = vpop.f32.mrb[0].mxu0
      %v4934 = vpop.f32.mrb[0].mxu0
      %v4935 = vadd.f32 %v4832, %v4934
      %v4936 = vpop.f32.mrb[0].mxu0
      %4937 = vmatprep.mubr.bf16.mxu0 0
      %4938 = vmatmul.mubr.bf16.gmra.mrb[0].mxu0 %v4848
      %v4939 = vpop.f32.mrb[0].mxu0
      %v4940 = vadd.f32 %v4832, %v4939
      %v4941 = vpop.f32.mrb[0].mxu0
      %v4942 = vpop.f32.mrb[0].mxu0
      %v4943 = vadd.f32 %v4832, %v4942
      %v4944 = vpop.f32.mrb[0].mxu0
      %4945 = vmatprep.mubr.bf16.mxu0 0
      %4946 = vmatmul.mubr.bf16.gmra.mrb[0].mxu0 %v4851
      %v4947 = vpop.f32.mrb[0].mxu0
      %v4948 = vadd.f32 %v4832, %v4947
      %v4949 = vpop.f32.mrb[0].mxu0
      %v4950 = vpop.f32.mrb[0].mxu0
      %v4951 = vadd.f32 %v4832, %v4950
      %v4952 = vpop.f32.mrb[0].mxu0
      %4953 = vmatprep.mubr.bf16.mxu0 0
      %4954 = vmatmul.mubr.bf16.gmra.mrb[0].mxu0 %v4854
      %v4955 = vpop.f32.mrb[0].mxu0
      %v4956 = vadd.f32 %v4832, %v4955
      %v4957 = vpop.f32.mrb[0].mxu0
      %v4958 = vpop.f32.mrb[0].mxu0
      %v4959 = vadd.f32 %v4832, %v4958
      %v4960 = vpop.f32.mrb[0].mxu0
      %4961 = vmatprep.mubr.bf16.mxu0 0
      %4962 = vmatmul.mubr.bf16.gmra.mrb[0].mxu0 %v4857
      %v4963 = vpop.f32.mrb[0].mxu0
      %v4964 = vadd.f32 %v4832, %v4963
      %v4965 = vpop.f32.mrb[0].mxu0
      %v4966 = vpop.f32.mrb[0].mxu0
      %v4967 = vadd.f32 %v4832, %v4966
      %v4968 = vpop.f32.mrb[0].mxu0
      %4969 = vmatprep.mubr.bf16.mxu0 0
      %4970 = vmatmul.mubr.bf16.gmra.mrb[0].mxu0 %v4860
      %v4971 = vpop.f32.mrb[0].mxu0
      %v4972 = vadd.f32 %v4832, %v4971
      %v4973 = vpop.f32.mrb[0].mxu0
      %v4974 = vpop.f32.mrb[0].mxu0
      %v4975 = vadd.f32 %v4832, %v4974
      %v4976 = vpop.f32.mrb[0].mxu0
      %4977 = vmatprep.mubr.bf16.mxu0 0
      %4978 = vmatmul.mubr.bf16.gmra.mrb[0].mxu0 %v4863
      %v4979 = vpop.f32.mrb[0].mxu0
      %v4980 = vadd.f32 %v4832, %v4979
      %v4981 = vpop.f32.mrb[0].mxu0
      %v4982 = vpop.f32.mrb[0].mxu0
      %v4983 = vadd.f32 %v4832, %v4982
      %v4984 = vpop.f32.mrb[0].mxu0
      %4985 = vmatprep.mubr.bf16.mxu0 0
      %4986 = vmatmul.mubr.bf16.gmra.mrb[0].mxu0 %v4866
      %v4987 = vpop.f32.mrb[0].mxu0
      %v4988 = vadd.f32 %v4832, %v4987
      %v4989 = vpop.f32.mrb[0].mxu0
      %v4990 = vpop.f32.mrb[0].mxu0
      %v4991 = vadd.f32 %v4832, %v4990
      %v4992 = vpop.f32.mrb[0].mxu0
      %4993 = vmatprep.mubr.bf16.mxu0 0
      %4994 = vmatmul.mubr.bf16.gmra.mrb[0].mxu0 %v4869
      %v4995 = vpop.f32.mrb[0].mxu0
      %v4996 = vadd.f32 %v4832, %v4995
      %v4997 = vpop.f32.mrb[0].mxu0
      %v4998 = vpop.f32.mrb[0].mxu0
      %v4999 = vadd.f32 %v4832, %v4998
      %v5000 = vpop.f32.mrb[0].mxu0
      %5001 = vmatprep.mubr.bf16.mxu0 0
      %5002 = vmatmul.mubr.bf16.gmra.mrb[0].mxu0 %v4872
      %v5003 = vpop.f32.mrb[0].mxu0
      %v5004 = vadd.f32 %v4832, %v5003
      %v5005 = vpop.f32.mrb[0].mxu0
      %v5006 = vpop.f32.mrb[0].mxu0
      %v5007 = vadd.f32 %v4832, %v5006
      %v5008 = vpop.f32.mrb[0].mxu0
      %5009 = vmatprep.mubr.bf16.mxu0 0
      %5010 = vmatmul.mubr.bf16.gmra.mrb[0].mxu0 %v4875
      %v5011 = vpop.f32.mrb[0].mxu0
      %v5012 = vadd.f32 %v4832, %v5011
      %v5013 = vpop.f32.mrb[0].mxu0
      %v5014 = vpop.f32.mrb[0].mxu0
      %v5015 = vadd.f32 %v4832, %v5014
      %v5016 = vpop.f32.mrb[0].mxu0
      %5017 = vmatprep.mubr.bf16.mxu0 0
      %5018 = vmatmul.mubr.bf16.gmra.mrb[0].mxu0 %v4878
      %v5019 = vpop.f32.mrb[0].mxu0
      %v5020 = vadd.f32 %v4832, %v5019
      %v5021 = vpop.f32.mrb[0].mxu0
      %v5022 = vpop.f32.mrb[0].mxu0
      %v5023 = vadd.f32 %v4832, %v5022
      %v5024 = vpop.f32.mrb[0].mxu0
      %5025 = vmatprep.mubr.bf16.mxu0 0
      %5026 = vmatmul.mubr.bf16.gmra.mrb[0].mxu0 %v4881
      %v5027 = vpop.f32.mrb[0].mxu0
      %v5028 = vadd.f32 %v4832, %v5027
      %v5029 = vpop.f32.mrb[0].mxu0
      %v5030 = vpop.f32.mrb[0].mxu0
      %v5031 = vadd.f32 %v4832, %v5030
      %v5032 = vpop.f32.mrb[0].mxu0
      %5033 = vmatprep.mubr.bf16.mxu0 0
      %5034 = vmatmul.mubr.bf16.gmra.mrb[0].mxu0 %v4884
      %v5035 = vpop.f32.mrb[0].mxu0
      %v5036 = vadd.f32 %v4832, %v5035
      %v5037 = vpop.f32.mrb[0].mxu0
      %v5038 = vpop.f32.mrb[0].mxu0
      %v5039 = vadd.f32 %v4832, %v5038
      %v5040 = vpop.f32.mrb[0].mxu0
      %5041 = vmatprep.mubr.bf16.mxu0 0
      %5042 = vmatmul.mubr.bf16.gmra.mrb[0].mxu0 %v4887
      %v5043 = vpop.f32.mrb[0].mxu0
      %v5044 = vadd.f32 %v4832, %v5043
      %v5045 = vpop.f32.mrb[0].mxu0
      %v5046 = vpop.f32.mrb[0].mxu0
      %v5047 = vadd.f32 %v4832, %v5046
      %v5048 = vpop.f32.mrb[0].mxu0
      %5049 = vdwg.mxu0
      %v5050 = vadd.f32 %v4924, %v4651
      %v5051 = vadd.f32 %v4927, %v4654
      %v5052 = vadd.f32 %v4932, %v4659
      %v5053 = vadd.f32 %v4935, %v4662
      %v5054 = vadd.f32 %v4940, %v4667
      %v5055 = vadd.f32 %v4943, %v4670
      %v5056 = vadd.f32 %v4948, %v4675
      %v5057 = vadd.f32 %v4951, %v4678
      %v5058 = vadd.f32 %v4956, %v4683
      %v5059 = vadd.f32 %v4959, %v4686
      %v5060 = vadd.f32 %v4964, %v4691
      %v5061 = vadd.f32 %v4967, %v4694
      %v5062 = vadd.f32 %v4972, %v4699
      %v5063 = vadd.f32 %v4975, %v4702
      %v5064 = vadd.f32 %v4980, %v4707
      %v5065 = vadd.f32 %v4983, %v4710
      %v5066 = vadd.f32 %v4988, %v4715
      %v5067 = vadd.f32 %v4991, %v4718
      %v5068 = vadd.f32 %v4996, %v4723
      %v5069 = vadd.f32 %v4999, %v4726
      %v5070 = vadd.f32 %v5004, %v4731
      %v5071 = vadd.f32 %v5007, %v4734
      %v5072 = vadd.f32 %v5012, %v4739
      %v5073 = vadd.f32 %v5015, %v4742
      %v5074 = vadd.f32 %v5020, %v4747
      %v5075 = vadd.f32 %v5023, %v4750
      %v5076 = vadd.f32 %v5028, %v4755
      %v5077 = vadd.f32 %v5031, %v4758
      %v5078 = vadd.f32 %v5036, %v4763
      %v5079 = vadd.f32 %v5039, %v4766
      %v5080 = vadd.f32 %v5044, %v4771
      %v5081 = vadd.f32 %v5047, %v4774
      %v5082 = vpack.c.bf16 %v5051, %v5050
      %v5083 = vpack.c.bf16 %v5053, %v5052
      %v5084 = vpack.c.bf16 %v5055, %v5054
      %v5085 = vpack.c.bf16 %v5057, %v5056
      %v5086 = vpack.c.bf16 %v5059, %v5058
      %v5087 = vpack.c.bf16 %v5061, %v5060
      %v5088 = vpack.c.bf16 %v5063, %v5062
      %v5089 = vpack.c.bf16 %v5065, %v5064
      %v5090 = vpack.c.bf16 %v5067, %v5066
      %v5091 = vpack.c.bf16 %v5069, %v5068
      %v5092 = vpack.c.bf16 %v5071, %v5070
      %v5093 = vpack.c.bf16 %v5073, %v5072
      %v5094 = vpack.c.bf16 %v5075, %v5074
      %v5095 = vpack.c.bf16 %v5077, %v5076
      %v5096 = vpack.c.bf16 %v5079, %v5078
      %v5097 = vpack.c.bf16 %v5081, %v5080
      %v5098 = vld [vmem:[%s10] sm:$0xff]
      %v5099 = vld [vmem:[%s10 + $0x8] sm:$0xff]
      %v5100 = vld [vmem:[%s10 + $0x10] sm:$0xff]
      %v5101 = vld [vmem:[%s10 + $0x18] sm:$0xff]
      %v5102 = vld [vmem:[%s10 + $0x20] sm:$0xff]
      %v5103 = vld [vmem:[%s10 + $0x28] sm:$0xff]
      %v5104 = vld [vmem:[%s10 + $0x30] sm:$0xff]
      %v5105 = vld [vmem:[%s10 + $0x38] sm:$0xff]
      %v5106 = vld [vmem:[%s10 + $0x40] sm:$0xff]
      %v5107 = vld [vmem:[%s10 + $0x48] sm:$0xff]
      %v5108 = vld [vmem:[%s10 + $0x50] sm:$0xff]
      %v5109 = vld [vmem:[%s10 + $0x58] sm:$0xff]
      %v5110 = vld [vmem:[%s10 + $0x60] sm:$0xff]
      %v5111 = vld [vmem:[%s10 + $0x68] sm:$0xff]
      %v5112 = vld [vmem:[%s10 + $0x70] sm:$0xff]
      %v5113 = vld [vmem:[%s10 + $0x78] sm:$0xff]
      %v5114 = vld [vmem:[%s11] sm:$0x3]
      %v5116 = vlaneseq
      %v5117 = vshrl.u32 %v5116, 7
      %v5118 = vsub.s32 0, %v5117
      %v5119 = vrot.slane %v5114, %v5118
      %v5120 = vlaneseq
      %v5121 = vshrl.u32 %v5120, 7
      %v5122 = vsub.s32 1, %v5121
      %v5123 = vrot.slane %v5114, %v5122
      %v5142 = vunpack.c.l.b16 %v5098
      %v5143 = vunpack.c.h.b16 %v5098
      %v5144 = vunpack.c.l.b16 %v5099
      %v5145 = vunpack.c.h.b16 %v5099
      %v5146 = vunpack.c.l.b16 %v5100
      %v5147 = vunpack.c.h.b16 %v5100
      %v5148 = vunpack.c.l.b16 %v5101
      %v5149 = vunpack.c.h.b16 %v5101
      %v5150 = vunpack.c.l.b16 %v5102
      %v5151 = vunpack.c.h.b16 %v5102
      %v5152 = vunpack.c.l.b16 %v5103
      %v5153 = vunpack.c.h.b16 %v5103
      %v5154 = vunpack.c.l.b16 %v5104
      %v5155 = vunpack.c.h.b16 %v5104
      %v5156 = vunpack.c.l.b16 %v5105
      %v5157 = vunpack.c.h.b16 %v5105
      %v5158 = vunpack.c.l.b16 %v5106
      %v5159 = vunpack.c.h.b16 %v5106
      %v5160 = vunpack.c.l.b16 %v5107
      %v5161 = vunpack.c.h.b16 %v5107
      %v5162 = vunpack.c.l.b16 %v5108
      %v5163 = vunpack.c.h.b16 %v5108
      %v5164 = vunpack.c.l.b16 %v5109
      %v5165 = vunpack.c.h.b16 %v5109
      %v5166 = vunpack.c.l.b16 %v5110
      %v5167 = vunpack.c.h.b16 %v5110
      %v5168 = vunpack.c.l.b16 %v5111
      %v5169 = vunpack.c.h.b16 %v5111
      %v5170 = vunpack.c.l.b16 %v5112
      %v5171 = vunpack.c.h.b16 %v5112
      %v5172 = vunpack.c.l.b16 %v5113
      %v5173 = vunpack.c.h.b16 %v5113
      %v5174 = vpack.c.b16 %v5144, %v5142
      %v5175 = vpack.c.b16 %v5145, %v5143
      %v5176 = vpack.c.b16 %v5148, %v5146
      %v5177 = vpack.c.b16 %v5149, %v5147
      %v5178 = vpack.c.b16 %v5152, %v5150
      %v5179 = vpack.c.b16 %v5153, %v5151
      %v5180 = vpack.c.b16 %v5156, %v5154
      %v5181 = vpack.c.b16 %v5157, %v5155
      %v5182 = vpack.c.b16 %v5160, %v5158
      %v5183 = vpack.c.b16 %v5161, %v5159
      %v5184 = vpack.c.b16 %v5164, %v5162
      %v5185 = vpack.c.b16 %v5165, %v5163
      %v5186 = vpack.c.b16 %v5168, %v5166
      %v5187 = vpack.c.b16 %v5169, %v5167
      %v5188 = vpack.c.b16 %v5172, %v5170
      %v5189 = vpack.c.b16 %v5173, %v5171
      %5206 = vmatprep.subr.bf16.mxu0 %v5175
      %5207 = vmatpush1.bf16.msra.mxu0 %v5174
      %5208 = vmatprep.subr.bf16.mxu0 %v5177
      %5209 = vmatpush1.bf16.msra.mxu0 %v5176
      %5210 = vmatprep.subr.bf16.mxu0 %v5179
      %5211 = vmatpush1.bf16.msra.mxu0 %v5178
      %5212 = vmatprep.subr.bf16.mxu0 %v5181
      %5213 = vmatpush1.bf16.msra.mxu0 %v5180
      %5214 = vmatprep.subr.bf16.mxu0 %v5183
      %5215 = vmatpush1.bf16.msra.mxu0 %v5182
      %5216 = vmatprep.subr.bf16.mxu0 %v5185
      %5217 = vmatpush1.bf16.msra.mxu0 %v5184
      %5218 = vmatprep.subr.bf16.mxu0 %v5187
      %5219 = vmatpush1.bf16.msra.mxu0 %v5186
      %5220 = vmatprep.subr.bf16.mxu0 %v5189
      %5221 = vmatpush1.bf16.msra.mxu0 %v5188
      %5222 = vmatprep.subr.bf16.mxu0 0
      %5223 = vmatpush1.bf16.msra.mxu0 0
      %5224 = vmatprep.subr.bf16.mxu0 0
      %5225 = vmatpush1.bf16.msra.mxu0 0
      %5226 = vmatprep.subr.bf16.mxu0 0
      %5227 = vmatpush1.bf16.msra.mxu0 0
      %5228 = vmatprep.subr.bf16.mxu0 0
      %5229 = vmatpush1.bf16.msra.mxu0 0
      %5230 = vmatprep.subr.bf16.mxu0 0
      %5231 = vmatpush1.bf16.msra.mxu0 0
      %5232 = vmatprep.subr.bf16.mxu0 0
      %5233 = vmatpush1.bf16.msra.mxu0 0
      %5234 = vmatprep.subr.bf16.mxu0 0
      %5235 = vmatpush1.bf16.msra.mxu0 0
      %5236 = vmatprep.subr.bf16.mxu0 0
      %5237 = vmatpush1.bf16.msra.mxu0 0
      %5238 = vmatprep.mubr.bf16.mxu0 0
      %5239 = vmatmul.mubr.bf16.gmra.mrb[0].mxu0 %v5082
      %v5240 = vpop.f32.mrb[0].mxu0
      %v5241 = vadd.f32 %v5119, %v5240
      %v5242 = vpop.f32.mrb[0].mxu0
      %v5243 = vadd.f32 %v5123, %v5242
      %v5244 = vpop.f32.mrb[0].mxu0
      %v5245 = vadd.f32 %v5119, %v5244
      %v5246 = vpop.f32.mrb[0].mxu0
      %v5247 = vadd.f32 %v5123, %v5246
      %5248 = vmatprep.mubr.bf16.mxu0 0
      %5249 = vmatmul.mubr.bf16.gmra.mrb[0].mxu0 %v5083
      %v5250 = vpop.f32.mrb[0].mxu0
      %v5251 = vadd.f32 %v5119, %v5250
      %v5252 = vpop.f32.mrb[0].mxu0
      %v5253 = vadd.f32 %v5123, %v5252
      %v5254 = vpop.f32.mrb[0].mxu0
      %v5255 = vadd.f32 %v5119, %v5254
      %v5256 = vpop.f32.mrb[0].mxu0
      %v5257 = vadd.f32 %v5123, %v5256
      %5258 = vmatprep.mubr.bf16.mxu0 0
      %5259 = vmatmul.mubr.bf16.gmra.mrb[0].mxu0 %v5084
      %v5260 = vpop.f32.mrb[0].mxu0
      %v5261 = vadd.f32 %v5119, %v5260
      %v5262 = vpop.f32.mrb[0].mxu0
      %v5263 = vadd.f32 %v5123, %v5262
      %v5264 = vpop.f32.mrb[0].mxu0
      %v5265 = vadd.f32 %v5119, %v5264
      %v5266 = vpop.f32.mrb[0].mxu0
      %v5267 = vadd.f32 %v5123, %v5266
      %5268 = vmatprep.mubr.bf16.mxu0 0
      %5269 = vmatmul.mubr.bf16.gmra.mrb[0].mxu0 %v5085
      %v5270 = vpop.f32.mrb[0].mxu0
      %v5271 = vadd.f32 %v5119, %v5270
      %v5272 = vpop.f32.mrb[0].mxu0
      %v5273 = vadd.f32 %v5123, %v5272
      %v5274 = vpop.f32.mrb[0].mxu0
      %v5275 = vadd.f32 %v5119, %v5274
      %v5276 = vpop.f32.mrb[0].mxu0
      %v5277 = vadd.f32 %v5123, %v5276
      %5278 = vmatprep.mubr.bf16.mxu0 0
      %5279 = vmatmul.mubr.bf16.gmra.mrb[0].mxu0 %v5086
      %v5280 = vpop.f32.mrb[0].mxu0
      %v5281 = vadd.f32 %v5119, %v5280
      %v5282 = vpop.f32.mrb[0].mxu0
      %v5283 = vadd.f32 %v5123, %v5282
      %v5284 = vpop.f32.mrb[0].mxu0
      %v5285 = vadd.f32 %v5119, %v5284
      %v5286 = vpop.f32.mrb[0].mxu0
      %v5287 = vadd.f32 %v5123, %v5286
      %5288 = vmatprep.mubr.bf16.mxu0 0
      %5289 = vmatmul.mubr.bf16.gmra.mrb[0].mxu0 %v5087
      %v5290 = vpop.f32.mrb[0].mxu0
      %v5291 = vadd.f32 %v5119, %v5290
      %v5292 = vpop.f32.mrb[0].mxu0
      %v5293 = vadd.f32 %v5123, %v5292
      %v5294 = vpop.f32.mrb[0].mxu0
      %v5295 = vadd.f32 %v5119, %v5294
      %v5296 = vpop.f32.mrb[0].mxu0
      %v5297 = vadd.f32 %v5123, %v5296
      %5298 = vmatprep.mubr.bf16.mxu0 0
      %5299 = vmatmul.mubr.bf16.gmra.mrb[0].mxu0 %v5088
      %v5300 = vpop.f32.mrb[0].mxu0
      %v5301 = vadd.f32 %v5119, %v5300
      %v5302 = vpop.f32.mrb[0].mxu0
      %v5303 = vadd.f32 %v5123, %v5302
      %v5304 = vpop.f32.mrb[0].mxu0
      %v5305 = vadd.f32 %v5119, %v5304
      %v5306 = vpop.f32.mrb[0].mxu0
      %v5307 = vadd.f32 %v5123, %v5306
      %5308 = vmatprep.mubr.bf16.mxu0 0
      %5309 = vmatmul.mubr.bf16.gmra.mrb[0].mxu0 %v5089
      %v5310 = vpop.f32.mrb[0].mxu0
      %v5311 = vadd.f32 %v5119, %v5310
      %v5312 = vpop.f32.mrb[0].mxu0
      %v5313 = vadd.f32 %v5123, %v5312
      %v5314 = vpop.f32.mrb[0].mxu0
      %v5315 = vadd.f32 %v5119, %v5314
      %v5316 = vpop.f32.mrb[0].mxu0
      %v5317 = vadd.f32 %v5123, %v5316
      %5318 = vmatprep.mubr.bf16.mxu0 0
      %5319 = vmatmul.mubr.bf16.gmra.mrb[0].mxu0 %v5090
      %v5320 = vpop.f32.mrb[0].mxu0
      %v5321 = vadd.f32 %v5119, %v5320
      %v5322 = vpop.f32.mrb[0].mxu0
      %v5323 = vadd.f32 %v5123, %v5322
      %v5324 = vpop.f32.mrb[0].mxu0
      %v5325 = vadd.f32 %v5119, %v5324
      %v5326 = vpop.f32.mrb[0].mxu0
      %v5327 = vadd.f32 %v5123, %v5326
      %5328 = vmatprep.mubr.bf16.mxu0 0
      %5329 = vmatmul.mubr.bf16.gmra.mrb[0].mxu0 %v5091
      %v5330 = vpop.f32.mrb[0].mxu0
      %v5331 = vadd.f32 %v5119, %v5330
      %v5332 = vpop.f32.mrb[0].mxu0
      %v5333 = vadd.f32 %v5123, %v5332
      %v5334 = vpop.f32.mrb[0].mxu0
      %v5335 = vadd.f32 %v5119, %v5334
      %v5336 = vpop.f32.mrb[0].mxu0
      %v5337 = vadd.f32 %v5123, %v5336
      %5338 = vmatprep.mubr.bf16.mxu0 0
      %5339 = vmatmul.mubr.bf16.gmra.mrb[0].mxu0 %v5092
      %v5340 = vpop.f32.mrb[0].mxu0
      %v5341 = vadd.f32 %v5119, %v5340
      %v5342 = vpop.f32.mrb[0].mxu0
      %v5343 = vadd.f32 %v5123, %v5342
      %v5344 = vpop.f32.mrb[0].mxu0
      %v5345 = vadd.f32 %v5119, %v5344
      %v5346 = vpop.f32.mrb[0].mxu0
      %v5347 = vadd.f32 %v5123, %v5346
      %5348 = vmatprep.mubr.bf16.mxu0 0
      %5349 = vmatmul.mubr.bf16.gmra.mrb[0].mxu0 %v5093
      %v5350 = vpop.f32.mrb[0].mxu0
      %v5351 = vadd.f32 %v5119, %v5350
      %v5352 = vpop.f32.mrb[0].mxu0
      %v5353 = vadd.f32 %v5123, %v5352
      %v5354 = vpop.f32.mrb[0].mxu0
      %v5355 = vadd.f32 %v5119, %v5354
      %v5356 = vpop.f32.mrb[0].mxu0
      %v5357 = vadd.f32 %v5123, %v5356
      %5358 = vmatprep.mubr.bf16.mxu0 0
      %5359 = vmatmul.mubr.bf16.gmra.mrb[0].mxu0 %v5094
      %v5360 = vpop.f32.mrb[0].mxu0
      %v5361 = vadd.f32 %v5119, %v5360
      %v5362 = vpop.f32.mrb[0].mxu0
      %v5363 = vadd.f32 %v5123, %v5362
      %v5364 = vpop.f32.mrb[0].mxu0
      %v5365 = vadd.f32 %v5119, %v5364
      %v5366 = vpop.f32.mrb[0].mxu0
      %v5367 = vadd.f32 %v5123, %v5366
      %5368 = vmatprep.mubr.bf16.mxu0 0
      %5369 = vmatmul.mubr.bf16.gmra.mrb[0].mxu0 %v5095
      %v5370 = vpop.f32.mrb[0].mxu0
      %v5371 = vadd.f32 %v5119, %v5370
      %v5372 = vpop.f32.mrb[0].mxu0
      %v5373 = vadd.f32 %v5123, %v5372
      %v5374 = vpop.f32.mrb[0].mxu0
      %v5375 = vadd.f32 %v5119, %v5374
      %v5376 = vpop.f32.mrb[0].mxu0
      %v5377 = vadd.f32 %v5123, %v5376
      %5378 = vmatprep.mubr.bf16.mxu0 0
      %5379 = vmatmul.mubr.bf16.gmra.mrb[0].mxu0 %v5096
      %v5380 = vpop.f32.mrb[0].mxu0
      %v5381 = vadd.f32 %v5119, %v5380
      %v5382 = vpop.f32.mrb[0].mxu0
      %v5383 = vadd.f32 %v5123, %v5382
      %v5384 = vpop.f32.mrb[0].mxu0
      %v5385 = vadd.f32 %v5119, %v5384
      %v5386 = vpop.f32.mrb[0].mxu0
      %v5387 = vadd.f32 %v5123, %v5386
      %5388 = vmatprep.mubr.bf16.mxu0 0
      %5389 = vmatmul.mubr.bf16.gmra.mrb[0].mxu0 %v5097
      %v5390 = vpop.f32.mrb[0].mxu0
      %v5391 = vadd.f32 %v5119, %v5390
      %v5392 = vpop.f32.mrb[0].mxu0
      %v5393 = vadd.f32 %v5123, %v5392
      %v5394 = vpop.f32.mrb[0].mxu0
      %v5395 = vadd.f32 %v5119, %v5394
      %v5396 = vpop.f32.mrb[0].mxu0
      %v5397 = vadd.f32 %v5123, %v5396
      %5398 = vdwg.mxu0
      %v5399 = vpack.c.bf16 %v5245, %v5241
      %v5400 = vpack.c.bf16 %v5247, %v5243
      %v5401 = vpack.c.bf16 %v5255, %v5251
      %v5402 = vpack.c.bf16 %v5257, %v5253
      %v5403 = vpack.c.bf16 %v5265, %v5261
      %v5404 = vpack.c.bf16 %v5267, %v5263
      %v5405 = vpack.c.bf16 %v5275, %v5271
      %v5406 = vpack.c.bf16 %v5277, %v5273
      %v5407 = vpack.c.bf16 %v5285, %v5281
      %v5408 = vpack.c.bf16 %v5287, %v5283
      %v5409 = vpack.c.bf16 %v5295, %v5291
      %v5410 = vpack.c.bf16 %v5297, %v5293
      %v5411 = vpack.c.bf16 %v5305, %v5301
      %v5412 = vpack.c.bf16 %v5307, %v5303
      %v5413 = vpack.c.bf16 %v5315, %v5311
      %v5414 = vpack.c.bf16 %v5317, %v5313
      %v5415 = vpack.c.bf16 %v5325, %v5321
      %v5416 = vpack.c.bf16 %v5327, %v5323
      %v5417 = vpack.c.bf16 %v5335, %v5331
      %v5418 = vpack.c.bf16 %v5337, %v5333
      %v5419 = vpack.c.bf16 %v5345, %v5341
      %v5420 = vpack.c.bf16 %v5347, %v5343
      %v5421 = vpack.c.bf16 %v5355, %v5351
      %v5422 = vpack.c.bf16 %v5357, %v5353
      %v5423 = vpack.c.bf16 %v5365, %v5361
      %v5424 = vpack.c.bf16 %v5367, %v5363
      %v5425 = vpack.c.bf16 %v5375, %v5371
      %v5426 = vpack.c.bf16 %v5377, %v5373
      %v5427 = vpack.c.bf16 %v5385, %v5381
      %v5428 = vpack.c.bf16 %v5387, %v5383
      %v5429 = vpack.c.bf16 %v5395, %v5391
      %v5430 = vpack.c.bf16 %v5397, %v5393
      %v5431 = vmul.bf16 %v5399, 1056980736
      %v5432 = vmul.bf16 %v5400, 1056980736
      %v5433 = vmul.bf16 %v5401, 1056980736
      %v5434 = vmul.bf16 %v5402, 1056980736
      %v5435 = vmul.bf16 %v5403, 1056980736
      %v5436 = vmul.bf16 %v5404, 1056980736
      %v5437 = vmul.bf16 %v5405, 1056980736
      %v5438 = vmul.bf16 %v5406, 1056980736
      %v5439 = vmul.bf16 %v5407, 1056980736
      %v5440 = vmul.bf16 %v5408, 1056980736
      %v5441 = vmul.bf16 %v5409, 1056980736
      %v5442 = vmul.bf16 %v5410, 1056980736
      %v5443 = vmul.bf16 %v5411, 1056980736
      %v5444 = vmul.bf16 %v5412, 1056980736
      %v5445 = vmul.bf16 %v5413, 1056980736
      %v5446 = vmul.bf16 %v5414, 1056980736
      %v5447 = vmul.bf16 %v5415, 1056980736
      %v5448 = vmul.bf16 %v5416, 1056980736
      %v5449 = vmul.bf16 %v5417, 1056980736
      %v5450 = vmul.bf16 %v5418, 1056980736
      %v5451 = vmul.bf16 %v5419, 1056980736
      %v5452 = vmul.bf16 %v5420, 1056980736
      %v5453 = vmul.bf16 %v5421, 1056980736
      %v5454 = vmul.bf16 %v5422, 1056980736
      %v5455 = vmul.bf16 %v5423, 1056980736
      %v5456 = vmul.bf16 %v5424, 1056980736
      %v5457 = vmul.bf16 %v5425, 1056980736
      %v5458 = vmul.bf16 %v5426, 1056980736
      %v5459 = vmul.bf16 %v5427, 1056980736
      %v5460 = vmul.bf16 %v5428, 1056980736
      %v5461 = vmul.bf16 %v5429, 1056980736
      %v5462 = vmul.bf16 %v5430, 1056980736
      %v5463 = vtanh.bf16.pop %v5431
      %v5464 = vtanh.bf16.pop %v5432
      %v5465 = vtanh.bf16.pop %v5433
      %v5466 = vtanh.bf16.pop %v5434
      %v5467 = vtanh.bf16.pop %v5435
      %v5468 = vtanh.bf16.pop %v5436
      %v5469 = vtanh.bf16.pop %v5437
      %v5470 = vtanh.bf16.pop %v5438
      %v5471 = vtanh.bf16.pop %v5439
      %v5472 = vtanh.bf16.pop %v5440
      %v5473 = vtanh.bf16.pop %v5441
      %v5474 = vtanh.bf16.pop %v5442
      %v5475 = vtanh.bf16.pop %v5443
      %v5476 = vtanh.bf16.pop %v5444
      %v5477 = vtanh.bf16.pop %v5445
      %v5478 = vtanh.bf16.pop %v5446
      %v5479 = vtanh.bf16.pop %v5447
      %v5480 = vtanh.bf16.pop %v5448
      %v5481 = vtanh.bf16.pop %v5449
      %v5482 = vtanh.bf16.pop %v5450
      %v5483 = vtanh.bf16.pop %v5451
      %v5484 = vtanh.bf16.pop %v5452
      %v5485 = vtanh.bf16.pop %v5453
      %v5486 = vtanh.bf16.pop %v5454
      %v5487 = vtanh.bf16.pop %v5455
      %v5488 = vtanh.bf16.pop %v5456
      %v5489 = vtanh.bf16.pop %v5457
      %v5490 = vtanh.bf16.pop %v5458
      %v5491 = vtanh.bf16.pop %v5459
      %v5492 = vtanh.bf16.pop %v5460
      %v5493 = vtanh.bf16.pop %v5461
      %v5494 = vtanh.bf16.pop %v5462
      %v5495 = vmul.bf16 %v5463, 1056980736
      %v5496 = vmul.bf16 %v5464, 1056980736
      %v5497 = vmul.bf16 %v5465, 1056980736
      %v5498 = vmul.bf16 %v5466, 1056980736
      %v5499 = vmul.bf16 %v5467, 1056980736
      %v5500 = vmul.bf16 %v5468, 1056980736
      %v5501 = vmul.bf16 %v5469, 1056980736
      %v5502 = vmul.bf16 %v5470, 1056980736
      %v5503 = vmul.bf16 %v5471, 1056980736
      %v5504 = vmul.bf16 %v5472, 1056980736
      %v5505 = vmul.bf16 %v5473, 1056980736
      %v5506 = vmul.bf16 %v5474, 1056980736
      %v5507 = vmul.bf16 %v5475, 1056980736
      %v5508 = vmul.bf16 %v5476, 1056980736
      %v5509 = vmul.bf16 %v5477, 1056980736
      %v5510 = vmul.bf16 %v5478, 1056980736
      %v5511 = vmul.bf16 %v5479, 1056980736
      %v5512 = vmul.bf16 %v5480, 1056980736
      %v5513 = vmul.bf16 %v5481, 1056980736
      %v5514 = vmul.bf16 %v5482, 1056980736
      %v5515 = vmul.bf16 %v5483, 1056980736
      %v5516 = vmul.bf16 %v5484, 1056980736
      %v5517 = vmul.bf16 %v5485, 1056980736
      %v5518 = vmul.bf16 %v5486, 1056980736
      %v5519 = vmul.bf16 %v5487, 1056980736
      %v5520 = vmul.bf16 %v5488, 1056980736
      %v5521 = vmul.bf16 %v5489, 1056980736
      %v5522 = vmul.bf16 %v5490, 1056980736
      %v5523 = vmul.bf16 %v5491, 1056980736
      %v5524 = vmul.bf16 %v5492, 1056980736
      %v5525 = vmul.bf16 %v5493, 1056980736
      %v5526 = vmul.bf16 %v5494, 1056980736
      %v5527 = vadd.bf16 %v5495, 1056980736
      %v5528 = vadd.bf16 %v5496, 1056980736
      %v5529 = vadd.bf16 %v5497, 1056980736
      %v5530 = vadd.bf16 %v5498, 1056980736
      %v5531 = vadd.bf16 %v5499, 1056980736
      %v5532 = vadd.bf16 %v5500, 1056980736
      %v5533 = vadd.bf16 %v5501, 1056980736
      %v5534 = vadd.bf16 %v5502, 1056980736
      %v5535 = vadd.bf16 %v5503, 1056980736
      %v5536 = vadd.bf16 %v5504, 1056980736
      %v5537 = vadd.bf16 %v5505, 1056980736
      %v5538 = vadd.bf16 %v5506, 1056980736
      %v5539 = vadd.bf16 %v5507, 1056980736
      %v5540 = vadd.bf16 %v5508, 1056980736
      %v5541 = vadd.bf16 %v5509, 1056980736
      %v5542 = vadd.bf16 %v5510, 1056980736
      %v5543 = vadd.bf16 %v5511, 1056980736
      %v5544 = vadd.bf16 %v5512, 1056980736
      %v5545 = vadd.bf16 %v5513, 1056980736
      %v5546 = vadd.bf16 %v5514, 1056980736
      %v5547 = vadd.bf16 %v5515, 1056980736
      %v5548 = vadd.bf16 %v5516, 1056980736
      %v5549 = vadd.bf16 %v5517, 1056980736
      %v5550 = vadd.bf16 %v5518, 1056980736
      %v5551 = vadd.bf16 %v5519, 1056980736
      %v5552 = vadd.bf16 %v5520, 1056980736
      %v5553 = vadd.bf16 %v5521, 1056980736
      %v5554 = vadd.bf16 %v5522, 1056980736
      %v5555 = vadd.bf16 %v5523, 1056980736
      %v5556 = vadd.bf16 %v5524, 1056980736
      %v5557 = vadd.bf16 %v5525, 1056980736
      %v5558 = vadd.bf16 %v5526, 1056980736
      %v5559 = vmul.bf16 %v5399, %v5527
      %v5560 = vmul.bf16 %v5400, %v5528
      %v5561 = vmul.bf16 %v5401, %v5529
      %v5562 = vmul.bf16 %v5402, %v5530
      %v5563 = vmul.bf16 %v5403, %v5531
      %v5564 = vmul.bf16 %v5404, %v5532
      %v5565 = vmul.bf16 %v5405, %v5533
      %v5566 = vmul.bf16 %v5406, %v5534
      %v5567 = vmul.bf16 %v5407, %v5535
      %v5568 = vmul.bf16 %v5408, %v5536
      %v5569 = vmul.bf16 %v5409, %v5537
      %v5570 = vmul.bf16 %v5410, %v5538
      %v5571 = vmul.bf16 %v5411, %v5539
      %v5572 = vmul.bf16 %v5412, %v5540
      %v5573 = vmul.bf16 %v5413, %v5541
      %v5574 = vmul.bf16 %v5414, %v5542
      %v5575 = vmul.bf16 %v5415, %v5543
      %v5576 = vmul.bf16 %v5416, %v5544
      %v5577 = vmul.bf16 %v5417, %v5545
      %v5578 = vmul.bf16 %v5418, %v5546
      %v5579 = vmul.bf16 %v5419, %v5547
      %v5580 = vmul.bf16 %v5420, %v5548
      %v5581 = vmul.bf16 %v5421, %v5549
      %v5582 = vmul.bf16 %v5422, %v5550
      %v5583 = vmul.bf16 %v5423, %v5551
      %v5584 = vmul.bf16 %v5424, %v5552
      %v5585 = vmul.bf16 %v5425, %v5553
      %v5586 = vmul.bf16 %v5426, %v5554
      %v5587 = vmul.bf16 %v5427, %v5555
      %v5588 = vmul.bf16 %v5428, %v5556
      %v5589 = vmul.bf16 %v5429, %v5557
      %v5590 = vmul.bf16 %v5430, %v5558
      %v5591 = vld [vmem:[%s12] sm:$0xff]
      %v5592 = vld [vmem:[%s12 + $0x8] sm:$0xff]
      %v5593 = vld [vmem:[%s12 + $0x10] sm:$0xff]
      %v5594 = vld [vmem:[%s12 + $0x18] sm:$0xff]
      %v5595 = vld [vmem:[%s12 + $0x20] sm:$0xff]
      %v5596 = vld [vmem:[%s12 + $0x28] sm:$0xff]
      %v5597 = vld [vmem:[%s12 + $0x30] sm:$0xff]
      %v5598 = vld [vmem:[%s12 + $0x38] sm:$0xff]
      %v5599 = vld [vmem:[%s12 + $0x40] sm:$0xff]
      %v5600 = vld [vmem:[%s12 + $0x48] sm:$0xff]
      %v5601 = vld [vmem:[%s12 + $0x50] sm:$0xff]
      %v5602 = vld [vmem:[%s12 + $0x58] sm:$0xff]
      %v5603 = vld [vmem:[%s12 + $0x60] sm:$0xff]
      %v5604 = vld [vmem:[%s12 + $0x68] sm:$0xff]
      %v5605 = vld [vmem:[%s12 + $0x70] sm:$0xff]
      %v5606 = vld [vmem:[%s12 + $0x78] sm:$0xff]
      %v5607 = vld [vmem:[%s12 + $0x80] sm:$0xff]
      %v5608 = vld [vmem:[%s12 + $0x88] sm:$0xff]
      %v5609 = vld [vmem:[%s12 + $0x90] sm:$0xff]
      %v5610 = vld [vmem:[%s12 + $0x98] sm:$0xff]
      %v5611 = vld [vmem:[%s12 + $0xa0] sm:$0xff]
      %v5612 = vld [vmem:[%s12 + $0xa8] sm:$0xff]
      %v5613 = vld [vmem:[%s12 + $0xb0] sm:$0xff]
      %v5614 = vld [vmem:[%s12 + $0xb8] sm:$0xff]
      %v5615 = vld [vmem:[%s12 + $0xc0] sm:$0xff]
      %v5616 = vld [vmem:[%s12 + $0xc8] sm:$0xff]
      %v5617 = vld [vmem:[%s12 + $0xd0] sm:$0xff]
      %v5618 = vld [vmem:[%s12 + $0xd8] sm:$0xff]
      %v5619 = vld [vmem:[%s12 + $0xe0] sm:$0xff]
      %v5620 = vld [vmem:[%s12 + $0xe8] sm:$0xff]
      %v5621 = vld [vmem:[%s12 + $0xf0] sm:$0xff]
      %v5622 = vld [vmem:[%s12 + $0xf8] sm:$0xff]
      %v5623 = vld [vmem:[%s13] sm:$0x3]
      %v5625 = vlaneseq
      %v5626 = vshrl.u32 %v5625, 7
      %v5627 = vsub.s32 0, %v5626
      %v5628 = vrot.slane %v5623, %v5627
      %v5629 = vlaneseq
      %v5630 = vshrl.u32 %v5629, 7
      %v5631 = vsub.s32 1, %v5630
      %v5632 = vrot.slane %v5623, %v5631
      %v5667 = vunpack.c.l.b16 %v5591
      %v5668 = vunpack.c.h.b16 %v5591
      %v5669 = vunpack.c.l.b16 %v5592
      %v5670 = vunpack.c.h.b16 %v5592
      %v5671 = vunpack.c.l.b16 %v5593
      %v5672 = vunpack.c.h.b16 %v5593
      %v5673 = vunpack.c.l.b16 %v5594
      %v5674 = vunpack.c.h.b16 %v5594
      %v5675 = vunpack.c.l.b16 %v5595
      %v5676 = vunpack.c.h.b16 %v5595
      %v5677 = vunpack.c.l.b16 %v5596
      %v5678 = vunpack.c.h.b16 %v5596
      %v5679 = vunpack.c.l.b16 %v5597
      %v5680 = vunpack.c.h.b16 %v5597
      %v5681 = vunpack.c.l.b16 %v5598
      %v5682 = vunpack.c.h.b16 %v5598
      %v5683 = vunpack.c.l.b16 %v5599
      %v5684 = vunpack.c.h.b16 %v5599
      %v5685 = vunpack.c.l.b16 %v5600
      %v5686 = vunpack.c.h.b16 %v5600
      %v5687 = vunpack.c.l.b16 %v5601
      %v5688 = vunpack.c.h.b16 %v5601
      %v5689 = vunpack.c.l.b16 %v5602
      %v5690 = vunpack.c.h.b16 %v5602
      %v5691 = vunpack.c.l.b16 %v5603
      %v5692 = vunpack.c.h.b16 %v5603
      %v5693 = vunpack.c.l.b16 %v5604
      %v5694 = vunpack.c.h.b16 %v5604
      %v5695 = vunpack.c.l.b16 %v5605
      %v5696 = vunpack.c.h.b16 %v5605
      %v5697 = vunpack.c.l.b16 %v5606
      %v5698 = vunpack.c.h.b16 %v5606
      %v5699 = vunpack.c.l.b16 %v5607
      %v5700 = vunpack.c.h.b16 %v5607
      %v5701 = vunpack.c.l.b16 %v5608
      %v5702 = vunpack.c.h.b16 %v5608
      %v5703 = vunpack.c.l.b16 %v5609
      %v5704 = vunpack.c.h.b16 %v5609
      %v5705 = vunpack.c.l.b16 %v5610
      %v5706 = vunpack.c.h.b16 %v5610
      %v5707 = vunpack.c.l.b16 %v5611
      %v5708 = vunpack.c.h.b16 %v5611
      %v5709 = vunpack.c.l.b16 %v5612
      %v5710 = vunpack.c.h.b16 %v5612
      %v5711 = vunpack.c.l.b16 %v5613
      %v5712 = vunpack.c.h.b16 %v5613
      %v5713 = vunpack.c.l.b16 %v5614
      %v5714 = vunpack.c.h.b16 %v5614
      %v5715 = vunpack.c.l.b16 %v5615
      %v5716 = vunpack.c.h.b16 %v5615
      %v5717 = vunpack.c.l.b16 %v5616
      %v5718 = vunpack.c.h.b16 %v5616
      %v5719 = vunpack.c.l.b16 %v5617
      %v5720 = vunpack.c.h.b16 %v5617
      %v5721 = vunpack.c.l.b16 %v5618
      %v5722 = vunpack.c.h.b16 %v5618
      %v5723 = vunpack.c.l.b16 %v5619
      %v5724 = vunpack.c.h.b16 %v5619
      %v5725 = vunpack.c.l.b16 %v5620
      %v5726 = vunpack.c.h.b16 %v5620
      %v5727 = vunpack.c.l.b16 %v5621
      %v5728 = vunpack.c.h.b16 %v5621
      %v5729 = vunpack.c.l.b16 %v5622
      %v5730 = vunpack.c.h.b16 %v5622
      %v5731 = vpack.c.b16 %v5669, %v5667
      %v5732 = vpack.c.b16 %v5670, %v5668
      %v5733 = vpack.c.b16 %v5673, %v5671
      %v5734 = vpack.c.b16 %v5674, %v5672
      %v5735 = vpack.c.b16 %v5677, %v5675
      %v5736 = vpack.c.b16 %v5678, %v5676
      %v5737 = vpack.c.b16 %v5681, %v5679
      %v5738 = vpack.c.b16 %v5682, %v5680
      %v5739 = vpack.c.b16 %v5685, %v5683
      %v5740 = vpack.c.b16 %v5686, %v5684
      %v5741 = vpack.c.b16 %v5689, %v5687
      %v5742 = vpack.c.b16 %v5690, %v5688
      %v5743 = vpack.c.b16 %v5693, %v5691
      %v5744 = vpack.c.b16 %v5694, %v5692
      %v5745 = vpack.c.b16 %v5697, %v5695
      %v5746 = vpack.c.b16 %v5698, %v5696
      %v5747 = vpack.c.b16 %v5701, %v5699
      %v5748 = vpack.c.b16 %v5702, %v5700
      %v5749 = vpack.c.b16 %v5705, %v5703
      %v5750 = vpack.c.b16 %v5706, %v5704
      %v5751 = vpack.c.b16 %v5709, %v5707
      %v5752 = vpack.c.b16 %v5710, %v5708
      %v5753 = vpack.c.b16 %v5713, %v5711
      %v5754 = vpack.c.b16 %v5714, %v5712
      %v5755 = vpack.c.b16 %v5717, %v5715
      %v5756 = vpack.c.b16 %v5718, %v5716
      %v5757 = vpack.c.b16 %v5721, %v5719
      %v5758 = vpack.c.b16 %v5722, %v5720
      %v5759 = vpack.c.b16 %v5725, %v5723
      %v5760 = vpack.c.b16 %v5726, %v5724
      %v5761 = vpack.c.b16 %v5729, %v5727
      %v5762 = vpack.c.b16 %v5730, %v5728
      %5795 = vmatprep.subr.bf16.mxu0 %v5732
      %5796 = vmatpush1.bf16.msra.mxu0 %v5731
      %5797 = vmatprep.subr.bf16.mxu0 %v5734
      %5798 = vmatpush1.bf16.msra.mxu0 %v5733
      %5799 = vmatprep.subr.bf16.mxu0 %v5736
      %5800 = vmatpush1.bf16.msra.mxu0 %v5735
      %5801 = vmatprep.subr.bf16.mxu0 %v5738
      %5802 = vmatpush1.bf16.msra.mxu0 %v5737
      %5803 = vmatprep.subr.bf16.mxu0 %v5740
      %5804 = vmatpush1.bf16.msra.mxu0 %v5739
      %5805 = vmatprep.subr.bf16.mxu0 %v5742
      %5806 = vmatpush1.bf16.msra.mxu0 %v5741
      %5807 = vmatprep.subr.bf16.mxu0 %v5744
      %5808 = vmatpush1.bf16.msra.mxu0 %v5743
      %5809 = vmatprep.subr.bf16.mxu0 %v5746
      %5810 = vmatpush1.bf16.msra.mxu0 %v5745
      %5811 = vmatprep.subr.bf16.mxu0 %v5748
      %5812 = vmatpush1.bf16.msra.mxu0 %v5747
      %5813 = vmatprep.subr.bf16.mxu0 %v5750
      %5814 = vmatpush1.bf16.msra.mxu0 %v5749
      %5815 = vmatprep.subr.bf16.mxu0 %v5752
      %5816 = vmatpush1.bf16.msra.mxu0 %v5751
      %5817 = vmatprep.subr.bf16.mxu0 %v5754
      %5818 = vmatpush1.bf16.msra.mxu0 %v5753
      %5819 = vmatprep.subr.bf16.mxu0 %v5756
      %5820 = vmatpush1.bf16.msra.mxu0 %v5755
      %5821 = vmatprep.subr.bf16.mxu0 %v5758
      %5822 = vmatpush1.bf16.msra.mxu0 %v5757
      %5823 = vmatprep.subr.bf16.mxu0 %v5760
      %5824 = vmatpush1.bf16.msra.mxu0 %v5759
      %5825 = vmatprep.subr.bf16.mxu0 %v5762
      %5826 = vmatpush1.bf16.msra.mxu0 %v5761
      %5827 = vmatprep.mubr.bf16.mxu0 %v5560
      %5828 = vmatmul.mubr.bf16.gmra.mrb[0].mxu0 %v5559
      %v5829 = vpop.f32.mrb[0].mxu0
      %v5830 = vadd.f32 %v5628, %v5829
      %v5831 = vpop.f32.mrb[0].mxu0
      %v5832 = vadd.f32 %v5632, %v5831
      %v5833 = vpop.f32.mrb[0].mxu0
      %v5834 = vadd.f32 %v5628, %v5833
      %v5835 = vpop.f32.mrb[0].mxu0
      %v5836 = vadd.f32 %v5632, %v5835
      %5837 = vmatprep.mubr.bf16.mxu0 %v5562
      %5838 = vmatmul.mubr.bf16.gmra.mrb[0].mxu0 %v5561
      %v5839 = vpop.f32.mrb[0].mxu0
      %v5840 = vadd.f32 %v5628, %v5839
      %v5841 = vpop.f32.mrb[0].mxu0
      %v5842 = vadd.f32 %v5632, %v5841
      %v5843 = vpop.f32.mrb[0].mxu0
      %v5844 = vadd.f32 %v5628, %v5843
      %v5845 = vpop.f32.mrb[0].mxu0
      %v5846 = vadd.f32 %v5632, %v5845
      %5847 = vmatprep.mubr.bf16.mxu0 %v5564
      %5848 = vmatmul.mubr.bf16.gmra.mrb[0].mxu0 %v5563
      %v5849 = vpop.f32.mrb[0].mxu0
      %v5850 = vadd.f32 %v5628, %v5849
      %v5851 = vpop.f32.mrb[0].mxu0
      %v5852 = vadd.f32 %v5632, %v5851
      %v5853 = vpop.f32.mrb[0].mxu0
      %v5854 = vadd.f32 %v5628, %v5853
      %v5855 = vpop.f32.mrb[0].mxu0
      %v5856 = vadd.f32 %v5632, %v5855
      %5857 = vmatprep.mubr.bf16.mxu0 %v5566
      %5858 = vmatmul.mubr.bf16.gmra.mrb[0].mxu0 %v5565
      %v5859 = vpop.f32.mrb[0].mxu0
      %v5860 = vadd.f32 %v5628, %v5859
      %v5861 = vpop.f32.mrb[0].mxu0
      %v5862 = vadd.f32 %v5632, %v5861
      %v5863 = vpop.f32.mrb[0].mxu0
      %v5864 = vadd.f32 %v5628, %v5863
      %v5865 = vpop.f32.mrb[0].mxu0
      %v5866 = vadd.f32 %v5632, %v5865
      %5867 = vmatprep.mubr.bf16.mxu0 %v5568
      %5868 = vmatmul.mubr.bf16.gmra.mrb[0].mxu0 %v5567
      %v5869 = vpop.f32.mrb[0].mxu0
      %v5870 = vadd.f32 %v5628, %v5869
      %v5871 = vpop.f32.mrb[0].mxu0
      %v5872 = vadd.f32 %v5632, %v5871
      %v5873 = vpop.f32.mrb[0].mxu0
      %v5874 = vadd.f32 %v5628, %v5873
      %v5875 = vpop.f32.mrb[0].mxu0
      %v5876 = vadd.f32 %v5632, %v5875
      %5877 = vmatprep.mubr.bf16.mxu0 %v5570
      %5878 = vmatmul.mubr.bf16.gmra.mrb[0].mxu0 %v5569
      %v5879 = vpop.f32.mrb[0].mxu0
      %v5880 = vadd.f32 %v5628, %v5879
      %v5881 = vpop.f32.mrb[0].mxu0
      %v5882 = vadd.f32 %v5632, %v5881
      %v5883 = vpop.f32.mrb[0].mxu0
      %v5884 = vadd.f32 %v5628, %v5883
      %v5885 = vpop.f32.mrb[0].mxu0
      %v5886 = vadd.f32 %v5632, %v5885
      %5887 = vmatprep.mubr.bf16.mxu0 %v5572
      %5888 = vmatmul.mubr.bf16.gmra.mrb[0].mxu0 %v5571
      %v5889 = vpop.f32.mrb[0].mxu0
      %v5890 = vadd.f32 %v5628, %v5889
      %v5891 = vpop.f32.mrb[0].mxu0
      %v5892 = vadd.f32 %v5632, %v5891
      %v5893 = vpop.f32.mrb[0].mxu0
      %v5894 = vadd.f32 %v5628, %v5893
      %v5895 = vpop.f32.mrb[0].mxu0
      %v5896 = vadd.f32 %v5632, %v5895
      %5897 = vmatprep.mubr.bf16.mxu0 %v5574
      %5898 = vmatmul.mubr.bf16.gmra.mrb[0].mxu0 %v5573
      %v5899 = vpop.f32.mrb[0].mxu0
      %v5900 = vadd.f32 %v5628, %v5899
      %v5901 = vpop.f32.mrb[0].mxu0
      %v5902 = vadd.f32 %v5632, %v5901
      %v5903 = vpop.f32.mrb[0].mxu0
      %v5904 = vadd.f32 %v5628, %v5903
      %v5905 = vpop.f32.mrb[0].mxu0
      %v5906 = vadd.f32 %v5632, %v5905
      %5907 = vmatprep.mubr.bf16.mxu0 %v5576
      %5908 = vmatmul.mubr.bf16.gmra.mrb[0].mxu0 %v5575
      %v5909 = vpop.f32.mrb[0].mxu0
      %v5910 = vadd.f32 %v5628, %v5909
      %v5911 = vpop.f32.mrb[0].mxu0
      %v5912 = vadd.f32 %v5632, %v5911
      %v5913 = vpop.f32.mrb[0].mxu0
      %v5914 = vadd.f32 %v5628, %v5913
      %v5915 = vpop.f32.mrb[0].mxu0
      %v5916 = vadd.f32 %v5632, %v5915
      %5917 = vmatprep.mubr.bf16.mxu0 %v5578
      %5918 = vmatmul.mubr.bf16.gmra.mrb[0].mxu0 %v5577
      %v5919 = vpop.f32.mrb[0].mxu0
      %v5920 = vadd.f32 %v5628, %v5919
      %v5921 = vpop.f32.mrb[0].mxu0
      %v5922 = vadd.f32 %v5632, %v5921
      %v5923 = vpop.f32.mrb[0].mxu0
      %v5924 = vadd.f32 %v5628, %v5923
      %v5925 = vpop.f32.mrb[0].mxu0
      %v5926 = vadd.f32 %v5632, %v5925
      %5927 = vmatprep.mubr.bf16.mxu0 %v5580
      %5928 = vmatmul.mubr.bf16.gmra.mrb[0].mxu0 %v5579
      %v5929 = vpop.f32.mrb[0].mxu0
      %v5930 = vadd.f32 %v5628, %v5929
      %v5931 = vpop.f32.mrb[0].mxu0
      %v5932 = vadd.f32 %v5632, %v5931
      %v5933 = vpop.f32.mrb[0].mxu0
      %v5934 = vadd.f32 %v5628, %v5933
      %v5935 = vpop.f32.mrb[0].mxu0
      %v5936 = vadd.f32 %v5632, %v5935
      %5937 = vmatprep.mubr.bf16.mxu0 %v5582
      %5938 = vmatmul.mubr.bf16.gmra.mrb[0].mxu0 %v5581
      %v5939 = vpop.f32.mrb[0].mxu0
      %v5940 = vadd.f32 %v5628, %v5939
      %v5941 = vpop.f32.mrb[0].mxu0
      %v5942 = vadd.f32 %v5632, %v5941
      %v5943 = vpop.f32.mrb[0].mxu0
      %v5944 = vadd.f32 %v5628, %v5943
      %v5945 = vpop.f32.mrb[0].mxu0
      %v5946 = vadd.f32 %v5632, %v5945
      %5947 = vmatprep.mubr.bf16.mxu0 %v5584
      %5948 = vmatmul.mubr.bf16.gmra.mrb[0].mxu0 %v5583
      %v5949 = vpop.f32.mrb[0].mxu0
      %v5950 = vadd.f32 %v5628, %v5949
      %v5951 = vpop.f32.mrb[0].mxu0
      %v5952 = vadd.f32 %v5632, %v5951
      %v5953 = vpop.f32.mrb[0].mxu0
      %v5954 = vadd.f32 %v5628, %v5953
      %v5955 = vpop.f32.mrb[0].mxu0
      %v5956 = vadd.f32 %v5632, %v5955
      %5957 = vmatprep.mubr.bf16.mxu0 %v5586
      %5958 = vmatmul.mubr.bf16.gmra.mrb[0].mxu0 %v5585
      %v5959 = vpop.f32.mrb[0].mxu0
      %v5960 = vadd.f32 %v5628, %v5959
      %v5961 = vpop.f32.mrb[0].mxu0
      %v5962 = vadd.f32 %v5632, %v5961
      %v5963 = vpop.f32.mrb[0].mxu0
      %v5964 = vadd.f32 %v5628, %v5963
      %v5965 = vpop.f32.mrb[0].mxu0
      %v5966 = vadd.f32 %v5632, %v5965
      %5967 = vmatprep.mubr.bf16.mxu0 %v5588
      %5968 = vmatmul.mubr.bf16.gmra.mrb[0].mxu0 %v5587
      %v5969 = vpop.f32.mrb[0].mxu0
      %v5970 = vadd.f32 %v5628, %v5969
      %v5971 = vpop.f32.mrb[0].mxu0
      %v5972 = vadd.f32 %v5632, %v5971
      %v5973 = vpop.f32.mrb[0].mxu0
      %v5974 = vadd.f32 %v5628, %v5973
      %v5975 = vpop.f32.mrb[0].mxu0
      %v5976 = vadd.f32 %v5632, %v5975
      %5977 = vmatprep.mubr.bf16.mxu0 %v5590
      %5978 = vmatmul.mubr.bf16.gmra.mrb[0].mxu0 %v5589
      %v5979 = vpop.f32.mrb[0].mxu0
      %v5980 = vadd.f32 %v5628, %v5979
      %v5981 = vpop.f32.mrb[0].mxu0
      %v5982 = vadd.f32 %v5632, %v5981
      %v5983 = vpop.f32.mrb[0].mxu0
      %v5984 = vadd.f32 %v5628, %v5983
      %v5985 = vpop.f32.mrb[0].mxu0
      %v5986 = vadd.f32 %v5632, %v5985
      %5987 = vdwg.mxu0
      %v5988 = vpack.c.bf16 %v5834, %v5830
      %v5989 = vpack.c.bf16 %v5836, %v5832
      %v5990 = vpack.c.bf16 %v5844, %v5840
      %v5991 = vpack.c.bf16 %v5846, %v5842
      %v5992 = vpack.c.bf16 %v5854, %v5850
      %v5993 = vpack.c.bf16 %v5856, %v5852
      %v5994 = vpack.c.bf16 %v5864, %v5860
      %v5995 = vpack.c.bf16 %v5866, %v5862
      %v5996 = vpack.c.bf16 %v5874, %v5870
      %v5997 = vpack.c.bf16 %v5876, %v5872
      %v5998 = vpack.c.bf16 %v5884, %v5880
      %v5999 = vpack.c.bf16 %v5886, %v5882
      %v6000 = vpack.c.bf16 %v5894, %v5890
      %v6001 = vpack.c.bf16 %v5896, %v5892
      %v6002 = vpack.c.bf16 %v5904, %v5900
      %v6003 = vpack.c.bf16 %v5906, %v5902
      %v6004 = vpack.c.bf16 %v5914, %v5910
      %v6005 = vpack.c.bf16 %v5916, %v5912
      %v6006 = vpack.c.bf16 %v5924, %v5920
      %v6007 = vpack.c.bf16 %v5926, %v5922
      %v6008 = vpack.c.bf16 %v5934, %v5930
      %v6009 = vpack.c.bf16 %v5936, %v5932
      %v6010 = vpack.c.bf16 %v5944, %v5940
      %v6011 = vpack.c.bf16 %v5946, %v5942
      %v6012 = vpack.c.bf16 %v5954, %v5950
      %v6013 = vpack.c.bf16 %v5956, %v5952
      %v6014 = vpack.c.bf16 %v5964, %v5960
      %v6015 = vpack.c.bf16 %v5966, %v5962
      %v6016 = vpack.c.bf16 %v5974, %v5970
      %v6017 = vpack.c.bf16 %v5976, %v5972
      %v6018 = vpack.c.bf16 %v5984, %v5980
      %v6019 = vpack.c.bf16 %v5986, %v5982
      %v6020 = vmul.bf16 %v5988, 1056980736
      %v6021 = vmul.bf16 %v5989, 1056980736
      %v6022 = vmul.bf16 %v5990, 1056980736
      %v6023 = vmul.bf16 %v5991, 1056980736
      %v6024 = vmul.bf16 %v5992, 1056980736
      %v6025 = vmul.bf16 %v5993, 1056980736
      %v6026 = vmul.bf16 %v5994, 1056980736
      %v6027 = vmul.bf16 %v5995, 1056980736
      %v6028 = vmul.bf16 %v5996, 1056980736
      %v6029 = vmul.bf16 %v5997, 1056980736
      %v6030 = vmul.bf16 %v5998, 1056980736
      %v6031 = vmul.bf16 %v5999, 1056980736
      %v6032 = vmul.bf16 %v6000, 1056980736
      %v6033 = vmul.bf16 %v6001, 1056980736
      %v6034 = vmul.bf16 %v6002, 1056980736
      %v6035 = vmul.bf16 %v6003, 1056980736
      %v6036 = vmul.bf16 %v6004, 1056980736
      %v6037 = vmul.bf16 %v6005, 1056980736
      %v6038 = vmul.bf16 %v6006, 1056980736
      %v6039 = vmul.bf16 %v6007, 1056980736
      %v6040 = vmul.bf16 %v6008, 1056980736
      %v6041 = vmul.bf16 %v6009, 1056980736
      %v6042 = vmul.bf16 %v6010, 1056980736
      %v6043 = vmul.bf16 %v6011, 1056980736
      %v6044 = vmul.bf16 %v6012, 1056980736
      %v6045 = vmul.bf16 %v6013, 1056980736
      %v6046 = vmul.bf16 %v6014, 1056980736
      %v6047 = vmul.bf16 %v6015, 1056980736
      %v6048 = vmul.bf16 %v6016, 1056980736
      %v6049 = vmul.bf16 %v6017, 1056980736
      %v6050 = vmul.bf16 %v6018, 1056980736
      %v6051 = vmul.bf16 %v6019, 1056980736
      %v6052 = vtanh.bf16.pop %v6020
      %v6053 = vtanh.bf16.pop %v6021
      %v6054 = vtanh.bf16.pop %v6022
      %v6055 = vtanh.bf16.pop %v6023
      %v6056 = vtanh.bf16.pop %v6024
      %v6057 = vtanh.bf16.pop %v6025
      %v6058 = vtanh.bf16.pop %v6026
      %v6059 = vtanh.bf16.pop %v6027
      %v6060 = vtanh.bf16.pop %v6028
      %v6061 = vtanh.bf16.pop %v6029
      %v6062 = vtanh.bf16.pop %v6030
      %v6063 = vtanh.bf16.pop %v6031
      %v6064 = vtanh.bf16.pop %v6032
      %v6065 = vtanh.bf16.pop %v6033
      %v6066 = vtanh.bf16.pop %v6034
      %v6067 = vtanh.bf16.pop %v6035
      %v6068 = vtanh.bf16.pop %v6036
      %v6069 = vtanh.bf16.pop %v6037
      %v6070 = vtanh.bf16.pop %v6038
      %v6071 = vtanh.bf16.pop %v6039
      %v6072 = vtanh.bf16.pop %v6040
      %v6073 = vtanh.bf16.pop %v6041
      %v6074 = vtanh.bf16.pop %v6042
      %v6075 = vtanh.bf16.pop %v6043
      %v6076 = vtanh.bf16.pop %v6044
      %v6077 = vtanh.bf16.pop %v6045
      %v6078 = vtanh.bf16.pop %v6046
      %v6079 = vtanh.bf16.pop %v6047
      %v6080 = vtanh.bf16.pop %v6048
      %v6081 = vtanh.bf16.pop %v6049
      %v6082 = vtanh.bf16.pop %v6050
      %v6083 = vtanh.bf16.pop %v6051
      %v6084 = vmul.bf16 %v6052, 1056980736
      %v6085 = vmul.bf16 %v6053, 1056980736
      %v6086 = vmul.bf16 %v6054, 1056980736
      %v6087 = vmul.bf16 %v6055, 1056980736
      %v6088 = vmul.bf16 %v6056, 1056980736
      %v6089 = vmul.bf16 %v6057, 1056980736
      %v6090 = vmul.bf16 %v6058, 1056980736
      %v6091 = vmul.bf16 %v6059, 1056980736
      %v6092 = vmul.bf16 %v6060, 1056980736
      %v6093 = vmul.bf16 %v6061, 1056980736
      %v6094 = vmul.bf16 %v6062, 1056980736
      %v6095 = vmul.bf16 %v6063, 1056980736
      %v6096 = vmul.bf16 %v6064, 1056980736
      %v6097 = vmul.bf16 %v6065, 1056980736
      %v6098 = vmul.bf16 %v6066, 1056980736
      %v6099 = vmul.bf16 %v6067, 1056980736
      %v6100 = vmul.bf16 %v6068, 1056980736
      %v6101 = vmul.bf16 %v6069, 1056980736
      %v6102 = vmul.bf16 %v6070, 1056980736
      %v6103 = vmul.bf16 %v6071, 1056980736
      %v6104 = vmul.bf16 %v6072, 1056980736
      %v6105 = vmul.bf16 %v6073, 1056980736
      %v6106 = vmul.bf16 %v6074, 1056980736
      %v6107 = vmul.bf16 %v6075, 1056980736
      %v6108 = vmul.bf16 %v6076, 1056980736
      %v6109 = vmul.bf16 %v6077, 1056980736
      %v6110 = vmul.bf16 %v6078, 1056980736
      %v6111 = vmul.bf16 %v6079, 1056980736
      %v6112 = vmul.bf16 %v6080, 1056980736
      %v6113 = vmul.bf16 %v6081, 1056980736
      %v6114 = vmul.bf16 %v6082, 1056980736
      %v6115 = vmul.bf16 %v6083, 1056980736
      %v6116 = vadd.bf16 %v6084, 1056980736
      %v6117 = vadd.bf16 %v6085, 1056980736
      %v6118 = vadd.bf16 %v6086, 1056980736
      %v6119 = vadd.bf16 %v6087, 1056980736
      %v6120 = vadd.bf16 %v6088, 1056980736
      %v6121 = vadd.bf16 %v6089, 1056980736
      %v6122 = vadd.bf16 %v6090, 1056980736
      %v6123 = vadd.bf16 %v6091, 1056980736
      %v6124 = vadd.bf16 %v6092, 1056980736
      %v6125 = vadd.bf16 %v6093, 1056980736
      %v6126 = vadd.bf16 %v6094, 1056980736
      %v6127 = vadd.bf16 %v6095, 1056980736
      %v6128 = vadd.bf16 %v6096, 1056980736
      %v6129 = vadd.bf16 %v6097, 1056980736
      %v6130 = vadd.bf16 %v6098, 1056980736
      %v6131 = vadd.bf16 %v6099, 1056980736
      %v6132 = vadd.bf16 %v6100, 1056980736
      %v6133 = vadd.bf16 %v6101, 1056980736
      %v6134 = vadd.bf16 %v6102, 1056980736
      %v6135 = vadd.bf16 %v6103, 1056980736
      %v6136 = vadd.bf16 %v6104, 1056980736
      %v6137 = vadd.bf16 %v6105, 1056980736
      %v6138 = vadd.bf16 %v6106, 1056980736
      %v6139 = vadd.bf16 %v6107, 1056980736
      %v6140 = vadd.bf16 %v6108, 1056980736
      %v6141 = vadd.bf16 %v6109, 1056980736
      %v6142 = vadd.bf16 %v6110, 1056980736
      %v6143 = vadd.bf16 %v6111, 1056980736
      %v6144 = vadd.bf16 %v6112, 1056980736
      %v6145 = vadd.bf16 %v6113, 1056980736
      %v6146 = vadd.bf16 %v6114, 1056980736
      %v6147 = vadd.bf16 %v6115, 1056980736
      %v6148 = vmul.bf16 %v5988, %v6116
      %v6149 = vmul.bf16 %v5989, %v6117
      %v6150 = vmul.bf16 %v5990, %v6118
      %v6151 = vmul.bf16 %v5991, %v6119
      %v6152 = vmul.bf16 %v5992, %v6120
      %v6153 = vmul.bf16 %v5993, %v6121
      %v6154 = vmul.bf16 %v5994, %v6122
      %v6155 = vmul.bf16 %v5995, %v6123
      %v6156 = vmul.bf16 %v5996, %v6124
      %v6157 = vmul.bf16 %v5997, %v6125
      %v6158 = vmul.bf16 %v5998, %v6126
      %v6159 = vmul.bf16 %v5999, %v6127
      %v6160 = vmul.bf16 %v6000, %v6128
      %v6161 = vmul.bf16 %v6001, %v6129
      %v6162 = vmul.bf16 %v6002, %v6130
      %v6163 = vmul.bf16 %v6003, %v6131
      %v6164 = vmul.bf16 %v6004, %v6132
      %v6165 = vmul.bf16 %v6005, %v6133
      %v6166 = vmul.bf16 %v6006, %v6134
      %v6167 = vmul.bf16 %v6007, %v6135
      %v6168 = vmul.bf16 %v6008, %v6136
      %v6169 = vmul.bf16 %v6009, %v6137
      %v6170 = vmul.bf16 %v6010, %v6138
      %v6171 = vmul.bf16 %v6011, %v6139
      %v6172 = vmul.bf16 %v6012, %v6140
      %v6173 = vmul.bf16 %v6013, %v6141
      %v6174 = vmul.bf16 %v6014, %v6142
      %v6175 = vmul.bf16 %v6015, %v6143
      %v6176 = vmul.bf16 %v6016, %v6144
      %v6177 = vmul.bf16 %v6017, %v6145
      %v6178 = vmul.bf16 %v6018, %v6146
      %v6179 = vmul.bf16 %v6019, %v6147
      %v6180 = vld [vmem:[%s14] sm:$0xf]
      %v6181 = vld [vmem:[%s14 + $0x4] sm:$0xf]
      %v6182 = vld [vmem:[%s14 + $0x8] sm:$0xf]
      %v6183 = vld [vmem:[%s14 + $0xc] sm:$0xf]
      %v6184 = vld [vmem:[%s14 + $0x10] sm:$0xf]
      %v6185 = vld [vmem:[%s14 + $0x14] sm:$0xf]
      %v6186 = vld [vmem:[%s14 + $0x18] sm:$0xf]
      %v6187 = vld [vmem:[%s14 + $0x1c] sm:$0xf]
      %v6188 = vld [vmem:[%s14 + $0x20] sm:$0xf]
      %v6189 = vld [vmem:[%s14 + $0x24] sm:$0xf]
      %v6190 = vld [vmem:[%s14 + $0x28] sm:$0xf]
      %v6191 = vld [vmem:[%s14 + $0x2c] sm:$0xf]
      %v6192 = vld [vmem:[%s14 + $0x30] sm:$0xf]
      %v6193 = vld [vmem:[%s14 + $0x34] sm:$0xf]
      %v6194 = vld [vmem:[%s14 + $0x38] sm:$0xf]
      %v6195 = vld [vmem:[%s14 + $0x3c] sm:$0xf]
      %v6196 = vld [vmem:[%s14 + $0x40] sm:$0xf]
      %v6197 = vld [vmem:[%s14 + $0x44] sm:$0xf]
      %v6198 = vld [vmem:[%s14 + $0x48] sm:$0xf]
      %v6199 = vld [vmem:[%s14 + $0x4c] sm:$0xf]
      %v6200 = vld [vmem:[%s14 + $0x50] sm:$0xf]
      %v6201 = vld [vmem:[%s14 + $0x54] sm:$0xf]
      %v6202 = vld [vmem:[%s14 + $0x58] sm:$0xf]
      %v6203 = vld [vmem:[%s14 + $0x5c] sm:$0xf]
      %v6204 = vld [vmem:[%s14 + $0x60] sm:$0xf]
      %v6205 = vld [vmem:[%s14 + $0x64] sm:$0xf]
      %v6206 = vld [vmem:[%s14 + $0x68] sm:$0xf]
      %v6207 = vld [vmem:[%s14 + $0x6c] sm:$0xf]
      %v6208 = vld [vmem:[%s14 + $0x70] sm:$0xf]
      %v6209 = vld [vmem:[%s14 + $0x74] sm:$0xf]
      %v6210 = vld [vmem:[%s14 + $0x78] sm:$0xf]
      %v6211 = vld [vmem:[%s14 + $0x7c] sm:$0xf]
      %v6212 = vld [vmem:[%s15] sm:$0x1]
      %v6214 = vlaneseq
      %v6215 = vshrl.u32 %v6214, 7
      %v6216 = vsub.s32 0, %v6215
      %v6217 = vrot.slane %v6212, %v6216
      %v6251 = vunpack.c.l.b16 %v6180
      %v6252 = vunpack.c.l.b16 %v6181
      %v6253 = vunpack.c.l.b16 %v6182
      %v6254 = vunpack.c.l.b16 %v6183
      %v6255 = vunpack.c.l.b16 %v6184
      %v6256 = vunpack.c.l.b16 %v6185
      %v6257 = vunpack.c.l.b16 %v6186
      %v6258 = vunpack.c.l.b16 %v6187
      %v6259 = vunpack.c.l.b16 %v6188
      %v6260 = vunpack.c.l.b16 %v6189
      %v6261 = vunpack.c.l.b16 %v6190
      %v6262 = vunpack.c.l.b16 %v6191
      %v6263 = vunpack.c.l.b16 %v6192
      %v6264 = vunpack.c.l.b16 %v6193
      %v6265 = vunpack.c.l.b16 %v6194
      %v6266 = vunpack.c.l.b16 %v6195
      %v6267 = vunpack.c.l.b16 %v6196
      %v6268 = vunpack.c.l.b16 %v6197
      %v6269 = vunpack.c.l.b16 %v6198
      %v6270 = vunpack.c.l.b16 %v6199
      %v6271 = vunpack.c.l.b16 %v6200
      %v6272 = vunpack.c.l.b16 %v6201
      %v6273 = vunpack.c.l.b16 %v6202
      %v6274 = vunpack.c.l.b16 %v6203
      %v6275 = vunpack.c.l.b16 %v6204
      %v6276 = vunpack.c.l.b16 %v6205
      %v6277 = vunpack.c.l.b16 %v6206
      %v6278 = vunpack.c.l.b16 %v6207
      %v6279 = vunpack.c.l.b16 %v6208
      %v6280 = vunpack.c.l.b16 %v6209
      %v6281 = vunpack.c.l.b16 %v6210
      %v6282 = vunpack.c.l.b16 %v6211
      %v6283 = vpack.c.b16 %v6252, %v6251
      %v6284 = vpack.c.b16 %v6254, %v6253
      %v6285 = vpack.c.b16 %v6256, %v6255
      %v6286 = vpack.c.b16 %v6258, %v6257
      %v6287 = vpack.c.b16 %v6260, %v6259
      %v6288 = vpack.c.b16 %v6262, %v6261
      %v6289 = vpack.c.b16 %v6264, %v6263
      %v6290 = vpack.c.b16 %v6266, %v6265
      %v6291 = vpack.c.b16 %v6268, %v6267
      %v6292 = vpack.c.b16 %v6270, %v6269
      %v6293 = vpack.c.b16 %v6272, %v6271
      %v6294 = vpack.c.b16 %v6274, %v6273
      %v6295 = vpack.c.b16 %v6276, %v6275
      %v6296 = vpack.c.b16 %v6278, %v6277
      %v6297 = vpack.c.b16 %v6280, %v6279
      %v6298 = vpack.c.b16 %v6282, %v6281
      %6315 = vmatprep.subr.bf16.mxu0 0
      %6316 = vmatpush1.bf16.msra.mxu0 %v6283
      %6317 = vmatprep.subr.bf16.mxu0 0
      %6318 = vmatpush1.bf16.msra.mxu0 %v6284
      %6319 = vmatprep.subr.bf16.mxu0 0
      %6320 = vmatpush1.bf16.msra.mxu0 %v6285
      %6321 = vmatprep.subr.bf16.mxu0 0
      %6322 = vmatpush1.bf16.msra.mxu0 %v6286
      %6323 = vmatprep.subr.bf16.mxu0 0
      %6324 = vmatpush1.bf16.msra.mxu0 %v6287
      %6325 = vmatprep.subr.bf16.mxu0 0
      %6326 = vmatpush1.bf16.msra.mxu0 %v6288
      %6327 = vmatprep.subr.bf16.mxu0 0
      %6328 = vmatpush1.bf16.msra.mxu0 %v6289
      %6329 = vmatprep.subr.bf16.mxu0 0
      %6330 = vmatpush1.bf16.msra.mxu0 %v6290
      %6331 = vmatprep.subr.bf16.mxu0 0
      %6332 = vmatpush1.bf16.msra.mxu0 %v6291
      %6333 = vmatprep.subr.bf16.mxu0 0
      %6334 = vmatpush1.bf16.msra.mxu0 %v6292
      %6335 = vmatprep.subr.bf16.mxu0 0
      %6336 = vmatpush1.bf16.msra.mxu0 %v6293
      %6337 = vmatprep.subr.bf16.mxu0 0
      %6338 = vmatpush1.bf16.msra.mxu0 %v6294
      %6339 = vmatprep.subr.bf16.mxu0 0
      %6340 = vmatpush1.bf16.msra.mxu0 %v6295
      %6341 = vmatprep.subr.bf16.mxu0 0
      %6342 = vmatpush1.bf16.msra.mxu0 %v6296
      %6343 = vmatprep.subr.bf16.mxu0 0
      %6344 = vmatpush1.bf16.msra.mxu0 %v6297
      %6345 = vmatprep.subr.bf16.mxu0 0
      %6346 = vmatpush1.bf16.msra.mxu0 %v6298
      %6347 = vmatprep.mubr.bf16.mxu0 %v6149
      %6348 = vmatmul.mubr.bf16.gmra.mrb[0].mxu0 %v6148
      %v6349 = vpop.f32.mrb[0].mxu0
      %v6350 = vadd.f32 %v6217, %v6349
      %v6351 = vpop.f32.mrb[0].mxu0
      %v6352 = vpop.f32.mrb[0].mxu0
      %v6353 = vadd.f32 %v6217, %v6352
      %v6354 = vpop.f32.mrb[0].mxu0
      %6355 = vmatprep.mubr.bf16.mxu0 %v6151
      %6356 = vmatmul.mubr.bf16.gmra.mrb[0].mxu0 %v6150
      %v6357 = vpop.f32.mrb[0].mxu0
      %v6358 = vadd.f32 %v6217, %v6357
      %v6359 = vpop.f32.mrb[0].mxu0
      %v6360 = vpop.f32.mrb[0].mxu0
      %v6361 = vadd.f32 %v6217, %v6360
      %v6362 = vpop.f32.mrb[0].mxu0
      %6363 = vmatprep.mubr.bf16.mxu0 %v6153
      %6364 = vmatmul.mubr.bf16.gmra.mrb[0].mxu0 %v6152
      %v6365 = vpop.f32.mrb[0].mxu0
      %v6366 = vadd.f32 %v6217, %v6365
      %v6367 = vpop.f32.mrb[0].mxu0
      %v6368 = vpop.f32.mrb[0].mxu0
      %v6369 = vadd.f32 %v6217, %v6368
      %v6370 = vpop.f32.mrb[0].mxu0
      %6371 = vmatprep.mubr.bf16.mxu0 %v6155
      %6372 = vmatmul.mubr.bf16.gmra.mrb[0].mxu0 %v6154
      %v6373 = vpop.f32.mrb[0].mxu0
      %v6374 = vadd.f32 %v6217, %v6373
      %v6375 = vpop.f32.mrb[0].mxu0
      %v6376 = vpop.f32.mrb[0].mxu0
      %v6377 = vadd.f32 %v6217, %v6376
      %v6378 = vpop.f32.mrb[0].mxu0
      %6379 = vmatprep.mubr.bf16.mxu0 %v6157
      %6380 = vmatmul.mubr.bf16.gmra.mrb[0].mxu0 %v6156
      %v6381 = vpop.f32.mrb[0].mxu0
      %v6382 = vadd.f32 %v6217, %v6381
      %v6383 = vpop.f32.mrb[0].mxu0
      %v6384 = vpop.f32.mrb[0].mxu0
      %v6385 = vadd.f32 %v6217, %v6384
      %v6386 = vpop.f32.mrb[0].mxu0
      %6387 = vmatprep.mubr.bf16.mxu0 %v6159
      %6388 = vmatmul.mubr.bf16.gmra.mrb[0].mxu0 %v6158
      %v6389 = vpop.f32.mrb[0].mxu0
      %v6390 = vadd.f32 %v6217, %v6389
      %v6391 = vpop.f32.mrb[0].mxu0
      %v6392 = vpop.f32.mrb[0].mxu0
      %v6393 = vadd.f32 %v6217, %v6392
      %v6394 = vpop.f32.mrb[0].mxu0
      %6395 = vmatprep.mubr.bf16.mxu0 %v6161
      %6396 = vmatmul.mubr.bf16.gmra.mrb[0].mxu0 %v6160
      %v6397 = vpop.f32.mrb[0].mxu0
      %v6398 = vadd.f32 %v6217, %v6397
      %v6399 = vpop.f32.mrb[0].mxu0
      %v6400 = vpop.f32.mrb[0].mxu0
      %v6401 = vadd.f32 %v6217, %v6400
      %v6402 = vpop.f32.mrb[0].mxu0
      %6403 = vmatprep.mubr.bf16.mxu0 %v6163
      %6404 = vmatmul.mubr.bf16.gmra.mrb[0].mxu0 %v6162
      %v6405 = vpop.f32.mrb[0].mxu0
      %v6406 = vadd.f32 %v6217, %v6405
      %v6407 = vpop.f32.mrb[0].mxu0
      %v6408 = vpop.f32.mrb[0].mxu0
      %v6409 = vadd.f32 %v6217, %v6408
      %v6410 = vpop.f32.mrb[0].mxu0
      %6411 = vmatprep.mubr.bf16.mxu0 %v6165
      %6412 = vmatmul.mubr.bf16.gmra.mrb[0].mxu0 %v6164
      %v6413 = vpop.f32.mrb[0].mxu0
      %v6414 = vadd.f32 %v6217, %v6413
      %v6415 = vpop.f32.mrb[0].mxu0
      %v6416 = vpop.f32.mrb[0].mxu0
      %v6417 = vadd.f32 %v6217, %v6416
      %v6418 = vpop.f32.mrb[0].mxu0
      %6419 = vmatprep.mubr.bf16.mxu0 %v6167
      %6420 = vmatmul.mubr.bf16.gmra.mrb[0].mxu0 %v6166
      %v6421 = vpop.f32.mrb[0].mxu0
      %v6422 = vadd.f32 %v6217, %v6421
      %v6423 = vpop.f32.mrb[0].mxu0
      %v6424 = vpop.f32.mrb[0].mxu0
      %v6425 = vadd.f32 %v6217, %v6424
      %v6426 = vpop.f32.mrb[0].mxu0
      %6427 = vmatprep.mubr.bf16.mxu0 %v6169
      %6428 = vmatmul.mubr.bf16.gmra.mrb[0].mxu0 %v6168
      %v6429 = vpop.f32.mrb[0].mxu0
      %v6430 = vadd.f32 %v6217, %v6429
      %v6431 = vpop.f32.mrb[0].mxu0
      %v6432 = vpop.f32.mrb[0].mxu0
      %v6433 = vadd.f32 %v6217, %v6432
      %v6434 = vpop.f32.mrb[0].mxu0
      %6435 = vmatprep.mubr.bf16.mxu0 %v6171
      %6436 = vmatmul.mubr.bf16.gmra.mrb[0].mxu0 %v6170
      %v6437 = vpop.f32.mrb[0].mxu0
      %v6438 = vadd.f32 %v6217, %v6437
      %v6439 = vpop.f32.mrb[0].mxu0
      %v6440 = vpop.f32.mrb[0].mxu0
      %v6441 = vadd.f32 %v6217, %v6440
      %v6442 = vpop.f32.mrb[0].mxu0
      %6443 = vmatprep.mubr.bf16.mxu0 %v6173
      %6444 = vmatmul.mubr.bf16.gmra.mrb[0].mxu0 %v6172
      %v6445 = vpop.f32.mrb[0].mxu0
      %v6446 = vadd.f32 %v6217, %v6445
      %v6447 = vpop.f32.mrb[0].mxu0
      %v6448 = vpop.f32.mrb[0].mxu0
      %v6449 = vadd.f32 %v6217, %v6448
      %v6450 = vpop.f32.mrb[0].mxu0
      %6451 = vmatprep.mubr.bf16.mxu0 %v6175
      %6452 = vmatmul.mubr.bf16.gmra.mrb[0].mxu0 %v6174
      %v6453 = vpop.f32.mrb[0].mxu0
      %v6454 = vadd.f32 %v6217, %v6453
      %v6455 = vpop.f32.mrb[0].mxu0
      %v6456 = vpop.f32.mrb[0].mxu0
      %v6457 = vadd.f32 %v6217, %v6456
      %v6458 = vpop.f32.mrb[0].mxu0
      %6459 = vmatprep.mubr.bf16.mxu0 %v6177
      %6460 = vmatmul.mubr.bf16.gmra.mrb[0].mxu0 %v6176
      %v6461 = vpop.f32.mrb[0].mxu0
      %v6462 = vadd.f32 %v6217, %v6461
      %v6463 = vpop.f32.mrb[0].mxu0
      %v6464 = vpop.f32.mrb[0].mxu0
      %v6465 = vadd.f32 %v6217, %v6464
      %v6466 = vpop.f32.mrb[0].mxu0
      %6467 = vmatprep.mubr.bf16.mxu0 %v6179
      %6468 = vmatmul.mubr.bf16.gmra.mrb[0].mxu0 %v6178
      %v6469 = vpop.f32.mrb[0].mxu0
      %v6470 = vadd.f32 %v6217, %v6469
      %v6471 = vpop.f32.mrb[0].mxu0
      %v6472 = vpop.f32.mrb[0].mxu0
      %v6473 = vadd.f32 %v6217, %v6472
      %v6474 = vpop.f32.mrb[0].mxu0
      %6475 = vdwg.mxu0
      %v6476 = vpack.c.bf16 %v6353, %v6350
      %v6477 = vpack.c.bf16 %v6361, %v6358
      %v6478 = vpack.c.bf16 %v6369, %v6366
      %v6479 = vpack.c.bf16 %v6377, %v6374
      %v6480 = vpack.c.bf16 %v6385, %v6382
      %v6481 = vpack.c.bf16 %v6393, %v6390
      %v6482 = vpack.c.bf16 %v6401, %v6398
      %v6483 = vpack.c.bf16 %v6409, %v6406
      %v6484 = vpack.c.bf16 %v6417, %v6414
      %v6485 = vpack.c.bf16 %v6425, %v6422
      %v6486 = vpack.c.bf16 %v6433, %v6430
      %v6487 = vpack.c.bf16 %v6441, %v6438
      %v6488 = vpack.c.bf16 %v6449, %v6446
      %v6489 = vpack.c.bf16 %v6457, %v6454
      %v6490 = vpack.c.bf16 %v6465, %v6462
      %v6491 = vpack.c.bf16 %v6473, %v6470
      %v6492 = vmul.bf16 %v6476, 1056980736
      %v6493 = vmul.bf16 %v6477, 1056980736
      %v6494 = vmul.bf16 %v6478, 1056980736
      %v6495 = vmul.bf16 %v6479, 1056980736
      %v6496 = vmul.bf16 %v6480, 1056980736
      %v6497 = vmul.bf16 %v6481, 1056980736
      %v6498 = vmul.bf16 %v6482, 1056980736
      %v6499 = vmul.bf16 %v6483, 1056980736
      %v6500 = vmul.bf16 %v6484, 1056980736
      %v6501 = vmul.bf16 %v6485, 1056980736
      %v6502 = vmul.bf16 %v6486, 1056980736
      %v6503 = vmul.bf16 %v6487, 1056980736
      %v6504 = vmul.bf16 %v6488, 1056980736
      %v6505 = vmul.bf16 %v6489, 1056980736
      %v6506 = vmul.bf16 %v6490, 1056980736
      %v6507 = vmul.bf16 %v6491, 1056980736
      %v6508 = vtanh.bf16.pop %v6492
      %v6509 = vtanh.bf16.pop %v6493
      %v6510 = vtanh.bf16.pop %v6494
      %v6511 = vtanh.bf16.pop %v6495
      %v6512 = vtanh.bf16.pop %v6496
      %v6513 = vtanh.bf16.pop %v6497
      %v6514 = vtanh.bf16.pop %v6498
      %v6515 = vtanh.bf16.pop %v6499
      %v6516 = vtanh.bf16.pop %v6500
      %v6517 = vtanh.bf16.pop %v6501
      %v6518 = vtanh.bf16.pop %v6502
      %v6519 = vtanh.bf16.pop %v6503
      %v6520 = vtanh.bf16.pop %v6504
      %v6521 = vtanh.bf16.pop %v6505
      %v6522 = vtanh.bf16.pop %v6506
      %v6523 = vtanh.bf16.pop %v6507
      %v6524 = vmul.bf16 %v6508, 1056980736
      %v6525 = vmul.bf16 %v6509, 1056980736
      %v6526 = vmul.bf16 %v6510, 1056980736
      %v6527 = vmul.bf16 %v6511, 1056980736
      %v6528 = vmul.bf16 %v6512, 1056980736
      %v6529 = vmul.bf16 %v6513, 1056980736
      %v6530 = vmul.bf16 %v6514, 1056980736
      %v6531 = vmul.bf16 %v6515, 1056980736
      %v6532 = vmul.bf16 %v6516, 1056980736
      %v6533 = vmul.bf16 %v6517, 1056980736
      %v6534 = vmul.bf16 %v6518, 1056980736
      %v6535 = vmul.bf16 %v6519, 1056980736
      %v6536 = vmul.bf16 %v6520, 1056980736
      %v6537 = vmul.bf16 %v6521, 1056980736
      %v6538 = vmul.bf16 %v6522, 1056980736
      %v6539 = vmul.bf16 %v6523, 1056980736
      %v6540 = vadd.bf16 %v6524, 1056980736
      %v6541 = vadd.bf16 %v6525, 1056980736
      %v6542 = vadd.bf16 %v6526, 1056980736
      %v6543 = vadd.bf16 %v6527, 1056980736
      %v6544 = vadd.bf16 %v6528, 1056980736
      %v6545 = vadd.bf16 %v6529, 1056980736
      %v6546 = vadd.bf16 %v6530, 1056980736
      %v6547 = vadd.bf16 %v6531, 1056980736
      %v6548 = vadd.bf16 %v6532, 1056980736
      %v6549 = vadd.bf16 %v6533, 1056980736
      %v6550 = vadd.bf16 %v6534, 1056980736
      %v6551 = vadd.bf16 %v6535, 1056980736
      %v6552 = vadd.bf16 %v6536, 1056980736
      %v6553 = vadd.bf16 %v6537, 1056980736
      %v6554 = vadd.bf16 %v6538, 1056980736
      %v6555 = vadd.bf16 %v6539, 1056980736
      %v6556 = vmul.bf16 %v6476, %v6540
      %v6557 = vmul.bf16 %v6477, %v6541
      %v6558 = vmul.bf16 %v6478, %v6542
      %v6559 = vmul.bf16 %v6479, %v6543
      %v6560 = vmul.bf16 %v6480, %v6544
      %v6561 = vmul.bf16 %v6481, %v6545
      %v6562 = vmul.bf16 %v6482, %v6546
      %v6563 = vmul.bf16 %v6483, %v6547
      %v6564 = vmul.bf16 %v6484, %v6548
      %v6565 = vmul.bf16 %v6485, %v6549
      %v6566 = vmul.bf16 %v6486, %v6550
      %v6567 = vmul.bf16 %v6487, %v6551
      %v6568 = vmul.bf16 %v6488, %v6552
      %v6569 = vmul.bf16 %v6489, %v6553
      %v6570 = vmul.bf16 %v6490, %v6554
      %v6571 = vmul.bf16 %v6491, %v6555
      %v6572 = vld [vmem:[%s16] sm:$0xf]
      %v6573 = vld [vmem:[%s16 + $0x4] sm:$0xf]
      %v6574 = vld [vmem:[%s16 + $0x8] sm:$0xf]
      %v6575 = vld [vmem:[%s16 + $0xc] sm:$0xf]
      %v6576 = vld [vmem:[%s16 + $0x10] sm:$0xf]
      %v6577 = vld [vmem:[%s16 + $0x14] sm:$0xf]
      %v6578 = vld [vmem:[%s16 + $0x18] sm:$0xf]
      %v6579 = vld [vmem:[%s16 + $0x1c] sm:$0xf]
      %v6580 = vld [vmem:[%s16 + $0x20] sm:$0xf]
      %v6581 = vld [vmem:[%s16 + $0x24] sm:$0xf]
      %v6582 = vld [vmem:[%s16 + $0x28] sm:$0xf]
      %v6583 = vld [vmem:[%s16 + $0x2c] sm:$0xf]
      %v6584 = vld [vmem:[%s16 + $0x30] sm:$0xf]
      %v6585 = vld [vmem:[%s16 + $0x34] sm:$0xf]
      %v6586 = vld [vmem:[%s16 + $0x38] sm:$0xf]
      %v6587 = vld [vmem:[%s16 + $0x3c] sm:$0xf]
      %v6588 = vld [vmem:[%s17] sm:$0x1]
      %v6590 = vlaneseq
      %v6591 = vshrl.u32 %v6590, 7
      %v6592 = vsub.s32 0, %v6591
      %v6593 = vrot.slane %v6588, %v6592
      %v6611 = vunpack.c.l.b16 %v6572
      %v6612 = vunpack.c.l.b16 %v6573
      %v6613 = vunpack.c.l.b16 %v6574
      %v6614 = vunpack.c.l.b16 %v6575
      %v6615 = vunpack.c.l.b16 %v6576
      %v6616 = vunpack.c.l.b16 %v6577
      %v6617 = vunpack.c.l.b16 %v6578
      %v6618 = vunpack.c.l.b16 %v6579
      %v6619 = vunpack.c.l.b16 %v6580
      %v6620 = vunpack.c.l.b16 %v6581
      %v6621 = vunpack.c.l.b16 %v6582
      %v6622 = vunpack.c.l.b16 %v6583
      %v6623 = vunpack.c.l.b16 %v6584
      %v6624 = vunpack.c.l.b16 %v6585
      %v6625 = vunpack.c.l.b16 %v6586
      %v6626 = vunpack.c.l.b16 %v6587
      %v6627 = vpack.c.b16 %v6612, %v6611
      %v6628 = vpack.c.b16 %v6614, %v6613
      %v6629 = vpack.c.b16 %v6616, %v6615
      %v6630 = vpack.c.b16 %v6618, %v6617
      %v6631 = vpack.c.b16 %v6620, %v6619
      %v6632 = vpack.c.b16 %v6622, %v6621
      %v6633 = vpack.c.b16 %v6624, %v6623
      %v6634 = vpack.c.b16 %v6626, %v6625
      %6643 = vmatprep.subr.bf16.mxu0 0
      %6644 = vmatpush1.bf16.msra.mxu0 %v6627
      %6645 = vmatprep.subr.bf16.mxu0 0
      %6646 = vmatpush1.bf16.msra.mxu0 %v6628
      %6647 = vmatprep.subr.bf16.mxu0 0
      %6648 = vmatpush1.bf16.msra.mxu0 %v6629
      %6649 = vmatprep.subr.bf16.mxu0 0
      %6650 = vmatpush1.bf16.msra.mxu0 %v6630
      %6651 = vmatprep.subr.bf16.mxu0 0
      %6652 = vmatpush1.bf16.msra.mxu0 %v6631
      %6653 = vmatprep.subr.bf16.mxu0 0
      %6654 = vmatpush1.bf16.msra.mxu0 %v6632
      %6655 = vmatprep.subr.bf16.mxu0 0
      %6656 = vmatpush1.bf16.msra.mxu0 %v6633
      %6657 = vmatprep.subr.bf16.mxu0 0
      %6658 = vmatpush1.bf16.msra.mxu0 %v6634
      %6659 = vmatprep.subr.bf16.mxu0 0
      %6660 = vmatpush1.bf16.msra.mxu0 0
      %6661 = vmatprep.subr.bf16.mxu0 0
      %6662 = vmatpush1.bf16.msra.mxu0 0
      %6663 = vmatprep.subr.bf16.mxu0 0
      %6664 = vmatpush1.bf16.msra.mxu0 0
      %6665 = vmatprep.subr.bf16.mxu0 0
      %6666 = vmatpush1.bf16.msra.mxu0 0
      %6667 = vmatprep.subr.bf16.mxu0 0
      %6668 = vmatpush1.bf16.msra.mxu0 0
      %6669 = vmatprep.subr.bf16.mxu0 0
      %6670 = vmatpush1.bf16.msra.mxu0 0
      %6671 = vmatprep.subr.bf16.mxu0 0
      %6672 = vmatpush1.bf16.msra.mxu0 0
      %6673 = vmatprep.subr.bf16.mxu0 0
      %6674 = vmatpush1.bf16.msra.mxu0 0
      %6675 = vmatprep.mubr.bf16.mxu0 0
      %6676 = vmatmul.mubr.bf16.gmra.mrb[0].mxu0 %v6556
      %v6677 = vpop.f32.mrb[0].mxu0
      %v6678 = vadd.f32 %v6593, %v6677
      %v6679 = vpop.f32.mrb[0].mxu0
      %v6680 = vpop.f32.mrb[0].mxu0
      %v6681 = vadd.f32 %v6593, %v6680
      %v6682 = vpop.f32.mrb[0].mxu0
      %6683 = vmatprep.mubr.bf16.mxu0 0
      %6684 = vmatmul.mubr.bf16.gmra.mrb[0].mxu0 %v6557
      %v6685 = vpop.f32.mrb[0].mxu0
      %v6686 = vadd.f32 %v6593, %v6685
      %v6687 = vpop.f32.mrb[0].mxu0
      %v6688 = vpop.f32.mrb[0].mxu0
      %v6689 = vadd.f32 %v6593, %v6688
      %v6690 = vpop.f32.mrb[0].mxu0
      %6691 = vmatprep.mubr.bf16.mxu0 0
      %6692 = vmatmul.mubr.bf16.gmra.mrb[0].mxu0 %v6558
      %v6693 = vpop.f32.mrb[0].mxu0
      %v6694 = vadd.f32 %v6593, %v6693
      %v6695 = vpop.f32.mrb[0].mxu0
      %v6696 = vpop.f32.mrb[0].mxu0
      %v6697 = vadd.f32 %v6593, %v6696
      %v6698 = vpop.f32.mrb[0].mxu0
      %6699 = vmatprep.mubr.bf16.mxu0 0
      %6700 = vmatmul.mubr.bf16.gmra.mrb[0].mxu0 %v6559
      %v6701 = vpop.f32.mrb[0].mxu0
      %v6702 = vadd.f32 %v6593, %v6701
      %v6703 = vpop.f32.mrb[0].mxu0
      %v6704 = vpop.f32.mrb[0].mxu0
      %v6705 = vadd.f32 %v6593, %v6704
      %v6706 = vpop.f32.mrb[0].mxu0
      %6707 = vmatprep.mubr.bf16.mxu0 0
      %6708 = vmatmul.mubr.bf16.gmra.mrb[0].mxu0 %v6560
      %v6709 = vpop.f32.mrb[0].mxu0
      %v6710 = vadd.f32 %v6593, %v6709
      %v6711 = vpop.f32.mrb[0].mxu0
      %v6712 = vpop.f32.mrb[0].mxu0
      %v6713 = vadd.f32 %v6593, %v6712
      %v6714 = vpop.f32.mrb[0].mxu0
      %6715 = vmatprep.mubr.bf16.mxu0 0
      %6716 = vmatmul.mubr.bf16.gmra.mrb[0].mxu0 %v6561
      %v6717 = vpop.f32.mrb[0].mxu0
      %v6718 = vadd.f32 %v6593, %v6717
      %v6719 = vpop.f32.mrb[0].mxu0
      %v6720 = vpop.f32.mrb[0].mxu0
      %v6721 = vadd.f32 %v6593, %v6720
      %v6722 = vpop.f32.mrb[0].mxu0
      %6723 = vmatprep.mubr.bf16.mxu0 0
      %6724 = vmatmul.mubr.bf16.gmra.mrb[0].mxu0 %v6562
      %v6725 = vpop.f32.mrb[0].mxu0
      %v6726 = vadd.f32 %v6593, %v6725
      %v6727 = vpop.f32.mrb[0].mxu0
      %v6728 = vpop.f32.mrb[0].mxu0
      %v6729 = vadd.f32 %v6593, %v6728
      %v6730 = vpop.f32.mrb[0].mxu0
      %6731 = vmatprep.mubr.bf16.mxu0 0
      %6732 = vmatmul.mubr.bf16.gmra.mrb[0].mxu0 %v6563
      %v6733 = vpop.f32.mrb[0].mxu0
      %v6734 = vadd.f32 %v6593, %v6733
      %v6735 = vpop.f32.mrb[0].mxu0
      %v6736 = vpop.f32.mrb[0].mxu0
      %v6737 = vadd.f32 %v6593, %v6736
      %v6738 = vpop.f32.mrb[0].mxu0
      %6739 = vmatprep.mubr.bf16.mxu0 0
      %6740 = vmatmul.mubr.bf16.gmra.mrb[0].mxu0 %v6564
      %v6741 = vpop.f32.mrb[0].mxu0
      %v6742 = vadd.f32 %v6593, %v6741
      %v6743 = vpop.f32.mrb[0].mxu0
      %v6744 = vpop.f32.mrb[0].mxu0
      %v6745 = vadd.f32 %v6593, %v6744
      %v6746 = vpop.f32.mrb[0].mxu0
      %6747 = vmatprep.mubr.bf16.mxu0 0
      %6748 = vmatmul.mubr.bf16.gmra.mrb[0].mxu0 %v6565
      %v6749 = vpop.f32.mrb[0].mxu0
      %v6750 = vadd.f32 %v6593, %v6749
      %v6751 = vpop.f32.mrb[0].mxu0
      %v6752 = vpop.f32.mrb[0].mxu0
      %v6753 = vadd.f32 %v6593, %v6752
      %v6754 = vpop.f32.mrb[0].mxu0
      %6755 = vmatprep.mubr.bf16.mxu0 0
      %6756 = vmatmul.mubr.bf16.gmra.mrb[0].mxu0 %v6566
      %v6757 = vpop.f32.mrb[0].mxu0
      %v6758 = vadd.f32 %v6593, %v6757
      %v6759 = vpop.f32.mrb[0].mxu0
      %v6760 = vpop.f32.mrb[0].mxu0
      %v6761 = vadd.f32 %v6593, %v6760
      %v6762 = vpop.f32.mrb[0].mxu0
      %6763 = vmatprep.mubr.bf16.mxu0 0
      %6764 = vmatmul.mubr.bf16.gmra.mrb[0].mxu0 %v6567
      %v6765 = vpop.f32.mrb[0].mxu0
      %v6766 = vadd.f32 %v6593, %v6765
      %v6767 = vpop.f32.mrb[0].mxu0
      %v6768 = vpop.f32.mrb[0].mxu0
      %v6769 = vadd.f32 %v6593, %v6768
      %v6770 = vpop.f32.mrb[0].mxu0
      %6771 = vmatprep.mubr.bf16.mxu0 0
      %6772 = vmatmul.mubr.bf16.gmra.mrb[0].mxu0 %v6568
      %v6773 = vpop.f32.mrb[0].mxu0
      %v6774 = vadd.f32 %v6593, %v6773
      %v6775 = vpop.f32.mrb[0].mxu0
      %v6776 = vpop.f32.mrb[0].mxu0
      %v6777 = vadd.f32 %v6593, %v6776
      %v6778 = vpop.f32.mrb[0].mxu0
      %6779 = vmatprep.mubr.bf16.mxu0 0
      %6780 = vmatmul.mubr.bf16.gmra.mrb[0].mxu0 %v6569
      %v6781 = vpop.f32.mrb[0].mxu0
      %v6782 = vadd.f32 %v6593, %v6781
      %v6783 = vpop.f32.mrb[0].mxu0
      %v6784 = vpop.f32.mrb[0].mxu0
      %v6785 = vadd.f32 %v6593, %v6784
      %v6786 = vpop.f32.mrb[0].mxu0
      %6787 = vmatprep.mubr.bf16.mxu0 0
      %6788 = vmatmul.mubr.bf16.gmra.mrb[0].mxu0 %v6570
      %v6789 = vpop.f32.mrb[0].mxu0
      %v6790 = vadd.f32 %v6593, %v6789
      %v6791 = vpop.f32.mrb[0].mxu0
      %v6792 = vpop.f32.mrb[0].mxu0
      %v6793 = vadd.f32 %v6593, %v6792
      %v6794 = vpop.f32.mrb[0].mxu0
      %6795 = vmatprep.mubr.bf16.mxu0 0
      %6796 = vmatmul.mubr.bf16.gmra.mrb[0].mxu0 %v6571
      %v6797 = vpop.f32.mrb[0].mxu0
      %v6798 = vadd.f32 %v6593, %v6797
      %v6799 = vpop.f32.mrb[0].mxu0
      %v6800 = vpop.f32.mrb[0].mxu0
      %v6801 = vadd.f32 %v6593, %v6800
      %v6802 = vpop.f32.mrb[0].mxu0
      %6803 = vdwg.mxu0
      %v6804 = vpack.c.bf16 %v6681, %v6678
      %v6805 = vpack.c.bf16 %v6689, %v6686
      %v6806 = vpack.c.bf16 %v6697, %v6694
      %v6807 = vpack.c.bf16 %v6705, %v6702
      %v6808 = vpack.c.bf16 %v6713, %v6710
      %v6809 = vpack.c.bf16 %v6721, %v6718
      %v6810 = vpack.c.bf16 %v6729, %v6726
      %v6811 = vpack.c.bf16 %v6737, %v6734
      %v6812 = vpack.c.bf16 %v6745, %v6742
      %v6813 = vpack.c.bf16 %v6753, %v6750
      %v6814 = vpack.c.bf16 %v6761, %v6758
      %v6815 = vpack.c.bf16 %v6769, %v6766
      %v6816 = vpack.c.bf16 %v6777, %v6774
      %v6817 = vpack.c.bf16 %v6785, %v6782
      %v6818 = vpack.c.bf16 %v6793, %v6790
      %v6819 = vpack.c.bf16 %v6801, %v6798
      %v6836 = vunpack.c.l.b16 %v6804
      %v6837 = vunpack.c.h.b16 %v6804
      %v6838 = vunpack.c.l.b16 %v6805
      %v6839 = vunpack.c.h.b16 %v6805
      %v6840 = vunpack.c.l.b16 %v6806
      %v6841 = vunpack.c.h.b16 %v6806
      %v6842 = vunpack.c.l.b16 %v6807
      %v6843 = vunpack.c.h.b16 %v6807
      %v6844 = vunpack.c.l.b16 %v6808
      %v6845 = vunpack.c.h.b16 %v6808
      %v6846 = vunpack.c.l.b16 %v6809
      %v6847 = vunpack.c.h.b16 %v6809
      %v6848 = vunpack.c.l.b16 %v6810
      %v6849 = vunpack.c.h.b16 %v6810
      %v6850 = vunpack.c.l.b16 %v6811
      %v6851 = vunpack.c.h.b16 %v6811
      %v6852 = vunpack.c.l.b16 %v6812
      %v6853 = vunpack.c.h.b16 %v6812
      %v6854 = vunpack.c.l.b16 %v6813
      %v6855 = vunpack.c.h.b16 %v6813
      %v6856 = vunpack.c.l.b16 %v6814
      %v6857 = vunpack.c.h.b16 %v6814
      %v6858 = vunpack.c.l.b16 %v6815
      %v6859 = vunpack.c.h.b16 %v6815
      %v6860 = vunpack.c.l.b16 %v6816
      %v6861 = vunpack.c.h.b16 %v6816
      %v6862 = vunpack.c.l.b16 %v6817
      %v6863 = vunpack.c.h.b16 %v6817
      %v6864 = vunpack.c.l.b16 %v6818
      %v6865 = vunpack.c.h.b16 %v6818
      %v6866 = vunpack.c.l.b16 %v6819
      %v6867 = vunpack.c.h.b16 %v6819
      %v6868 = vpack.c.b16 %v6836, %v6836
      %v6869 = vpack.c.b16 %v6837, %v6837
      %v6870 = vpack.c.b16 %v6838, %v6838
      %v6871 = vpack.c.b16 %v6839, %v6839
      %v6872 = vpack.c.b16 %v6840, %v6840
      %v6873 = vpack.c.b16 %v6841, %v6841
      %v6874 = vpack.c.b16 %v6842, %v6842
      %v6875 = vpack.c.b16 %v6843, %v6843
      %v6876 = vpack.c.b16 %v6844, %v6844
      %v6877 = vpack.c.b16 %v6845, %v6845
      %v6878 = vpack.c.b16 %v6846, %v6846
      %v6879 = vpack.c.b16 %v6847, %v6847
      %v6880 = vpack.c.b16 %v6848, %v6848
      %v6881 = vpack.c.b16 %v6849, %v6849
      %v6882 = vpack.c.b16 %v6850, %v6850
      %v6883 = vpack.c.b16 %v6851, %v6851
      %v6884 = vpack.c.b16 %v6852, %v6852
      %v6885 = vpack.c.b16 %v6853, %v6853
      %v6886 = vpack.c.b16 %v6854, %v6854
      %v6887 = vpack.c.b16 %v6855, %v6855
      %v6888 = vpack.c.b16 %v6856, %v6856
      %v6889 = vpack.c.b16 %v6857, %v6857
      %v6890 = vpack.c.b16 %v6858, %v6858
      %v6891 = vpack.c.b16 %v6859, %v6859
      %v6892 = vpack.c.b16 %v6860, %v6860
      %v6893 = vpack.c.b16 %v6861, %v6861
      %v6894 = vpack.c.b16 %v6862, %v6862
      %v6895 = vpack.c.b16 %v6863, %v6863
      %v6896 = vpack.c.b16 %v6864, %v6864
      %v6897 = vpack.c.b16 %v6865, %v6865
      %v6898 = vpack.c.b16 %v6866, %v6866
      %v6899 = vpack.c.b16 %v6867, %v6867
      %6932 = vst [vmem:[%s599] sm:$0xf] %v6868
      %6933 = vst [vmem:[%s599 + $0x4] sm:$0xf] %v6869
      %6934 = vst [vmem:[%s599 + $0x8] sm:$0xf] %v6870
      %6935 = vst [vmem:[%s599 + $0xc] sm:$0xf] %v6871
      %6936 = vst [vmem:[%s599 + $0x10] sm:$0xf] %v6872
      %6937 = vst [vmem:[%s599 + $0x14] sm:$0xf] %v6873
      %6938 = vst [vmem:[%s599 + $0x18] sm:$0xf] %v6874
      %6939 = vst [vmem:[%s599 + $0x1c] sm:$0xf] %v6875
      %6940 = vst [vmem:[%s599 + $0x20] sm:$0xf] %v6876
      %6941 = vst [vmem:[%s599 + $0x24] sm:$0xf] %v6877
      %6942 = vst [vmem:[%s599 + $0x28] sm:$0xf] %v6878
      %6943 = vst [vmem:[%s599 + $0x2c] sm:$0xf] %v6879
      %6944 = vst [vmem:[%s599 + $0x30] sm:$0xf] %v6880
      %6945 = vst [vmem:[%s599 + $0x34] sm:$0xf] %v6881
      %6946 = vst [vmem:[%s599 + $0x38] sm:$0xf] %v6882
      %6947 = vst [vmem:[%s599 + $0x3c] sm:$0xf] %v6883
      %6948 = vst [vmem:[%s599 + $0x40] sm:$0xf] %v6884
      %6949 = vst [vmem:[%s599 + $0x44] sm:$0xf] %v6885
      %6950 = vst [vmem:[%s599 + $0x48] sm:$0xf] %v6886
      %6951 = vst [vmem:[%s599 + $0x4c] sm:$0xf] %v6887
      %6952 = vst [vmem:[%s599 + $0x50] sm:$0xf] %v6888
      %6953 = vst [vmem:[%s599 + $0x54] sm:$0xf] %v6889
      %6954 = vst [vmem:[%s599 + $0x58] sm:$0xf] %v6890
      %6955 = vst [vmem:[%s599 + $0x5c] sm:$0xf] %v6891
      %6956 = vst [vmem:[%s599 + $0x60] sm:$0xf] %v6892
      %6957 = vst [vmem:[%s599 + $0x64] sm:$0xf] %v6893
      %6958 = vst [vmem:[%s599 + $0x68] sm:$0xf] %v6894
      %6959 = vst [vmem:[%s599 + $0x6c] sm:$0xf] %v6895
      %6960 = vst [vmem:[%s599 + $0x70] sm:$0xf] %v6896
      %6961 = vst [vmem:[%s599 + $0x74] sm:$0xf] %v6897
      %6962 = vst [vmem:[%s599 + $0x78] sm:$0xf] %v6898
      %6963 = vst [vmem:[%s599 + $0x7c] sm:$0xf] %v6899
      %s6964 = smul.u32 32, %s29
      %p6965 = scmp.lt.s32.totalorder %s6964, 63
      %s6966 = scalar_select %p6965, %s6964, 63
      %s6967 = smul.addr %s6966, 4
      %s6968 = scalar_lea.vmem %s18, %s6967
      // Predicated region
      $region93: #{_forward_impl.1} parent=91 // pred_check
        %p6969 = pneg %p435
      $region94: #{_forward_impl.1} parent=91 // pred_check_branch
        %6971 = sbr.rel (%p6969) target = $region96
      $region95: #{_forward_impl.1} parent=91 // pred_region
        %s6972 = smul.u32 32, %s29
      $region96: #{_forward_impl.1} parent=91 // pred_fallthru
        _
    $region92: #{_forward_impl.1} parent=5 // pred_fallthru
      _
    %p6973 = scmp.le.s32.totalorder 2, %s24
    // Predicated region
    $region97: #{_forward_impl.1} parent=5 // pred_check
      %p6974 = pneg %p6973
    $region98: #{_forward_impl.1} parent=5 // pred_check_branch
      %6976 = sbr.rel (%p6974) target = $region100
    $region99: #{_forward_impl.1} parent=5 // pred_region
      %s6977 = ssub.s32 %s24, 2
      // Predicated region
      $region101: #{_forward_impl.1} parent=99 // pred_check
        %p6978 = pneg %p441
      $region102: #{_forward_impl.1} parent=99 // pred_check_branch
        %6980 = sbr.rel (%p6978) target = $region104
      $region103: #{_forward_impl.1} parent=99 // pred_region
        %s6981 = smul.u32 32, %s30
        %p6982 = scmp.lt.s32.totalorder %s6981, 63
        %s6983 = scalar_select %p6982, %s6981, 63
        %s6984 = smul.addr %s6983, 4
        %s6985 = scalar_lea.vmem %s18, %s6984
      $region104: #{_forward_impl.1} parent=99 // pred_fallthru
        _
    $region100: #{_forward_impl.1} parent=5 // pred_fallthru
      _
  $region6: #{_forward_impl.1} parent=0 // loop_footer
    %s28 = sadd.s32 1, %s24
  $region7: #{_forward_impl.1} parent=0 // loop_footer_branch
    %23 = sbr.rel target = $region3
  $region8: #{_forward_impl.1} parent=0 // loop_exit
    _

</llo_original>
